<compile_context>
chip_gen: v7x
topology: tpu7x:2x2x1
jax: 0.10.0
libtpu: 0.0.40
codegen_flags: <defaults>
</compile_context>

<pallas_src>
import numpy as np
import jax
import jax.numpy as jnp
from jax.experimental import pallas as pl
from jax.experimental.pallas import tpu as pltpu


# Same corner-offset order as the torch module.
OFFSETS = (
    (0.0, 0.0, 0.0), (0.0, 0.0, 1.0), (0.0, 1.0, 0.0), (0.0, 1.0, 1.0),
    (1.0, 0.0, 0.0), (1.0, 0.0, 1.0), (1.0, 1.0, 0.0), (1.0, 1.0, 1.0),
)


def _nextprime(n):
    def is_prime(k):
        if k < 2:
            return False
        if k % 2 == 0:
            return k == 2
        i = 3
        while i * i <= k:
            if k % i == 0:
                return False
            i += 2
        return True
    k = n + 1
    while not is_prime(k):
        k += 1
    return k


def make_hash_encoding_config(bbox=((-2.0, -2.0, -2.0), (2.0, 2.0, 2.0)),
                              n_levels=4, n_features_per_level=16, b=1.38,
                              log2_hashmap_size=10, base_resolution=8,
                              ps=(1, 19349663, 83492791)):
    """Mirrors HashEncoding.__init__ bookkeeping (small synthetic config)."""
    T = _nextprime(2 ** log2_hashmap_size)
    entries_num = [int(base_resolution * b ** i) for i in range(n_levels)]
    entries_cnt = [n ** 3 for n in entries_num]
    entries_size = [1.0 / (n - 1) for n in entries_num]
    start_hash = n_levels
    for i in range(n_levels):
        if entries_cnt[i] > T:
            start_hash = i
            break
    # In-kernel hash uses int32; products idx * ps[i] must stay below 2**31 to
    # reproduce torch's int64 XOR-hash exactly.
    assert max(entries_num) - 1 <= (2 ** 31 - 1) // max(ps), (
        "grid resolution too large for exact int32 hashing")
    # The in-kernel modulo uses floor(v * (1/T)) with a single +/-T correction.
    # That is exact iff the f32 quotient error (< v * 2^-23 / T <= 2^8 / T) is
    # < 1, i.e. T > 256.  Guard it explicitly so larger hash maps fail loudly.
    assert T > 2 ** 8, "T too small for the single-correction f32 modulo"
    # TODO(synk): the full default config (log2_hashmap_size=20, 16 levels) needs
    # int64 XOR-hash arithmetic and ~1GiB tables; neither maps cleanly onto the
    # 32-bit TPU VPU / VMEM, so a reduced-but-semantically-identical config is used.
    return dict(
        bounds=np.array(bbox, np.float32).reshape(2, 3),
        n_levels=n_levels, f=n_features_per_level, b=b, T=T,
        base_resolution=base_resolution,
        entries_num=np.array(entries_num, np.int64),
        entries_cnt=np.array(entries_cnt, np.int64),
        entries_size=np.array(entries_size, np.float32),
        start_hash=start_hash,
        ps=tuple(int(p) for p in ps),
        offsets=np.array(OFFSETS, np.float32),
    )


def init_hash_encoding_params(key, cfg):
    """separate_dense=True storage: concatenated dense table + per-level hash tables.
    Deterministic normal init (stand-in for nn.init.kaiming_normal_)."""
    sh, L, F, T = cfg["start_hash"], cfg["n_levels"], cfg["f"], cfg["T"]
    n_dense = int(np.sum(cfg["entries_cnt"][:sh]))
    H = L - sh
    k1, k2 = jax.random.split(key)
    std = 0.1
    dense = (std * jax.random.normal(k1, (n_dense, F))).astype(jnp.float32)
    hash_p = (std * jax.random.normal(k2, (H, T, F))).astype(jnp.float32)
    return dense, hash_p


def preferred_table_dtype():
    """bf16 tables / one-hot on v6e+ (native bf16 VPU+MXU); pure f32 elsewhere
    (v5e has no bf16 VALU, so bf16 compares/converts would cost extra VALU ops)."""
    try:
        kind = jax.devices()[0].device_kind.lower()
    except Exception:
        return jnp.float32
    if "v6" in kind or "v7" in kind:
        return jnp.bfloat16
    return jnp.float32


def pack_level_tables(cfg, dense, hash_p, dtype=jnp.float32):
    """Exploit sum_over_features=True: pre-reduce the feature axis and repack the
    parameters lane-dense as (L, R_PAD, 128).  Entry i of level l is stored at
    [l, i // 128, i % 128].

    Dense levels are additionally pre-folded over the z-neighbour pair
    (Tz[x,y,z] = T[x,y,z] + T[x,y,min(z+1, n-1)]): the reference forward applies
    no z weight, so both z corners of a dense level share the same weight and
    the kernel only needs the 4 (x,y) corners for them."""
    sh, L, F, T = cfg["start_hash"], cfg["n_levels"], cfg["f"], cfg["T"]
    r_pad = ((-(-T // 128)) + 7) // 8 * 8          # rows of 128, rounded to 8 sublanes
    t_pad = r_pad * 128
    table = jnp.zeros((L, t_pad), jnp.float32)
    off = 0
    for l in range(sh):
        cnt = int(cfg["entries_cnt"][l])
        nl = int(cfg["entries_num"][l])
        lvl = jnp.sum(dense[off:off + cnt], axis=-1).reshape(nl, nl, nl)  # [x, y, z]
        z_next = jnp.concatenate([lvl[:, :, 1:], lvl[:, :, -1:]], axis=-1)
        table = table.at[l, :cnt].set((lvl + z_next).reshape(cnt))
        off += cnt
    if L - sh > 0:
        table = table.at[sh:, :T].set(jnp.sum(hash_p, axis=-1))
    return table.reshape(L, r_pad, 128).astype(dtype)


def _round_rows(n_entries, r_pad):
    return min(int(r_pad), ((-(-int(n_entries) // 128)) + 7) // 8 * 8)


def _make_kernel(cfg, r_pad, compute_dtype):
    """Build the per-tile kernel with all per-level parameters baked as constants."""
    L = int(cfg["n_levels"])
    sh = int(cfg["start_hash"])
    T = int(cfg["T"])
    p0, p1, p2 = (int(p) for p in cfg["ps"])
    inv_t = np.float32(1.0 / T)
    sizes = [np.float32(s) for s in np.asarray(cfg["entries_size"], np.float32)]
    enums = [int(n) for n in np.asarray(cfg["entries_num"], np.int64)]
    cnts = [int(c) for c in np.asarray(cfg["entries_cnt"], np.int64)]
    # trace-time constants: per-level used row count (level loop is unrolled)
    rows = [_round_rows(cnts[l], r_pad) if l < sh else _round_rows(T, r_pad)
            for l in range(L)]
    cdt = compute_dtype

    def kernel(xyz_ref, table_ref, out_ref):
        xyz = xyz_ref[...]                           # (3, TN) normalized, points on lanes
        tn = xyz.shape[1]
        # include_input: the normalized xyz rows go straight into the output block.
        out_ref[0, 0:3, :] = xyz

        fx, fy, fz = xyz[0:1, :], xyz[1:2, :], xyz[2:3, :]
        iota_q = jax.lax.broadcasted_iota(jnp.int32, (128, tn), 0)
        zero_c = jnp.zeros((), cdt)
        one = jnp.float32(1.0)

        for l in range(L):                           # unrolled; per-level constants fold
            size = sizes[l]
            enum = enums[l]
            is_hash = l >= sh
            max_idx = np.int32(enum - 1)
            rl = rows[l]
            iota_r = jax.lax.broadcasted_iota(jnp.int32, (rl, tn), 0)

            # torch: flt_xyz = xyz / entries_size[l]
            flx = fx / size
            fly = fy / size
            flz = fz / size

            # torch: int_xyz = (flt + offset).long().clip(0, num - 1); hoisted per axis
            ix = (jnp.clip(flx.astype(jnp.int32), 0, max_idx),
                  jnp.clip((flx + 1.0).astype(jnp.int32), 0, max_idx))
            iy = (jnp.clip(fly.astype(jnp.int32), 0, max_idx),
                  jnp.clip((fly + 1.0).astype(jnp.int32), 0, max_idx))
            iz0 = jnp.clip(flz.astype(jnp.int32), 0, max_idx)

            # NB: the reference forward only multiplies the x and y weights
            # (mul_xyz[..., 0] * mul_xyz[..., 1]); reproduced verbatim.
            off_x = flx - ix[0].astype(jnp.float32)
            off_y = fly - iy[0].astype(jnp.float32)
            wx = (one - off_x, off_x)
            wy = (one - off_y, off_y)
            # Fold the bilinear weight into the lane one-hot (cast once per corner
            # pair to the compute dtype: bf16 on v6e/v7x, f32 on v5e).
            w_xy = {(a, b): (wx[a] * wy[b]).astype(cdt) for a in (0, 1) for b in (0, 1)}

            if is_hash:
                iz1 = jnp.clip((flz + 1.0).astype(jnp.int32), 0, max_idx)
                # hoist hash products: 2 per axis instead of per corner (8x)
                hx = tuple(v if p0 == 1 else v * np.int32(p0) for v in ix)
                hy = tuple(v * np.int32(p1) for v in iy)
                hz = (iz0 * np.int32(p2), iz1 * np.int32(p2))
                corners = [(int(a), int(b), int(c)) for (a, b, c) in OFFSETS]
            else:
                e2 = np.int32(enum * enum)
                dx = tuple(v * e2 for v in ix)
                dy = tuple(v * np.int32(enum) for v in iy)
                # z-neighbour pair is pre-folded into the table -> 4 corners only
                corners = [(0, 0, 0), (0, 1, 0), (1, 0, 0), (1, 1, 0)]

            tbl = table_ref[l, :rl, :]               # (rl, 128), pre-summed over F
            acc = jnp.zeros((rl, tn), jnp.float32)

            for (a, b, c) in corners:
                if is_hash:
                    v = hx[a] ^ hy[b] ^ hz[c]        # int32-exact XOR hash (config assert)
                    # exact v % T (0 <= v < 2**31, T > 256) without vector int division
                    q = jnp.floor(v.astype(jnp.float32) * inv_t).astype(jnp.int32)
                    idx = v - q * T
                    idx = jnp.where(idx < 0, idx + T, idx)
                    idx = jnp.where(idx >= T, idx - T, idx)
                else:
                    idx = dx[a] + dy[b] + iz0        # local dense index (z pre-folded)

                q_lane = jnp.bitwise_and(idx, 127)   # idx = 128 * r_row + q_lane
                r_row = jnp.right_shift(idx, 7)

                # Factored gather: weighted lane one-hot + one small MXU matmul
                # fetch w * tbl[r, q_lane[n]] for every row r; the row select
                # picks r_row[n].  The MXU output is already weighted.
                # TODO(synk): a true lane gather (jnp.take on the flat table) would
                # move this onto the idle XLU; keep the one-hot path until the
                # Mosaic lowering of jnp.take is verified to avoid select chains.
                onehot_q = jnp.where(iota_q == q_lane, w_xy[(a, b)], zero_c)  # (128, TN)
                cand = jnp.dot(tbl, onehot_q,
                               preferred_element_type=jnp.float32)            # (rl, TN)
                acc = acc + jnp.where(iota_r == r_row, cand, jnp.float32(0.0))

            # sum=True, sum_over_features=True (already folded into the table):
            # reduce the (tiny) row axis and store one lane-dense row per level.
            out_ref[0, 3 + l:4 + l, :] = jnp.sum(acc, axis=0, keepdims=True)

    return kernel


def hash_encoding_forward(xyz, table, cfg, block_points=None):
    bash = xyz.shape
    x = xyz.reshape(-1, bash[-1]).astype(jnp.float32)
    n = x.shape[0]
    bounds = jnp.asarray(cfg["bounds"])
    x_n = (x - bounds[0]) / (bounds[1] - bounds[0])          # glue: bbox normalization

    L = int(cfg["n_levels"])
    sh = int(cfg["start_hash"])
    T = int(cfg["T"])
    cnts = np.asarray(cfg["entries_cnt"], np.int64)
    r_pad = int(table.shape[1])
    out_rows = 3 + L

    if block_points is None:
        # Largest lane-aligned tile that still yields >= 8 grid steps
        # (>= 4 tiles per v7x TensorCore so both cores get a pipelined stream);
        # capped at 512 so the f32 one-hot stays within the register file on v5e.
        tn = 128
        for cand in (256, 512):
            if -(-n // cand) >= 8:
                tn = cand
    else:
        assert block_points % 128 == 0, "point tile must be lane-aligned"
        tn = int(block_points)

    n_tiles = -(-n // tn)
    if n_tiles > 1 and n_tiles % 2:
        n_tiles += 1                                         # even tile count for v7x's 2 TCs
    n_pad = n_tiles * tn

    xt = x_n.T                                               # (3, N): points on lanes
    if n_pad != n:
        xt = jnp.pad(xt, ((0, 0), (0, n_pad - n)))           # padded points are discarded

    kernel = _make_kernel(cfg, r_pad, table.dtype)

    flops_per_point = 0
    for l in range(L):
        if l < sh:
            nc, rl = 4, _round_rows(cnts[l], r_pad)
        else:
            nc, rl = 8, _round_rows(T, r_pad)
        flops_per_point += nc * (2 * rl * 128 + 3 * rl + 64)
    flops = int(n_pad * flops_per_point)
    bytes_accessed = int(3 * n_pad * 4
                         + L * r_pad * 128 * np.dtype(table.dtype).itemsize
                         + n_pad * out_rows * 4)

    out = pl.pallas_call(
        kernel,
        out_shape=jax.ShapeDtypeStruct((n_tiles, out_rows, tn), jnp.float32),
        grid=(n_tiles,),
        in_specs=[
            # xyz tile: lane-dense (TN multiple of 128), reused for all levels
            pl.BlockSpec((3, tn), lambda i: (0, i)),
            # all pre-summed level tables (a few tens of KiB), constant index
            # map -> DMA'd once and resident across every point tile
            pl.BlockSpec((L, r_pad, 128), lambda i: (0, 0, 0)),
        ],
        # lane-dense output block (xyz rows + one row per level), disjoint per tile
        out_specs=pl.BlockSpec((1, out_rows, tn), lambda i: (i, 0, 0)),
        compiler_params=pltpu.CompilerParams(
            # point tiles are independent -> shard across v7x's 2 TensorCores
            dimension_semantics=("parallel",),
            # no explicit vmem_limit_bytes: per-step footprint is well under 1 MiB
        ),
        cost_estimate=pl.CostEstimate(
            flops=flops, transcendentals=0, bytes_accessed=bytes_accessed),
    )(xt, table)

    # (n_tiles, 3+L, tn) -> (N, 3+L): columns are [x_n, y_n, z_n, level_0..L-1]
    out = out.transpose(0, 2, 1).reshape(n_pad, out_rows)[:n]
    return out.reshape(*bash[:-1], out_rows)


def reference_forward(xyz, dense, hash_p, cfg):
    """NumPy reference mirroring the torch forward (int64 index math, no folding)."""
    sh, L, F, T = cfg["start_hash"], cfg["n_levels"], cfg["f"], cfg["T"]
    H = L - sh
    ps = cfg["ps"]
    offsets = cfg["offsets"].astype(np.float32)
    entries_num = cfg["entries_num"].astype(np.int64)
    entries_size = cfg["entries_size"].astype(np.float32)
    entries_sum = np.cumsum(cfg["entries_cnt"].astype(np.int64))
    bounds = cfg["bounds"].astype(np.float32)

    bash = xyz.shape
    x = np.asarray(xyz, np.float32).reshape(-1, 3)
    N = x.shape[0]
    x = (x - bounds[0]) / (bounds[1] - bounds[0])
    ind_xyz = np.broadcast_to(x[None], (L, N, 3))
    flt_xyz = (ind_xyz / entries_size[:, None, None]).astype(np.float32)
    int_xyz = (flt_xyz[:, :, None] + offsets[None, None]).astype(np.int64)
    int_xyz = np.clip(int_xyz, 0, (entries_num - 1)[:, None, None, None])
    off_xyz = flt_xyz - int_xyz[:, :, 0].astype(np.float32)

    ind_dense = np.array(int_xyz[:sh, ..., 0] * entries_num[:sh, None, None] ** 2
                         + int_xyz[:sh, ..., 1] * entries_num[:sh, None, None]
                         + int_xyz[:sh, ..., 2])
    if sh > 1:
        ind_dense[1:] = ind_dense[1:] + entries_sum[:sh - 1][:, None, None]
    ind_hash = ((int_xyz[sh:, ..., 0] * ps[0])
                ^ (int_xyz[sh:, ..., 1] * ps[1])
                ^ (int_xyz[sh:, ..., 2] * ps[2])) % T

    dense = np.asarray(dense)
    hash_np = np.asarray(hash_p)
    val_dense = dense[ind_dense.reshape(-1)].reshape(sh, N, 8, F)
    val_hash = hash_np[np.arange(H)[:, None],
                       ind_hash.reshape(H, N * 8)].reshape(H, N, 8, F)
    val = np.concatenate([val_dense, val_hash], axis=0)

    mul_xyz = 1 - offsets[None, None] + (2 * offsets[None, None] - 1.0) * off_xyz[:, :, None]
    mul_xyz = mul_xyz[..., 0] * mul_xyz[..., 1]
    val = (mul_xyz[..., None] * val).sum(axis=-2)        # (L, N, F)
    val = val.transpose(1, 0, 2)                          # (N, L, F)
    val = val.sum(axis=-1)                                # (N, L)
    val = np.concatenate([x, val], axis=-1)               # include_input
    return val.reshape(*bash[:-1], val.shape[-1])


if __name__ == "__main__":
    cfg = make_hash_encoding_config()
    key = jax.random.PRNGKey(0)
    kp, kx = jax.random.split(key)

    dense, hash_p = init_hash_encoding_params(kp, cfg)
    tdt = preferred_table_dtype()                           # bf16 on v6e/v7x, f32 on v5e
    table = pack_level_tables(cfg, dense, hash_p, dtype=tdt)

    # points inside the bbox [-2, 2]^3; batch shape (2, 512) -> N = 1024
    # -> auto tile = 128 points -> 8 grid steps (4 per TensorCore on v7x)
    xyz = jax.random.uniform(kx, (2, 512, 3), jnp.float32, minval=-1.8, maxval=1.8)

    @jax.jit
    def fwd(pts, tbl):
        return hash_encoding_forward(pts, tbl, cfg)

    out = jax.block_until_ready(fwd(xyz, table))

    expected_dim = cfg["n_levels"] + 3                      # sum_over_features + include_input
    assert out.shape == (2, 512, expected_dim), out.shape

    ref = reference_forward(np.asarray(xyz), np.asarray(dense), np.asarray(hash_p), cfg)
    np.testing.assert_allclose(np.asarray(out), ref, rtol=3e-2, atol=3e-2)

    print("KERNEL_OK")
</pallas_src>

<mosaic_0001>
module attributes {stable_mosaic.version = 11 : i64} {
  func.func @kernel(%arg0: i32, %arg1: memref<3x128xf32, #tpu.memory_space<vmem>>, %arg2: memref<4x16x128xf32, #tpu.memory_space<vmem>>, %arg3: memref<1x7x128xf32, #tpu.memory_space<vmem>>) attributes {dimension_semantics = [#tpu.dimension_semantics<parallel>], iteration_bounds = array<i64: 8>, scalar_prefetch = 0 : i64, scratch_operands = 0 : i64, tpu.core_type = #tpu.core_type<tc>, window_params = [{transform_indices = @transform_0, window_bounds = array<i64: 3, 128>}, {pipeline_mode = #tpu.pipeline_mode<synchronous>, transform_indices = @transform_1, window_bounds = array<i64: 4, 16, 128>}, {transform_indices = @transform_2, window_bounds = array<i64: 1, 7, 128>}]} {
    %c0 = arith.constant 0 : index
    %c0_0 = arith.constant 0 : index
    %0 = vector.load %arg1[%c0, %c0_0] : memref<3x128xf32, #tpu.memory_space<vmem>>, vector<3x128xf32>
    %c0_1 = arith.constant 0 : index
    %c0_2 = arith.constant 0 : index
    %c0_3 = arith.constant 0 : index
    %1 = vector.load %arg3[%c0_1, %c0_2, %c0_3] : memref<1x7x128xf32, #tpu.memory_space<vmem>>, vector<1x3x128xf32>
    %2 = vector.shape_cast %1 : vector<1x3x128xf32> to vector<3x128xf32>
    %3 = vector.shape_cast %0 : vector<3x128xf32> to vector<1x3x128xf32>
    tpu.vector_store %arg3[%c0_1, %c0_2, %c0_3], %3 {strides = array<i32>} : memref<1x7x128xf32, #tpu.memory_space<vmem>>, vector<1x3x128xf32>,
    %4 = vector.extract_strided_slice %0 {offsets = [0, 0], sizes = [1, 128], strides = [1, 1]} : vector<3x128xf32> to vector<1x128xf32>
    %5 = vector.extract_strided_slice %0 {offsets = [1, 0], sizes = [1, 128], strides = [1, 1]} : vector<3x128xf32> to vector<1x128xf32>
    %6 = vector.extract_strided_slice %0 {offsets = [2, 0], sizes = [1, 128], strides = [1, 1]} : vector<3x128xf32> to vector<1x128xf32>
    %7 = tpu.iota {dimensions = array<i32: 0>} : vector<128x128xi32>
    %8 = tpu.iota {dimensions = array<i32: 0>} : vector<8x128xi32>
    %cst = arith.constant 0.142857149 : f32
    %9 = vector.broadcast %cst : f32 to vector<1x128xf32>
    %10 = arith.divf %4, %9 : vector<1x128xf32>
    %cst_4 = arith.constant 0.142857149 : f32
    %11 = vector.broadcast %cst_4 : f32 to vector<1x128xf32>
    %12 = arith.divf %5, %11 : vector<1x128xf32>
    %cst_5 = arith.constant 0.142857149 : f32
    %13 = vector.broadcast %cst_5 : f32 to vector<1x128xf32>
    %14 = arith.divf %6, %13 : vector<1x128xf32>
    %15 = arith.fptosi %10 : vector<1x128xf32> to vector<1x128xi32>
    %c0_i32 = arith.constant 0 : i32
    %c7_i32 = arith.constant 7 : i32
    %16 = vector.broadcast %c0_i32 : i32 to vector<1x128xi32>
    %17 = arith.maxsi %16, %15 : vector<1x128xi32>
    %18 = vector.broadcast %c7_i32 : i32 to vector<1x128xi32>
    %19 = arith.minsi %18, %17 : vector<1x128xi32>
    %cst_6 = arith.constant 1.000000e+00 : f32
    %20 = vector.broadcast %cst_6 : f32 to vector<1x128xf32>
    %21 = arith.addf %10, %20 : vector<1x128xf32>
    %22 = arith.fptosi %21 : vector<1x128xf32> to vector<1x128xi32>
    %c0_i32_7 = arith.constant 0 : i32
    %c7_i32_8 = arith.constant 7 : i32
    %23 = vector.broadcast %c0_i32_7 : i32 to vector<1x128xi32>
    %24 = arith.maxsi %23, %22 : vector<1x128xi32>
    %25 = vector.broadcast %c7_i32_8 : i32 to vector<1x128xi32>
    %26 = arith.minsi %25, %24 : vector<1x128xi32>
    %27 = arith.fptosi %12 : vector<1x128xf32> to vector<1x128xi32>
    %c0_i32_9 = arith.constant 0 : i32
    %c7_i32_10 = arith.constant 7 : i32
    %28 = vector.broadcast %c0_i32_9 : i32 to vector<1x128xi32>
    %29 = arith.maxsi %28, %27 : vector<1x128xi32>
    %30 = vector.broadcast %c7_i32_10 : i32 to vector<1x128xi32>
    %31 = arith.minsi %30, %29 : vector<1x128xi32>
    %cst_11 = arith.constant 1.000000e+00 : f32
    %32 = vector.broadcast %cst_11 : f32 to vector<1x128xf32>
    %33 = arith.addf %12, %32 : vector<1x128xf32>
    %34 = arith.fptosi %33 : vector<1x128xf32> to vector<1x128xi32>
    %c0_i32_12 = arith.constant 0 : i32
    %c7_i32_13 = arith.constant 7 : i32
    %35 = vector.broadcast %c0_i32_12 : i32 to vector<1x128xi32>
    %36 = arith.maxsi %35, %34 : vector<1x128xi32>
    %37 = vector.broadcast %c7_i32_13 : i32 to vector<1x128xi32>
    %38 = arith.minsi %37, %36 : vector<1x128xi32>
    %39 = arith.fptosi %14 : vector<1x128xf32> to vector<1x128xi32>
    %c0_i32_14 = arith.constant 0 : i32
    %c7_i32_15 = arith.constant 7 : i32
    %40 = vector.broadcast %c0_i32_14 : i32 to vector<1x128xi32>
    %41 = arith.maxsi %40, %39 : vector<1x128xi32>
    %42 = vector.broadcast %c7_i32_15 : i32 to vector<1x128xi32>
    %43 = arith.minsi %42, %41 : vector<1x128xi32>
    %44 = arith.sitofp %19 : vector<1x128xi32> to vector<1x128xf32>
    %45 = arith.subf %10, %44 : vector<1x128xf32>
    %46 = arith.sitofp %31 : vector<1x128xi32> to vector<1x128xf32>
    %47 = arith.subf %12, %46 : vector<1x128xf32>
    %cst_16 = arith.constant 1.000000e+00 : f32
    %48 = vector.broadcast %cst_16 : f32 to vector<1x128xf32>
    %49 = arith.subf %48, %45 : vector<1x128xf32>
    %cst_17 = arith.constant 1.000000e+00 : f32
    %50 = vector.broadcast %cst_17 : f32 to vector<1x128xf32>
    %51 = arith.subf %50, %47 : vector<1x128xf32>
    %52 = arith.mulf %49, %51 : vector<1x128xf32>
    %53 = arith.mulf %49, %47 : vector<1x128xf32>
    %54 = arith.mulf %45, %51 : vector<1x128xf32>
    %55 = arith.mulf %45, %47 : vector<1x128xf32>
    %c64_i32 = arith.constant 64 : i32
    %56 = vector.broadcast %c64_i32 : i32 to vector<1x128xi32>
    %57 = arith.muli %19, %56 : vector<1x128xi32>
    %c64_i32_18 = arith.constant 64 : i32
    %58 = vector.broadcast %c64_i32_18 : i32 to vector<1x128xi32>
    %59 = arith.muli %26, %58 : vector<1x128xi32>
    %c8_i32 = arith.constant 8 : i32
    %60 = vector.broadcast %c8_i32 : i32 to vector<1x128xi32>
    %61 = arith.muli %31, %60 : vector<1x128xi32>
    %c8_i32_19 = arith.constant 8 : i32
    %62 = vector.broadcast %c8_i32_19 : i32 to vector<1x128xi32>
    %63 = arith.muli %38, %62 : vector<1x128xi32>
    %c0_20 = arith.constant 0 : index
    %c0_21 = arith.constant 0 : index
    %c0_22 = arith.constant 0 : index
    %64 = vector.load %arg2[%c0_20, %c0_21, %c0_22] : memref<4x16x128xf32, #tpu.memory_space<vmem>>, vector<1x8x128xf32>
    %65 = vector.shape_cast %64 : vector<1x8x128xf32> to vector<8x128xf32>
    %cst_23 = arith.constant 0.000000e+00 : f32
    %66 = vector.broadcast %cst_23 : f32 to vector<8x128xf32>
    %67 = arith.addi %57, %61 : vector<1x128xi32>
    %68 = arith.addi %67, %43 : vector<1x128xi32>
    %c127_i32 = arith.constant 127 : i32
    %69 = vector.broadcast %c127_i32 : i32 to vector<1x128xi32>
    %70 = arith.andi %68, %69 : vector<1x128xi32>
    %c7_i32_24 = arith.constant 7 : i32
    %71 = vector.broadcast %c7_i32_24 : i32 to vector<1x128xi32>
    %72 = arith.shrsi %68, %71 : vector<1x128xi32>
    %73 = vector.broadcast %70 : vector<1x128xi32> to vector<128x128xi32>
    %74 = arith.cmpi eq, %7, %73 : vector<128x128xi32>
    %cst_25 = arith.constant 0.000000e+00 : f32
    %75 = vector.shape_cast %52 : vector<1x128xf32> to vector<1x128xf32>
    %76 = vector.broadcast %75 : vector<1x128xf32> to vector<128x128xf32>
    %77 = vector.broadcast %cst_25 : f32 to vector<128x128xf32>
    %78 = arith.select %74, %76, %77 : vector<128x128xi1>, vector<128x128xf32>
    %cst_26 = arith.constant dense<0.000000e+00> : vector<8x128xf32>
    %79 = tpu.matmul %65, %78, %cst_26 {dimension_numbers = #tpu.dot_dimension_numbers<[1], [0], [0], [1], [0, 0, 1, 1], [], []>} : vector<8x128xf32>, vector<128x128xf32>, vector<8x128xf32> -> vector<8x128xf32>
    %80 = vector.broadcast %72 : vector<1x128xi32> to vector<8x128xi32>
    %81 = arith.cmpi eq, %8, %80 : vector<8x128xi32>
    %cst_27 = arith.constant 0.000000e+00 : f32
    %82 = vector.broadcast %cst_27 : f32 to vector<8x128xf32>
    %83 = arith.select %81, %79, %82 : vector<8x128xi1>, vector<8x128xf32>
    %84 = arith.addf %66, %83 : vector<8x128xf32>
    %85 = arith.addi %57, %63 : vector<1x128xi32>
    %86 = arith.addi %85, %43 : vector<1x128xi32>
    %c127_i32_28 = arith.constant 127 : i32
    %87 = vector.broadcast %c127_i32_28 : i32 to vector<1x128xi32>
    %88 = arith.andi %86, %87 : vector<1x128xi32>
    %c7_i32_29 = arith.constant 7 : i32
    %89 = vector.broadcast %c7_i32_29 : i32 to vector<1x128xi32>
    %90 = arith.shrsi %86, %89 : vector<1x128xi32>
    %91 = vector.broadcast %88 : vector<1x128xi32> to vector<128x128xi32>
    %92 = arith.cmpi eq, %7, %91 : vector<128x128xi32>
    %cst_30 = arith.constant 0.000000e+00 : f32
    %93 = vector.shape_cast %53 : vector<1x128xf32> to vector<1x128xf32>
    %94 = vector.broadcast %93 : vector<1x128xf32> to vector<128x128xf32>
    %95 = vector.broadcast %cst_30 : f32 to vector<128x128xf32>
    %96 = arith.select %92, %94, %95 : vector<128x128xi1>, vector<128x128xf32>
    %cst_31 = arith.constant dense<0.000000e+00> : vector<8x128xf32>
    %97 = tpu.matmul %65, %96, %cst_31 {dimension_numbers = #tpu.dot_dimension_numbers<[1], [0], [0], [1], [0, 0, 1, 1], [], []>} : vector<8x128xf32>, vector<128x128xf32>, vector<8x128xf32> -> vector<8x128xf32>
    %98 = vector.broadcast %90 : vector<1x128xi32> to vector<8x128xi32>
    %99 = arith.cmpi eq, %8, %98 : vector<8x128xi32>
    %cst_32 = arith.constant 0.000000e+00 : f32
    %100 = vector.broadcast %cst_32 : f32 to vector<8x128xf32>
    %101 = arith.select %99, %97, %100 : vector<8x128xi1>, vector<8x128xf32>
    %102 = arith.addf %84, %101 : vector<8x128xf32>
    %103 = arith.addi %59, %61 : vector<1x128xi32>
    %104 = arith.addi %103, %43 : vector<1x128xi32>
    %c127_i32_33 = arith.constant 127 : i32
    %105 = vector.broadcast %c127_i32_33 : i32 to vector<1x128xi32>
    %106 = arith.andi %104, %105 : vector<1x128xi32>
    %c7_i32_34 = arith.constant 7 : i32
    %107 = vector.broadcast %c7_i32_34 : i32 to vector<1x128xi32>
    %108 = arith.shrsi %104, %107 : vector<1x128xi32>
    %109 = vector.broadcast %106 : vector<1x128xi32> to vector<128x128xi32>
    %110 = arith.cmpi eq, %7, %109 : vector<128x128xi32>
    %cst_35 = arith.constant 0.000000e+00 : f32
    %111 = vector.shape_cast %54 : vector<1x128xf32> to vector<1x128xf32>
    %112 = vector.broadcast %111 : vector<1x128xf32> to vector<128x128xf32>
    %113 = vector.broadcast %cst_35 : f32 to vector<128x128xf32>
    %114 = arith.select %110, %112, %113 : vector<128x128xi1>, vector<128x128xf32>
    %cst_36 = arith.constant dense<0.000000e+00> : vector<8x128xf32>
    %115 = tpu.matmul %65, %114, %cst_36 {dimension_numbers = #tpu.dot_dimension_numbers<[1], [0], [0], [1], [0, 0, 1, 1], [], []>} : vector<8x128xf32>, vector<128x128xf32>, vector<8x128xf32> -> vector<8x128xf32>
    %116 = vector.broadcast %108 : vector<1x128xi32> to vector<8x128xi32>
    %117 = arith.cmpi eq, %8, %116 : vector<8x128xi32>
    %cst_37 = arith.constant 0.000000e+00 : f32
    %118 = vector.broadcast %cst_37 : f32 to vector<8x128xf32>
    %119 = arith.select %117, %115, %118 : vector<8x128xi1>, vector<8x128xf32>
    %120 = arith.addf %102, %119 : vector<8x128xf32>
    %121 = arith.addi %59, %63 : vector<1x128xi32>
    %122 = arith.addi %121, %43 : vector<1x128xi32>
    %c127_i32_38 = arith.constant 127 : i32
    %123 = vector.broadcast %c127_i32_38 : i32 to vector<1x128xi32>
    %124 = arith.andi %122, %123 : vector<1x128xi32>
    %c7_i32_39 = arith.constant 7 : i32
    %125 = vector.broadcast %c7_i32_39 : i32 to vector<1x128xi32>
    %126 = arith.shrsi %122, %125 : vector<1x128xi32>
    %127 = vector.broadcast %124 : vector<1x128xi32> to vector<128x128xi32>
    %128 = arith.cmpi eq, %7, %127 : vector<128x128xi32>
    %cst_40 = arith.constant 0.000000e+00 : f32
    %129 = vector.shape_cast %55 : vector<1x128xf32> to vector<1x128xf32>
    %130 = vector.broadcast %129 : vector<1x128xf32> to vector<128x128xf32>
    %131 = vector.broadcast %cst_40 : f32 to vector<128x128xf32>
    %132 = arith.select %128, %130, %131 : vector<128x128xi1>, vector<128x128xf32>
    %cst_41 = arith.constant dense<0.000000e+00> : vector<8x128xf32>
    %133 = tpu.matmul %65, %132, %cst_41 {dimension_numbers = #tpu.dot_dimension_numbers<[1], [0], [0], [1], [0, 0, 1, 1], [], []>} : vector<8x128xf32>, vector<128x128xf32>, vector<8x128xf32> -> vector<8x128xf32>
    %134 = vector.broadcast %126 : vector<1x128xi32> to vector<8x128xi32>
    %135 = arith.cmpi eq, %8, %134 : vector<8x128xi32>
    %cst_42 = arith.constant 0.000000e+00 : f32
    %136 = vector.broadcast %cst_42 : f32 to vector<8x128xf32>
    %137 = arith.select %135, %133, %136 : vector<8x128xi1>, vector<8x128xf32>
    %138 = arith.addf %120, %137 : vector<8x128xf32>
    %cst_43 = arith.constant dense<0.000000e+00> : vector<128xf32>
    %139 = vector.multi_reduction <add>, %138, %cst_43 [0] : vector<8x128xf32> to vector<128xf32>
    %140 = vector.shape_cast %139 : vector<128xf32> to vector<1x128xf32>
    %c0_44 = arith.constant 0 : index
    %c3 = arith.constant 3 : index
    %c0_45 = arith.constant 0 : index
    %141 = vector.load %arg3[%c0_44, %c3, %c0_45] : memref<1x7x128xf32, #tpu.memory_space<vmem>>, vector<1x1x128xf32>
    %142 = vector.shape_cast %141 : vector<1x1x128xf32> to vector<1x128xf32>
    %143 = vector.shape_cast %140 : vector<1x128xf32> to vector<1x1x128xf32>
    tpu.vector_store %arg3[%c0_44, %c3, %c0_45], %143 {strides = array<i32>} : memref<1x7x128xf32, #tpu.memory_space<vmem>>, vector<1x1x128xf32>,
    %144 = tpu.iota {dimensions = array<i32: 0>} : vector<16x128xi32>
    %cst_46 = arith.constant 1.000000e-01 : f32
    %145 = vector.broadcast %cst_46 : f32 to vector<1x128xf32>
    %146 = arith.divf %4, %145 : vector<1x128xf32>
    %cst_47 = arith.constant 1.000000e-01 : f32
    %147 = vector.broadcast %cst_47 : f32 to vector<1x128xf32>
    %148 = arith.divf %5, %147 : vector<1x128xf32>
    %cst_48 = arith.constant 1.000000e-01 : f32
    %149 = vector.broadcast %cst_48 : f32 to vector<1x128xf32>
    %150 = arith.divf %6, %149 : vector<1x128xf32>
    %151 = arith.fptosi %146 : vector<1x128xf32> to vector<1x128xi32>
    %c0_i32_49 = arith.constant 0 : i32
    %c10_i32 = arith.constant 10 : i32
    %152 = vector.broadcast %c0_i32_49 : i32 to vector<1x128xi32>
    %153 = arith.maxsi %152, %151 : vector<1x128xi32>
    %154 = vector.broadcast %c10_i32 : i32 to vector<1x128xi32>
    %155 = arith.minsi %154, %153 : vector<1x128xi32>
    %cst_50 = arith.constant 1.000000e+00 : f32
    %156 = vector.broadcast %cst_50 : f32 to vector<1x128xf32>
    %157 = arith.addf %146, %156 : vector<1x128xf32>
    %158 = arith.fptosi %157 : vector<1x128xf32> to vector<1x128xi32>
    %c0_i32_51 = arith.constant 0 : i32
    %c10_i32_52 = arith.constant 10 : i32
    %159 = vector.broadcast %c0_i32_51 : i32 to vector<1x128xi32>
    %160 = arith.maxsi %159, %158 : vector<1x128xi32>
    %161 = vector.broadcast %c10_i32_52 : i32 to vector<1x128xi32>
    %162 = arith.minsi %161, %160 : vector<1x128xi32>
    %163 = arith.fptosi %148 : vector<1x128xf32> to vector<1x128xi32>
    %c0_i32_53 = arith.constant 0 : i32
    %c10_i32_54 = arith.constant 10 : i32
    %164 = vector.broadcast %c0_i32_53 : i32 to vector<1x128xi32>
    %165 = arith.maxsi %164, %163 : vector<1x128xi32>
    %166 = vector.broadcast %c10_i32_54 : i32 to vector<1x128xi32>
    %167 = arith.minsi %166, %165 : vector<1x128xi32>
    %cst_55 = arith.constant 1.000000e+00 : f32
    %168 = vector.broadcast %cst_55 : f32 to vector<1x128xf32>
    %169 = arith.addf %148, %168 : vector<1x128xf32>
    %170 = arith.fptosi %169 : vector<1x128xf32> to vector<1x128xi32>
    %c0_i32_56 = arith.constant 0 : i32
    %c10_i32_57 = arith.constant 10 : i32
    %171 = vector.broadcast %c0_i32_56 : i32 to vector<1x128xi32>
    %172 = arith.maxsi %171, %170 : vector<1x128xi32>
    %173 = vector.broadcast %c10_i32_57 : i32 to vector<1x128xi32>
    %174 = arith.minsi %173, %172 : vector<1x128xi32>
    %175 = arith.fptosi %150 : vector<1x128xf32> to vector<1x128xi32>
    %c0_i32_58 = arith.constant 0 : i32
    %c10_i32_59 = arith.constant 10 : i32
    %176 = vector.broadcast %c0_i32_58 : i32 to vector<1x128xi32>
    %177 = arith.maxsi %176, %175 : vector<1x128xi32>
    %178 = vector.broadcast %c10_i32_59 : i32 to vector<1x128xi32>
    %179 = arith.minsi %178, %177 : vector<1x128xi32>
    %180 = arith.sitofp %155 : vector<1x128xi32> to vector<1x128xf32>
    %181 = arith.subf %146, %180 : vector<1x128xf32>
    %182 = arith.sitofp %167 : vector<1x128xi32> to vector<1x128xf32>
    %183 = arith.subf %148, %182 : vector<1x128xf32>
    %cst_60 = arith.constant 1.000000e+00 : f32
    %184 = vector.broadcast %cst_60 : f32 to vector<1x128xf32>
    %185 = arith.subf %184, %181 : vector<1x128xf32>
    %cst_61 = arith.constant 1.000000e+00 : f32
    %186 = vector.broadcast %cst_61 : f32 to vector<1x128xf32>
    %187 = arith.subf %186, %183 : vector<1x128xf32>
    %188 = arith.mulf %185, %187 : vector<1x128xf32>
    %189 = arith.mulf %185, %183 : vector<1x128xf32>
    %190 = arith.mulf %181, %187 : vector<1x128xf32>
    %191 = arith.mulf %181, %183 : vector<1x128xf32>
    %cst_62 = arith.constant 1.000000e+00 : f32
    %192 = vector.broadcast %cst_62 : f32 to vector<1x128xf32>
    %193 = arith.addf %150, %192 : vector<1x128xf32>
    %194 = arith.fptosi %193 : vector<1x128xf32> to vector<1x128xi32>
    %c0_i32_63 = arith.constant 0 : i32
    %c10_i32_64 = arith.constant 10 : i32
    %195 = vector.broadcast %c0_i32_63 : i32 to vector<1x128xi32>
    %196 = arith.maxsi %195, %194 : vector<1x128xi32>
    %197 = vector.broadcast %c10_i32_64 : i32 to vector<1x128xi32>
    %198 = arith.minsi %197, %196 : vector<1x128xi32>
    %c19349663_i32 = arith.constant 19349663 : i32
    %199 = vector.broadcast %c19349663_i32 : i32 to vector<1x128xi32>
    %200 = arith.muli %167, %199 : vector<1x128xi32>
    %c19349663_i32_65 = arith.constant 19349663 : i32
    %201 = vector.broadcast %c19349663_i32_65 : i32 to vector<1x128xi32>
    %202 = arith.muli %174, %201 : vector<1x128xi32>
    %c83492791_i32 = arith.constant 83492791 : i32
    %203 = vector.broadcast %c83492791_i32 : i32 to vector<1x128xi32>
    %204 = arith.muli %179, %203 : vector<1x128xi32>
    %c83492791_i32_66 = arith.constant 83492791 : i32
    %205 = vector.broadcast %c83492791_i32_66 : i32 to vector<1x128xi32>
    %206 = arith.muli %198, %205 : vector<1x128xi32>
    %c1 = arith.constant 1 : index
    %c0_67 = arith.constant 0 : index
    %c0_68 = arith.constant 0 : index
    %207 = vector.load %arg2[%c1, %c0_67, %c0_68] : memref<4x16x128xf32, #tpu.memory_space<vmem>>, vector<1x16x128xf32>
    %208 = vector.shape_cast %207 : vector<1x16x128xf32> to vector<16x128xf32>
    %cst_69 = arith.constant 0.000000e+00 : f32
    %209 = vector.broadcast %cst_69 : f32 to vector<16x128xf32>
    %210 = arith.xori %155, %200 : vector<1x128xi32>
    %211 = arith.xori %210, %204 : vector<1x128xi32>
    %212 = arith.sitofp %211 : vector<1x128xi32> to vector<1x128xf32>
    %cst_70 = arith.constant 9.69932124E-4 : f32
    %213 = vector.broadcast %cst_70 : f32 to vector<1x128xf32>
    %214 = arith.mulf %212, %213 : vector<1x128xf32>
    %215 = math.floor %214 : vector<1x128xf32>
    %216 = arith.fptosi %215 : vector<1x128xf32> to vector<1x128xi32>
    %c1031_i32 = arith.constant 1031 : i32
    %217 = vector.broadcast %c1031_i32 : i32 to vector<1x128xi32>
    %218 = arith.muli %216, %217 : vector<1x128xi32>
    %219 = arith.subi %211, %218 : vector<1x128xi32>
    %c0_i32_71 = arith.constant 0 : i32
    %220 = vector.broadcast %c0_i32_71 : i32 to vector<1x128xi32>
    %221 = arith.cmpi slt, %219, %220 : vector<1x128xi32>
    %c1031_i32_72 = arith.constant 1031 : i32
    %222 = vector.broadcast %c1031_i32_72 : i32 to vector<1x128xi32>
    %223 = arith.addi %219, %222 : vector<1x128xi32>
    %224 = arith.select %221, %223, %219 : vector<1x128xi1>, vector<1x128xi32>
    %c1031_i32_73 = arith.constant 1031 : i32
    %225 = vector.broadcast %c1031_i32_73 : i32 to vector<1x128xi32>
    %226 = arith.cmpi sge, %224, %225 : vector<1x128xi32>
    %c1031_i32_74 = arith.constant 1031 : i32
    %227 = vector.broadcast %c1031_i32_74 : i32 to vector<1x128xi32>
    %228 = arith.subi %224, %227 : vector<1x128xi32>
    %229 = arith.select %226, %228, %224 : vector<1x128xi1>, vector<1x128xi32>
    %c127_i32_75 = arith.constant 127 : i32
    %230 = vector.broadcast %c127_i32_75 : i32 to vector<1x128xi32>
    %231 = arith.andi %229, %230 : vector<1x128xi32>
    %c7_i32_76 = arith.constant 7 : i32
    %232 = vector.broadcast %c7_i32_76 : i32 to vector<1x128xi32>
    %233 = arith.shrsi %229, %232 : vector<1x128xi32>
    %234 = vector.broadcast %231 : vector<1x128xi32> to vector<128x128xi32>
    %235 = arith.cmpi eq, %7, %234 : vector<128x128xi32>
    %cst_77 = arith.constant 0.000000e+00 : f32
    %236 = vector.shape_cast %188 : vector<1x128xf32> to vector<1x128xf32>
    %237 = vector.broadcast %236 : vector<1x128xf32> to vector<128x128xf32>
    %238 = vector.broadcast %cst_77 : f32 to vector<128x128xf32>
    %239 = arith.select %235, %237, %238 : vector<128x128xi1>, vector<128x128xf32>
    %cst_78 = arith.constant dense<0.000000e+00> : vector<16x128xf32>
    %240 = tpu.matmul %208, %239, %cst_78 {dimension_numbers = #tpu.dot_dimension_numbers<[1], [0], [0], [1], [0, 0, 1, 1], [], []>} : vector<16x128xf32>, vector<128x128xf32>, vector<16x128xf32> -> vector<16x128xf32>
    %241 = vector.broadcast %233 : vector<1x128xi32> to vector<16x128xi32>
    %242 = arith.cmpi eq, %144, %241 : vector<16x128xi32>
    %cst_79 = arith.constant 0.000000e+00 : f32
    %243 = vector.broadcast %cst_79 : f32 to vector<16x128xf32>
    %244 = arith.select %242, %240, %243 : vector<16x128xi1>, vector<16x128xf32>
    %245 = arith.addf %209, %244 : vector<16x128xf32>
    %246 = arith.xori %155, %200 : vector<1x128xi32>
    %247 = arith.xori %246, %206 : vector<1x128xi32>
    %248 = arith.sitofp %247 : vector<1x128xi32> to vector<1x128xf32>
    %cst_80 = arith.constant 9.69932124E-4 : f32
    %249 = vector.broadcast %cst_80 : f32 to vector<1x128xf32>
    %250 = arith.mulf %248, %249 : vector<1x128xf32>
    %251 = math.floor %250 : vector<1x128xf32>
    %252 = arith.fptosi %251 : vector<1x128xf32> to vector<1x128xi32>
    %c1031_i32_81 = arith.constant 1031 : i32
    %253 = vector.broadcast %c1031_i32_81 : i32 to vector<1x128xi32>
    %254 = arith.muli %252, %253 : vector<1x128xi32>
    %255 = arith.subi %247, %254 : vector<1x128xi32>
    %c0_i32_82 = arith.constant 0 : i32
    %256 = vector.broadcast %c0_i32_82 : i32 to vector<1x128xi32>
    %257 = arith.cmpi slt, %255, %256 : vector<1x128xi32>
    %c1031_i32_83 = arith.constant 1031 : i32
    %258 = vector.broadcast %c1031_i32_83 : i32 to vector<1x128xi32>
    %259 = arith.addi %255, %258 : vector<1x128xi32>
    %260 = arith.select %257, %259, %255 : vector<1x128xi1>, vector<1x128xi32>
    %c1031_i32_84 = arith.constant 1031 : i32
    %261 = vector.broadcast %c1031_i32_84 : i32 to vector<1x128xi32>
    %262 = arith.cmpi sge, %260, %261 : vector<1x128xi32>
    %c1031_i32_85 = arith.constant 1031 : i32
    %263 = vector.broadcast %c1031_i32_85 : i32 to vector<1x128xi32>
    %264 = arith.subi %260, %263 : vector<1x128xi32>
    %265 = arith.select %262, %264, %260 : vector<1x128xi1>, vector<1x128xi32>
    %c127_i32_86 = arith.constant 127 : i32
    %266 = vector.broadcast %c127_i32_86 : i32 to vector<1x128xi32>
    %267 = arith.andi %265, %266 : vector<1x128xi32>
    %c7_i32_87 = arith.constant 7 : i32
    %268 = vector.broadcast %c7_i32_87 : i32 to vector<1x128xi32>
    %269 = arith.shrsi %265, %268 : vector<1x128xi32>
    %270 = vector.broadcast %267 : vector<1x128xi32> to vector<128x128xi32>
    %271 = arith.cmpi eq, %7, %270 : vector<128x128xi32>
    %cst_88 = arith.constant 0.000000e+00 : f32
    %272 = vector.shape_cast %188 : vector<1x128xf32> to vector<1x128xf32>
    %273 = vector.broadcast %272 : vector<1x128xf32> to vector<128x128xf32>
    %274 = vector.broadcast %cst_88 : f32 to vector<128x128xf32>
    %275 = arith.select %271, %273, %274 : vector<128x128xi1>, vector<128x128xf32>
    %cst_89 = arith.constant dense<0.000000e+00> : vector<16x128xf32>
    %276 = tpu.matmul %208, %275, %cst_89 {dimension_numbers = #tpu.dot_dimension_numbers<[1], [0], [0], [1], [0, 0, 1, 1], [], []>} : vector<16x128xf32>, vector<128x128xf32>, vector<16x128xf32> -> vector<16x128xf32>
    %277 = vector.broadcast %269 : vector<1x128xi32> to vector<16x128xi32>
    %278 = arith.cmpi eq, %144, %277 : vector<16x128xi32>
    %cst_90 = arith.constant 0.000000e+00 : f32
    %279 = vector.broadcast %cst_90 : f32 to vector<16x128xf32>
    %280 = arith.select %278, %276, %279 : vector<16x128xi1>, vector<16x128xf32>
    %281 = arith.addf %245, %280 : vector<16x128xf32>
    %282 = arith.xori %155, %202 : vector<1x128xi32>
    %283 = arith.xori %282, %204 : vector<1x128xi32>
    %284 = arith.sitofp %283 : vector<1x128xi32> to vector<1x128xf32>
    %cst_91 = arith.constant 9.69932124E-4 : f32
    %285 = vector.broadcast %cst_91 : f32 to vector<1x128xf32>
    %286 = arith.mulf %284, %285 : vector<1x128xf32>
    %287 = math.floor %286 : vector<1x128xf32>
    %288 = arith.fptosi %287 : vector<1x128xf32> to vector<1x128xi32>
    %c1031_i32_92 = arith.constant 1031 : i32
    %289 = vector.broadcast %c1031_i32_92 : i32 to vector<1x128xi32>
    %290 = arith.muli %288, %289 : vector<1x128xi32>
    %291 = arith.subi %283, %290 : vector<1x128xi32>
    %c0_i32_93 = arith.constant 0 : i32
    %292 = vector.broadcast %c0_i32_93 : i32 to vector<1x128xi32>
    %293 = arith.cmpi slt, %291, %292 : vector<1x128xi32>
    %c1031_i32_94 = arith.constant 1031 : i32
    %294 = vector.broadcast %c1031_i32_94 : i32 to vector<1x128xi32>
    %295 = arith.addi %291, %294 : vector<1x128xi32>
    %296 = arith.select %293, %295, %291 : vector<1x128xi1>, vector<1x128xi32>
    %c1031_i32_95 = arith.constant 1031 : i32
    %297 = vector.broadcast %c1031_i32_95 : i32 to vector<1x128xi32>
    %298 = arith.cmpi sge, %296, %297 : vector<1x128xi32>
    %c1031_i32_96 = arith.constant 1031 : i32
    %299 = vector.broadcast %c1031_i32_96 : i32 to vector<1x128xi32>
    %300 = arith.subi %296, %299 : vector<1x128xi32>
    %301 = arith.select %298, %300, %296 : vector<1x128xi1>, vector<1x128xi32>
    %c127_i32_97 = arith.constant 127 : i32
    %302 = vector.broadcast %c127_i32_97 : i32 to vector<1x128xi32>
    %303 = arith.andi %301, %302 : vector<1x128xi32>
    %c7_i32_98 = arith.constant 7 : i32
    %304 = vector.broadcast %c7_i32_98 : i32 to vector<1x128xi32>
    %305 = arith.shrsi %301, %304 : vector<1x128xi32>
    %306 = vector.broadcast %303 : vector<1x128xi32> to vector<128x128xi32>
    %307 = arith.cmpi eq, %7, %306 : vector<128x128xi32>
    %cst_99 = arith.constant 0.000000e+00 : f32
    %308 = vector.shape_cast %189 : vector<1x128xf32> to vector<1x128xf32>
    %309 = vector.broadcast %308 : vector<1x128xf32> to vector<128x128xf32>
    %310 = vector.broadcast %cst_99 : f32 to vector<128x128xf32>
    %311 = arith.select %307, %309, %310 : vector<128x128xi1>, vector<128x128xf32>
    %cst_100 = arith.constant dense<0.000000e+00> : vector<16x128xf32>
    %312 = tpu.matmul %208, %311, %cst_100 {dimension_numbers = #tpu.dot_dimension_numbers<[1], [0], [0], [1], [0, 0, 1, 1], [], []>} : vector<16x128xf32>, vector<128x128xf32>, vector<16x128xf32> -> vector<16x128xf32>
    %313 = vector.broadcast %305 : vector<1x128xi32> to vector<16x128xi32>
    %314 = arith.cmpi eq, %144, %313 : vector<16x128xi32>
    %cst_101 = arith.constant 0.000000e+00 : f32
    %315 = vector.broadcast %cst_101 : f32 to vector<16x128xf32>
    %316 = arith.select %314, %312, %315 : vector<16x128xi1>, vector<16x128xf32>
    %317 = arith.addf %281, %316 : vector<16x128xf32>
    %318 = arith.xori %155, %202 : vector<1x128xi32>
    %319 = arith.xori %318, %206 : vector<1x128xi32>
    %320 = arith.sitofp %319 : vector<1x128xi32> to vector<1x128xf32>
    %cst_102 = arith.constant 9.69932124E-4 : f32
    %321 = vector.broadcast %cst_102 : f32 to vector<1x128xf32>
    %322 = arith.mulf %320, %321 : vector<1x128xf32>
    %323 = math.floor %322 : vector<1x128xf32>
    %324 = arith.fptosi %323 : vector<1x128xf32> to vector<1x128xi32>
    %c1031_i32_103 = arith.constant 1031 : i32
    %325 = vector.broadcast %c1031_i32_103 : i32 to vector<1x128xi32>
    %326 = arith.muli %324, %325 : vector<1x128xi32>
    %327 = arith.subi %319, %326 : vector<1x128xi32>
    %c0_i32_104 = arith.constant 0 : i32
    %328 = vector.broadcast %c0_i32_104 : i32 to vector<1x128xi32>
    %329 = arith.cmpi slt, %327, %328 : vector<1x128xi32>
    %c1031_i32_105 = arith.constant 1031 : i32
    %330 = vector.broadcast %c1031_i32_105 : i32 to vector<1x128xi32>
    %331 = arith.addi %327, %330 : vector<1x128xi32>
    %332 = arith.select %329, %331, %327 : vector<1x128xi1>, vector<1x128xi32>
    %c1031_i32_106 = arith.constant 1031 : i32
    %333 = vector.broadcast %c1031_i32_106 : i32 to vector<1x128xi32>
    %334 = arith.cmpi sge, %332, %333 : vector<1x128xi32>
    %c1031_i32_107 = arith.constant 1031 : i32
    %335 = vector.broadcast %c1031_i32_107 : i32 to vector<1x128xi32>
    %336 = arith.subi %332, %335 : vector<1x128xi32>
    %337 = arith.select %334, %336, %332 : vector<1x128xi1>, vector<1x128xi32>
    %c127_i32_108 = arith.constant 127 : i32
    %338 = vector.broadcast %c127_i32_108 : i32 to vector<1x128xi32>
    %339 = arith.andi %337, %338 : vector<1x128xi32>
    %c7_i32_109 = arith.constant 7 : i32
    %340 = vector.broadcast %c7_i32_109 : i32 to vector<1x128xi32>
    %341 = arith.shrsi %337, %340 : vector<1x128xi32>
    %342 = vector.broadcast %339 : vector<1x128xi32> to vector<128x128xi32>
    %343 = arith.cmpi eq, %7, %342 : vector<128x128xi32>
    %cst_110 = arith.constant 0.000000e+00 : f32
    %344 = vector.shape_cast %189 : vector<1x128xf32> to vector<1x128xf32>
    %345 = vector.broadcast %344 : vector<1x128xf32> to vector<128x128xf32>
    %346 = vector.broadcast %cst_110 : f32 to vector<128x128xf32>
    %347 = arith.select %343, %345, %346 : vector<128x128xi1>, vector<128x128xf32>
    %cst_111 = arith.constant dense<0.000000e+00> : vector<16x128xf32>
    %348 = tpu.matmul %208, %347, %cst_111 {dimension_numbers = #tpu.dot_dimension_numbers<[1], [0], [0], [1], [0, 0, 1, 1], [], []>} : vector<16x128xf32>, vector<128x128xf32>, vector<16x128xf32> -> vector<16x128xf32>
    %349 = vector.broadcast %341 : vector<1x128xi32> to vector<16x128xi32>
    %350 = arith.cmpi eq, %144, %349 : vector<16x128xi32>
    %cst_112 = arith.constant 0.000000e+00 : f32
    %351 = vector.broadcast %cst_112 : f32 to vector<16x128xf32>
    %352 = arith.select %350, %348, %351 : vector<16x128xi1>, vector<16x128xf32>
    %353 = arith.addf %317, %352 : vector<16x128xf32>
    %354 = arith.xori %162, %200 : vector<1x128xi32>
    %355 = arith.xori %354, %204 : vector<1x128xi32>
    %356 = arith.sitofp %355 : vector<1x128xi32> to vector<1x128xf32>
    %cst_113 = arith.constant 9.69932124E-4 : f32
    %357 = vector.broadcast %cst_113 : f32 to vector<1x128xf32>
    %358 = arith.mulf %356, %357 : vector<1x128xf32>
    %359 = math.floor %358 : vector<1x128xf32>
    %360 = arith.fptosi %359 : vector<1x128xf32> to vector<1x128xi32>
    %c1031_i32_114 = arith.constant 1031 : i32
    %361 = vector.broadcast %c1031_i32_114 : i32 to vector<1x128xi32>
    %362 = arith.muli %360, %361 : vector<1x128xi32>
    %363 = arith.subi %355, %362 : vector<1x128xi32>
    %c0_i32_115 = arith.constant 0 : i32
    %364 = vector.broadcast %c0_i32_115 : i32 to vector<1x128xi32>
    %365 = arith.cmpi slt, %363, %364 : vector<1x128xi32>
    %c1031_i32_116 = arith.constant 1031 : i32
    %366 = vector.broadcast %c1031_i32_116 : i32 to vector<1x128xi32>
    %367 = arith.addi %363, %366 : vector<1x128xi32>
    %368 = arith.select %365, %367, %363 : vector<1x128xi1>, vector<1x128xi32>
    %c1031_i32_117 = arith.constant 1031 : i32
    %369 = vector.broadcast %c1031_i32_117 : i32 to vector<1x128xi32>
    %370 = arith.cmpi sge, %368, %369 : vector<1x128xi32>
    %c1031_i32_118 = arith.constant 1031 : i32
    %371 = vector.broadcast %c1031_i32_118 : i32 to vector<1x128xi32>
    %372 = arith.subi %368, %371 : vector<1x128xi32>
    %373 = arith.select %370, %372, %368 : vector<1x128xi1>, vector<1x128xi32>
    %c127_i32_119 = arith.constant 127 : i32
    %374 = vector.broadcast %c127_i32_119 : i32 to vector<1x128xi32>
    %375 = arith.andi %373, %374 : vector<1x128xi32>
    %c7_i32_120 = arith.constant 7 : i32
    %376 = vector.broadcast %c7_i32_120 : i32 to vector<1x128xi32>
    %377 = arith.shrsi %373, %376 : vector<1x128xi32>
    %378 = vector.broadcast %375 : vector<1x128xi32> to vector<128x128xi32>
    %379 = arith.cmpi eq, %7, %378 : vector<128x128xi32>
    %cst_121 = arith.constant 0.000000e+00 : f32
    %380 = vector.shape_cast %190 : vector<1x128xf32> to vector<1x128xf32>
    %381 = vector.broadcast %380 : vector<1x128xf32> to vector<128x128xf32>
    %382 = vector.broadcast %cst_121 : f32 to vector<128x128xf32>
    %383 = arith.select %379, %381, %382 : vector<128x128xi1>, vector<128x128xf32>
    %cst_122 = arith.constant dense<0.000000e+00> : vector<16x128xf32>
    %384 = tpu.matmul %208, %383, %cst_122 {dimension_numbers = #tpu.dot_dimension_numbers<[1], [0], [0], [1], [0, 0, 1, 1], [], []>} : vector<16x128xf32>, vector<128x128xf32>, vector<16x128xf32> -> vector<16x128xf32>
    %385 = vector.broadcast %377 : vector<1x128xi32> to vector<16x128xi32>
    %386 = arith.cmpi eq, %144, %385 : vector<16x128xi32>
    %cst_123 = arith.constant 0.000000e+00 : f32
    %387 = vector.broadcast %cst_123 : f32 to vector<16x128xf32>
    %388 = arith.select %386, %384, %387 : vector<16x128xi1>, vector<16x128xf32>
    %389 = arith.addf %353, %388 : vector<16x128xf32>
    %390 = arith.xori %162, %200 : vector<1x128xi32>
    %391 = arith.xori %390, %206 : vector<1x128xi32>
    %392 = arith.sitofp %391 : vector<1x128xi32> to vector<1x128xf32>
    %cst_124 = arith.constant 9.69932124E-4 : f32
    %393 = vector.broadcast %cst_124 : f32 to vector<1x128xf32>
    %394 = arith.mulf %392, %393 : vector<1x128xf32>
    %395 = math.floor %394 : vector<1x128xf32>
    %396 = arith.fptosi %395 : vector<1x128xf32> to vector<1x128xi32>
    %c1031_i32_125 = arith.constant 1031 : i32
    %397 = vector.broadcast %c1031_i32_125 : i32 to vector<1x128xi32>
    %398 = arith.muli %396, %397 : vector<1x128xi32>
    %399 = arith.subi %391, %398 : vector<1x128xi32>
    %c0_i32_126 = arith.constant 0 : i32
    %400 = vector.broadcast %c0_i32_126 : i32 to vector<1x128xi32>
    %401 = arith.cmpi slt, %399, %400 : vector<1x128xi32>
    %c1031_i32_127 = arith.constant 1031 : i32
    %402 = vector.broadcast %c1031_i32_127 : i32 to vector<1x128xi32>
    %403 = arith.addi %399, %402 : vector<1x128xi32>
    %404 = arith.select %401, %403, %399 : vector<1x128xi1>, vector<1x128xi32>
    %c1031_i32_128 = arith.constant 1031 : i32
    %405 = vector.broadcast %c1031_i32_128 : i32 to vector<1x128xi32>
    %406 = arith.cmpi sge, %404, %405 : vector<1x128xi32>
    %c1031_i32_129 = arith.constant 1031 : i32
    %407 = vector.broadcast %c1031_i32_129 : i32 to vector<1x128xi32>
    %408 = arith.subi %404, %407 : vector<1x128xi32>
    %409 = arith.select %406, %408, %404 : vector<1x128xi1>, vector<1x128xi32>
    %c127_i32_130 = arith.constant 127 : i32
    %410 = vector.broadcast %c127_i32_130 : i32 to vector<1x128xi32>
    %411 = arith.andi %409, %410 : vector<1x128xi32>
    %c7_i32_131 = arith.constant 7 : i32
    %412 = vector.broadcast %c7_i32_131 : i32 to vector<1x128xi32>
    %413 = arith.shrsi %409, %412 : vector<1x128xi32>
    %414 = vector.broadcast %411 : vector<1x128xi32> to vector<128x128xi32>
    %415 = arith.cmpi eq, %7, %414 : vector<128x128xi32>
    %cst_132 = arith.constant 0.000000e+00 : f32
    %416 = vector.shape_cast %190 : vector<1x128xf32> to vector<1x128xf32>
    %417 = vector.broadcast %416 : vector<1x128xf32> to vector<128x128xf32>
    %418 = vector.broadcast %cst_132 : f32 to vector<128x128xf32>
    %419 = arith.select %415, %417, %418 : vector<128x128xi1>, vector<128x128xf32>
    %cst_133 = arith.constant dense<0.000000e+00> : vector<16x128xf32>
    %420 = tpu.matmul %208, %419, %cst_133 {dimension_numbers = #tpu.dot_dimension_numbers<[1], [0], [0], [1], [0, 0, 1, 1], [], []>} : vector<16x128xf32>, vector<128x128xf32>, vector<16x128xf32> -> vector<16x128xf32>
    %421 = vector.broadcast %413 : vector<1x128xi32> to vector<16x128xi32>
    %422 = arith.cmpi eq, %144, %421 : vector<16x128xi32>
    %cst_134 = arith.constant 0.000000e+00 : f32
    %423 = vector.broadcast %cst_134 : f32 to vector<16x128xf32>
    %424 = arith.select %422, %420, %423 : vector<16x128xi1>, vector<16x128xf32>
    %425 = arith.addf %389, %424 : vector<16x128xf32>
    %426 = arith.xori %162, %202 : vector<1x128xi32>
    %427 = arith.xori %426, %204 : vector<1x128xi32>
    %428 = arith.sitofp %427 : vector<1x128xi32> to vector<1x128xf32>
    %cst_135 = arith.constant 9.69932124E-4 : f32
    %429 = vector.broadcast %cst_135 : f32 to vector<1x128xf32>
    %430 = arith.mulf %428, %429 : vector<1x128xf32>
    %431 = math.floor %430 : vector<1x128xf32>
    %432 = arith.fptosi %431 : vector<1x128xf32> to vector<1x128xi32>
    %c1031_i32_136 = arith.constant 1031 : i32
    %433 = vector.broadcast %c1031_i32_136 : i32 to vector<1x128xi32>
    %434 = arith.muli %432, %433 : vector<1x128xi32>
    %435 = arith.subi %427, %434 : vector<1x128xi32>
    %c0_i32_137 = arith.constant 0 : i32
    %436 = vector.broadcast %c0_i32_137 : i32 to vector<1x128xi32>
    %437 = arith.cmpi slt, %435, %436 : vector<1x128xi32>
    %c1031_i32_138 = arith.constant 1031 : i32
    %438 = vector.broadcast %c1031_i32_138 : i32 to vector<1x128xi32>
    %439 = arith.addi %435, %438 : vector<1x128xi32>
    %440 = arith.select %437, %439, %435 : vector<1x128xi1>, vector<1x128xi32>
    %c1031_i32_139 = arith.constant 1031 : i32
    %441 = vector.broadcast %c1031_i32_139 : i32 to vector<1x128xi32>
    %442 = arith.cmpi sge, %440, %441 : vector<1x128xi32>
    %c1031_i32_140 = arith.constant 1031 : i32
    %443 = vector.broadcast %c1031_i32_140 : i32 to vector<1x128xi32>
    %444 = arith.subi %440, %443 : vector<1x128xi32>
    %445 = arith.select %442, %444, %440 : vector<1x128xi1>, vector<1x128xi32>
    %c127_i32_141 = arith.constant 127 : i32
    %446 = vector.broadcast %c127_i32_141 : i32 to vector<1x128xi32>
    %447 = arith.andi %445, %446 : vector<1x128xi32>
    %c7_i32_142 = arith.constant 7 : i32
    %448 = vector.broadcast %c7_i32_142 : i32 to vector<1x128xi32>
    %449 = arith.shrsi %445, %448 : vector<1x128xi32>
    %450 = vector.broadcast %447 : vector<1x128xi32> to vector<128x128xi32>
    %451 = arith.cmpi eq, %7, %450 : vector<128x128xi32>
    %cst_143 = arith.constant 0.000000e+00 : f32
    %452 = vector.shape_cast %191 : vector<1x128xf32> to vector<1x128xf32>
    %453 = vector.broadcast %452 : vector<1x128xf32> to vector<128x128xf32>
    %454 = vector.broadcast %cst_143 : f32 to vector<128x128xf32>
    %455 = arith.select %451, %453, %454 : vector<128x128xi1>, vector<128x128xf32>
    %cst_144 = arith.constant dense<0.000000e+00> : vector<16x128xf32>
    %456 = tpu.matmul %208, %455, %cst_144 {dimension_numbers = #tpu.dot_dimension_numbers<[1], [0], [0], [1], [0, 0, 1, 1], [], []>} : vector<16x128xf32>, vector<128x128xf32>, vector<16x128xf32> -> vector<16x128xf32>
    %457 = vector.broadcast %449 : vector<1x128xi32> to vector<16x128xi32>
    %458 = arith.cmpi eq, %144, %457 : vector<16x128xi32>
    %cst_145 = arith.constant 0.000000e+00 : f32
    %459 = vector.broadcast %cst_145 : f32 to vector<16x128xf32>
    %460 = arith.select %458, %456, %459 : vector<16x128xi1>, vector<16x128xf32>
    %461 = arith.addf %425, %460 : vector<16x128xf32>
    %462 = arith.xori %162, %202 : vector<1x128xi32>
    %463 = arith.xori %462, %206 : vector<1x128xi32>
    %464 = arith.sitofp %463 : vector<1x128xi32> to vector<1x128xf32>
    %cst_146 = arith.constant 9.69932124E-4 : f32
    %465 = vector.broadcast %cst_146 : f32 to vector<1x128xf32>
    %466 = arith.mulf %464, %465 : vector<1x128xf32>
    %467 = math.floor %466 : vector<1x128xf32>
    %468 = arith.fptosi %467 : vector<1x128xf32> to vector<1x128xi32>
    %c1031_i32_147 = arith.constant 1031 : i32
    %469 = vector.broadcast %c1031_i32_147 : i32 to vector<1x128xi32>
    %470 = arith.muli %468, %469 : vector<1x128xi32>
    %471 = arith.subi %463, %470 : vector<1x128xi32>
    %c0_i32_148 = arith.constant 0 : i32
    %472 = vector.broadcast %c0_i32_148 : i32 to vector<1x128xi32>
    %473 = arith.cmpi slt, %471, %472 : vector<1x128xi32>
    %c1031_i32_149 = arith.constant 1031 : i32
    %474 = vector.broadcast %c1031_i32_149 : i32 to vector<1x128xi32>
    %475 = arith.addi %471, %474 : vector<1x128xi32>
    %476 = arith.select %473, %475, %471 : vector<1x128xi1>, vector<1x128xi32>
    %c1031_i32_150 = arith.constant 1031 : i32
    %477 = vector.broadcast %c1031_i32_150 : i32 to vector<1x128xi32>
    %478 = arith.cmpi sge, %476, %477 : vector<1x128xi32>
    %c1031_i32_151 = arith.constant 1031 : i32
    %479 = vector.broadcast %c1031_i32_151 : i32 to vector<1x128xi32>
    %480 = arith.subi %476, %479 : vector<1x128xi32>
    %481 = arith.select %478, %480, %476 : vector<1x128xi1>, vector<1x128xi32>
    %c127_i32_152 = arith.constant 127 : i32
    %482 = vector.broadcast %c127_i32_152 : i32 to vector<1x128xi32>
    %483 = arith.andi %481, %482 : vector<1x128xi32>
    %c7_i32_153 = arith.constant 7 : i32
    %484 = vector.broadcast %c7_i32_153 : i32 to vector<1x128xi32>
    %485 = arith.shrsi %481, %484 : vector<1x128xi32>
    %486 = vector.broadcast %483 : vector<1x128xi32> to vector<128x128xi32>
    %487 = arith.cmpi eq, %7, %486 : vector<128x128xi32>
    %cst_154 = arith.constant 0.000000e+00 : f32
    %488 = vector.shape_cast %191 : vector<1x128xf32> to vector<1x128xf32>
    %489 = vector.broadcast %488 : vector<1x128xf32> to vector<128x128xf32>
    %490 = vector.broadcast %cst_154 : f32 to vector<128x128xf32>
    %491 = arith.select %487, %489, %490 : vector<128x128xi1>, vector<128x128xf32>
    %cst_155 = arith.constant dense<0.000000e+00> : vector<16x128xf32>
    %492 = tpu.matmul %208, %491, %cst_155 {dimension_numbers = #tpu.dot_dimension_numbers<[1], [0], [0], [1], [0, 0, 1, 1], [], []>} : vector<16x128xf32>, vector<128x128xf32>, vector<16x128xf32> -> vector<16x128xf32>
    %493 = vector.broadcast %485 : vector<1x128xi32> to vector<16x128xi32>
    %494 = arith.cmpi eq, %144, %493 : vector<16x128xi32>
    %cst_156 = arith.constant 0.000000e+00 : f32
    %495 = vector.broadcast %cst_156 : f32 to vector<16x128xf32>
    %496 = arith.select %494, %492, %495 : vector<16x128xi1>, vector<16x128xf32>
    %497 = arith.addf %461, %496 : vector<16x128xf32>
    %cst_157 = arith.constant dense<0.000000e+00> : vector<128xf32>
    %498 = vector.multi_reduction <add>, %497, %cst_157 [0] : vector<16x128xf32> to vector<128xf32>
    %499 = vector.shape_cast %498 : vector<128xf32> to vector<1x128xf32>
    %c0_158 = arith.constant 0 : index
    %c4 = arith.constant 4 : index
    %c0_159 = arith.constant 0 : index
    %500 = vector.load %arg3[%c0_158, %c4, %c0_159] : memref<1x7x128xf32, #tpu.memory_space<vmem>>, vector<1x1x128xf32>
    %501 = vector.shape_cast %500 : vector<1x1x128xf32> to vector<1x128xf32>
    %502 = vector.shape_cast %499 : vector<1x128xf32> to vector<1x1x128xf32>
    tpu.vector_store %arg3[%c0_158, %c4, %c0_159], %502 {strides = array<i32>} : memref<1x7x128xf32, #tpu.memory_space<vmem>>, vector<1x1x128xf32>,
    %503 = tpu.iota {dimensions = array<i32: 0>} : vector<16x128xi32>
    %cst_160 = arith.constant 0.0714285746 : f32
    %504 = vector.broadcast %cst_160 : f32 to vector<1x128xf32>
    %505 = arith.divf %4, %504 : vector<1x128xf32>
    %cst_161 = arith.constant 0.0714285746 : f32
    %506 = vector.broadcast %cst_161 : f32 to vector<1x128xf32>
    %507 = arith.divf %5, %506 : vector<1x128xf32>
    %cst_162 = arith.constant 0.0714285746 : f32
    %508 = vector.broadcast %cst_162 : f32 to vector<1x128xf32>
    %509 = arith.divf %6, %508 : vector<1x128xf32>
    %510 = arith.fptosi %505 : vector<1x128xf32> to vector<1x128xi32>
    %c0_i32_163 = arith.constant 0 : i32
    %c14_i32 = arith.constant 14 : i32
    %511 = vector.broadcast %c0_i32_163 : i32 to vector<1x128xi32>
    %512 = arith.maxsi %511, %510 : vector<1x128xi32>
    %513 = vector.broadcast %c14_i32 : i32 to vector<1x128xi32>
    %514 = arith.minsi %513, %512 : vector<1x128xi32>
    %cst_164 = arith.constant 1.000000e+00 : f32
    %515 = vector.broadcast %cst_164 : f32 to vector<1x128xf32>
    %516 = arith.addf %505, %515 : vector<1x128xf32>
    %517 = arith.fptosi %516 : vector<1x128xf32> to vector<1x128xi32>
    %c0_i32_165 = arith.constant 0 : i32
    %c14_i32_166 = arith.constant 14 : i32
    %518 = vector.broadcast %c0_i32_165 : i32 to vector<1x128xi32>
    %519 = arith.maxsi %518, %517 : vector<1x128xi32>
    %520 = vector.broadcast %c14_i32_166 : i32 to vector<1x128xi32>
    %521 = arith.minsi %520, %519 : vector<1x128xi32>
    %522 = arith.fptosi %507 : vector<1x128xf32> to vector<1x128xi32>
    %c0_i32_167 = arith.constant 0 : i32
    %c14_i32_168 = arith.constant 14 : i32
    %523 = vector.broadcast %c0_i32_167 : i32 to vector<1x128xi32>
    %524 = arith.maxsi %523, %522 : vector<1x128xi32>
    %525 = vector.broadcast %c14_i32_168 : i32 to vector<1x128xi32>
    %526 = arith.minsi %525, %524 : vector<1x128xi32>
    %cst_169 = arith.constant 1.000000e+00 : f32
    %527 = vector.broadcast %cst_169 : f32 to vector<1x128xf32>
    %528 = arith.addf %507, %527 : vector<1x128xf32>
    %529 = arith.fptosi %528 : vector<1x128xf32> to vector<1x128xi32>
    %c0_i32_170 = arith.constant 0 : i32
    %c14_i32_171 = arith.constant 14 : i32
    %530 = vector.broadcast %c0_i32_170 : i32 to vector<1x128xi32>
    %531 = arith.maxsi %530, %529 : vector<1x128xi32>
    %532 = vector.broadcast %c14_i32_171 : i32 to vector<1x128xi32>
    %533 = arith.minsi %532, %531 : vector<1x128xi32>
    %534 = arith.fptosi %509 : vector<1x128xf32> to vector<1x128xi32>
    %c0_i32_172 = arith.constant 0 : i32
    %c14_i32_173 = arith.constant 14 : i32
    %535 = vector.broadcast %c0_i32_172 : i32 to vector<1x128xi32>
    %536 = arith.maxsi %535, %534 : vector<1x128xi32>
    %537 = vector.broadcast %c14_i32_173 : i32 to vector<1x128xi32>
    %538 = arith.minsi %537, %536 : vector<1x128xi32>
    %539 = arith.sitofp %514 : vector<1x128xi32> to vector<1x128xf32>
    %540 = arith.subf %505, %539 : vector<1x128xf32>
    %541 = arith.sitofp %526 : vector<1x128xi32> to vector<1x128xf32>
    %542 = arith.subf %507, %541 : vector<1x128xf32>
    %cst_174 = arith.constant 1.000000e+00 : f32
    %543 = vector.broadcast %cst_174 : f32 to vector<1x128xf32>
    %544 = arith.subf %543, %540 : vector<1x128xf32>
    %cst_175 = arith.constant 1.000000e+00 : f32
    %545 = vector.broadcast %cst_175 : f32 to vector<1x128xf32>
    %546 = arith.subf %545, %542 : vector<1x128xf32>
    %547 = arith.mulf %544, %546 : vector<1x128xf32>
    %548 = arith.mulf %544, %542 : vector<1x128xf32>
    %549 = arith.mulf %540, %546 : vector<1x128xf32>
    %550 = arith.mulf %540, %542 : vector<1x128xf32>
    %cst_176 = arith.constant 1.000000e+00 : f32
    %551 = vector.broadcast %cst_176 : f32 to vector<1x128xf32>
    %552 = arith.addf %509, %551 : vector<1x128xf32>
    %553 = arith.fptosi %552 : vector<1x128xf32> to vector<1x128xi32>
    %c0_i32_177 = arith.constant 0 : i32
    %c14_i32_178 = arith.constant 14 : i32
    %554 = vector.broadcast %c0_i32_177 : i32 to vector<1x128xi32>
    %555 = arith.maxsi %554, %553 : vector<1x128xi32>
    %556 = vector.broadcast %c14_i32_178 : i32 to vector<1x128xi32>
    %557 = arith.minsi %556, %555 : vector<1x128xi32>
    %c19349663_i32_179 = arith.constant 19349663 : i32
    %558 = vector.broadcast %c19349663_i32_179 : i32 to vector<1x128xi32>
    %559 = arith.muli %526, %558 : vector<1x128xi32>
    %c19349663_i32_180 = arith.constant 19349663 : i32
    %560 = vector.broadcast %c19349663_i32_180 : i32 to vector<1x128xi32>
    %561 = arith.muli %533, %560 : vector<1x128xi32>
    %c83492791_i32_181 = arith.constant 83492791 : i32
    %562 = vector.broadcast %c83492791_i32_181 : i32 to vector<1x128xi32>
    %563 = arith.muli %538, %562 : vector<1x128xi32>
    %c83492791_i32_182 = arith.constant 83492791 : i32
    %564 = vector.broadcast %c83492791_i32_182 : i32 to vector<1x128xi32>
    %565 = arith.muli %557, %564 : vector<1x128xi32>
    %c2 = arith.constant 2 : index
    %c0_183 = arith.constant 0 : index
    %c0_184 = arith.constant 0 : index
    %566 = vector.load %arg2[%c2, %c0_183, %c0_184] : memref<4x16x128xf32, #tpu.memory_space<vmem>>, vector<1x16x128xf32>
    %567 = vector.shape_cast %566 : vector<1x16x128xf32> to vector<16x128xf32>
    %cst_185 = arith.constant 0.000000e+00 : f32
    %568 = vector.broadcast %cst_185 : f32 to vector<16x128xf32>
    %569 = arith.xori %514, %559 : vector<1x128xi32>
    %570 = arith.xori %569, %563 : vector<1x128xi32>
    %571 = arith.sitofp %570 : vector<1x128xi32> to vector<1x128xf32>
    %cst_186 = arith.constant 9.69932124E-4 : f32
    %572 = vector.broadcast %cst_186 : f32 to vector<1x128xf32>
    %573 = arith.mulf %571, %572 : vector<1x128xf32>
    %574 = math.floor %573 : vector<1x128xf32>
    %575 = arith.fptosi %574 : vector<1x128xf32> to vector<1x128xi32>
    %c1031_i32_187 = arith.constant 1031 : i32
    %576 = vector.broadcast %c1031_i32_187 : i32 to vector<1x128xi32>
    %577 = arith.muli %575, %576 : vector<1x128xi32>
    %578 = arith.subi %570, %577 : vector<1x128xi32>
    %c0_i32_188 = arith.constant 0 : i32
    %579 = vector.broadcast %c0_i32_188 : i32 to vector<1x128xi32>
    %580 = arith.cmpi slt, %578, %579 : vector<1x128xi32>
    %c1031_i32_189 = arith.constant 1031 : i32
    %581 = vector.broadcast %c1031_i32_189 : i32 to vector<1x128xi32>
    %582 = arith.addi %578, %581 : vector<1x128xi32>
    %583 = arith.select %580, %582, %578 : vector<1x128xi1>, vector<1x128xi32>
    %c1031_i32_190 = arith.constant 1031 : i32
    %584 = vector.broadcast %c1031_i32_190 : i32 to vector<1x128xi32>
    %585 = arith.cmpi sge, %583, %584 : vector<1x128xi32>
    %c1031_i32_191 = arith.constant 1031 : i32
    %586 = vector.broadcast %c1031_i32_191 : i32 to vector<1x128xi32>
    %587 = arith.subi %583, %586 : vector<1x128xi32>
    %588 = arith.select %585, %587, %583 : vector<1x128xi1>, vector<1x128xi32>
    %c127_i32_192 = arith.constant 127 : i32
    %589 = vector.broadcast %c127_i32_192 : i32 to vector<1x128xi32>
    %590 = arith.andi %588, %589 : vector<1x128xi32>
    %c7_i32_193 = arith.constant 7 : i32
    %591 = vector.broadcast %c7_i32_193 : i32 to vector<1x128xi32>
    %592 = arith.shrsi %588, %591 : vector<1x128xi32>
    %593 = vector.broadcast %590 : vector<1x128xi32> to vector<128x128xi32>
    %594 = arith.cmpi eq, %7, %593 : vector<128x128xi32>
    %cst_194 = arith.constant 0.000000e+00 : f32
    %595 = vector.shape_cast %547 : vector<1x128xf32> to vector<1x128xf32>
    %596 = vector.broadcast %595 : vector<1x128xf32> to vector<128x128xf32>
    %597 = vector.broadcast %cst_194 : f32 to vector<128x128xf32>
    %598 = arith.select %594, %596, %597 : vector<128x128xi1>, vector<128x128xf32>
    %cst_195 = arith.constant dense<0.000000e+00> : vector<16x128xf32>
    %599 = tpu.matmul %567, %598, %cst_195 {dimension_numbers = #tpu.dot_dimension_numbers<[1], [0], [0], [1], [0, 0, 1, 1], [], []>} : vector<16x128xf32>, vector<128x128xf32>, vector<16x128xf32> -> vector<16x128xf32>
    %600 = vector.broadcast %592 : vector<1x128xi32> to vector<16x128xi32>
    %601 = arith.cmpi eq, %503, %600 : vector<16x128xi32>
    %cst_196 = arith.constant 0.000000e+00 : f32
    %602 = vector.broadcast %cst_196 : f32 to vector<16x128xf32>
    %603 = arith.select %601, %599, %602 : vector<16x128xi1>, vector<16x128xf32>
    %604 = arith.addf %568, %603 : vector<16x128xf32>
    %605 = arith.xori %514, %559 : vector<1x128xi32>
    %606 = arith.xori %605, %565 : vector<1x128xi32>
    %607 = arith.sitofp %606 : vector<1x128xi32> to vector<1x128xf32>
    %cst_197 = arith.constant 9.69932124E-4 : f32
    %608 = vector.broadcast %cst_197 : f32 to vector<1x128xf32>
    %609 = arith.mulf %607, %608 : vector<1x128xf32>
    %610 = math.floor %609 : vector<1x128xf32>
    %611 = arith.fptosi %610 : vector<1x128xf32> to vector<1x128xi32>
    %c1031_i32_198 = arith.constant 1031 : i32
    %612 = vector.broadcast %c1031_i32_198 : i32 to vector<1x128xi32>
    %613 = arith.muli %611, %612 : vector<1x128xi32>
    %614 = arith.subi %606, %613 : vector<1x128xi32>
    %c0_i32_199 = arith.constant 0 : i32
    %615 = vector.broadcast %c0_i32_199 : i32 to vector<1x128xi32>
    %616 = arith.cmpi slt, %614, %615 : vector<1x128xi32>
    %c1031_i32_200 = arith.constant 1031 : i32
    %617 = vector.broadcast %c1031_i32_200 : i32 to vector<1x128xi32>
    %618 = arith.addi %614, %617 : vector<1x128xi32>
    %619 = arith.select %616, %618, %614 : vector<1x128xi1>, vector<1x128xi32>
    %c1031_i32_201 = arith.constant 1031 : i32
    %620 = vector.broadcast %c1031_i32_201 : i32 to vector<1x128xi32>
    %621 = arith.cmpi sge, %619, %620 : vector<1x128xi32>
    %c1031_i32_202 = arith.constant 1031 : i32
    %622 = vector.broadcast %c1031_i32_202 : i32 to vector<1x128xi32>
    %623 = arith.subi %619, %622 : vector<1x128xi32>
    %624 = arith.select %621, %623, %619 : vector<1x128xi1>, vector<1x128xi32>
    %c127_i32_203 = arith.constant 127 : i32
    %625 = vector.broadcast %c127_i32_203 : i32 to vector<1x128xi32>
    %626 = arith.andi %624, %625 : vector<1x128xi32>
    %c7_i32_204 = arith.constant 7 : i32
    %627 = vector.broadcast %c7_i32_204 : i32 to vector<1x128xi32>
    %628 = arith.shrsi %624, %627 : vector<1x128xi32>
    %629 = vector.broadcast %626 : vector<1x128xi32> to vector<128x128xi32>
    %630 = arith.cmpi eq, %7, %629 : vector<128x128xi32>
    %cst_205 = arith.constant 0.000000e+00 : f32
    %631 = vector.shape_cast %547 : vector<1x128xf32> to vector<1x128xf32>
    %632 = vector.broadcast %631 : vector<1x128xf32> to vector<128x128xf32>
    %633 = vector.broadcast %cst_205 : f32 to vector<128x128xf32>
    %634 = arith.select %630, %632, %633 : vector<128x128xi1>, vector<128x128xf32>
    %cst_206 = arith.constant dense<0.000000e+00> : vector<16x128xf32>
    %635 = tpu.matmul %567, %634, %cst_206 {dimension_numbers = #tpu.dot_dimension_numbers<[1], [0], [0], [1], [0, 0, 1, 1], [], []>} : vector<16x128xf32>, vector<128x128xf32>, vector<16x128xf32> -> vector<16x128xf32>
    %636 = vector.broadcast %628 : vector<1x128xi32> to vector<16x128xi32>
    %637 = arith.cmpi eq, %503, %636 : vector<16x128xi32>
    %cst_207 = arith.constant 0.000000e+00 : f32
    %638 = vector.broadcast %cst_207 : f32 to vector<16x128xf32>
    %639 = arith.select %637, %635, %638 : vector<16x128xi1>, vector<16x128xf32>
    %640 = arith.addf %604, %639 : vector<16x128xf32>
    %641 = arith.xori %514, %561 : vector<1x128xi32>
    %642 = arith.xori %641, %563 : vector<1x128xi32>
    %643 = arith.sitofp %642 : vector<1x128xi32> to vector<1x128xf32>
    %cst_208 = arith.constant 9.69932124E-4 : f32
    %644 = vector.broadcast %cst_208 : f32 to vector<1x128xf32>
    %645 = arith.mulf %643, %644 : vector<1x128xf32>
    %646 = math.floor %645 : vector<1x128xf32>
    %647 = arith.fptosi %646 : vector<1x128xf32> to vector<1x128xi32>
    %c1031_i32_209 = arith.constant 1031 : i32
    %648 = vector.broadcast %c1031_i32_209 : i32 to vector<1x128xi32>
    %649 = arith.muli %647, %648 : vector<1x128xi32>
    %650 = arith.subi %642, %649 : vector<1x128xi32>
    %c0_i32_210 = arith.constant 0 : i32
    %651 = vector.broadcast %c0_i32_210 : i32 to vector<1x128xi32>
    %652 = arith.cmpi slt, %650, %651 : vector<1x128xi32>
    %c1031_i32_211 = arith.constant 1031 : i32
    %653 = vector.broadcast %c1031_i32_211 : i32 to vector<1x128xi32>
    %654 = arith.addi %650, %653 : vector<1x128xi32>
    %655 = arith.select %652, %654, %650 : vector<1x128xi1>, vector<1x128xi32>
    %c1031_i32_212 = arith.constant 1031 : i32
    %656 = vector.broadcast %c1031_i32_212 : i32 to vector<1x128xi32>
    %657 = arith.cmpi sge, %655, %656 : vector<1x128xi32>
    %c1031_i32_213 = arith.constant 1031 : i32
    %658 = vector.broadcast %c1031_i32_213 : i32 to vector<1x128xi32>
    %659 = arith.subi %655, %658 : vector<1x128xi32>
    %660 = arith.select %657, %659, %655 : vector<1x128xi1>, vector<1x128xi32>
    %c127_i32_214 = arith.constant 127 : i32
    %661 = vector.broadcast %c127_i32_214 : i32 to vector<1x128xi32>
    %662 = arith.andi %660, %661 : vector<1x128xi32>
    %c7_i32_215 = arith.constant 7 : i32
    %663 = vector.broadcast %c7_i32_215 : i32 to vector<1x128xi32>
    %664 = arith.shrsi %660, %663 : vector<1x128xi32>
    %665 = vector.broadcast %662 : vector<1x128xi32> to vector<128x128xi32>
    %666 = arith.cmpi eq, %7, %665 : vector<128x128xi32>
    %cst_216 = arith.constant 0.000000e+00 : f32
    %667 = vector.shape_cast %548 : vector<1x128xf32> to vector<1x128xf32>
    %668 = vector.broadcast %667 : vector<1x128xf32> to vector<128x128xf32>
    %669 = vector.broadcast %cst_216 : f32 to vector<128x128xf32>
    %670 = arith.select %666, %668, %669 : vector<128x128xi1>, vector<128x128xf32>
    %cst_217 = arith.constant dense<0.000000e+00> : vector<16x128xf32>
    %671 = tpu.matmul %567, %670, %cst_217 {dimension_numbers = #tpu.dot_dimension_numbers<[1], [0], [0], [1], [0, 0, 1, 1], [], []>} : vector<16x128xf32>, vector<128x128xf32>, vector<16x128xf32> -> vector<16x128xf32>
    %672 = vector.broadcast %664 : vector<1x128xi32> to vector<16x128xi32>
    %673 = arith.cmpi eq, %503, %672 : vector<16x128xi32>
    %cst_218 = arith.constant 0.000000e+00 : f32
    %674 = vector.broadcast %cst_218 : f32 to vector<16x128xf32>
    %675 = arith.select %673, %671, %674 : vector<16x128xi1>, vector<16x128xf32>
    %676 = arith.addf %640, %675 : vector<16x128xf32>
    %677 = arith.xori %514, %561 : vector<1x128xi32>
    %678 = arith.xori %677, %565 : vector<1x128xi32>
    %679 = arith.sitofp %678 : vector<1x128xi32> to vector<1x128xf32>
    %cst_219 = arith.constant 9.69932124E-4 : f32
    %680 = vector.broadcast %cst_219 : f32 to vector<1x128xf32>
    %681 = arith.mulf %679, %680 : vector<1x128xf32>
    %682 = math.floor %681 : vector<1x128xf32>
    %683 = arith.fptosi %682 : vector<1x128xf32> to vector<1x128xi32>
    %c1031_i32_220 = arith.constant 1031 : i32
    %684 = vector.broadcast %c1031_i32_220 : i32 to vector<1x128xi32>
    %685 = arith.muli %683, %684 : vector<1x128xi32>
    %686 = arith.subi %678, %685 : vector<1x128xi32>
    %c0_i32_221 = arith.constant 0 : i32
    %687 = vector.broadcast %c0_i32_221 : i32 to vector<1x128xi32>
    %688 = arith.cmpi slt, %686, %687 : vector<1x128xi32>
    %c1031_i32_222 = arith.constant 1031 : i32
    %689 = vector.broadcast %c1031_i32_222 : i32 to vector<1x128xi32>
    %690 = arith.addi %686, %689 : vector<1x128xi32>
    %691 = arith.select %688, %690, %686 : vector<1x128xi1>, vector<1x128xi32>
    %c1031_i32_223 = arith.constant 1031 : i32
    %692 = vector.broadcast %c1031_i32_223 : i32 to vector<1x128xi32>
    %693 = arith.cmpi sge, %691, %692 : vector<1x128xi32>
    %c1031_i32_224 = arith.constant 1031 : i32
    %694 = vector.broadcast %c1031_i32_224 : i32 to vector<1x128xi32>
    %695 = arith.subi %691, %694 : vector<1x128xi32>
    %696 = arith.select %693, %695, %691 : vector<1x128xi1>, vector<1x128xi32>
    %c127_i32_225 = arith.constant 127 : i32
    %697 = vector.broadcast %c127_i32_225 : i32 to vector<1x128xi32>
    %698 = arith.andi %696, %697 : vector<1x128xi32>
    %c7_i32_226 = arith.constant 7 : i32
    %699 = vector.broadcast %c7_i32_226 : i32 to vector<1x128xi32>
    %700 = arith.shrsi %696, %699 : vector<1x128xi32>
    %701 = vector.broadcast %698 : vector<1x128xi32> to vector<128x128xi32>
    %702 = arith.cmpi eq, %7, %701 : vector<128x128xi32>
    %cst_227 = arith.constant 0.000000e+00 : f32
    %703 = vector.shape_cast %548 : vector<1x128xf32> to vector<1x128xf32>
    %704 = vector.broadcast %703 : vector<1x128xf32> to vector<128x128xf32>
    %705 = vector.broadcast %cst_227 : f32 to vector<128x128xf32>
    %706 = arith.select %702, %704, %705 : vector<128x128xi1>, vector<128x128xf32>
    %cst_228 = arith.constant dense<0.000000e+00> : vector<16x128xf32>
    %707 = tpu.matmul %567, %706, %cst_228 {dimension_numbers = #tpu.dot_dimension_numbers<[1], [0], [0], [1], [0, 0, 1, 1], [], []>} : vector<16x128xf32>, vector<128x128xf32>, vector<16x128xf32> -> vector<16x128xf32>
    %708 = vector.broadcast %700 : vector<1x128xi32> to vector<16x128xi32>
    %709 = arith.cmpi eq, %503, %708 : vector<16x128xi32>
    %cst_229 = arith.constant 0.000000e+00 : f32
    %710 = vector.broadcast %cst_229 : f32 to vector<16x128xf32>
    %711 = arith.select %709, %707, %710 : vector<16x128xi1>, vector<16x128xf32>
    %712 = arith.addf %676, %711 : vector<16x128xf32>
    %713 = arith.xori %521, %559 : vector<1x128xi32>
    %714 = arith.xori %713, %563 : vector<1x128xi32>
    %715 = arith.sitofp %714 : vector<1x128xi32> to vector<1x128xf32>
    %cst_230 = arith.constant 9.69932124E-4 : f32
    %716 = vector.broadcast %cst_230 : f32 to vector<1x128xf32>
    %717 = arith.mulf %715, %716 : vector<1x128xf32>
    %718 = math.floor %717 : vector<1x128xf32>
    %719 = arith.fptosi %718 : vector<1x128xf32> to vector<1x128xi32>
    %c1031_i32_231 = arith.constant 1031 : i32
    %720 = vector.broadcast %c1031_i32_231 : i32 to vector<1x128xi32>
    %721 = arith.muli %719, %720 : vector<1x128xi32>
    %722 = arith.subi %714, %721 : vector<1x128xi32>
    %c0_i32_232 = arith.constant 0 : i32
    %723 = vector.broadcast %c0_i32_232 : i32 to vector<1x128xi32>
    %724 = arith.cmpi slt, %722, %723 : vector<1x128xi32>
    %c1031_i32_233 = arith.constant 1031 : i32
    %725 = vector.broadcast %c1031_i32_233 : i32 to vector<1x128xi32>
    %726 = arith.addi %722, %725 : vector<1x128xi32>
    %727 = arith.select %724, %726, %722 : vector<1x128xi1>, vector<1x128xi32>
    %c1031_i32_234 = arith.constant 1031 : i32
    %728 = vector.broadcast %c1031_i32_234 : i32 to vector<1x128xi32>
    %729 = arith.cmpi sge, %727, %728 : vector<1x128xi32>
    %c1031_i32_235 = arith.constant 1031 : i32
    %730 = vector.broadcast %c1031_i32_235 : i32 to vector<1x128xi32>
    %731 = arith.subi %727, %730 : vector<1x128xi32>
    %732 = arith.select %729, %731, %727 : vector<1x128xi1>, vector<1x128xi32>
    %c127_i32_236 = arith.constant 127 : i32
    %733 = vector.broadcast %c127_i32_236 : i32 to vector<1x128xi32>
    %734 = arith.andi %732, %733 : vector<1x128xi32>
    %c7_i32_237 = arith.constant 7 : i32
    %735 = vector.broadcast %c7_i32_237 : i32 to vector<1x128xi32>
    %736 = arith.shrsi %732, %735 : vector<1x128xi32>
    %737 = vector.broadcast %734 : vector<1x128xi32> to vector<128x128xi32>
    %738 = arith.cmpi eq, %7, %737 : vector<128x128xi32>
    %cst_238 = arith.constant 0.000000e+00 : f32
    %739 = vector.shape_cast %549 : vector<1x128xf32> to vector<1x128xf32>
    %740 = vector.broadcast %739 : vector<1x128xf32> to vector<128x128xf32>
    %741 = vector.broadcast %cst_238 : f32 to vector<128x128xf32>
    %742 = arith.select %738, %740, %741 : vector<128x128xi1>, vector<128x128xf32>
    %cst_239 = arith.constant dense<0.000000e+00> : vector<16x128xf32>
    %743 = tpu.matmul %567, %742, %cst_239 {dimension_numbers = #tpu.dot_dimension_numbers<[1], [0], [0], [1], [0, 0, 1, 1], [], []>} : vector<16x128xf32>, vector<128x128xf32>, vector<16x128xf32> -> vector<16x128xf32>
    %744 = vector.broadcast %736 : vector<1x128xi32> to vector<16x128xi32>
    %745 = arith.cmpi eq, %503, %744 : vector<16x128xi32>
    %cst_240 = arith.constant 0.000000e+00 : f32
    %746 = vector.broadcast %cst_240 : f32 to vector<16x128xf32>
    %747 = arith.select %745, %743, %746 : vector<16x128xi1>, vector<16x128xf32>
    %748 = arith.addf %712, %747 : vector<16x128xf32>
    %749 = arith.xori %521, %559 : vector<1x128xi32>
    %750 = arith.xori %749, %565 : vector<1x128xi32>
    %751 = arith.sitofp %750 : vector<1x128xi32> to vector<1x128xf32>
    %cst_241 = arith.constant 9.69932124E-4 : f32
    %752 = vector.broadcast %cst_241 : f32 to vector<1x128xf32>
    %753 = arith.mulf %751, %752 : vector<1x128xf32>
    %754 = math.floor %753 : vector<1x128xf32>
    %755 = arith.fptosi %754 : vector<1x128xf32> to vector<1x128xi32>
    %c1031_i32_242 = arith.constant 1031 : i32
    %756 = vector.broadcast %c1031_i32_242 : i32 to vector<1x128xi32>
    %757 = arith.muli %755, %756 : vector<1x128xi32>
    %758 = arith.subi %750, %757 : vector<1x128xi32>
    %c0_i32_243 = arith.constant 0 : i32
    %759 = vector.broadcast %c0_i32_243 : i32 to vector<1x128xi32>
    %760 = arith.cmpi slt, %758, %759 : vector<1x128xi32>
    %c1031_i32_244 = arith.constant 1031 : i32
    %761 = vector.broadcast %c1031_i32_244 : i32 to vector<1x128xi32>
    %762 = arith.addi %758, %761 : vector<1x128xi32>
    %763 = arith.select %760, %762, %758 : vector<1x128xi1>, vector<1x128xi32>
    %c1031_i32_245 = arith.constant 1031 : i32
    %764 = vector.broadcast %c1031_i32_245 : i32 to vector<1x128xi32>
    %765 = arith.cmpi sge, %763, %764 : vector<1x128xi32>
    %c1031_i32_246 = arith.constant 1031 : i32
    %766 = vector.broadcast %c1031_i32_246 : i32 to vector<1x128xi32>
    %767 = arith.subi %763, %766 : vector<1x128xi32>
    %768 = arith.select %765, %767, %763 : vector<1x128xi1>, vector<1x128xi32>
    %c127_i32_247 = arith.constant 127 : i32
    %769 = vector.broadcast %c127_i32_247 : i32 to vector<1x128xi32>
    %770 = arith.andi %768, %769 : vector<1x128xi32>
    %c7_i32_248 = arith.constant 7 : i32
    %771 = vector.broadcast %c7_i32_248 : i32 to vector<1x128xi32>
    %772 = arith.shrsi %768, %771 : vector<1x128xi32>
    %773 = vector.broadcast %770 : vector<1x128xi32> to vector<128x128xi32>
    %774 = arith.cmpi eq, %7, %773 : vector<128x128xi32>
    %cst_249 = arith.constant 0.000000e+00 : f32
    %775 = vector.shape_cast %549 : vector<1x128xf32> to vector<1x128xf32>
    %776 = vector.broadcast %775 : vector<1x128xf32> to vector<128x128xf32>
    %777 = vector.broadcast %cst_249 : f32 to vector<128x128xf32>
    %778 = arith.select %774, %776, %777 : vector<128x128xi1>, vector<128x128xf32>
    %cst_250 = arith.constant dense<0.000000e+00> : vector<16x128xf32>
    %779 = tpu.matmul %567, %778, %cst_250 {dimension_numbers = #tpu.dot_dimension_numbers<[1], [0], [0], [1], [0, 0, 1, 1], [], []>} : vector<16x128xf32>, vector<128x128xf32>, vector<16x128xf32> -> vector<16x128xf32>
    %780 = vector.broadcast %772 : vector<1x128xi32> to vector<16x128xi32>
    %781 = arith.cmpi eq, %503, %780 : vector<16x128xi32>
    %cst_251 = arith.constant 0.000000e+00 : f32
    %782 = vector.broadcast %cst_251 : f32 to vector<16x128xf32>
    %783 = arith.select %781, %779, %782 : vector<16x128xi1>, vector<16x128xf32>
    %784 = arith.addf %748, %783 : vector<16x128xf32>
    %785 = arith.xori %521, %561 : vector<1x128xi32>
    %786 = arith.xori %785, %563 : vector<1x128xi32>
    %787 = arith.sitofp %786 : vector<1x128xi32> to vector<1x128xf32>
    %cst_252 = arith.constant 9.69932124E-4 : f32
    %788 = vector.broadcast %cst_252 : f32 to vector<1x128xf32>
    %789 = arith.mulf %787, %788 : vector<1x128xf32>
    %790 = math.floor %789 : vector<1x128xf32>
    %791 = arith.fptosi %790 : vector<1x128xf32> to vector<1x128xi32>
    %c1031_i32_253 = arith.constant 1031 : i32
    %792 = vector.broadcast %c1031_i32_253 : i32 to vector<1x128xi32>
    %793 = arith.muli %791, %792 : vector<1x128xi32>
    %794 = arith.subi %786, %793 : vector<1x128xi32>
    %c0_i32_254 = arith.constant 0 : i32
    %795 = vector.broadcast %c0_i32_254 : i32 to vector<1x128xi32>
    %796 = arith.cmpi slt, %794, %795 : vector<1x128xi32>
    %c1031_i32_255 = arith.constant 1031 : i32
    %797 = vector.broadcast %c1031_i32_255 : i32 to vector<1x128xi32>
    %798 = arith.addi %794, %797 : vector<1x128xi32>
    %799 = arith.select %796, %798, %794 : vector<1x128xi1>, vector<1x128xi32>
    %c1031_i32_256 = arith.constant 1031 : i32
    %800 = vector.broadcast %c1031_i32_256 : i32 to vector<1x128xi32>
    %801 = arith.cmpi sge, %799, %800 : vector<1x128xi32>
    %c1031_i32_257 = arith.constant 1031 : i32
    %802 = vector.broadcast %c1031_i32_257 : i32 to vector<1x128xi32>
    %803 = arith.subi %799, %802 : vector<1x128xi32>
    %804 = arith.select %801, %803, %799 : vector<1x128xi1>, vector<1x128xi32>
    %c127_i32_258 = arith.constant 127 : i32
    %805 = vector.broadcast %c127_i32_258 : i32 to vector<1x128xi32>
    %806 = arith.andi %804, %805 : vector<1x128xi32>
    %c7_i32_259 = arith.constant 7 : i32
    %807 = vector.broadcast %c7_i32_259 : i32 to vector<1x128xi32>
    %808 = arith.shrsi %804, %807 : vector<1x128xi32>
    %809 = vector.broadcast %806 : vector<1x128xi32> to vector<128x128xi32>
    %810 = arith.cmpi eq, %7, %809 : vector<128x128xi32>
    %cst_260 = arith.constant 0.000000e+00 : f32
    %811 = vector.shape_cast %550 : vector<1x128xf32> to vector<1x128xf32>
    %812 = vector.broadcast %811 : vector<1x128xf32> to vector<128x128xf32>
    %813 = vector.broadcast %cst_260 : f32 to vector<128x128xf32>
    %814 = arith.select %810, %812, %813 : vector<128x128xi1>, vector<128x128xf32>
    %cst_261 = arith.constant dense<0.000000e+00> : vector<16x128xf32>
    %815 = tpu.matmul %567, %814, %cst_261 {dimension_numbers = #tpu.dot_dimension_numbers<[1], [0], [0], [1], [0, 0, 1, 1], [], []>} : vector<16x128xf32>, vector<128x128xf32>, vector<16x128xf32> -> vector<16x128xf32>
    %816 = vector.broadcast %808 : vector<1x128xi32> to vector<16x128xi32>
    %817 = arith.cmpi eq, %503, %816 : vector<16x128xi32>
    %cst_262 = arith.constant 0.000000e+00 : f32
    %818 = vector.broadcast %cst_262 : f32 to vector<16x128xf32>
    %819 = arith.select %817, %815, %818 : vector<16x128xi1>, vector<16x128xf32>
    %820 = arith.addf %784, %819 : vector<16x128xf32>
    %821 = arith.xori %521, %561 : vector<1x128xi32>
    %822 = arith.xori %821, %565 : vector<1x128xi32>
    %823 = arith.sitofp %822 : vector<1x128xi32> to vector<1x128xf32>
    %cst_263 = arith.constant 9.69932124E-4 : f32
    %824 = vector.broadcast %cst_263 : f32 to vector<1x128xf32>
    %825 = arith.mulf %823, %824 : vector<1x128xf32>
    %826 = math.floor %825 : vector<1x128xf32>
    %827 = arith.fptosi %826 : vector<1x128xf32> to vector<1x128xi32>
    %c1031_i32_264 = arith.constant 1031 : i32
    %828 = vector.broadcast %c1031_i32_264 : i32 to vector<1x128xi32>
    %829 = arith.muli %827, %828 : vector<1x128xi32>
    %830 = arith.subi %822, %829 : vector<1x128xi32>
    %c0_i32_265 = arith.constant 0 : i32
    %831 = vector.broadcast %c0_i32_265 : i32 to vector<1x128xi32>
    %832 = arith.cmpi slt, %830, %831 : vector<1x128xi32>
    %c1031_i32_266 = arith.constant 1031 : i32
    %833 = vector.broadcast %c1031_i32_266 : i32 to vector<1x128xi32>
    %834 = arith.addi %830, %833 : vector<1x128xi32>
    %835 = arith.select %832, %834, %830 : vector<1x128xi1>, vector<1x128xi32>
    %c1031_i32_267 = arith.constant 1031 : i32
    %836 = vector.broadcast %c1031_i32_267 : i32 to vector<1x128xi32>
    %837 = arith.cmpi sge, %835, %836 : vector<1x128xi32>
    %c1031_i32_268 = arith.constant 1031 : i32
    %838 = vector.broadcast %c1031_i32_268 : i32 to vector<1x128xi32>
    %839 = arith.subi %835, %838 : vector<1x128xi32>
    %840 = arith.select %837, %839, %835 : vector<1x128xi1>, vector<1x128xi32>
    %c127_i32_269 = arith.constant 127 : i32
    %841 = vector.broadcast %c127_i32_269 : i32 to vector<1x128xi32>
    %842 = arith.andi %840, %841 : vector<1x128xi32>
    %c7_i32_270 = arith.constant 7 : i32
    %843 = vector.broadcast %c7_i32_270 : i32 to vector<1x128xi32>
    %844 = arith.shrsi %840, %843 : vector<1x128xi32>
    %845 = vector.broadcast %842 : vector<1x128xi32> to vector<128x128xi32>
    %846 = arith.cmpi eq, %7, %845 : vector<128x128xi32>
    %cst_271 = arith.constant 0.000000e+00 : f32
    %847 = vector.shape_cast %550 : vector<1x128xf32> to vector<1x128xf32>
    %848 = vector.broadcast %847 : vector<1x128xf32> to vector<128x128xf32>
    %849 = vector.broadcast %cst_271 : f32 to vector<128x128xf32>
    %850 = arith.select %846, %848, %849 : vector<128x128xi1>, vector<128x128xf32>
    %cst_272 = arith.constant dense<0.000000e+00> : vector<16x128xf32>
    %851 = tpu.matmul %567, %850, %cst_272 {dimension_numbers = #tpu.dot_dimension_numbers<[1], [0], [0], [1], [0, 0, 1, 1], [], []>} : vector<16x128xf32>, vector<128x128xf32>, vector<16x128xf32> -> vector<16x128xf32>
    %852 = vector.broadcast %844 : vector<1x128xi32> to vector<16x128xi32>
    %853 = arith.cmpi eq, %503, %852 : vector<16x128xi32>
    %cst_273 = arith.constant 0.000000e+00 : f32
    %854 = vector.broadcast %cst_273 : f32 to vector<16x128xf32>
    %855 = arith.select %853, %851, %854 : vector<16x128xi1>, vector<16x128xf32>
    %856 = arith.addf %820, %855 : vector<16x128xf32>
    %cst_274 = arith.constant dense<0.000000e+00> : vector<128xf32>
    %857 = vector.multi_reduction <add>, %856, %cst_274 [0] : vector<16x128xf32> to vector<128xf32>
    %858 = vector.shape_cast %857 : vector<128xf32> to vector<1x128xf32>
    %c0_275 = arith.constant 0 : index
    %c5 = arith.constant 5 : index
    %c0_276 = arith.constant 0 : index
    %859 = vector.load %arg3[%c0_275, %c5, %c0_276] : memref<1x7x128xf32, #tpu.memory_space<vmem>>, vector<1x1x128xf32>
    %860 = vector.shape_cast %859 : vector<1x1x128xf32> to vector<1x128xf32>
    %861 = vector.shape_cast %858 : vector<1x128xf32> to vector<1x1x128xf32>
    tpu.vector_store %arg3[%c0_275, %c5, %c0_276], %861 {strides = array<i32>} : memref<1x7x128xf32, #tpu.memory_space<vmem>>, vector<1x1x128xf32>,
    %862 = tpu.iota {dimensions = array<i32: 0>} : vector<16x128xi32>
    %cst_277 = arith.constant 5.000000e-02 : f32
    %863 = vector.broadcast %cst_277 : f32 to vector<1x128xf32>
    %864 = arith.divf %4, %863 : vector<1x128xf32>
    %cst_278 = arith.constant 5.000000e-02 : f32
    %865 = vector.broadcast %cst_278 : f32 to vector<1x128xf32>
    %866 = arith.divf %5, %865 : vector<1x128xf32>
    %cst_279 = arith.constant 5.000000e-02 : f32
    %867 = vector.broadcast %cst_279 : f32 to vector<1x128xf32>
    %868 = arith.divf %6, %867 : vector<1x128xf32>
    %869 = arith.fptosi %864 : vector<1x128xf32> to vector<1x128xi32>
    %c0_i32_280 = arith.constant 0 : i32
    %c20_i32 = arith.constant 20 : i32
    %870 = vector.broadcast %c0_i32_280 : i32 to vector<1x128xi32>
    %871 = arith.maxsi %870, %869 : vector<1x128xi32>
    %872 = vector.broadcast %c20_i32 : i32 to vector<1x128xi32>
    %873 = arith.minsi %872, %871 : vector<1x128xi32>
    %cst_281 = arith.constant 1.000000e+00 : f32
    %874 = vector.broadcast %cst_281 : f32 to vector<1x128xf32>
    %875 = arith.addf %864, %874 : vector<1x128xf32>
    %876 = arith.fptosi %875 : vector<1x128xf32> to vector<1x128xi32>
    %c0_i32_282 = arith.constant 0 : i32
    %c20_i32_283 = arith.constant 20 : i32
    %877 = vector.broadcast %c0_i32_282 : i32 to vector<1x128xi32>
    %878 = arith.maxsi %877, %876 : vector<1x128xi32>
    %879 = vector.broadcast %c20_i32_283 : i32 to vector<1x128xi32>
    %880 = arith.minsi %879, %878 : vector<1x128xi32>
    %881 = arith.fptosi %866 : vector<1x128xf32> to vector<1x128xi32>
    %c0_i32_284 = arith.constant 0 : i32
    %c20_i32_285 = arith.constant 20 : i32
    %882 = vector.broadcast %c0_i32_284 : i32 to vector<1x128xi32>
    %883 = arith.maxsi %882, %881 : vector<1x128xi32>
    %884 = vector.broadcast %c20_i32_285 : i32 to vector<1x128xi32>
    %885 = arith.minsi %884, %883 : vector<1x128xi32>
    %cst_286 = arith.constant 1.000000e+00 : f32
    %886 = vector.broadcast %cst_286 : f32 to vector<1x128xf32>
    %887 = arith.addf %866, %886 : vector<1x128xf32>
    %888 = arith.fptosi %887 : vector<1x128xf32> to vector<1x128xi32>
    %c0_i32_287 = arith.constant 0 : i32
    %c20_i32_288 = arith.constant 20 : i32
    %889 = vector.broadcast %c0_i32_287 : i32 to vector<1x128xi32>
    %890 = arith.maxsi %889, %888 : vector<1x128xi32>
    %891 = vector.broadcast %c20_i32_288 : i32 to vector<1x128xi32>
    %892 = arith.minsi %891, %890 : vector<1x128xi32>
    %893 = arith.fptosi %868 : vector<1x128xf32> to vector<1x128xi32>
    %c0_i32_289 = arith.constant 0 : i32
    %c20_i32_290 = arith.constant 20 : i32
    %894 = vector.broadcast %c0_i32_289 : i32 to vector<1x128xi32>
    %895 = arith.maxsi %894, %893 : vector<1x128xi32>
    %896 = vector.broadcast %c20_i32_290 : i32 to vector<1x128xi32>
    %897 = arith.minsi %896, %895 : vector<1x128xi32>
    %898 = arith.sitofp %873 : vector<1x128xi32> to vector<1x128xf32>
    %899 = arith.subf %864, %898 : vector<1x128xf32>
    %900 = arith.sitofp %885 : vector<1x128xi32> to vector<1x128xf32>
    %901 = arith.subf %866, %900 : vector<1x128xf32>
    %cst_291 = arith.constant 1.000000e+00 : f32
    %902 = vector.broadcast %cst_291 : f32 to vector<1x128xf32>
    %903 = arith.subf %902, %899 : vector<1x128xf32>
    %cst_292 = arith.constant 1.000000e+00 : f32
    %904 = vector.broadcast %cst_292 : f32 to vector<1x128xf32>
    %905 = arith.subf %904, %901 : vector<1x128xf32>
    %906 = arith.mulf %903, %905 : vector<1x128xf32>
    %907 = arith.mulf %903, %901 : vector<1x128xf32>
    %908 = arith.mulf %899, %905 : vector<1x128xf32>
    %909 = arith.mulf %899, %901 : vector<1x128xf32>
    %cst_293 = arith.constant 1.000000e+00 : f32
    %910 = vector.broadcast %cst_293 : f32 to vector<1x128xf32>
    %911 = arith.addf %868, %910 : vector<1x128xf32>
    %912 = arith.fptosi %911 : vector<1x128xf32> to vector<1x128xi32>
    %c0_i32_294 = arith.constant 0 : i32
    %c20_i32_295 = arith.constant 20 : i32
    %913 = vector.broadcast %c0_i32_294 : i32 to vector<1x128xi32>
    %914 = arith.maxsi %913, %912 : vector<1x128xi32>
    %915 = vector.broadcast %c20_i32_295 : i32 to vector<1x128xi32>
    %916 = arith.minsi %915, %914 : vector<1x128xi32>
    %c19349663_i32_296 = arith.constant 19349663 : i32
    %917 = vector.broadcast %c19349663_i32_296 : i32 to vector<1x128xi32>
    %918 = arith.muli %885, %917 : vector<1x128xi32>
    %c19349663_i32_297 = arith.constant 19349663 : i32
    %919 = vector.broadcast %c19349663_i32_297 : i32 to vector<1x128xi32>
    %920 = arith.muli %892, %919 : vector<1x128xi32>
    %c83492791_i32_298 = arith.constant 83492791 : i32
    %921 = vector.broadcast %c83492791_i32_298 : i32 to vector<1x128xi32>
    %922 = arith.muli %897, %921 : vector<1x128xi32>
    %c83492791_i32_299 = arith.constant 83492791 : i32
    %923 = vector.broadcast %c83492791_i32_299 : i32 to vector<1x128xi32>
    %924 = arith.muli %916, %923 : vector<1x128xi32>
    %c3_300 = arith.constant 3 : index
    %c0_301 = arith.constant 0 : index
    %c0_302 = arith.constant 0 : index
    %925 = vector.load %arg2[%c3_300, %c0_301, %c0_302] : memref<4x16x128xf32, #tpu.memory_space<vmem>>, vector<1x16x128xf32>
    %926 = vector.shape_cast %925 : vector<1x16x128xf32> to vector<16x128xf32>
    %cst_303 = arith.constant 0.000000e+00 : f32
    %927 = vector.broadcast %cst_303 : f32 to vector<16x128xf32>
    %928 = arith.xori %873, %918 : vector<1x128xi32>
    %929 = arith.xori %928, %922 : vector<1x128xi32>
    %930 = arith.sitofp %929 : vector<1x128xi32> to vector<1x128xf32>
    %cst_304 = arith.constant 9.69932124E-4 : f32
    %931 = vector.broadcast %cst_304 : f32 to vector<1x128xf32>
    %932 = arith.mulf %930, %931 : vector<1x128xf32>
    %933 = math.floor %932 : vector<1x128xf32>
    %934 = arith.fptosi %933 : vector<1x128xf32> to vector<1x128xi32>
    %c1031_i32_305 = arith.constant 1031 : i32
    %935 = vector.broadcast %c1031_i32_305 : i32 to vector<1x128xi32>
    %936 = arith.muli %934, %935 : vector<1x128xi32>
    %937 = arith.subi %929, %936 : vector<1x128xi32>
    %c0_i32_306 = arith.constant 0 : i32
    %938 = vector.broadcast %c0_i32_306 : i32 to vector<1x128xi32>
    %939 = arith.cmpi slt, %937, %938 : vector<1x128xi32>
    %c1031_i32_307 = arith.constant 1031 : i32
    %940 = vector.broadcast %c1031_i32_307 : i32 to vector<1x128xi32>
    %941 = arith.addi %937, %940 : vector<1x128xi32>
    %942 = arith.select %939, %941, %937 : vector<1x128xi1>, vector<1x128xi32>
    %c1031_i32_308 = arith.constant 1031 : i32
    %943 = vector.broadcast %c1031_i32_308 : i32 to vector<1x128xi32>
    %944 = arith.cmpi sge, %942, %943 : vector<1x128xi32>
    %c1031_i32_309 = arith.constant 1031 : i32
    %945 = vector.broadcast %c1031_i32_309 : i32 to vector<1x128xi32>
    %946 = arith.subi %942, %945 : vector<1x128xi32>
    %947 = arith.select %944, %946, %942 : vector<1x128xi1>, vector<1x128xi32>
    %c127_i32_310 = arith.constant 127 : i32
    %948 = vector.broadcast %c127_i32_310 : i32 to vector<1x128xi32>
    %949 = arith.andi %947, %948 : vector<1x128xi32>
    %c7_i32_311 = arith.constant 7 : i32
    %950 = vector.broadcast %c7_i32_311 : i32 to vector<1x128xi32>
    %951 = arith.shrsi %947, %950 : vector<1x128xi32>
    %952 = vector.broadcast %949 : vector<1x128xi32> to vector<128x128xi32>
    %953 = arith.cmpi eq, %7, %952 : vector<128x128xi32>
    %cst_312 = arith.constant 0.000000e+00 : f32
    %954 = vector.shape_cast %906 : vector<1x128xf32> to vector<1x128xf32>
    %955 = vector.broadcast %954 : vector<1x128xf32> to vector<128x128xf32>
    %956 = vector.broadcast %cst_312 : f32 to vector<128x128xf32>
    %957 = arith.select %953, %955, %956 : vector<128x128xi1>, vector<128x128xf32>
    %cst_313 = arith.constant dense<0.000000e+00> : vector<16x128xf32>
    %958 = tpu.matmul %926, %957, %cst_313 {dimension_numbers = #tpu.dot_dimension_numbers<[1], [0], [0], [1], [0, 0, 1, 1], [], []>} : vector<16x128xf32>, vector<128x128xf32>, vector<16x128xf32> -> vector<16x128xf32>
    %959 = vector.broadcast %951 : vector<1x128xi32> to vector<16x128xi32>
    %960 = arith.cmpi eq, %862, %959 : vector<16x128xi32>
    %cst_314 = arith.constant 0.000000e+00 : f32
    %961 = vector.broadcast %cst_314 : f32 to vector<16x128xf32>
    %962 = arith.select %960, %958, %961 : vector<16x128xi1>, vector<16x128xf32>
    %963 = arith.addf %927, %962 : vector<16x128xf32>
    %964 = arith.xori %873, %918 : vector<1x128xi32>
    %965 = arith.xori %964, %924 : vector<1x128xi32>
    %966 = arith.sitofp %965 : vector<1x128xi32> to vector<1x128xf32>
    %cst_315 = arith.constant 9.69932124E-4 : f32
    %967 = vector.broadcast %cst_315 : f32 to vector<1x128xf32>
    %968 = arith.mulf %966, %967 : vector<1x128xf32>
    %969 = math.floor %968 : vector<1x128xf32>
    %970 = arith.fptosi %969 : vector<1x128xf32> to vector<1x128xi32>
    %c1031_i32_316 = arith.constant 1031 : i32
    %971 = vector.broadcast %c1031_i32_316 : i32 to vector<1x128xi32>
    %972 = arith.muli %970, %971 : vector<1x128xi32>
    %973 = arith.subi %965, %972 : vector<1x128xi32>
    %c0_i32_317 = arith.constant 0 : i32
    %974 = vector.broadcast %c0_i32_317 : i32 to vector<1x128xi32>
    %975 = arith.cmpi slt, %973, %974 : vector<1x128xi32>
    %c1031_i32_318 = arith.constant 1031 : i32
    %976 = vector.broadcast %c1031_i32_318 : i32 to vector<1x128xi32>
    %977 = arith.addi %973, %976 : vector<1x128xi32>
    %978 = arith.select %975, %977, %973 : vector<1x128xi1>, vector<1x128xi32>
    %c1031_i32_319 = arith.constant 1031 : i32
    %979 = vector.broadcast %c1031_i32_319 : i32 to vector<1x128xi32>
    %980 = arith.cmpi sge, %978, %979 : vector<1x128xi32>
    %c1031_i32_320 = arith.constant 1031 : i32
    %981 = vector.broadcast %c1031_i32_320 : i32 to vector<1x128xi32>
    %982 = arith.subi %978, %981 : vector<1x128xi32>
    %983 = arith.select %980, %982, %978 : vector<1x128xi1>, vector<1x128xi32>
    %c127_i32_321 = arith.constant 127 : i32
    %984 = vector.broadcast %c127_i32_321 : i32 to vector<1x128xi32>
    %985 = arith.andi %983, %984 : vector<1x128xi32>
    %c7_i32_322 = arith.constant 7 : i32
    %986 = vector.broadcast %c7_i32_322 : i32 to vector<1x128xi32>
    %987 = arith.shrsi %983, %986 : vector<1x128xi32>
    %988 = vector.broadcast %985 : vector<1x128xi32> to vector<128x128xi32>
    %989 = arith.cmpi eq, %7, %988 : vector<128x128xi32>
    %cst_323 = arith.constant 0.000000e+00 : f32
    %990 = vector.shape_cast %906 : vector<1x128xf32> to vector<1x128xf32>
    %991 = vector.broadcast %990 : vector<1x128xf32> to vector<128x128xf32>
    %992 = vector.broadcast %cst_323 : f32 to vector<128x128xf32>
    %993 = arith.select %989, %991, %992 : vector<128x128xi1>, vector<128x128xf32>
    %cst_324 = arith.constant dense<0.000000e+00> : vector<16x128xf32>
    %994 = tpu.matmul %926, %993, %cst_324 {dimension_numbers = #tpu.dot_dimension_numbers<[1], [0], [0], [1], [0, 0, 1, 1], [], []>} : vector<16x128xf32>, vector<128x128xf32>, vector<16x128xf32> -> vector<16x128xf32>
    %995 = vector.broadcast %987 : vector<1x128xi32> to vector<16x128xi32>
    %996 = arith.cmpi eq, %862, %995 : vector<16x128xi32>
    %cst_325 = arith.constant 0.000000e+00 : f32
    %997 = vector.broadcast %cst_325 : f32 to vector<16x128xf32>
    %998 = arith.select %996, %994, %997 : vector<16x128xi1>, vector<16x128xf32>
    %999 = arith.addf %963, %998 : vector<16x128xf32>
    %1000 = arith.xori %873, %920 : vector<1x128xi32>
    %1001 = arith.xori %1000, %922 : vector<1x128xi32>
    %1002 = arith.sitofp %1001 : vector<1x128xi32> to vector<1x128xf32>
    %cst_326 = arith.constant 9.69932124E-4 : f32
    %1003 = vector.broadcast %cst_326 : f32 to vector<1x128xf32>
    %1004 = arith.mulf %1002, %1003 : vector<1x128xf32>
    %1005 = math.floor %1004 : vector<1x128xf32>
    %1006 = arith.fptosi %1005 : vector<1x128xf32> to vector<1x128xi32>
    %c1031_i32_327 = arith.constant 1031 : i32
    %1007 = vector.broadcast %c1031_i32_327 : i32 to vector<1x128xi32>
    %1008 = arith.muli %1006, %1007 : vector<1x128xi32>
    %1009 = arith.subi %1001, %1008 : vector<1x128xi32>
    %c0_i32_328 = arith.constant 0 : i32
    %1010 = vector.broadcast %c0_i32_328 : i32 to vector<1x128xi32>
    %1011 = arith.cmpi slt, %1009, %1010 : vector<1x128xi32>
    %c1031_i32_329 = arith.constant 1031 : i32
    %1012 = vector.broadcast %c1031_i32_329 : i32 to vector<1x128xi32>
    %1013 = arith.addi %1009, %1012 : vector<1x128xi32>
    %1014 = arith.select %1011, %1013, %1009 : vector<1x128xi1>, vector<1x128xi32>
    %c1031_i32_330 = arith.constant 1031 : i32
    %1015 = vector.broadcast %c1031_i32_330 : i32 to vector<1x128xi32>
    %1016 = arith.cmpi sge, %1014, %1015 : vector<1x128xi32>
    %c1031_i32_331 = arith.constant 1031 : i32
    %1017 = vector.broadcast %c1031_i32_331 : i32 to vector<1x128xi32>
    %1018 = arith.subi %1014, %1017 : vector<1x128xi32>
    %1019 = arith.select %1016, %1018, %1014 : vector<1x128xi1>, vector<1x128xi32>
    %c127_i32_332 = arith.constant 127 : i32
    %1020 = vector.broadcast %c127_i32_332 : i32 to vector<1x128xi32>
    %1021 = arith.andi %1019, %1020 : vector<1x128xi32>
    %c7_i32_333 = arith.constant 7 : i32
    %1022 = vector.broadcast %c7_i32_333 : i32 to vector<1x128xi32>
    %1023 = arith.shrsi %1019, %1022 : vector<1x128xi32>
    %1024 = vector.broadcast %1021 : vector<1x128xi32> to vector<128x128xi32>
    %1025 = arith.cmpi eq, %7, %1024 : vector<128x128xi32>
    %cst_334 = arith.constant 0.000000e+00 : f32
    %1026 = vector.shape_cast %907 : vector<1x128xf32> to vector<1x128xf32>
    %1027 = vector.broadcast %1026 : vector<1x128xf32> to vector<128x128xf32>
    %1028 = vector.broadcast %cst_334 : f32 to vector<128x128xf32>
    %1029 = arith.select %1025, %1027, %1028 : vector<128x128xi1>, vector<128x128xf32>
    %cst_335 = arith.constant dense<0.000000e+00> : vector<16x128xf32>
    %1030 = tpu.matmul %926, %1029, %cst_335 {dimension_numbers = #tpu.dot_dimension_numbers<[1], [0], [0], [1], [0, 0, 1, 1], [], []>} : vector<16x128xf32>, vector<128x128xf32>, vector<16x128xf32> -> vector<16x128xf32>
    %1031 = vector.broadcast %1023 : vector<1x128xi32> to vector<16x128xi32>
    %1032 = arith.cmpi eq, %862, %1031 : vector<16x128xi32>
    %cst_336 = arith.constant 0.000000e+00 : f32
    %1033 = vector.broadcast %cst_336 : f32 to vector<16x128xf32>
    %1034 = arith.select %1032, %1030, %1033 : vector<16x128xi1>, vector<16x128xf32>
    %1035 = arith.addf %999, %1034 : vector<16x128xf32>
    %1036 = arith.xori %873, %920 : vector<1x128xi32>
    %1037 = arith.xori %1036, %924 : vector<1x128xi32>
    %1038 = arith.sitofp %1037 : vector<1x128xi32> to vector<1x128xf32>
    %cst_337 = arith.constant 9.69932124E-4 : f32
    %1039 = vector.broadcast %cst_337 : f32 to vector<1x128xf32>
    %1040 = arith.mulf %1038, %1039 : vector<1x128xf32>
    %1041 = math.floor %1040 : vector<1x128xf32>
    %1042 = arith.fptosi %1041 : vector<1x128xf32> to vector<1x128xi32>
    %c1031_i32_338 = arith.constant 1031 : i32
    %1043 = vector.broadcast %c1031_i32_338 : i32 to vector<1x128xi32>
    %1044 = arith.muli %1042, %1043 : vector<1x128xi32>
    %1045 = arith.subi %1037, %1044 : vector<1x128xi32>
    %c0_i32_339 = arith.constant 0 : i32
    %1046 = vector.broadcast %c0_i32_339 : i32 to vector<1x128xi32>
    %1047 = arith.cmpi slt, %1045, %1046 : vector<1x128xi32>
    %c1031_i32_340 = arith.constant 1031 : i32
    %1048 = vector.broadcast %c1031_i32_340 : i32 to vector<1x128xi32>
    %1049 = arith.addi %1045, %1048 : vector<1x128xi32>
    %1050 = arith.select %1047, %1049, %1045 : vector<1x128xi1>, vector<1x128xi32>
    %c1031_i32_341 = arith.constant 1031 : i32
    %1051 = vector.broadcast %c1031_i32_341 : i32 to vector<1x128xi32>
    %1052 = arith.cmpi sge, %1050, %1051 : vector<1x128xi32>
    %c1031_i32_342 = arith.constant 1031 : i32
    %1053 = vector.broadcast %c1031_i32_342 : i32 to vector<1x128xi32>
    %1054 = arith.subi %1050, %1053 : vector<1x128xi32>
    %1055 = arith.select %1052, %1054, %1050 : vector<1x128xi1>, vector<1x128xi32>
    %c127_i32_343 = arith.constant 127 : i32
    %1056 = vector.broadcast %c127_i32_343 : i32 to vector<1x128xi32>
    %1057 = arith.andi %1055, %1056 : vector<1x128xi32>
    %c7_i32_344 = arith.constant 7 : i32
    %1058 = vector.broadcast %c7_i32_344 : i32 to vector<1x128xi32>
    %1059 = arith.shrsi %1055, %1058 : vector<1x128xi32>
    %1060 = vector.broadcast %1057 : vector<1x128xi32> to vector<128x128xi32>
    %1061 = arith.cmpi eq, %7, %1060 : vector<128x128xi32>
    %cst_345 = arith.constant 0.000000e+00 : f32
    %1062 = vector.shape_cast %907 : vector<1x128xf32> to vector<1x128xf32>
    %1063 = vector.broadcast %1062 : vector<1x128xf32> to vector<128x128xf32>
    %1064 = vector.broadcast %cst_345 : f32 to vector<128x128xf32>
    %1065 = arith.select %1061, %1063, %1064 : vector<128x128xi1>, vector<128x128xf32>
    %cst_346 = arith.constant dense<0.000000e+00> : vector<16x128xf32>
    %1066 = tpu.matmul %926, %1065, %cst_346 {dimension_numbers = #tpu.dot_dimension_numbers<[1], [0], [0], [1], [0, 0, 1, 1], [], []>} : vector<16x128xf32>, vector<128x128xf32>, vector<16x128xf32> -> vector<16x128xf32>
    %1067 = vector.broadcast %1059 : vector<1x128xi32> to vector<16x128xi32>
    %1068 = arith.cmpi eq, %862, %1067 : vector<16x128xi32>
    %cst_347 = arith.constant 0.000000e+00 : f32
    %1069 = vector.broadcast %cst_347 : f32 to vector<16x128xf32>
    %1070 = arith.select %1068, %1066, %1069 : vector<16x128xi1>, vector<16x128xf32>
    %1071 = arith.addf %1035, %1070 : vector<16x128xf32>
    %1072 = arith.xori %880, %918 : vector<1x128xi32>
    %1073 = arith.xori %1072, %922 : vector<1x128xi32>
    %1074 = arith.sitofp %1073 : vector<1x128xi32> to vector<1x128xf32>
    %cst_348 = arith.constant 9.69932124E-4 : f32
    %1075 = vector.broadcast %cst_348 : f32 to vector<1x128xf32>
    %1076 = arith.mulf %1074, %1075 : vector<1x128xf32>
    %1077 = math.floor %1076 : vector<1x128xf32>
    %1078 = arith.fptosi %1077 : vector<1x128xf32> to vector<1x128xi32>
    %c1031_i32_349 = arith.constant 1031 : i32
    %1079 = vector.broadcast %c1031_i32_349 : i32 to vector<1x128xi32>
    %1080 = arith.muli %1078, %1079 : vector<1x128xi32>
    %1081 = arith.subi %1073, %1080 : vector<1x128xi32>
    %c0_i32_350 = arith.constant 0 : i32
    %1082 = vector.broadcast %c0_i32_350 : i32 to vector<1x128xi32>
    %1083 = arith.cmpi slt, %1081, %1082 : vector<1x128xi32>
    %c1031_i32_351 = arith.constant 1031 : i32
    %1084 = vector.broadcast %c1031_i32_351 : i32 to vector<1x128xi32>
    %1085 = arith.addi %1081, %1084 : vector<1x128xi32>
    %1086 = arith.select %1083, %1085, %1081 : vector<1x128xi1>, vector<1x128xi32>
    %c1031_i32_352 = arith.constant 1031 : i32
    %1087 = vector.broadcast %c1031_i32_352 : i32 to vector<1x128xi32>
    %1088 = arith.cmpi sge, %1086, %1087 : vector<1x128xi32>
    %c1031_i32_353 = arith.constant 1031 : i32
    %1089 = vector.broadcast %c1031_i32_353 : i32 to vector<1x128xi32>
    %1090 = arith.subi %1086, %1089 : vector<1x128xi32>
    %1091 = arith.select %1088, %1090, %1086 : vector<1x128xi1>, vector<1x128xi32>
    %c127_i32_354 = arith.constant 127 : i32
    %1092 = vector.broadcast %c127_i32_354 : i32 to vector<1x128xi32>
    %1093 = arith.andi %1091, %1092 : vector<1x128xi32>
    %c7_i32_355 = arith.constant 7 : i32
    %1094 = vector.broadcast %c7_i32_355 : i32 to vector<1x128xi32>
    %1095 = arith.shrsi %1091, %1094 : vector<1x128xi32>
    %1096 = vector.broadcast %1093 : vector<1x128xi32> to vector<128x128xi32>
    %1097 = arith.cmpi eq, %7, %1096 : vector<128x128xi32>
    %cst_356 = arith.constant 0.000000e+00 : f32
    %1098 = vector.shape_cast %908 : vector<1x128xf32> to vector<1x128xf32>
    %1099 = vector.broadcast %1098 : vector<1x128xf32> to vector<128x128xf32>
    %1100 = vector.broadcast %cst_356 : f32 to vector<128x128xf32>
    %1101 = arith.select %1097, %1099, %1100 : vector<128x128xi1>, vector<128x128xf32>
    %cst_357 = arith.constant dense<0.000000e+00> : vector<16x128xf32>
    %1102 = tpu.matmul %926, %1101, %cst_357 {dimension_numbers = #tpu.dot_dimension_numbers<[1], [0], [0], [1], [0, 0, 1, 1], [], []>} : vector<16x128xf32>, vector<128x128xf32>, vector<16x128xf32> -> vector<16x128xf32>
    %1103 = vector.broadcast %1095 : vector<1x128xi32> to vector<16x128xi32>
    %1104 = arith.cmpi eq, %862, %1103 : vector<16x128xi32>
    %cst_358 = arith.constant 0.000000e+00 : f32
    %1105 = vector.broadcast %cst_358 : f32 to vector<16x128xf32>
    %1106 = arith.select %1104, %1102, %1105 : vector<16x128xi1>, vector<16x128xf32>
    %1107 = arith.addf %1071, %1106 : vector<16x128xf32>
    %1108 = arith.xori %880, %918 : vector<1x128xi32>
    %1109 = arith.xori %1108, %924 : vector<1x128xi32>
    %1110 = arith.sitofp %1109 : vector<1x128xi32> to vector<1x128xf32>
    %cst_359 = arith.constant 9.69932124E-4 : f32
    %1111 = vector.broadcast %cst_359 : f32 to vector<1x128xf32>
    %1112 = arith.mulf %1110, %1111 : vector<1x128xf32>
    %1113 = math.floor %1112 : vector<1x128xf32>
    %1114 = arith.fptosi %1113 : vector<1x128xf32> to vector<1x128xi32>
    %c1031_i32_360 = arith.constant 1031 : i32
    %1115 = vector.broadcast %c1031_i32_360 : i32 to vector<1x128xi32>
    %1116 = arith.muli %1114, %1115 : vector<1x128xi32>
    %1117 = arith.subi %1109, %1116 : vector<1x128xi32>
    %c0_i32_361 = arith.constant 0 : i32
    %1118 = vector.broadcast %c0_i32_361 : i32 to vector<1x128xi32>
    %1119 = arith.cmpi slt, %1117, %1118 : vector<1x128xi32>
    %c1031_i32_362 = arith.constant 1031 : i32
    %1120 = vector.broadcast %c1031_i32_362 : i32 to vector<1x128xi32>
    %1121 = arith.addi %1117, %1120 : vector<1x128xi32>
    %1122 = arith.select %1119, %1121, %1117 : vector<1x128xi1>, vector<1x128xi32>
    %c1031_i32_363 = arith.constant 1031 : i32
    %1123 = vector.broadcast %c1031_i32_363 : i32 to vector<1x128xi32>
    %1124 = arith.cmpi sge, %1122, %1123 : vector<1x128xi32>
    %c1031_i32_364 = arith.constant 1031 : i32
    %1125 = vector.broadcast %c1031_i32_364 : i32 to vector<1x128xi32>
    %1126 = arith.subi %1122, %1125 : vector<1x128xi32>
    %1127 = arith.select %1124, %1126, %1122 : vector<1x128xi1>, vector<1x128xi32>
    %c127_i32_365 = arith.constant 127 : i32
    %1128 = vector.broadcast %c127_i32_365 : i32 to vector<1x128xi32>
    %1129 = arith.andi %1127, %1128 : vector<1x128xi32>
    %c7_i32_366 = arith.constant 7 : i32
    %1130 = vector.broadcast %c7_i32_366 : i32 to vector<1x128xi32>
    %1131 = arith.shrsi %1127, %1130 : vector<1x128xi32>
    %1132 = vector.broadcast %1129 : vector<1x128xi32> to vector<128x128xi32>
    %1133 = arith.cmpi eq, %7, %1132 : vector<128x128xi32>
    %cst_367 = arith.constant 0.000000e+00 : f32
    %1134 = vector.shape_cast %908 : vector<1x128xf32> to vector<1x128xf32>
    %1135 = vector.broadcast %1134 : vector<1x128xf32> to vector<128x128xf32>
    %1136 = vector.broadcast %cst_367 : f32 to vector<128x128xf32>
    %1137 = arith.select %1133, %1135, %1136 : vector<128x128xi1>, vector<128x128xf32>
    %cst_368 = arith.constant dense<0.000000e+00> : vector<16x128xf32>
    %1138 = tpu.matmul %926, %1137, %cst_368 {dimension_numbers = #tpu.dot_dimension_numbers<[1], [0], [0], [1], [0, 0, 1, 1], [], []>} : vector<16x128xf32>, vector<128x128xf32>, vector<16x128xf32> -> vector<16x128xf32>
    %1139 = vector.broadcast %1131 : vector<1x128xi32> to vector<16x128xi32>
    %1140 = arith.cmpi eq, %862, %1139 : vector<16x128xi32>
    %cst_369 = arith.constant 0.000000e+00 : f32
    %1141 = vector.broadcast %cst_369 : f32 to vector<16x128xf32>
    %1142 = arith.select %1140, %1138, %1141 : vector<16x128xi1>, vector<16x128xf32>
    %1143 = arith.addf %1107, %1142 : vector<16x128xf32>
    %1144 = arith.xori %880, %920 : vector<1x128xi32>
    %1145 = arith.xori %1144, %922 : vector<1x128xi32>
    %1146 = arith.sitofp %1145 : vector<1x128xi32> to vector<1x128xf32>
    %cst_370 = arith.constant 9.69932124E-4 : f32
    %1147 = vector.broadcast %cst_370 : f32 to vector<1x128xf32>
    %1148 = arith.mulf %1146, %1147 : vector<1x128xf32>
    %1149 = math.floor %1148 : vector<1x128xf32>
    %1150 = arith.fptosi %1149 : vector<1x128xf32> to vector<1x128xi32>
    %c1031_i32_371 = arith.constant 1031 : i32
    %1151 = vector.broadcast %c1031_i32_371 : i32 to vector<1x128xi32>
    %1152 = arith.muli %1150, %1151 : vector<1x128xi32>
    %1153 = arith.subi %1145, %1152 : vector<1x128xi32>
    %c0_i32_372 = arith.constant 0 : i32
    %1154 = vector.broadcast %c0_i32_372 : i32 to vector<1x128xi32>
    %1155 = arith.cmpi slt, %1153, %1154 : vector<1x128xi32>
    %c1031_i32_373 = arith.constant 1031 : i32
    %1156 = vector.broadcast %c1031_i32_373 : i32 to vector<1x128xi32>
    %1157 = arith.addi %1153, %1156 : vector<1x128xi32>
    %1158 = arith.select %1155, %1157, %1153 : vector<1x128xi1>, vector<1x128xi32>
    %c1031_i32_374 = arith.constant 1031 : i32
    %1159 = vector.broadcast %c1031_i32_374 : i32 to vector<1x128xi32>
    %1160 = arith.cmpi sge, %1158, %1159 : vector<1x128xi32>
    %c1031_i32_375 = arith.constant 1031 : i32
    %1161 = vector.broadcast %c1031_i32_375 : i32 to vector<1x128xi32>
    %1162 = arith.subi %1158, %1161 : vector<1x128xi32>
    %1163 = arith.select %1160, %1162, %1158 : vector<1x128xi1>, vector<1x128xi32>
    %c127_i32_376 = arith.constant 127 : i32
    %1164 = vector.broadcast %c127_i32_376 : i32 to vector<1x128xi32>
    %1165 = arith.andi %1163, %1164 : vector<1x128xi32>
    %c7_i32_377 = arith.constant 7 : i32
    %1166 = vector.broadcast %c7_i32_377 : i32 to vector<1x128xi32>
    %1167 = arith.shrsi %1163, %1166 : vector<1x128xi32>
    %1168 = vector.broadcast %1165 : vector<1x128xi32> to vector<128x128xi32>
    %1169 = arith.cmpi eq, %7, %1168 : vector<128x128xi32>
    %cst_378 = arith.constant 0.000000e+00 : f32
    %1170 = vector.shape_cast %909 : vector<1x128xf32> to vector<1x128xf32>
    %1171 = vector.broadcast %1170 : vector<1x128xf32> to vector<128x128xf32>
    %1172 = vector.broadcast %cst_378 : f32 to vector<128x128xf32>
    %1173 = arith.select %1169, %1171, %1172 : vector<128x128xi1>, vector<128x128xf32>
    %cst_379 = arith.constant dense<0.000000e+00> : vector<16x128xf32>
    %1174 = tpu.matmul %926, %1173, %cst_379 {dimension_numbers = #tpu.dot_dimension_numbers<[1], [0], [0], [1], [0, 0, 1, 1], [], []>} : vector<16x128xf32>, vector<128x128xf32>, vector<16x128xf32> -> vector<16x128xf32>
    %1175 = vector.broadcast %1167 : vector<1x128xi32> to vector<16x128xi32>
    %1176 = arith.cmpi eq, %862, %1175 : vector<16x128xi32>
    %cst_380 = arith.constant 0.000000e+00 : f32
    %1177 = vector.broadcast %cst_380 : f32 to vector<16x128xf32>
    %1178 = arith.select %1176, %1174, %1177 : vector<16x128xi1>, vector<16x128xf32>
    %1179 = arith.addf %1143, %1178 : vector<16x128xf32>
    %1180 = arith.xori %880, %920 : vector<1x128xi32>
    %1181 = arith.xori %1180, %924 : vector<1x128xi32>
    %1182 = arith.sitofp %1181 : vector<1x128xi32> to vector<1x128xf32>
    %cst_381 = arith.constant 9.69932124E-4 : f32
    %1183 = vector.broadcast %cst_381 : f32 to vector<1x128xf32>
    %1184 = arith.mulf %1182, %1183 : vector<1x128xf32>
    %1185 = math.floor %1184 : vector<1x128xf32>
    %1186 = arith.fptosi %1185 : vector<1x128xf32> to vector<1x128xi32>
    %c1031_i32_382 = arith.constant 1031 : i32
    %1187 = vector.broadcast %c1031_i32_382 : i32 to vector<1x128xi32>
    %1188 = arith.muli %1186, %1187 : vector<1x128xi32>
    %1189 = arith.subi %1181, %1188 : vector<1x128xi32>
    %c0_i32_383 = arith.constant 0 : i32
    %1190 = vector.broadcast %c0_i32_383 : i32 to vector<1x128xi32>
    %1191 = arith.cmpi slt, %1189, %1190 : vector<1x128xi32>
    %c1031_i32_384 = arith.constant 1031 : i32
    %1192 = vector.broadcast %c1031_i32_384 : i32 to vector<1x128xi32>
    %1193 = arith.addi %1189, %1192 : vector<1x128xi32>
    %1194 = arith.select %1191, %1193, %1189 : vector<1x128xi1>, vector<1x128xi32>
    %c1031_i32_385 = arith.constant 1031 : i32
    %1195 = vector.broadcast %c1031_i32_385 : i32 to vector<1x128xi32>
    %1196 = arith.cmpi sge, %1194, %1195 : vector<1x128xi32>
    %c1031_i32_386 = arith.constant 1031 : i32
    %1197 = vector.broadcast %c1031_i32_386 : i32 to vector<1x128xi32>
    %1198 = arith.subi %1194, %1197 : vector<1x128xi32>
    %1199 = arith.select %1196, %1198, %1194 : vector<1x128xi1>, vector<1x128xi32>
    %c127_i32_387 = arith.constant 127 : i32
    %1200 = vector.broadcast %c127_i32_387 : i32 to vector<1x128xi32>
    %1201 = arith.andi %1199, %1200 : vector<1x128xi32>
    %c7_i32_388 = arith.constant 7 : i32
    %1202 = vector.broadcast %c7_i32_388 : i32 to vector<1x128xi32>
    %1203 = arith.shrsi %1199, %1202 : vector<1x128xi32>
    %1204 = vector.broadcast %1201 : vector<1x128xi32> to vector<128x128xi32>
    %1205 = arith.cmpi eq, %7, %1204 : vector<128x128xi32>
    %cst_389 = arith.constant 0.000000e+00 : f32
    %1206 = vector.shape_cast %909 : vector<1x128xf32> to vector<1x128xf32>
    %1207 = vector.broadcast %1206 : vector<1x128xf32> to vector<128x128xf32>
    %1208 = vector.broadcast %cst_389 : f32 to vector<128x128xf32>
    %1209 = arith.select %1205, %1207, %1208 : vector<128x128xi1>, vector<128x128xf32>
    %cst_390 = arith.constant dense<0.000000e+00> : vector<16x128xf32>
    %1210 = tpu.matmul %926, %1209, %cst_390 {dimension_numbers = #tpu.dot_dimension_numbers<[1], [0], [0], [1], [0, 0, 1, 1], [], []>} : vector<16x128xf32>, vector<128x128xf32>, vector<16x128xf32> -> vector<16x128xf32>
    %1211 = vector.broadcast %1203 : vector<1x128xi32> to vector<16x128xi32>
    %1212 = arith.cmpi eq, %862, %1211 : vector<16x128xi32>
    %cst_391 = arith.constant 0.000000e+00 : f32
    %1213 = vector.broadcast %cst_391 : f32 to vector<16x128xf32>
    %1214 = arith.select %1212, %1210, %1213 : vector<16x128xi1>, vector<16x128xf32>
    %1215 = arith.addf %1179, %1214 : vector<16x128xf32>
    %cst_392 = arith.constant dense<0.000000e+00> : vector<128xf32>
    %1216 = vector.multi_reduction <add>, %1215, %cst_392 [0] : vector<16x128xf32> to vector<128xf32>
    %1217 = vector.shape_cast %1216 : vector<128xf32> to vector<1x128xf32>
    %c0_393 = arith.constant 0 : index
    %c6 = arith.constant 6 : index
    %c0_394 = arith.constant 0 : index
    %1218 = vector.load %arg3[%c0_393, %c6, %c0_394] : memref<1x7x128xf32, #tpu.memory_space<vmem>>, vector<1x1x128xf32>
    %1219 = vector.shape_cast %1218 : vector<1x1x128xf32> to vector<1x128xf32>
    %1220 = vector.shape_cast %1217 : vector<1x128xf32> to vector<1x1x128xf32>
    tpu.vector_store %arg3[%c0_393, %c6, %c0_394], %1220 {strides = array<i32>} : memref<1x7x128xf32, #tpu.memory_space<vmem>>, vector<1x1x128xf32>,
    return
  }
  func.func @transform_0(%arg0: i32) -> (i32, i32) {
    %c0_i32 = arith.constant 0 : i32
    %c0_i32_0 = arith.constant 0 : i32
    return %c0_i32, %arg0 : i32, i32
  }
  func.func @transform_1(%arg0: i32) -> (i32, i32, i32) {
    %c0_i32 = arith.constant 0 : i32
    %c0_i32_0 = arith.constant 0 : i32
    %c0_i32_1 = arith.constant 0 : i32
    %c0_i32_2 = arith.constant 0 : i32
    return %c0_i32, %c0_i32_0, %c0_i32_1 : i32, i32, i32
  }
  func.func @transform_2(%arg0: i32) -> (i32, i32, i32) {
    %c0_i32 = arith.constant 0 : i32
    %c0_i32_0 = arith.constant 0 : i32
    %c0_i32_1 = arith.constant 0 : i32
    return %arg0, %c0_i32, %c0_i32_0 : i32, i32, i32
  }
}

</mosaic_0001>

<llo_original>
// kernel: fwd.1
$region0: #{fwd.1}
  #allocation0 [shape = 'u32[]', space=smem, size = 0x4, offset = 0x4, fixed_abs, tag = 'smem constant byte address 0x4 - core index']
  #allocation1 [shape = 'u32[144,128]{1,0:T(1,128)}', space=vmem, size = 0x12000, scoped, tag = 'internal scratch']
  %s0 = inlined_call_operand.vmem [shape: f32[3,1024], index: 0, kind: input, shape index: {}]
  %s1 = inlined_call_operand.vmem [shape: f32[4,16,128], index: 1, kind: input, shape index: {}]
  %s2 = inlined_call_operand.vmem [shape: f32[8,7,128], index: 2, kind: output, shape index: {}]
  %s3 = sld [smem:[#allocation0]]
  $region41: #{fwd.1} parent=0
    _
  %s5 = ssub.s32 1, %s3
  %s6 = scalar_select 0, %s5, %s3
  loop: start=0, step=1, limit=10
  $region2: #{fwd.1} parent=0 // loop_pre_header
    _
  $region3: #{fwd.1} parent=0 // loop_header
    %s8 = sphi 0, %s12
    %p9 = scmp.ge.s32.totalorder %s8, 10
    %s18 = sphi 0, %s20
    %s21 = sphi 0, %s18
    %s22 = sphi 0, %s21
    %s38 = sphi 0, %s22
    %s42 = sphi 0, %s42
    %s44 = sphi 0, %s42
    %s45 = sphi 0, %s44
    %s59 = sphi 0, %s45
    %s65 = sphi 0, %s67
    %s68 = sphi 0, %s65
    %s69 = sphi 0, %s68
    %s85 = sphi 0, %s69
  $region4: #{fwd.1} parent=0 // loop_header_branch
    %11 = sbr.rel (%p9) target = $region8
  $region5: #{fwd.1} parent=0 // loop_body
    %s13 = ssub.s32 %s8, 1
    %s14 = ssub.s32 %s8, 2
    %s15 = sadd.s32 %s8, 1
    %s16 = ssub.s32 %s8, %s15
    %p17 = scmp.eq.s32.totalorder %s16, 0
    %s19 = sadd.s32 %s18, 1
    %s20 = scalar_select %p17, %s18, %s19
    %p23 = pneg %p17
    %p24 = scmp.eq.s32.totalorder %s8, 7
    %p25 = por %p23, %p24
    %p26 = scmp.ne.s32.totalorder %s18, %s21
    %p27 = scmp.eq.s32.totalorder %s8, 0
    %p28 = por %p26, %p27
    %p29 = scmp.ne.s32.totalorder %s18, %s21
    %p30 = scmp.eq.s32.totalorder %s13, 7
    %p31 = por %p29, %p30
    %p32 = scmp.ne.s32.totalorder %s21, %s22
    %p33 = scmp.eq.s32.totalorder %s13, 0
    %p34 = por %p32, %p33
    %p35 = scmp.ne.s32.totalorder %s21, %s22
    %p36 = scmp.eq.s32.totalorder %s14, 7
    %p37 = por %p35, %p36
    %p39 = scmp.ne.s32.totalorder %s22, %s38
    %p40 = scmp.eq.s32.totalorder %s14, 0
    %p41 = por %p39, %p40
    %s43 = sadd.s32 %s42, 1
    %p46 = scmp.eq.s32.totalorder %s8, 7
    %p47 = scmp.ne.s32.totalorder %s42, %s44
    %p48 = scmp.eq.s32.totalorder %s8, 0
    %p49 = por %p47, %p48
    %p50 = scmp.ne.s32.totalorder %s42, %s44
    %p51 = scmp.eq.s32.totalorder %s13, 7
    %p52 = por %p50, %p51
    %p53 = scmp.ne.s32.totalorder %s44, %s45
    %p54 = scmp.eq.s32.totalorder %s13, 0
    %p55 = por %p53, %p54
    %p56 = scmp.ne.s32.totalorder %s44, %s45
    %p57 = scmp.eq.s32.totalorder %s14, 7
    %p58 = por %p56, %p57
    %p60 = scmp.ne.s32.totalorder %s45, %s59
    %p61 = scmp.eq.s32.totalorder %s14, 0
    %p62 = por %p60, %p61
    %s63 = ssub.s32 %s8, %s15
    %p64 = scmp.eq.s32.totalorder %s63, 0
    %s66 = sadd.s32 %s65, 1
    %s67 = scalar_select %p64, %s65, %s66
    %p70 = pneg %p64
    %p71 = scmp.eq.s32.totalorder %s8, 7
    %p72 = por %p70, %p71
    %p73 = scmp.ne.s32.totalorder %s65, %s68
    %p74 = scmp.eq.s32.totalorder %s8, 0
    %p75 = por %p73, %p74
    %p76 = scmp.ne.s32.totalorder %s65, %s68
    %p77 = scmp.eq.s32.totalorder %s13, 7
    %p78 = por %p76, %p77
    %p79 = scmp.ne.s32.totalorder %s68, %s69
    %p80 = scmp.eq.s32.totalorder %s13, 0
    %p81 = por %p79, %p80
    %p82 = scmp.ne.s32.totalorder %s68, %s69
    %p83 = scmp.eq.s32.totalorder %s14, 7
    %p84 = por %p82, %p83
    %p86 = scmp.ne.s32.totalorder %s69, %s85
    %p87 = scmp.eq.s32.totalorder %s14, 0
    %p88 = por %p86, %p87
    %p89 = scmp.le.s32.totalorder 1, %s8
    %p90 = scmp.lt.s32.totalorder %s8, 9
    %p91 = pnand %p89, %p90
    %p92 = pneg %p91
    // Predicated region
    $region9: #{fwd.1} parent=5 // pred_check
      _
    $region10: #{fwd.1} parent=5 // pred_check_branch
      %94 = sbr.rel (%p91) target = $region12
    $region11: #{fwd.1} parent=5 // pred_region
      %s95 = ssub.s32 %s8, 1
      // Predicated region
      $region13: #{fwd.1} parent=11 // pred_check
        %p96 = pneg %p55
      $region14: #{fwd.1} parent=11 // pred_check_branch
        %98 = sbr.rel (%p96) target = $region16
      $region15: #{fwd.1} parent=11 // pred_region
        _
      $region16: #{fwd.1} parent=11 // pred_fallthru
        _
    $region12: #{fwd.1} parent=5 // pred_fallthru
      _
    %p99 = scmp.lt.s32.totalorder %s8, 8
    // Predicated region
    $region17: #{fwd.1} parent=5 // pred_check
      %p100 = pneg %p99
    $region18: #{fwd.1} parent=5 // pred_check_branch
      %102 = sbr.rel (%p100) target = $region20
    $region19: #{fwd.1} parent=5 // pred_region
      // Predicated region
      $region21: #{fwd.1} parent=19 // pred_check
        %p103 = pneg %p28
      $region22: #{fwd.1} parent=19 // pred_check_branch
        %105 = sbr.rel (%p103) target = $region24
      $region23: #{fwd.1} parent=19 // pred_region
        %p106 = scmp.lt.s32.totalorder %s8, 7
        %s107 = scalar_select %p106, %s8, 7
        %s108 = smul.addr %s107, 4
        %s109 = scalar_lea.vmem %s0, %s108
      $region24: #{fwd.1} parent=19 // pred_fallthru
        _
    $region20: #{fwd.1} parent=5 // pred_fallthru
      _
    %p110 = scmp.le.s32.totalorder 1, %s8
    %p111 = scmp.lt.s32.totalorder %s8, 9
    %p112 = pnand %p110, %p111
    %p113 = pneg %p112
    // Predicated region
    $region25: #{fwd.1} parent=5 // pred_check
      _
    $region26: #{fwd.1} parent=5 // pred_check_branch
      %115 = sbr.rel (%p112) target = $region28
    $region27: #{fwd.1} parent=5 // pred_region
      %s116 = ssub.s32 %s8, 1
      %p117 = scmp.lt.s32.totalorder %s13, 7
      %s118 = scalar_select %p117, %s13, 7
      %s119 = smul.addr %s118, 4
      %s120 = scalar_lea.vmem %s0, %s119
      %p121 = pneg %p34
      %p122 = pneg %p31
      %p123 = pneg %p55
      %p124 = pneg %p52
      %p125 = pneg %p81
      %p126 = pneg %p78
      %p127 = scmp.lt.s32.totalorder %s13, 7
      %s128 = scalar_select %p127, %s13, 7
      %s129 = smul.addr %s128, 8
      %s130 = scalar_lea.vmem %s2, %s129
      %p131 = scmp.lt.s32.totalorder %s13, 7
      %s132 = scalar_select %p131, %s13, 7
      %s133 = smul.addr %s132, 4
      %s134 = scalar_lea.vmem %s0, %s133
      %p135 = scmp.lt.s32.totalorder %s13, 7
      %s136 = scalar_select %p135, %s13, 7
      %s137 = smul.addr %s136, 8
      %s138 = scalar_lea.vmem %s2, %s137
      %v139 = vld [vmem:[%s134] sm:$0x7]
      %140 = vst [vmem:[%s138] sm:$0x7] %v139
      %v141 = vlaneseq
      %v142 = vshrl.u32 %v141, 7
      %v143 = vadd.s32 %v142, 8
      %v144 = vadd.s32 %v142, 16
      %v145 = vadd.s32 %v142, 24
      %v146 = vadd.s32 %v142, 32
      %v147 = vadd.s32 %v142, 40
      %v148 = vadd.s32 %v142, 48
      %v149 = vadd.s32 %v142, 56
      %v150 = vadd.s32 %v142, 64
      %v151 = vadd.s32 %v142, 72
      %v152 = vadd.s32 %v142, 80
      %v153 = vadd.s32 %v142, 88
      %v154 = vadd.s32 %v142, 96
      %v155 = vadd.s32 %v142, 104
      %v156 = vadd.s32 %v142, 112
      %v157 = vadd.s32 %v142, 120
      %v158 = vrcp.pop 0.14285715
      %v159 = vmul.f32 %v139, %v158
      %v160 = vcvt.f32.s32.to.zero.pseudo %v159
      %vm161 = vcmp.gt.s32.totalorder %v160, 0
      %v162 = vsel %vm161, %v160, 0
      %vm163 = vcmp.lt.s32.totalorder %v162, 7
      %v164 = vsel %vm163, %v162, 7
      %v165 = vadd.f32 %v159, 1.0
      %v166 = vcvt.f32.s32.to.zero.pseudo %v165
      %vm167 = vcmp.gt.s32.totalorder %v166, 0
      %v168 = vsel %vm167, %v166, 0
      %vm169 = vcmp.lt.s32.totalorder %v168, 7
      %v170 = vsel %vm169, %v168, 7
      %v171 = vcvt.s32.f32 %v164
      %v172 = vsub.f32 %v159, %v171
      %v173 = vsub.f32 1.0, %v172
      %v175 = vrot.slane %v173, 1
      %v177 = vmul.f32 %v173, %v175
      %v179 = vrot.slane %v172, 1
      %v181 = vmul.f32 %v173, %v179
      %v182 = vmul.f32 %v172, %v175
      %v183 = vmul.f32 %v172, %v179
      %v184 = vmul.u32 %v164, 64
      %v185 = vmul.u32 %v170, 64
      %v186 = vmul.u32 %v164, 8
      %v187 = vmul.u32 %v170, 8
      %v188 = vld [vmem:[%s1] sm:$0xff]
      %v189 = vrot.slane %v186, 1
      %v190 = vadd.s32 %v184, %v189
      %v191 = vrot.slane %v164, 2
      %v192 = vadd.s32 %v190, %v191
      %v193 = vand.u32 %v192, 127
      %v194 = vshra.s32 %v192, 7
      %v195 = vlaneseq
      %v196 = vshrl.u32 %v195, 7
      %v197 = vsub.s32 0, %v196
      %v198 = vrot.slane %v193, %v197
      %vm199 = vcmp.eq.s32.totalorder %v142, %v198
      %vm200 = vcmp.eq.s32.totalorder %v143, %v198
      %vm201 = vcmp.eq.s32.totalorder %v144, %v198
      %vm202 = vcmp.eq.s32.totalorder %v145, %v198
      %vm203 = vcmp.eq.s32.totalorder %v146, %v198
      %vm204 = vcmp.eq.s32.totalorder %v147, %v198
      %vm205 = vcmp.eq.s32.totalorder %v148, %v198
      %vm206 = vcmp.eq.s32.totalorder %v149, %v198
      %vm207 = vcmp.eq.s32.totalorder %v150, %v198
      %vm208 = vcmp.eq.s32.totalorder %v151, %v198
      %vm209 = vcmp.eq.s32.totalorder %v152, %v198
      %vm210 = vcmp.eq.s32.totalorder %v153, %v198
      %vm211 = vcmp.eq.s32.totalorder %v154, %v198
      %vm212 = vcmp.eq.s32.totalorder %v155, %v198
      %vm213 = vcmp.eq.s32.totalorder %v156, %v198
      %vm214 = vcmp.eq.s32.totalorder %v157, %v198
      %v215 = vlaneseq
      %v216 = vshrl.u32 %v215, 7
      %v217 = vsub.s32 0, %v216
      %v218 = vrot.slane %v177, %v217
      %v219 = vsel %vm199, %v218, 0.0
      %v220 = vsel %vm200, %v218, 0.0
      %v221 = vsel %vm201, %v218, 0.0
      %v222 = vsel %vm202, %v218, 0.0
      %v223 = vsel %vm203, %v218, 0.0
      %v224 = vsel %vm204, %v218, 0.0
      %v225 = vsel %vm205, %v218, 0.0
      %v226 = vsel %vm206, %v218, 0.0
      %v227 = vsel %vm207, %v218, 0.0
      %v228 = vsel %vm208, %v218, 0.0
      %v229 = vsel %vm209, %v218, 0.0
      %v230 = vsel %vm210, %v218, 0.0
      %v231 = vsel %vm211, %v218, 0.0
      %v232 = vsel %vm212, %v218, 0.0
      %v233 = vsel %vm213, %v218, 0.0
      %v234 = vsel %vm214, %v218, 0.0
      %235 = vmatprep.subr.mxu0 0.0
      %236 = vmatpush1.msra.mxu0 %v219
      %237 = vmatprep.subr.mxu0 0.0
      %238 = vmatpush1.msra.mxu0 %v220
      %239 = vmatprep.subr.mxu0 0.0
      %240 = vmatpush1.msra.mxu0 %v221
      %241 = vmatprep.subr.mxu0 0.0
      %242 = vmatpush1.msra.mxu0 %v222
      %243 = vmatprep.subr.mxu0 0.0
      %244 = vmatpush1.msra.mxu0 %v223
      %245 = vmatprep.subr.mxu0 0.0
      %246 = vmatpush1.msra.mxu0 %v224
      %247 = vmatprep.subr.mxu0 0.0
      %248 = vmatpush1.msra.mxu0 %v225
      %249 = vmatprep.subr.mxu0 0.0
      %250 = vmatpush1.msra.mxu0 %v226
      %251 = vmatprep.subr.mxu0 0.0
      %252 = vmatpush1.msra.mxu0 %v227
      %253 = vmatprep.subr.mxu0 0.0
      %254 = vmatpush1.msra.mxu0 %v228
      %255 = vmatprep.subr.mxu0 0.0
      %256 = vmatpush1.msra.mxu0 %v229
      %257 = vmatprep.subr.mxu0 0.0
      %258 = vmatpush1.msra.mxu0 %v230
      %259 = vmatprep.subr.mxu0 0.0
      %260 = vmatpush1.msra.mxu0 %v231
      %261 = vmatprep.subr.mxu0 0.0
      %262 = vmatpush1.msra.mxu0 %v232
      %263 = vmatprep.subr.mxu0 0.0
      %264 = vmatpush1.msra.mxu0 %v233
      %265 = vmatprep.subr.mxu0 0.0
      %266 = vmatpush1.msra.mxu0 %v234
      %267 = vmatprep.subr.mxu0 0.0
      %268 = vmatpush1.msra.mxu0 0.0
      %269 = vmatprep.subr.mxu0 0.0
      %270 = vmatpush1.msra.mxu0 0.0
      %271 = vmatprep.subr.mxu0 0.0
      %272 = vmatpush1.msra.mxu0 0.0
      %273 = vmatprep.subr.mxu0 0.0
      %274 = vmatpush1.msra.mxu0 0.0
      %275 = vmatprep.subr.mxu0 0.0
      %276 = vmatpush1.msra.mxu0 0.0
      %277 = vmatprep.subr.mxu0 0.0
      %278 = vmatpush1.msra.mxu0 0.0
      %279 = vmatprep.subr.mxu0 0.0
      %280 = vmatpush1.msra.mxu0 0.0
      %281 = vmatprep.subr.mxu0 0.0
      %282 = vmatpush1.msra.mxu0 0.0
      %283 = vmatprep.subr.mxu0 0.0
      %284 = vmatpush1.msra.mxu0 0.0
      %285 = vmatprep.subr.mxu0 0.0
      %286 = vmatpush1.msra.mxu0 0.0
      %287 = vmatprep.subr.mxu0 0.0
      %288 = vmatpush1.msra.mxu0 0.0
      %289 = vmatprep.subr.mxu0 0.0
      %290 = vmatpush1.msra.mxu0 0.0
      %291 = vmatprep.subr.mxu0 0.0
      %292 = vmatpush1.msra.mxu0 0.0
      %293 = vmatprep.subr.mxu0 0.0
      %294 = vmatpush1.msra.mxu0 0.0
      %295 = vmatprep.subr.mxu0 0.0
      %296 = vmatpush1.msra.mxu0 0.0
      %297 = vmatprep.subr.mxu0 0.0
      %298 = vmatpush1.msra.mxu0 0.0
      %299 = vmatprep.mubr.f32.mxu0 0.0
      %300 = vmatmul.mubr.f32.gmra.mrb[0].mxu0 %v188
      %v301 = vpop.f32.mrb[0].mxu0
      %v302 = vadd.f32 0.0, %v301
      %v303 = vpop.f32.mrb[0].mxu0
      %304 = vdwg.mxu0
      %v305 = vlaneseq
      %v306 = vshrl.u32 %v305, 7
      %v307 = vsub.s32 0, %v306
      %v308 = vrot.slane %v194, %v307
      %vm309 = vcmp.eq.s32.totalorder %v142, %v308
      %v310 = vsel %vm309, %v302, 0.0
      %v311 = vadd.f32 %v310, 0.0
      %v312 = vrot.slane %v187, 1
      %v313 = vadd.s32 %v184, %v312
      %v314 = vadd.s32 %v313, %v191
      %v315 = vand.u32 %v314, 127
      %v316 = vshra.s32 %v314, 7
      %v317 = vlaneseq
      %v318 = vshrl.u32 %v317, 7
      %v319 = vsub.s32 0, %v318
      %v320 = vrot.slane %v315, %v319
      %vm321 = vcmp.eq.s32.totalorder %v142, %v320
      %vm322 = vcmp.eq.s32.totalorder %v143, %v320
      %vm323 = vcmp.eq.s32.totalorder %v144, %v320
      %vm324 = vcmp.eq.s32.totalorder %v145, %v320
      %vm325 = vcmp.eq.s32.totalorder %v146, %v320
      %vm326 = vcmp.eq.s32.totalorder %v147, %v320
      %vm327 = vcmp.eq.s32.totalorder %v148, %v320
      %vm328 = vcmp.eq.s32.totalorder %v149, %v320
      %vm329 = vcmp.eq.s32.totalorder %v150, %v320
      %vm330 = vcmp.eq.s32.totalorder %v151, %v320
      %vm331 = vcmp.eq.s32.totalorder %v152, %v320
      %vm332 = vcmp.eq.s32.totalorder %v153, %v320
      %vm333 = vcmp.eq.s32.totalorder %v154, %v320
      %vm334 = vcmp.eq.s32.totalorder %v155, %v320
      %vm335 = vcmp.eq.s32.totalorder %v156, %v320
      %vm336 = vcmp.eq.s32.totalorder %v157, %v320
      %v337 = vlaneseq
      %v338 = vshrl.u32 %v337, 7
      %v339 = vsub.s32 0, %v338
      %v340 = vrot.slane %v181, %v339
      %v341 = vsel %vm321, %v340, 0.0
      %v342 = vsel %vm322, %v340, 0.0
      %v343 = vsel %vm323, %v340, 0.0
      %v344 = vsel %vm324, %v340, 0.0
      %v345 = vsel %vm325, %v340, 0.0
      %v346 = vsel %vm326, %v340, 0.0
      %v347 = vsel %vm327, %v340, 0.0
      %v348 = vsel %vm328, %v340, 0.0
      %v349 = vsel %vm329, %v340, 0.0
      %v350 = vsel %vm330, %v340, 0.0
      %v351 = vsel %vm331, %v340, 0.0
      %v352 = vsel %vm332, %v340, 0.0
      %v353 = vsel %vm333, %v340, 0.0
      %v354 = vsel %vm334, %v340, 0.0
      %v355 = vsel %vm335, %v340, 0.0
      %v356 = vsel %vm336, %v340, 0.0
      %357 = vmatprep.subr.mxu0 0.0
      %358 = vmatpush1.msra.mxu0 %v341
      %359 = vmatprep.subr.mxu0 0.0
      %360 = vmatpush1.msra.mxu0 %v342
      %361 = vmatprep.subr.mxu0 0.0
      %362 = vmatpush1.msra.mxu0 %v343
      %363 = vmatprep.subr.mxu0 0.0
      %364 = vmatpush1.msra.mxu0 %v344
      %365 = vmatprep.subr.mxu0 0.0
      %366 = vmatpush1.msra.mxu0 %v345
      %367 = vmatprep.subr.mxu0 0.0
      %368 = vmatpush1.msra.mxu0 %v346
      %369 = vmatprep.subr.mxu0 0.0
      %370 = vmatpush1.msra.mxu0 %v347
      %371 = vmatprep.subr.mxu0 0.0
      %372 = vmatpush1.msra.mxu0 %v348
      %373 = vmatprep.subr.mxu0 0.0
      %374 = vmatpush1.msra.mxu0 %v349
      %375 = vmatprep.subr.mxu0 0.0
      %376 = vmatpush1.msra.mxu0 %v350
      %377 = vmatprep.subr.mxu0 0.0
      %378 = vmatpush1.msra.mxu0 %v351
      %379 = vmatprep.subr.mxu0 0.0
      %380 = vmatpush1.msra.mxu0 %v352
      %381 = vmatprep.subr.mxu0 0.0
      %382 = vmatpush1.msra.mxu0 %v353
      %383 = vmatprep.subr.mxu0 0.0
      %384 = vmatpush1.msra.mxu0 %v354
      %385 = vmatprep.subr.mxu0 0.0
      %386 = vmatpush1.msra.mxu0 %v355
      %387 = vmatprep.subr.mxu0 0.0
      %388 = vmatpush1.msra.mxu0 %v356
      %389 = vmatprep.subr.mxu0 0.0
      %390 = vmatpush1.msra.mxu0 0.0
      %391 = vmatprep.subr.mxu0 0.0
      %392 = vmatpush1.msra.mxu0 0.0
      %393 = vmatprep.subr.mxu0 0.0
      %394 = vmatpush1.msra.mxu0 0.0
      %395 = vmatprep.subr.mxu0 0.0
      %396 = vmatpush1.msra.mxu0 0.0
      %397 = vmatprep.subr.mxu0 0.0
      %398 = vmatpush1.msra.mxu0 0.0
      %399 = vmatprep.subr.mxu0 0.0
      %400 = vmatpush1.msra.mxu0 0.0
      %401 = vmatprep.subr.mxu0 0.0
      %402 = vmatpush1.msra.mxu0 0.0
      %403 = vmatprep.subr.mxu0 0.0
      %404 = vmatpush1.msra.mxu0 0.0
      %405 = vmatprep.subr.mxu0 0.0
      %406 = vmatpush1.msra.mxu0 0.0
      %407 = vmatprep.subr.mxu0 0.0
      %408 = vmatpush1.msra.mxu0 0.0
      %409 = vmatprep.subr.mxu0 0.0
      %410 = vmatpush1.msra.mxu0 0.0
      %411 = vmatprep.subr.mxu0 0.0
      %412 = vmatpush1.msra.mxu0 0.0
      %413 = vmatprep.subr.mxu0 0.0
      %414 = vmatpush1.msra.mxu0 0.0
      %415 = vmatprep.subr.mxu0 0.0
      %416 = vmatpush1.msra.mxu0 0.0
      %417 = vmatprep.subr.mxu0 0.0
      %418 = vmatpush1.msra.mxu0 0.0
      %419 = vmatprep.subr.mxu0 0.0
      %420 = vmatpush1.msra.mxu0 0.0
      %421 = vmatprep.mubr.f32.mxu0 0.0
      %422 = vmatmul.mubr.f32.gmra.mrb[0].mxu0 %v188
      %v423 = vpop.f32.mrb[0].mxu0
      %v424 = vadd.f32 0.0, %v423
      %v425 = vpop.f32.mrb[0].mxu0
      %426 = vdwg.mxu0
      %v427 = vlaneseq
      %v428 = vshrl.u32 %v427, 7
      %v429 = vsub.s32 0, %v428
      %v430 = vrot.slane %v316, %v429
      %vm431 = vcmp.eq.s32.totalorder %v142, %v430
      %v432 = vsel %vm431, %v424, 0.0
      %v433 = vadd.f32 %v311, %v432
      %v434 = vadd.s32 %v185, %v189
      %v435 = vadd.s32 %v434, %v191
      %v436 = vand.u32 %v435, 127
      %v437 = vshra.s32 %v435, 7
      %v438 = vlaneseq
      %v439 = vshrl.u32 %v438, 7
      %v440 = vsub.s32 0, %v439
      %v441 = vrot.slane %v436, %v440
      %vm442 = vcmp.eq.s32.totalorder %v142, %v441
      %vm443 = vcmp.eq.s32.totalorder %v143, %v441
      %vm444 = vcmp.eq.s32.totalorder %v144, %v441
      %vm445 = vcmp.eq.s32.totalorder %v145, %v441
      %vm446 = vcmp.eq.s32.totalorder %v146, %v441
      %vm447 = vcmp.eq.s32.totalorder %v147, %v441
      %vm448 = vcmp.eq.s32.totalorder %v148, %v441
      %vm449 = vcmp.eq.s32.totalorder %v149, %v441
      %vm450 = vcmp.eq.s32.totalorder %v150, %v441
      %vm451 = vcmp.eq.s32.totalorder %v151, %v441
      %vm452 = vcmp.eq.s32.totalorder %v152, %v441
      %vm453 = vcmp.eq.s32.totalorder %v153, %v441
      %vm454 = vcmp.eq.s32.totalorder %v154, %v441
      %vm455 = vcmp.eq.s32.totalorder %v155, %v441
      %vm456 = vcmp.eq.s32.totalorder %v156, %v441
      %vm457 = vcmp.eq.s32.totalorder %v157, %v441
      %v458 = vlaneseq
      %v459 = vshrl.u32 %v458, 7
      %v460 = vsub.s32 0, %v459
      %v461 = vrot.slane %v182, %v460
      %v462 = vsel %vm442, %v461, 0.0
      %v463 = vsel %vm443, %v461, 0.0
      %v464 = vsel %vm444, %v461, 0.0
      %v465 = vsel %vm445, %v461, 0.0
      %v466 = vsel %vm446, %v461, 0.0
      %v467 = vsel %vm447, %v461, 0.0
      %v468 = vsel %vm448, %v461, 0.0
      %v469 = vsel %vm449, %v461, 0.0
      %v470 = vsel %vm450, %v461, 0.0
      %v471 = vsel %vm451, %v461, 0.0
      %v472 = vsel %vm452, %v461, 0.0
      %v473 = vsel %vm453, %v461, 0.0
      %v474 = vsel %vm454, %v461, 0.0
      %v475 = vsel %vm455, %v461, 0.0
      %v476 = vsel %vm456, %v461, 0.0
      %v477 = vsel %vm457, %v461, 0.0
      %478 = vmatprep.subr.mxu0 0.0
      %479 = vmatpush1.msra.mxu0 %v462
      %480 = vmatprep.subr.mxu0 0.0
      %481 = vmatpush1.msra.mxu0 %v463
      %482 = vmatprep.subr.mxu0 0.0
      %483 = vmatpush1.msra.mxu0 %v464
      %484 = vmatprep.subr.mxu0 0.0
      %485 = vmatpush1.msra.mxu0 %v465
      %486 = vmatprep.subr.mxu0 0.0
      %487 = vmatpush1.msra.mxu0 %v466
      %488 = vmatprep.subr.mxu0 0.0
      %489 = vmatpush1.msra.mxu0 %v467
      %490 = vmatprep.subr.mxu0 0.0
      %491 = vmatpush1.msra.mxu0 %v468
      %492 = vmatprep.subr.mxu0 0.0
      %493 = vmatpush1.msra.mxu0 %v469
      %494 = vmatprep.subr.mxu0 0.0
      %495 = vmatpush1.msra.mxu0 %v470
      %496 = vmatprep.subr.mxu0 0.0
      %497 = vmatpush1.msra.mxu0 %v471
      %498 = vmatprep.subr.mxu0 0.0
      %499 = vmatpush1.msra.mxu0 %v472
      %500 = vmatprep.subr.mxu0 0.0
      %501 = vmatpush1.msra.mxu0 %v473
      %502 = vmatprep.subr.mxu0 0.0
      %503 = vmatpush1.msra.mxu0 %v474
      %504 = vmatprep.subr.mxu0 0.0
      %505 = vmatpush1.msra.mxu0 %v475
      %506 = vmatprep.subr.mxu0 0.0
      %507 = vmatpush1.msra.mxu0 %v476
      %508 = vmatprep.subr.mxu0 0.0
      %509 = vmatpush1.msra.mxu0 %v477
      %510 = vmatprep.subr.mxu0 0.0
      %511 = vmatpush1.msra.mxu0 0.0
      %512 = vmatprep.subr.mxu0 0.0
      %513 = vmatpush1.msra.mxu0 0.0
      %514 = vmatprep.subr.mxu0 0.0
      %515 = vmatpush1.msra.mxu0 0.0
      %516 = vmatprep.subr.mxu0 0.0
      %517 = vmatpush1.msra.mxu0 0.0
      %518 = vmatprep.subr.mxu0 0.0
      %519 = vmatpush1.msra.mxu0 0.0
      %520 = vmatprep.subr.mxu0 0.0
      %521 = vmatpush1.msra.mxu0 0.0
      %522 = vmatprep.subr.mxu0 0.0
      %523 = vmatpush1.msra.mxu0 0.0
      %524 = vmatprep.subr.mxu0 0.0
      %525 = vmatpush1.msra.mxu0 0.0
      %526 = vmatprep.subr.mxu0 0.0
      %527 = vmatpush1.msra.mxu0 0.0
      %528 = vmatprep.subr.mxu0 0.0
      %529 = vmatpush1.msra.mxu0 0.0
      %530 = vmatprep.subr.mxu0 0.0
      %531 = vmatpush1.msra.mxu0 0.0
      %532 = vmatprep.subr.mxu0 0.0
      %533 = vmatpush1.msra.mxu0 0.0
      %534 = vmatprep.subr.mxu0 0.0
      %535 = vmatpush1.msra.mxu0 0.0
      %536 = vmatprep.subr.mxu0 0.0
      %537 = vmatpush1.msra.mxu0 0.0
      %538 = vmatprep.subr.mxu0 0.0
      %539 = vmatpush1.msra.mxu0 0.0
      %540 = vmatprep.subr.mxu0 0.0
      %541 = vmatpush1.msra.mxu0 0.0
      %542 = vmatprep.mubr.f32.mxu0 0.0
      %543 = vmatmul.mubr.f32.gmra.mrb[0].mxu0 %v188
      %v544 = vpop.f32.mrb[0].mxu0
      %v545 = vadd.f32 0.0, %v544
      %v546 = vpop.f32.mrb[0].mxu0
      %547 = vdwg.mxu0
      %v548 = vlaneseq
      %v549 = vshrl.u32 %v548, 7
      %v550 = vsub.s32 0, %v549
      %v551 = vrot.slane %v437, %v550
      %vm552 = vcmp.eq.s32.totalorder %v142, %v551
      %v553 = vsel %vm552, %v545, 0.0
      %v554 = vadd.f32 %v433, %v553
      %v555 = vadd.s32 %v185, %v312
      %v556 = vadd.s32 %v555, %v191
      %v557 = vand.u32 %v556, 127
      %v558 = vshra.s32 %v556, 7
      %v559 = vlaneseq
      %v560 = vshrl.u32 %v559, 7
      %v561 = vsub.s32 0, %v560
      %v562 = vrot.slane %v557, %v561
      %vm563 = vcmp.eq.s32.totalorder %v142, %v562
      %vm564 = vcmp.eq.s32.totalorder %v143, %v562
      %vm565 = vcmp.eq.s32.totalorder %v144, %v562
      %vm566 = vcmp.eq.s32.totalorder %v145, %v562
      %vm567 = vcmp.eq.s32.totalorder %v146, %v562
      %vm568 = vcmp.eq.s32.totalorder %v147, %v562
      %vm569 = vcmp.eq.s32.totalorder %v148, %v562
      %vm570 = vcmp.eq.s32.totalorder %v149, %v562
      %vm571 = vcmp.eq.s32.totalorder %v150, %v562
      %vm572 = vcmp.eq.s32.totalorder %v151, %v562
      %vm573 = vcmp.eq.s32.totalorder %v152, %v562
      %vm574 = vcmp.eq.s32.totalorder %v153, %v562
      %vm575 = vcmp.eq.s32.totalorder %v154, %v562
      %vm576 = vcmp.eq.s32.totalorder %v155, %v562
      %vm577 = vcmp.eq.s32.totalorder %v156, %v562
      %vm578 = vcmp.eq.s32.totalorder %v157, %v562
      %v579 = vlaneseq
      %v580 = vshrl.u32 %v579, 7
      %v581 = vsub.s32 0, %v580
      %v582 = vrot.slane %v183, %v581
      %v583 = vsel %vm563, %v582, 0.0
      %v584 = vsel %vm564, %v582, 0.0
      %v585 = vsel %vm565, %v582, 0.0
      %v586 = vsel %vm566, %v582, 0.0
      %v587 = vsel %vm567, %v582, 0.0
      %v588 = vsel %vm568, %v582, 0.0
      %v589 = vsel %vm569, %v582, 0.0
      %v590 = vsel %vm570, %v582, 0.0
      %v591 = vsel %vm571, %v582, 0.0
      %v592 = vsel %vm572, %v582, 0.0
      %v593 = vsel %vm573, %v582, 0.0
      %v594 = vsel %vm574, %v582, 0.0
      %v595 = vsel %vm575, %v582, 0.0
      %v596 = vsel %vm576, %v582, 0.0
      %v597 = vsel %vm577, %v582, 0.0
      %v598 = vsel %vm578, %v582, 0.0
      %599 = vmatprep.subr.mxu0 0.0
      %600 = vmatpush1.msra.mxu0 %v583
      %601 = vmatprep.subr.mxu0 0.0
      %602 = vmatpush1.msra.mxu0 %v584
      %603 = vmatprep.subr.mxu0 0.0
      %604 = vmatpush1.msra.mxu0 %v585
      %605 = vmatprep.subr.mxu0 0.0
      %606 = vmatpush1.msra.mxu0 %v586
      %607 = vmatprep.subr.mxu0 0.0
      %608 = vmatpush1.msra.mxu0 %v587
      %609 = vmatprep.subr.mxu0 0.0
      %610 = vmatpush1.msra.mxu0 %v588
      %611 = vmatprep.subr.mxu0 0.0
      %612 = vmatpush1.msra.mxu0 %v589
      %613 = vmatprep.subr.mxu0 0.0
      %614 = vmatpush1.msra.mxu0 %v590
      %615 = vmatprep.subr.mxu0 0.0
      %616 = vmatpush1.msra.mxu0 %v591
      %617 = vmatprep.subr.mxu0 0.0
      %618 = vmatpush1.msra.mxu0 %v592
      %619 = vmatprep.subr.mxu0 0.0
      %620 = vmatpush1.msra.mxu0 %v593
      %621 = vmatprep.subr.mxu0 0.0
      %622 = vmatpush1.msra.mxu0 %v594
      %623 = vmatprep.subr.mxu0 0.0
      %624 = vmatpush1.msra.mxu0 %v595
      %625 = vmatprep.subr.mxu0 0.0
      %626 = vmatpush1.msra.mxu0 %v596
      %627 = vmatprep.subr.mxu0 0.0
      %628 = vmatpush1.msra.mxu0 %v597
      %629 = vmatprep.subr.mxu0 0.0
      %630 = vmatpush1.msra.mxu0 %v598
      %631 = vmatprep.subr.mxu0 0.0
      %632 = vmatpush1.msra.mxu0 0.0
      %633 = vmatprep.subr.mxu0 0.0
      %634 = vmatpush1.msra.mxu0 0.0
      %635 = vmatprep.subr.mxu0 0.0
      %636 = vmatpush1.msra.mxu0 0.0
      %637 = vmatprep.subr.mxu0 0.0
      %638 = vmatpush1.msra.mxu0 0.0
      %639 = vmatprep.subr.mxu0 0.0
      %640 = vmatpush1.msra.mxu0 0.0
      %641 = vmatprep.subr.mxu0 0.0
      %642 = vmatpush1.msra.mxu0 0.0
      %643 = vmatprep.subr.mxu0 0.0
      %644 = vmatpush1.msra.mxu0 0.0
      %645 = vmatprep.subr.mxu0 0.0
      %646 = vmatpush1.msra.mxu0 0.0
      %647 = vmatprep.subr.mxu0 0.0
      %648 = vmatpush1.msra.mxu0 0.0
      %649 = vmatprep.subr.mxu0 0.0
      %650 = vmatpush1.msra.mxu0 0.0
      %651 = vmatprep.subr.mxu0 0.0
      %652 = vmatpush1.msra.mxu0 0.0
      %653 = vmatprep.subr.mxu0 0.0
      %654 = vmatpush1.msra.mxu0 0.0
      %655 = vmatprep.subr.mxu0 0.0
      %656 = vmatpush1.msra.mxu0 0.0
      %657 = vmatprep.subr.mxu0 0.0
      %658 = vmatpush1.msra.mxu0 0.0
      %659 = vmatprep.subr.mxu0 0.0
      %660 = vmatpush1.msra.mxu0 0.0
      %661 = vmatprep.subr.mxu0 0.0
      %662 = vmatpush1.msra.mxu0 0.0
      %663 = vmatprep.mubr.f32.mxu0 0.0
      %664 = vmatmul.mubr.f32.gmra.mrb[0].mxu0 %v188
      %v665 = vpop.f32.mrb[0].mxu0
      %v666 = vadd.f32 0.0, %v665
      %v667 = vpop.f32.mrb[0].mxu0
      %668 = vdwg.mxu0
      %v669 = vlaneseq
      %v670 = vshrl.u32 %v669, 7
      %v671 = vsub.s32 0, %v670
      %v672 = vrot.slane %v558, %v671
      %vm673 = vcmp.eq.s32.totalorder %v142, %v672
      %v674 = vsel %vm673, %v666, 0.0
      %v675 = vadd.f32 %v554, %v674
      %v676 = vrot.slane %v675, 4
      %v677 = vadd.f32 %v675, %v676
      %v678 = vrot.slane %v677, 2
      %v679 = vadd.f32 %v677, %v678
      %v680 = vrot.slane %v679, 1
      %v681 = vadd.f32 %v679, %v680
      %682 = vst [vmem:[%s138 + $0x3] sm:$0x1] %v681
      %v683 = vrcp.pop 0.1
      %v684 = vmul.f32 %v139, %v683
      %v685 = vcvt.f32.s32.to.zero.pseudo %v684
      %vm686 = vcmp.gt.s32.totalorder %v685, 0
      %v687 = vsel %vm686, %v685, 0
      %vm688 = vcmp.lt.s32.totalorder %v687, 10
      %v689 = vsel %vm688, %v687, 10
      %v690 = vadd.f32 %v684, 1.0
      %v691 = vcvt.f32.s32.to.zero.pseudo %v690
      %vm692 = vcmp.gt.s32.totalorder %v691, 0
      %v693 = vsel %vm692, %v691, 0
      %vm694 = vcmp.lt.s32.totalorder %v693, 10
      %v695 = vsel %vm694, %v693, 10
      %v696 = vcvt.s32.f32 %v689
      %v697 = vsub.f32 %v684, %v696
      %v698 = vsub.f32 1.0, %v697
      %v700 = vrot.slane %v698, 1
      %v702 = vmul.f32 %v698, %v700
      %v704 = vrot.slane %v697, 1
      %v706 = vmul.f32 %v698, %v704
      %v707 = vmul.f32 %v697, %v700
      %v708 = vmul.f32 %v697, %v704
      %v709 = vmul.u32 %v689, 19349663
      %v710 = vmul.u32 %v695, 19349663
      %v711 = vmul.u32 %v689, 83492791
      %v712 = vmul.u32 %v695, 83492791
      %s713 = scalar_lea.vmem %s1, 16
      %v714 = vld [vmem:[%s713] sm:$0xff]
      %v715 = vld [vmem:[%s713 + $0x8] sm:$0xff]
      %v716 = vrot.slane %v709, 1
      %v717 = vxor.u32 %v689, %v716
      %v718 = vrot.slane %v711, 2
      %v719 = vxor.u32 %v717, %v718
      %v720 = vcvt.s32.f32 %v719
      %v721 = vmul.f32 %v720, 0.0009699321
      %v722 = vfloor.f32 %v721
      %v723 = vcvt.f32.s32.to.zero.pseudo %v722
      %v724 = vmul.u32 %v723, 1031
      %v725 = vsub.s32 %v719, %v724
      %vm726 = vcmp.lt.s32.totalorder %v725, 0
      %v727 = vadd.s32 %v725, 1031
      %v728 = vsel %vm726, %v727, %v725
      %vm729 = vcmp.ge.s32.totalorder %v728, 1031
      %v730 = vsub.s32 %v728, 1031
      %v731 = vsel %vm729, %v730, %v728
      %v732 = vand.u32 %v731, 127
      %v733 = vshra.s32 %v731, 7
      %v734 = vlaneseq
      %v735 = vshrl.u32 %v734, 7
      %v736 = vsub.s32 0, %v735
      %v737 = vrot.slane %v732, %v736
      %vm738 = vcmp.eq.s32.totalorder %v142, %v737
      %vm739 = vcmp.eq.s32.totalorder %v143, %v737
      %vm740 = vcmp.eq.s32.totalorder %v144, %v737
      %vm741 = vcmp.eq.s32.totalorder %v145, %v737
      %vm742 = vcmp.eq.s32.totalorder %v146, %v737
      %vm743 = vcmp.eq.s32.totalorder %v147, %v737
      %vm744 = vcmp.eq.s32.totalorder %v148, %v737
      %vm745 = vcmp.eq.s32.totalorder %v149, %v737
      %vm746 = vcmp.eq.s32.totalorder %v150, %v737
      %vm747 = vcmp.eq.s32.totalorder %v151, %v737
      %vm748 = vcmp.eq.s32.totalorder %v152, %v737
      %vm749 = vcmp.eq.s32.totalorder %v153, %v737
      %vm750 = vcmp.eq.s32.totalorder %v154, %v737
      %vm751 = vcmp.eq.s32.totalorder %v155, %v737
      %vm752 = vcmp.eq.s32.totalorder %v156, %v737
      %vm753 = vcmp.eq.s32.totalorder %v157, %v737
      %v754 = vlaneseq
      %v755 = vshrl.u32 %v754, 7
      %v756 = vsub.s32 0, %v755
      %v757 = vrot.slane %v702, %v756
      %v758 = vsel %vm738, %v757, 0.0
      %v759 = vsel %vm739, %v757, 0.0
      %v760 = vsel %vm740, %v757, 0.0
      %v761 = vsel %vm741, %v757, 0.0
      %v762 = vsel %vm742, %v757, 0.0
      %v763 = vsel %vm743, %v757, 0.0
      %v764 = vsel %vm744, %v757, 0.0
      %v765 = vsel %vm745, %v757, 0.0
      %v766 = vsel %vm746, %v757, 0.0
      %v767 = vsel %vm747, %v757, 0.0
      %v768 = vsel %vm748, %v757, 0.0
      %v769 = vsel %vm749, %v757, 0.0
      %v770 = vsel %vm750, %v757, 0.0
      %v771 = vsel %vm751, %v757, 0.0
      %v772 = vsel %vm752, %v757, 0.0
      %v773 = vsel %vm753, %v757, 0.0
      %774 = vmatprep.subr.mxu0 0.0
      %775 = vmatpush1.msra.mxu0 %v758
      %776 = vmatprep.subr.mxu0 0.0
      %777 = vmatpush1.msra.mxu0 %v759
      %778 = vmatprep.subr.mxu0 0.0
      %779 = vmatpush1.msra.mxu0 %v760
      %780 = vmatprep.subr.mxu0 0.0
      %781 = vmatpush1.msra.mxu0 %v761
      %782 = vmatprep.subr.mxu0 0.0
      %783 = vmatpush1.msra.mxu0 %v762
      %784 = vmatprep.subr.mxu0 0.0
      %785 = vmatpush1.msra.mxu0 %v763
      %786 = vmatprep.subr.mxu0 0.0
      %787 = vmatpush1.msra.mxu0 %v764
      %788 = vmatprep.subr.mxu0 0.0
      %789 = vmatpush1.msra.mxu0 %v765
      %790 = vmatprep.subr.mxu0 0.0
      %791 = vmatpush1.msra.mxu0 %v766
      %792 = vmatprep.subr.mxu0 0.0
      %793 = vmatpush1.msra.mxu0 %v767
      %794 = vmatprep.subr.mxu0 0.0
      %795 = vmatpush1.msra.mxu0 %v768
      %796 = vmatprep.subr.mxu0 0.0
      %797 = vmatpush1.msra.mxu0 %v769
      %798 = vmatprep.subr.mxu0 0.0
      %799 = vmatpush1.msra.mxu0 %v770
      %800 = vmatprep.subr.mxu0 0.0
      %801 = vmatpush1.msra.mxu0 %v771
      %802 = vmatprep.subr.mxu0 0.0
      %803 = vmatpush1.msra.mxu0 %v772
      %804 = vmatprep.subr.mxu0 0.0
      %805 = vmatpush1.msra.mxu0 %v773
      %806 = vmatprep.subr.mxu0 0.0
      %807 = vmatpush1.msra.mxu0 0.0
      %808 = vmatprep.subr.mxu0 0.0
      %809 = vmatpush1.msra.mxu0 0.0
      %810 = vmatprep.subr.mxu0 0.0
      %811 = vmatpush1.msra.mxu0 0.0
      %812 = vmatprep.subr.mxu0 0.0
      %813 = vmatpush1.msra.mxu0 0.0
      %814 = vmatprep.subr.mxu0 0.0
      %815 = vmatpush1.msra.mxu0 0.0
      %816 = vmatprep.subr.mxu0 0.0
      %817 = vmatpush1.msra.mxu0 0.0
      %818 = vmatprep.subr.mxu0 0.0
      %819 = vmatpush1.msra.mxu0 0.0
      %820 = vmatprep.subr.mxu0 0.0
      %821 = vmatpush1.msra.mxu0 0.0
      %822 = vmatprep.subr.mxu0 0.0
      %823 = vmatpush1.msra.mxu0 0.0
      %824 = vmatprep.subr.mxu0 0.0
      %825 = vmatpush1.msra.mxu0 0.0
      %826 = vmatprep.subr.mxu0 0.0
      %827 = vmatpush1.msra.mxu0 0.0
      %828 = vmatprep.subr.mxu0 0.0
      %829 = vmatpush1.msra.mxu0 0.0
      %830 = vmatprep.subr.mxu0 0.0
      %831 = vmatpush1.msra.mxu0 0.0
      %832 = vmatprep.subr.mxu0 0.0
      %833 = vmatpush1.msra.mxu0 0.0
      %834 = vmatprep.subr.mxu0 0.0
      %835 = vmatpush1.msra.mxu0 0.0
      %836 = vmatprep.subr.mxu0 0.0
      %837 = vmatpush1.msra.mxu0 0.0
      %838 = vmatprep.mubr.f32.mxu0 0.0
      %839 = vmatmul.mubr.f32.gmra.mrb[0].mxu0 %v714
      %v840 = vpop.f32.mrb[0].mxu0
      %v841 = vadd.f32 0.0, %v840
      %v842 = vpop.f32.mrb[0].mxu0
      %843 = vmatprep.mubr.f32.mxu0 0.0
      %844 = vmatmul.mubr.f32.gmra.mrb[0].mxu0 %v715
      %v845 = vpop.f32.mrb[0].mxu0
      %v846 = vadd.f32 0.0, %v845
      %v847 = vpop.f32.mrb[0].mxu0
      %848 = vdwg.mxu0
      %v849 = vlaneseq
      %v850 = vshrl.u32 %v849, 7
      %v851 = vsub.s32 0, %v850
      %v852 = vrot.slane %v733, %v851
      %vm853 = vcmp.eq.s32.totalorder %v142, %v852
      %vm854 = vcmp.eq.s32.totalorder %v143, %v852
      %v855 = vsel %vm853, %v841, 0.0
      %v856 = vsel %vm854, %v846, 0.0
      %v857 = vadd.f32 %v855, 0.0
      %v858 = vadd.f32 %v856, 0.0
      %v859 = vrot.slane %v712, 2
      %v860 = vxor.u32 %v717, %v859
      %v861 = vcvt.s32.f32 %v860
      %v862 = vmul.f32 %v861, 0.0009699321
      %v863 = vfloor.f32 %v862
      %v864 = vcvt.f32.s32.to.zero.pseudo %v863
      %v865 = vmul.u32 %v864, 1031
      %v866 = vsub.s32 %v860, %v865
      %vm867 = vcmp.lt.s32.totalorder %v866, 0
      %v868 = vadd.s32 %v866, 1031
      %v869 = vsel %vm867, %v868, %v866
      %vm870 = vcmp.ge.s32.totalorder %v869, 1031
      %v871 = vsub.s32 %v869, 1031
      %v872 = vsel %vm870, %v871, %v869
      %v873 = vand.u32 %v872, 127
      %v874 = vshra.s32 %v872, 7
      %v875 = vlaneseq
      %v876 = vshrl.u32 %v875, 7
      %v877 = vsub.s32 0, %v876
      %v878 = vrot.slane %v873, %v877
      %vm879 = vcmp.eq.s32.totalorder %v142, %v878
      %vm880 = vcmp.eq.s32.totalorder %v143, %v878
      %vm881 = vcmp.eq.s32.totalorder %v144, %v878
      %vm882 = vcmp.eq.s32.totalorder %v145, %v878
      %vm883 = vcmp.eq.s32.totalorder %v146, %v878
      %vm884 = vcmp.eq.s32.totalorder %v147, %v878
      %vm885 = vcmp.eq.s32.totalorder %v148, %v878
      %vm886 = vcmp.eq.s32.totalorder %v149, %v878
      %vm887 = vcmp.eq.s32.totalorder %v150, %v878
      %vm888 = vcmp.eq.s32.totalorder %v151, %v878
      %vm889 = vcmp.eq.s32.totalorder %v152, %v878
      %vm890 = vcmp.eq.s32.totalorder %v153, %v878
      %vm891 = vcmp.eq.s32.totalorder %v154, %v878
      %vm892 = vcmp.eq.s32.totalorder %v155, %v878
      %vm893 = vcmp.eq.s32.totalorder %v156, %v878
      %vm894 = vcmp.eq.s32.totalorder %v157, %v878
      %v895 = vsel %vm879, %v757, 0.0
      %v896 = vsel %vm880, %v757, 0.0
      %v897 = vsel %vm881, %v757, 0.0
      %v898 = vsel %vm882, %v757, 0.0
      %v899 = vsel %vm883, %v757, 0.0
      %v900 = vsel %vm884, %v757, 0.0
      %v901 = vsel %vm885, %v757, 0.0
      %v902 = vsel %vm886, %v757, 0.0
      %v903 = vsel %vm887, %v757, 0.0
      %v904 = vsel %vm888, %v757, 0.0
      %v905 = vsel %vm889, %v757, 0.0
      %v906 = vsel %vm890, %v757, 0.0
      %v907 = vsel %vm891, %v757, 0.0
      %v908 = vsel %vm892, %v757, 0.0
      %v909 = vsel %vm893, %v757, 0.0
      %v910 = vsel %vm894, %v757, 0.0
      %911 = vmatprep.subr.mxu0 0.0
      %912 = vmatpush1.msra.mxu0 %v895
      %913 = vmatprep.subr.mxu0 0.0
      %914 = vmatpush1.msra.mxu0 %v896
      %915 = vmatprep.subr.mxu0 0.0
      %916 = vmatpush1.msra.mxu0 %v897
      %917 = vmatprep.subr.mxu0 0.0
      %918 = vmatpush1.msra.mxu0 %v898
      %919 = vmatprep.subr.mxu0 0.0
      %920 = vmatpush1.msra.mxu0 %v899
      %921 = vmatprep.subr.mxu0 0.0
      %922 = vmatpush1.msra.mxu0 %v900
      %923 = vmatprep.subr.mxu0 0.0
      %924 = vmatpush1.msra.mxu0 %v901
      %925 = vmatprep.subr.mxu0 0.0
      %926 = vmatpush1.msra.mxu0 %v902
      %927 = vmatprep.subr.mxu0 0.0
      %928 = vmatpush1.msra.mxu0 %v903
      %929 = vmatprep.subr.mxu0 0.0
      %930 = vmatpush1.msra.mxu0 %v904
      %931 = vmatprep.subr.mxu0 0.0
      %932 = vmatpush1.msra.mxu0 %v905
      %933 = vmatprep.subr.mxu0 0.0
      %934 = vmatpush1.msra.mxu0 %v906
      %935 = vmatprep.subr.mxu0 0.0
      %936 = vmatpush1.msra.mxu0 %v907
      %937 = vmatprep.subr.mxu0 0.0
      %938 = vmatpush1.msra.mxu0 %v908
      %939 = vmatprep.subr.mxu0 0.0
      %940 = vmatpush1.msra.mxu0 %v909
      %941 = vmatprep.subr.mxu0 0.0
      %942 = vmatpush1.msra.mxu0 %v910
      %943 = vmatprep.subr.mxu0 0.0
      %944 = vmatpush1.msra.mxu0 0.0
      %945 = vmatprep.subr.mxu0 0.0
      %946 = vmatpush1.msra.mxu0 0.0
      %947 = vmatprep.subr.mxu0 0.0
      %948 = vmatpush1.msra.mxu0 0.0
      %949 = vmatprep.subr.mxu0 0.0
      %950 = vmatpush1.msra.mxu0 0.0
      %951 = vmatprep.subr.mxu0 0.0
      %952 = vmatpush1.msra.mxu0 0.0
      %953 = vmatprep.subr.mxu0 0.0
      %954 = vmatpush1.msra.mxu0 0.0
      %955 = vmatprep.subr.mxu0 0.0
      %956 = vmatpush1.msra.mxu0 0.0
      %957 = vmatprep.subr.mxu0 0.0
      %958 = vmatpush1.msra.mxu0 0.0
      %959 = vmatprep.subr.mxu0 0.0
      %960 = vmatpush1.msra.mxu0 0.0
      %961 = vmatprep.subr.mxu0 0.0
      %962 = vmatpush1.msra.mxu0 0.0
      %963 = vmatprep.subr.mxu0 0.0
      %964 = vmatpush1.msra.mxu0 0.0
      %965 = vmatprep.subr.mxu0 0.0
      %966 = vmatpush1.msra.mxu0 0.0
      %967 = vmatprep.subr.mxu0 0.0
      %968 = vmatpush1.msra.mxu0 0.0
      %969 = vmatprep.subr.mxu0 0.0
      %970 = vmatpush1.msra.mxu0 0.0
      %971 = vmatprep.subr.mxu0 0.0
      %972 = vmatpush1.msra.mxu0 0.0
      %973 = vmatprep.subr.mxu0 0.0
      %974 = vmatpush1.msra.mxu0 0.0
      %975 = vmatprep.mubr.f32.mxu0 0.0
      %976 = vmatmul.mubr.f32.gmra.mrb[0].mxu0 %v714
      %v977 = vpop.f32.mrb[0].mxu0
      %v978 = vadd.f32 0.0, %v977
      %v979 = vpop.f32.mrb[0].mxu0
      %980 = vmatprep.mubr.f32.mxu0 0.0
      %981 = vmatmul.mubr.f32.gmra.mrb[0].mxu0 %v715
      %v982 = vpop.f32.mrb[0].mxu0
      %v983 = vadd.f32 0.0, %v982
      %v984 = vpop.f32.mrb[0].mxu0
      %985 = vdwg.mxu0
      %v986 = vlaneseq
      %v987 = vshrl.u32 %v986, 7
      %v988 = vsub.s32 0, %v987
      %v989 = vrot.slane %v874, %v988
      %vm990 = vcmp.eq.s32.totalorder %v142, %v989
      %vm991 = vcmp.eq.s32.totalorder %v143, %v989
      %v992 = vsel %vm990, %v978, 0.0
      %v993 = vsel %vm991, %v983, 0.0
      %v994 = vadd.f32 %v857, %v992
      %v995 = vadd.f32 %v858, %v993
      %v996 = vrot.slane %v710, 1
      %v997 = vxor.u32 %v689, %v996
      %v998 = vxor.u32 %v997, %v718
      %v999 = vcvt.s32.f32 %v998
      %v1000 = vmul.f32 %v999, 0.0009699321
      %v1001 = vfloor.f32 %v1000
      %v1002 = vcvt.f32.s32.to.zero.pseudo %v1001
      %v1003 = vmul.u32 %v1002, 1031
      %v1004 = vsub.s32 %v998, %v1003
      %vm1005 = vcmp.lt.s32.totalorder %v1004, 0
      %v1006 = vadd.s32 %v1004, 1031
      %v1007 = vsel %vm1005, %v1006, %v1004
      %vm1008 = vcmp.ge.s32.totalorder %v1007, 1031
      %v1009 = vsub.s32 %v1007, 1031
      %v1010 = vsel %vm1008, %v1009, %v1007
      %v1011 = vand.u32 %v1010, 127
      %v1012 = vshra.s32 %v1010, 7
      %v1013 = vlaneseq
      %v1014 = vshrl.u32 %v1013, 7
      %v1015 = vsub.s32 0, %v1014
      %v1016 = vrot.slane %v1011, %v1015
      %vm1017 = vcmp.eq.s32.totalorder %v142, %v1016
      %vm1018 = vcmp.eq.s32.totalorder %v143, %v1016
      %vm1019 = vcmp.eq.s32.totalorder %v144, %v1016
      %vm1020 = vcmp.eq.s32.totalorder %v145, %v1016
      %vm1021 = vcmp.eq.s32.totalorder %v146, %v1016
      %vm1022 = vcmp.eq.s32.totalorder %v147, %v1016
      %vm1023 = vcmp.eq.s32.totalorder %v148, %v1016
      %vm1024 = vcmp.eq.s32.totalorder %v149, %v1016
      %vm1025 = vcmp.eq.s32.totalorder %v150, %v1016
      %vm1026 = vcmp.eq.s32.totalorder %v151, %v1016
      %vm1027 = vcmp.eq.s32.totalorder %v152, %v1016
      %vm1028 = vcmp.eq.s32.totalorder %v153, %v1016
      %vm1029 = vcmp.eq.s32.totalorder %v154, %v1016
      %vm1030 = vcmp.eq.s32.totalorder %v155, %v1016
      %vm1031 = vcmp.eq.s32.totalorder %v156, %v1016
      %vm1032 = vcmp.eq.s32.totalorder %v157, %v1016
      %v1033 = vlaneseq
      %v1034 = vshrl.u32 %v1033, 7
      %v1035 = vsub.s32 0, %v1034
      %v1036 = vrot.slane %v706, %v1035
      %v1037 = vsel %vm1017, %v1036, 0.0
      %v1038 = vsel %vm1018, %v1036, 0.0
      %v1039 = vsel %vm1019, %v1036, 0.0
      %v1040 = vsel %vm1020, %v1036, 0.0
      %v1041 = vsel %vm1021, %v1036, 0.0
      %v1042 = vsel %vm1022, %v1036, 0.0
      %v1043 = vsel %vm1023, %v1036, 0.0
      %v1044 = vsel %vm1024, %v1036, 0.0
      %v1045 = vsel %vm1025, %v1036, 0.0
      %v1046 = vsel %vm1026, %v1036, 0.0
      %v1047 = vsel %vm1027, %v1036, 0.0
      %v1048 = vsel %vm1028, %v1036, 0.0
      %v1049 = vsel %vm1029, %v1036, 0.0
      %v1050 = vsel %vm1030, %v1036, 0.0
      %v1051 = vsel %vm1031, %v1036, 0.0
      %v1052 = vsel %vm1032, %v1036, 0.0
      %1053 = vmatprep.subr.mxu0 0.0
      %1054 = vmatpush1.msra.mxu0 %v1037
      %1055 = vmatprep.subr.mxu0 0.0
      %1056 = vmatpush1.msra.mxu0 %v1038
      %1057 = vmatprep.subr.mxu0 0.0
      %1058 = vmatpush1.msra.mxu0 %v1039
      %1059 = vmatprep.subr.mxu0 0.0
      %1060 = vmatpush1.msra.mxu0 %v1040
      %1061 = vmatprep.subr.mxu0 0.0
      %1062 = vmatpush1.msra.mxu0 %v1041
      %1063 = vmatprep.subr.mxu0 0.0
      %1064 = vmatpush1.msra.mxu0 %v1042
      %1065 = vmatprep.subr.mxu0 0.0
      %1066 = vmatpush1.msra.mxu0 %v1043
      %1067 = vmatprep.subr.mxu0 0.0
      %1068 = vmatpush1.msra.mxu0 %v1044
      %1069 = vmatprep.subr.mxu0 0.0
      %1070 = vmatpush1.msra.mxu0 %v1045
      %1071 = vmatprep.subr.mxu0 0.0
      %1072 = vmatpush1.msra.mxu0 %v1046
      %1073 = vmatprep.subr.mxu0 0.0
      %1074 = vmatpush1.msra.mxu0 %v1047
      %1075 = vmatprep.subr.mxu0 0.0
      %1076 = vmatpush1.msra.mxu0 %v1048
      %1077 = vmatprep.subr.mxu0 0.0
      %1078 = vmatpush1.msra.mxu0 %v1049
      %1079 = vmatprep.subr.mxu0 0.0
      %1080 = vmatpush1.msra.mxu0 %v1050
      %1081 = vmatprep.subr.mxu0 0.0
      %1082 = vmatpush1.msra.mxu0 %v1051
      %1083 = vmatprep.subr.mxu0 0.0
      %1084 = vmatpush1.msra.mxu0 %v1052
      %1085 = vmatprep.subr.mxu0 0.0
      %1086 = vmatpush1.msra.mxu0 0.0
      %1087 = vmatprep.subr.mxu0 0.0
      %1088 = vmatpush1.msra.mxu0 0.0
      %1089 = vmatprep.subr.mxu0 0.0
      %1090 = vmatpush1.msra.mxu0 0.0
      %1091 = vmatprep.subr.mxu0 0.0
      %1092 = vmatpush1.msra.mxu0 0.0
      %1093 = vmatprep.subr.mxu0 0.0
      %1094 = vmatpush1.msra.mxu0 0.0
      %1095 = vmatprep.subr.mxu0 0.0
      %1096 = vmatpush1.msra.mxu0 0.0
      %1097 = vmatprep.subr.mxu0 0.0
      %1098 = vmatpush1.msra.mxu0 0.0
      %1099 = vmatprep.subr.mxu0 0.0
      %1100 = vmatpush1.msra.mxu0 0.0
      %1101 = vmatprep.subr.mxu0 0.0
      %1102 = vmatpush1.msra.mxu0 0.0
      %1103 = vmatprep.subr.mxu0 0.0
      %1104 = vmatpush1.msra.mxu0 0.0
      %1105 = vmatprep.subr.mxu0 0.0
      %1106 = vmatpush1.msra.mxu0 0.0
      %1107 = vmatprep.subr.mxu0 0.0
      %1108 = vmatpush1.msra.mxu0 0.0
      %1109 = vmatprep.subr.mxu0 0.0
      %1110 = vmatpush1.msra.mxu0 0.0
      %1111 = vmatprep.subr.mxu0 0.0
      %1112 = vmatpush1.msra.mxu0 0.0
      %1113 = vmatprep.subr.mxu0 0.0
      %1114 = vmatpush1.msra.mxu0 0.0
      %1115 = vmatprep.subr.mxu0 0.0
      %1116 = vmatpush1.msra.mxu0 0.0
      %1117 = vmatprep.mubr.f32.mxu0 0.0
      %1118 = vmatmul.mubr.f32.gmra.mrb[0].mxu0 %v714
      %v1119 = vpop.f32.mrb[0].mxu0
      %v1120 = vadd.f32 0.0, %v1119
      %v1121 = vpop.f32.mrb[0].mxu0
      %1122 = vmatprep.mubr.f32.mxu0 0.0
      %1123 = vmatmul.mubr.f32.gmra.mrb[0].mxu0 %v715
      %v1124 = vpop.f32.mrb[0].mxu0
      %v1125 = vadd.f32 0.0, %v1124
      %v1126 = vpop.f32.mrb[0].mxu0
      %1127 = vdwg.mxu0
      %v1128 = vlaneseq
      %v1129 = vshrl.u32 %v1128, 7
      %v1130 = vsub.s32 0, %v1129
      %v1131 = vrot.slane %v1012, %v1130
      %vm1132 = vcmp.eq.s32.totalorder %v142, %v1131
      %vm1133 = vcmp.eq.s32.totalorder %v143, %v1131
      %v1134 = vsel %vm1132, %v1120, 0.0
      %v1135 = vsel %vm1133, %v1125, 0.0
      %v1136 = vadd.f32 %v994, %v1134
      %v1137 = vadd.f32 %v995, %v1135
      %v1138 = vxor.u32 %v997, %v859
      %v1139 = vcvt.s32.f32 %v1138
      %v1140 = vmul.f32 %v1139, 0.0009699321
      %v1141 = vfloor.f32 %v1140
      %v1142 = vcvt.f32.s32.to.zero.pseudo %v1141
      %v1143 = vmul.u32 %v1142, 1031
      %v1144 = vsub.s32 %v1138, %v1143
      %vm1145 = vcmp.lt.s32.totalorder %v1144, 0
      %v1146 = vadd.s32 %v1144, 1031
      %v1147 = vsel %vm1145, %v1146, %v1144
      %vm1148 = vcmp.ge.s32.totalorder %v1147, 1031
      %v1149 = vsub.s32 %v1147, 1031
      %v1150 = vsel %vm1148, %v1149, %v1147
      %v1151 = vand.u32 %v1150, 127
      %v1152 = vshra.s32 %v1150, 7
      %v1153 = vlaneseq
      %v1154 = vshrl.u32 %v1153, 7
      %v1155 = vsub.s32 0, %v1154
      %v1156 = vrot.slane %v1151, %v1155
      %vm1157 = vcmp.eq.s32.totalorder %v142, %v1156
      %vm1158 = vcmp.eq.s32.totalorder %v143, %v1156
      %vm1159 = vcmp.eq.s32.totalorder %v144, %v1156
      %vm1160 = vcmp.eq.s32.totalorder %v145, %v1156
      %vm1161 = vcmp.eq.s32.totalorder %v146, %v1156
      %vm1162 = vcmp.eq.s32.totalorder %v147, %v1156
      %vm1163 = vcmp.eq.s32.totalorder %v148, %v1156
      %vm1164 = vcmp.eq.s32.totalorder %v149, %v1156
      %vm1165 = vcmp.eq.s32.totalorder %v150, %v1156
      %vm1166 = vcmp.eq.s32.totalorder %v151, %v1156
      %vm1167 = vcmp.eq.s32.totalorder %v152, %v1156
      %vm1168 = vcmp.eq.s32.totalorder %v153, %v1156
      %vm1169 = vcmp.eq.s32.totalorder %v154, %v1156
      %vm1170 = vcmp.eq.s32.totalorder %v155, %v1156
      %vm1171 = vcmp.eq.s32.totalorder %v156, %v1156
      %vm1172 = vcmp.eq.s32.totalorder %v157, %v1156
      %v1173 = vsel %vm1157, %v1036, 0.0
      %v1174 = vsel %vm1158, %v1036, 0.0
      %v1175 = vsel %vm1159, %v1036, 0.0
      %v1176 = vsel %vm1160, %v1036, 0.0
      %v1177 = vsel %vm1161, %v1036, 0.0
      %v1178 = vsel %vm1162, %v1036, 0.0
      %v1179 = vsel %vm1163, %v1036, 0.0
      %v1180 = vsel %vm1164, %v1036, 0.0
      %v1181 = vsel %vm1165, %v1036, 0.0
      %v1182 = vsel %vm1166, %v1036, 0.0
      %v1183 = vsel %vm1167, %v1036, 0.0
      %v1184 = vsel %vm1168, %v1036, 0.0
      %v1185 = vsel %vm1169, %v1036, 0.0
      %v1186 = vsel %vm1170, %v1036, 0.0
      %v1187 = vsel %vm1171, %v1036, 0.0
      %v1188 = vsel %vm1172, %v1036, 0.0
      %1189 = vmatprep.subr.mxu0 0.0
      %1190 = vmatpush1.msra.mxu0 %v1173
      %1191 = vmatprep.subr.mxu0 0.0
      %1192 = vmatpush1.msra.mxu0 %v1174
      %1193 = vmatprep.subr.mxu0 0.0
      %1194 = vmatpush1.msra.mxu0 %v1175
      %1195 = vmatprep.subr.mxu0 0.0
      %1196 = vmatpush1.msra.mxu0 %v1176
      %1197 = vmatprep.subr.mxu0 0.0
      %1198 = vmatpush1.msra.mxu0 %v1177
      %1199 = vmatprep.subr.mxu0 0.0
      %1200 = vmatpush1.msra.mxu0 %v1178
      %1201 = vmatprep.subr.mxu0 0.0
      %1202 = vmatpush1.msra.mxu0 %v1179
      %1203 = vmatprep.subr.mxu0 0.0
      %1204 = vmatpush1.msra.mxu0 %v1180
      %1205 = vmatprep.subr.mxu0 0.0
      %1206 = vmatpush1.msra.mxu0 %v1181
      %1207 = vmatprep.subr.mxu0 0.0
      %1208 = vmatpush1.msra.mxu0 %v1182
      %1209 = vmatprep.subr.mxu0 0.0
      %1210 = vmatpush1.msra.mxu0 %v1183
      %1211 = vmatprep.subr.mxu0 0.0
      %1212 = vmatpush1.msra.mxu0 %v1184
      %1213 = vmatprep.subr.mxu0 0.0
      %1214 = vmatpush1.msra.mxu0 %v1185
      %1215 = vmatprep.subr.mxu0 0.0
      %1216 = vmatpush1.msra.mxu0 %v1186
      %1217 = vmatprep.subr.mxu0 0.0
      %1218 = vmatpush1.msra.mxu0 %v1187
      %1219 = vmatprep.subr.mxu0 0.0
      %1220 = vmatpush1.msra.mxu0 %v1188
      %1221 = vmatprep.subr.mxu0 0.0
      %1222 = vmatpush1.msra.mxu0 0.0
      %1223 = vmatprep.subr.mxu0 0.0
      %1224 = vmatpush1.msra.mxu0 0.0
      %1225 = vmatprep.subr.mxu0 0.0
      %1226 = vmatpush1.msra.mxu0 0.0
      %1227 = vmatprep.subr.mxu0 0.0
      %1228 = vmatpush1.msra.mxu0 0.0
      %1229 = vmatprep.subr.mxu0 0.0
      %1230 = vmatpush1.msra.mxu0 0.0
      %1231 = vmatprep.subr.mxu0 0.0
      %1232 = vmatpush1.msra.mxu0 0.0
      %1233 = vmatprep.subr.mxu0 0.0
      %1234 = vmatpush1.msra.mxu0 0.0
      %1235 = vmatprep.subr.mxu0 0.0
      %1236 = vmatpush1.msra.mxu0 0.0
      %1237 = vmatprep.subr.mxu0 0.0
      %1238 = vmatpush1.msra.mxu0 0.0
      %1239 = vmatprep.subr.mxu0 0.0
      %1240 = vmatpush1.msra.mxu0 0.0
      %1241 = vmatprep.subr.mxu0 0.0
      %1242 = vmatpush1.msra.mxu0 0.0
      %1243 = vmatprep.subr.mxu0 0.0
      %1244 = vmatpush1.msra.mxu0 0.0
      %1245 = vmatprep.subr.mxu0 0.0
      %1246 = vmatpush1.msra.mxu0 0.0
      %1247 = vmatprep.subr.mxu0 0.0
      %1248 = vmatpush1.msra.mxu0 0.0
      %1249 = vmatprep.subr.mxu0 0.0
      %1250 = vmatpush1.msra.mxu0 0.0
      %1251 = vmatprep.subr.mxu0 0.0
      %1252 = vmatpush1.msra.mxu0 0.0
      %1253 = vmatprep.mubr.f32.mxu0 0.0
      %1254 = vmatmul.mubr.f32.gmra.mrb[0].mxu0 %v714
      %v1255 = vpop.f32.mrb[0].mxu0
      %v1256 = vadd.f32 0.0, %v1255
      %v1257 = vpop.f32.mrb[0].mxu0
      %1258 = vmatprep.mubr.f32.mxu0 0.0
      %1259 = vmatmul.mubr.f32.gmra.mrb[0].mxu0 %v715
      %v1260 = vpop.f32.mrb[0].mxu0
      %v1261 = vadd.f32 0.0, %v1260
      %v1262 = vpop.f32.mrb[0].mxu0
      %1263 = vdwg.mxu0
      %v1264 = vlaneseq
      %v1265 = vshrl.u32 %v1264, 7
      %v1266 = vsub.s32 0, %v1265
      %v1267 = vrot.slane %v1152, %v1266
      %vm1268 = vcmp.eq.s32.totalorder %v142, %v1267
      %vm1269 = vcmp.eq.s32.totalorder %v143, %v1267
      %v1270 = vsel %vm1268, %v1256, 0.0
      %v1271 = vsel %vm1269, %v1261, 0.0
      %v1272 = vadd.f32 %v1136, %v1270
      %v1273 = vadd.f32 %v1137, %v1271
      %v1274 = vxor.u32 %v695, %v716
      %v1275 = vxor.u32 %v1274, %v718
      %v1276 = vcvt.s32.f32 %v1275
      %v1277 = vmul.f32 %v1276, 0.0009699321
      %v1278 = vfloor.f32 %v1277
      %v1279 = vcvt.f32.s32.to.zero.pseudo %v1278
      %v1280 = vmul.u32 %v1279, 1031
      %v1281 = vsub.s32 %v1275, %v1280
      %vm1282 = vcmp.lt.s32.totalorder %v1281, 0
      %v1283 = vadd.s32 %v1281, 1031
      %v1284 = vsel %vm1282, %v1283, %v1281
      %vm1285 = vcmp.ge.s32.totalorder %v1284, 1031
      %v1286 = vsub.s32 %v1284, 1031
      %v1287 = vsel %vm1285, %v1286, %v1284
      %v1288 = vand.u32 %v1287, 127
      %v1289 = vshra.s32 %v1287, 7
      %v1290 = vlaneseq
      %v1291 = vshrl.u32 %v1290, 7
      %v1292 = vsub.s32 0, %v1291
      %v1293 = vrot.slane %v1288, %v1292
      %vm1294 = vcmp.eq.s32.totalorder %v142, %v1293
      %vm1295 = vcmp.eq.s32.totalorder %v143, %v1293
      %vm1296 = vcmp.eq.s32.totalorder %v144, %v1293
      %vm1297 = vcmp.eq.s32.totalorder %v145, %v1293
      %vm1298 = vcmp.eq.s32.totalorder %v146, %v1293
      %vm1299 = vcmp.eq.s32.totalorder %v147, %v1293
      %vm1300 = vcmp.eq.s32.totalorder %v148, %v1293
      %vm1301 = vcmp.eq.s32.totalorder %v149, %v1293
      %vm1302 = vcmp.eq.s32.totalorder %v150, %v1293
      %vm1303 = vcmp.eq.s32.totalorder %v151, %v1293
      %vm1304 = vcmp.eq.s32.totalorder %v152, %v1293
      %vm1305 = vcmp.eq.s32.totalorder %v153, %v1293
      %vm1306 = vcmp.eq.s32.totalorder %v154, %v1293
      %vm1307 = vcmp.eq.s32.totalorder %v155, %v1293
      %vm1308 = vcmp.eq.s32.totalorder %v156, %v1293
      %vm1309 = vcmp.eq.s32.totalorder %v157, %v1293
      %v1310 = vlaneseq
      %v1311 = vshrl.u32 %v1310, 7
      %v1312 = vsub.s32 0, %v1311
      %v1313 = vrot.slane %v707, %v1312
      %v1314 = vsel %vm1294, %v1313, 0.0
      %v1315 = vsel %vm1295, %v1313, 0.0
      %v1316 = vsel %vm1296, %v1313, 0.0
      %v1317 = vsel %vm1297, %v1313, 0.0
      %v1318 = vsel %vm1298, %v1313, 0.0
      %v1319 = vsel %vm1299, %v1313, 0.0
      %v1320 = vsel %vm1300, %v1313, 0.0
      %v1321 = vsel %vm1301, %v1313, 0.0
      %v1322 = vsel %vm1302, %v1313, 0.0
      %v1323 = vsel %vm1303, %v1313, 0.0
      %v1324 = vsel %vm1304, %v1313, 0.0
      %v1325 = vsel %vm1305, %v1313, 0.0
      %v1326 = vsel %vm1306, %v1313, 0.0
      %v1327 = vsel %vm1307, %v1313, 0.0
      %v1328 = vsel %vm1308, %v1313, 0.0
      %v1329 = vsel %vm1309, %v1313, 0.0
      %1330 = vmatprep.subr.mxu0 0.0
      %1331 = vmatpush1.msra.mxu0 %v1314
      %1332 = vmatprep.subr.mxu0 0.0
      %1333 = vmatpush1.msra.mxu0 %v1315
      %1334 = vmatprep.subr.mxu0 0.0
      %1335 = vmatpush1.msra.mxu0 %v1316
      %1336 = vmatprep.subr.mxu0 0.0
      %1337 = vmatpush1.msra.mxu0 %v1317
      %1338 = vmatprep.subr.mxu0 0.0
      %1339 = vmatpush1.msra.mxu0 %v1318
      %1340 = vmatprep.subr.mxu0 0.0
      %1341 = vmatpush1.msra.mxu0 %v1319
      %1342 = vmatprep.subr.mxu0 0.0
      %1343 = vmatpush1.msra.mxu0 %v1320
      %1344 = vmatprep.subr.mxu0 0.0
      %1345 = vmatpush1.msra.mxu0 %v1321
      %1346 = vmatprep.subr.mxu0 0.0
      %1347 = vmatpush1.msra.mxu0 %v1322
      %1348 = vmatprep.subr.mxu0 0.0
      %1349 = vmatpush1.msra.mxu0 %v1323
      %1350 = vmatprep.subr.mxu0 0.0
      %1351 = vmatpush1.msra.mxu0 %v1324
      %1352 = vmatprep.subr.mxu0 0.0
      %1353 = vmatpush1.msra.mxu0 %v1325
      %1354 = vmatprep.subr.mxu0 0.0
      %1355 = vmatpush1.msra.mxu0 %v1326
      %1356 = vmatprep.subr.mxu0 0.0
      %1357 = vmatpush1.msra.mxu0 %v1327
      %1358 = vmatprep.subr.mxu0 0.0
      %1359 = vmatpush1.msra.mxu0 %v1328
      %1360 = vmatprep.subr.mxu0 0.0
      %1361 = vmatpush1.msra.mxu0 %v1329
      %1362 = vmatprep.subr.mxu0 0.0
      %1363 = vmatpush1.msra.mxu0 0.0
      %1364 = vmatprep.subr.mxu0 0.0
      %1365 = vmatpush1.msra.mxu0 0.0
      %1366 = vmatprep.subr.mxu0 0.0
      %1367 = vmatpush1.msra.mxu0 0.0
      %1368 = vmatprep.subr.mxu0 0.0
      %1369 = vmatpush1.msra.mxu0 0.0
      %1370 = vmatprep.subr.mxu0 0.0
      %1371 = vmatpush1.msra.mxu0 0.0
      %1372 = vmatprep.subr.mxu0 0.0
      %1373 = vmatpush1.msra.mxu0 0.0
      %1374 = vmatprep.subr.mxu0 0.0
      %1375 = vmatpush1.msra.mxu0 0.0
      %1376 = vmatprep.subr.mxu0 0.0
      %1377 = vmatpush1.msra.mxu0 0.0
      %1378 = vmatprep.subr.mxu0 0.0
      %1379 = vmatpush1.msra.mxu0 0.0
      %1380 = vmatprep.subr.mxu0 0.0
      %1381 = vmatpush1.msra.mxu0 0.0
      %1382 = vmatprep.subr.mxu0 0.0
      %1383 = vmatpush1.msra.mxu0 0.0
      %1384 = vmatprep.subr.mxu0 0.0
      %1385 = vmatpush1.msra.mxu0 0.0
      %1386 = vmatprep.subr.mxu0 0.0
      %1387 = vmatpush1.msra.mxu0 0.0
      %1388 = vmatprep.subr.mxu0 0.0
      %1389 = vmatpush1.msra.mxu0 0.0
      %1390 = vmatprep.subr.mxu0 0.0
      %1391 = vmatpush1.msra.mxu0 0.0
      %1392 = vmatprep.subr.mxu0 0.0
      %1393 = vmatpush1.msra.mxu0 0.0
      %1394 = vmatprep.mubr.f32.mxu0 0.0
      %1395 = vmatmul.mubr.f32.gmra.mrb[0].mxu0 %v714
      %v1396 = vpop.f32.mrb[0].mxu0
      %v1397 = vadd.f32 0.0, %v1396
      %v1398 = vpop.f32.mrb[0].mxu0
      %1399 = vmatprep.mubr.f32.mxu0 0.0
      %1400 = vmatmul.mubr.f32.gmra.mrb[0].mxu0 %v715
      %v1401 = vpop.f32.mrb[0].mxu0
      %v1402 = vadd.f32 0.0, %v1401
      %v1403 = vpop.f32.mrb[0].mxu0
      %1404 = vdwg.mxu0
      %v1405 = vlaneseq
      %v1406 = vshrl.u32 %v1405, 7
      %v1407 = vsub.s32 0, %v1406
      %v1408 = vrot.slane %v1289, %v1407
      %vm1409 = vcmp.eq.s32.totalorder %v142, %v1408
      %vm1410 = vcmp.eq.s32.totalorder %v143, %v1408
      %v1411 = vsel %vm1409, %v1397, 0.0
      %v1412 = vsel %vm1410, %v1402, 0.0
      %v1413 = vadd.f32 %v1272, %v1411
      %v1414 = vadd.f32 %v1273, %v1412
      %v1415 = vxor.u32 %v1274, %v859
      %v1416 = vcvt.s32.f32 %v1415
      %v1417 = vmul.f32 %v1416, 0.0009699321
      %v1418 = vfloor.f32 %v1417
      %v1419 = vcvt.f32.s32.to.zero.pseudo %v1418
      %v1420 = vmul.u32 %v1419, 1031
      %v1421 = vsub.s32 %v1415, %v1420
      %vm1422 = vcmp.lt.s32.totalorder %v1421, 0
      %v1423 = vadd.s32 %v1421, 1031
      %v1424 = vsel %vm1422, %v1423, %v1421
      %vm1425 = vcmp.ge.s32.totalorder %v1424, 1031
      %v1426 = vsub.s32 %v1424, 1031
      %v1427 = vsel %vm1425, %v1426, %v1424
      %v1428 = vand.u32 %v1427, 127
      %v1429 = vshra.s32 %v1427, 7
      %v1430 = vlaneseq
      %v1431 = vshrl.u32 %v1430, 7
      %v1432 = vsub.s32 0, %v1431
      %v1433 = vrot.slane %v1428, %v1432
      %vm1434 = vcmp.eq.s32.totalorder %v142, %v1433
      %vm1435 = vcmp.eq.s32.totalorder %v143, %v1433
      %vm1436 = vcmp.eq.s32.totalorder %v144, %v1433
      %vm1437 = vcmp.eq.s32.totalorder %v145, %v1433
      %vm1438 = vcmp.eq.s32.totalorder %v146, %v1433
      %vm1439 = vcmp.eq.s32.totalorder %v147, %v1433
      %vm1440 = vcmp.eq.s32.totalorder %v148, %v1433
      %vm1441 = vcmp.eq.s32.totalorder %v149, %v1433
      %vm1442 = vcmp.eq.s32.totalorder %v150, %v1433
      %vm1443 = vcmp.eq.s32.totalorder %v151, %v1433
      %vm1444 = vcmp.eq.s32.totalorder %v152, %v1433
      %vm1445 = vcmp.eq.s32.totalorder %v153, %v1433
      %vm1446 = vcmp.eq.s32.totalorder %v154, %v1433
      %vm1447 = vcmp.eq.s32.totalorder %v155, %v1433
      %vm1448 = vcmp.eq.s32.totalorder %v156, %v1433
      %vm1449 = vcmp.eq.s32.totalorder %v157, %v1433
      %v1450 = vsel %vm1434, %v1313, 0.0
      %v1451 = vsel %vm1435, %v1313, 0.0
      %v1452 = vsel %vm1436, %v1313, 0.0
      %v1453 = vsel %vm1437, %v1313, 0.0
      %v1454 = vsel %vm1438, %v1313, 0.0
      %v1455 = vsel %vm1439, %v1313, 0.0
      %v1456 = vsel %vm1440, %v1313, 0.0
      %v1457 = vsel %vm1441, %v1313, 0.0
      %v1458 = vsel %vm1442, %v1313, 0.0
      %v1459 = vsel %vm1443, %v1313, 0.0
      %v1460 = vsel %vm1444, %v1313, 0.0
      %v1461 = vsel %vm1445, %v1313, 0.0
      %v1462 = vsel %vm1446, %v1313, 0.0
      %v1463 = vsel %vm1447, %v1313, 0.0
      %v1464 = vsel %vm1448, %v1313, 0.0
      %v1465 = vsel %vm1449, %v1313, 0.0
      %1466 = vmatprep.subr.mxu0 0.0
      %1467 = vmatpush1.msra.mxu0 %v1450
      %1468 = vmatprep.subr.mxu0 0.0
      %1469 = vmatpush1.msra.mxu0 %v1451
      %1470 = vmatprep.subr.mxu0 0.0
      %1471 = vmatpush1.msra.mxu0 %v1452
      %1472 = vmatprep.subr.mxu0 0.0
      %1473 = vmatpush1.msra.mxu0 %v1453
      %1474 = vmatprep.subr.mxu0 0.0
      %1475 = vmatpush1.msra.mxu0 %v1454
      %1476 = vmatprep.subr.mxu0 0.0
      %1477 = vmatpush1.msra.mxu0 %v1455
      %1478 = vmatprep.subr.mxu0 0.0
      %1479 = vmatpush1.msra.mxu0 %v1456
      %1480 = vmatprep.subr.mxu0 0.0
      %1481 = vmatpush1.msra.mxu0 %v1457
      %1482 = vmatprep.subr.mxu0 0.0
      %1483 = vmatpush1.msra.mxu0 %v1458
      %1484 = vmatprep.subr.mxu0 0.0
      %1485 = vmatpush1.msra.mxu0 %v1459
      %1486 = vmatprep.subr.mxu0 0.0
      %1487 = vmatpush1.msra.mxu0 %v1460
      %1488 = vmatprep.subr.mxu0 0.0
      %1489 = vmatpush1.msra.mxu0 %v1461
      %1490 = vmatprep.subr.mxu0 0.0
      %1491 = vmatpush1.msra.mxu0 %v1462
      %1492 = vmatprep.subr.mxu0 0.0
      %1493 = vmatpush1.msra.mxu0 %v1463
      %1494 = vmatprep.subr.mxu0 0.0
      %1495 = vmatpush1.msra.mxu0 %v1464
      %1496 = vmatprep.subr.mxu0 0.0
      %1497 = vmatpush1.msra.mxu0 %v1465
      %1498 = vmatprep.subr.mxu0 0.0
      %1499 = vmatpush1.msra.mxu0 0.0
      %1500 = vmatprep.subr.mxu0 0.0
      %1501 = vmatpush1.msra.mxu0 0.0
      %1502 = vmatprep.subr.mxu0 0.0
      %1503 = vmatpush1.msra.mxu0 0.0
      %1504 = vmatprep.subr.mxu0 0.0
      %1505 = vmatpush1.msra.mxu0 0.0
      %1506 = vmatprep.subr.mxu0 0.0
      %1507 = vmatpush1.msra.mxu0 0.0
      %1508 = vmatprep.subr.mxu0 0.0
      %1509 = vmatpush1.msra.mxu0 0.0
      %1510 = vmatprep.subr.mxu0 0.0
      %1511 = vmatpush1.msra.mxu0 0.0
      %1512 = vmatprep.subr.mxu0 0.0
      %1513 = vmatpush1.msra.mxu0 0.0
      %1514 = vmatprep.subr.mxu0 0.0
      %1515 = vmatpush1.msra.mxu0 0.0
      %1516 = vmatprep.subr.mxu0 0.0
      %1517 = vmatpush1.msra.mxu0 0.0
      %1518 = vmatprep.subr.mxu0 0.0
      %1519 = vmatpush1.msra.mxu0 0.0
      %1520 = vmatprep.subr.mxu0 0.0
      %1521 = vmatpush1.msra.mxu0 0.0
      %1522 = vmatprep.subr.mxu0 0.0
      %1523 = vmatpush1.msra.mxu0 0.0
      %1524 = vmatprep.subr.mxu0 0.0
      %1525 = vmatpush1.msra.mxu0 0.0
      %1526 = vmatprep.subr.mxu0 0.0
      %1527 = vmatpush1.msra.mxu0 0.0
      %1528 = vmatprep.subr.mxu0 0.0
      %1529 = vmatpush1.msra.mxu0 0.0
      %1530 = vmatprep.mubr.f32.mxu0 0.0
      %1531 = vmatmul.mubr.f32.gmra.mrb[0].mxu0 %v714
      %v1532 = vpop.f32.mrb[0].mxu0
      %v1533 = vadd.f32 0.0, %v1532
      %v1534 = vpop.f32.mrb[0].mxu0
      %1535 = vmatprep.mubr.f32.mxu0 0.0
      %1536 = vmatmul.mubr.f32.gmra.mrb[0].mxu0 %v715
      %v1537 = vpop.f32.mrb[0].mxu0
      %v1538 = vadd.f32 0.0, %v1537
      %v1539 = vpop.f32.mrb[0].mxu0
      %1540 = vdwg.mxu0
      %v1541 = vlaneseq
      %v1542 = vshrl.u32 %v1541, 7
      %v1543 = vsub.s32 0, %v1542
      %v1544 = vrot.slane %v1429, %v1543
      %vm1545 = vcmp.eq.s32.totalorder %v142, %v1544
      %vm1546 = vcmp.eq.s32.totalorder %v143, %v1544
      %v1547 = vsel %vm1545, %v1533, 0.0
      %v1548 = vsel %vm1546, %v1538, 0.0
      %v1549 = vadd.f32 %v1413, %v1547
      %v1550 = vadd.f32 %v1414, %v1548
      %v1551 = vxor.u32 %v695, %v996
      %v1552 = vxor.u32 %v1551, %v718
      %v1553 = vcvt.s32.f32 %v1552
      %v1554 = vmul.f32 %v1553, 0.0009699321
      %v1555 = vfloor.f32 %v1554
      %v1556 = vcvt.f32.s32.to.zero.pseudo %v1555
      %v1557 = vmul.u32 %v1556, 1031
      %v1558 = vsub.s32 %v1552, %v1557
      %vm1559 = vcmp.lt.s32.totalorder %v1558, 0
      %v1560 = vadd.s32 %v1558, 1031
      %v1561 = vsel %vm1559, %v1560, %v1558
      %vm1562 = vcmp.ge.s32.totalorder %v1561, 1031
      %v1563 = vsub.s32 %v1561, 1031
      %v1564 = vsel %vm1562, %v1563, %v1561
      %v1565 = vand.u32 %v1564, 127
      %v1566 = vshra.s32 %v1564, 7
      %v1567 = vlaneseq
      %v1568 = vshrl.u32 %v1567, 7
      %v1569 = vsub.s32 0, %v1568
      %v1570 = vrot.slane %v1565, %v1569
      %vm1571 = vcmp.eq.s32.totalorder %v142, %v1570
      %vm1572 = vcmp.eq.s32.totalorder %v143, %v1570
      %vm1573 = vcmp.eq.s32.totalorder %v144, %v1570
      %vm1574 = vcmp.eq.s32.totalorder %v145, %v1570
      %vm1575 = vcmp.eq.s32.totalorder %v146, %v1570
      %vm1576 = vcmp.eq.s32.totalorder %v147, %v1570
      %vm1577 = vcmp.eq.s32.totalorder %v148, %v1570
      %vm1578 = vcmp.eq.s32.totalorder %v149, %v1570
      %vm1579 = vcmp.eq.s32.totalorder %v150, %v1570
      %vm1580 = vcmp.eq.s32.totalorder %v151, %v1570
      %vm1581 = vcmp.eq.s32.totalorder %v152, %v1570
      %vm1582 = vcmp.eq.s32.totalorder %v153, %v1570
      %vm1583 = vcmp.eq.s32.totalorder %v154, %v1570
      %vm1584 = vcmp.eq.s32.totalorder %v155, %v1570
      %vm1585 = vcmp.eq.s32.totalorder %v156, %v1570
      %vm1586 = vcmp.eq.s32.totalorder %v157, %v1570
      %v1587 = vlaneseq
      %v1588 = vshrl.u32 %v1587, 7
      %v1589 = vsub.s32 0, %v1588
      %v1590 = vrot.slane %v708, %v1589
      %v1591 = vsel %vm1571, %v1590, 0.0
      %v1592 = vsel %vm1572, %v1590, 0.0
      %v1593 = vsel %vm1573, %v1590, 0.0
      %v1594 = vsel %vm1574, %v1590, 0.0
      %v1595 = vsel %vm1575, %v1590, 0.0
      %v1596 = vsel %vm1576, %v1590, 0.0
      %v1597 = vsel %vm1577, %v1590, 0.0
      %v1598 = vsel %vm1578, %v1590, 0.0
      %v1599 = vsel %vm1579, %v1590, 0.0
      %v1600 = vsel %vm1580, %v1590, 0.0
      %v1601 = vsel %vm1581, %v1590, 0.0
      %v1602 = vsel %vm1582, %v1590, 0.0
      %v1603 = vsel %vm1583, %v1590, 0.0
      %v1604 = vsel %vm1584, %v1590, 0.0
      %v1605 = vsel %vm1585, %v1590, 0.0
      %v1606 = vsel %vm1586, %v1590, 0.0
      %1607 = vmatprep.subr.mxu0 0.0
      %1608 = vmatpush1.msra.mxu0 %v1591
      %1609 = vmatprep.subr.mxu0 0.0
      %1610 = vmatpush1.msra.mxu0 %v1592
      %1611 = vmatprep.subr.mxu0 0.0
      %1612 = vmatpush1.msra.mxu0 %v1593
      %1613 = vmatprep.subr.mxu0 0.0
      %1614 = vmatpush1.msra.mxu0 %v1594
      %1615 = vmatprep.subr.mxu0 0.0
      %1616 = vmatpush1.msra.mxu0 %v1595
      %1617 = vmatprep.subr.mxu0 0.0
      %1618 = vmatpush1.msra.mxu0 %v1596
      %1619 = vmatprep.subr.mxu0 0.0
      %1620 = vmatpush1.msra.mxu0 %v1597
      %1621 = vmatprep.subr.mxu0 0.0
      %1622 = vmatpush1.msra.mxu0 %v1598
      %1623 = vmatprep.subr.mxu0 0.0
      %1624 = vmatpush1.msra.mxu0 %v1599
      %1625 = vmatprep.subr.mxu0 0.0
      %1626 = vmatpush1.msra.mxu0 %v1600
      %1627 = vmatprep.subr.mxu0 0.0
      %1628 = vmatpush1.msra.mxu0 %v1601
      %1629 = vmatprep.subr.mxu0 0.0
      %1630 = vmatpush1.msra.mxu0 %v1602
      %1631 = vmatprep.subr.mxu0 0.0
      %1632 = vmatpush1.msra.mxu0 %v1603
      %1633 = vmatprep.subr.mxu0 0.0
      %1634 = vmatpush1.msra.mxu0 %v1604
      %1635 = vmatprep.subr.mxu0 0.0
      %1636 = vmatpush1.msra.mxu0 %v1605
      %1637 = vmatprep.subr.mxu0 0.0
      %1638 = vmatpush1.msra.mxu0 %v1606
      %1639 = vmatprep.subr.mxu0 0.0
      %1640 = vmatpush1.msra.mxu0 0.0
      %1641 = vmatprep.subr.mxu0 0.0
      %1642 = vmatpush1.msra.mxu0 0.0
      %1643 = vmatprep.subr.mxu0 0.0
      %1644 = vmatpush1.msra.mxu0 0.0
      %1645 = vmatprep.subr.mxu0 0.0
      %1646 = vmatpush1.msra.mxu0 0.0
      %1647 = vmatprep.subr.mxu0 0.0
      %1648 = vmatpush1.msra.mxu0 0.0
      %1649 = vmatprep.subr.mxu0 0.0
      %1650 = vmatpush1.msra.mxu0 0.0
      %1651 = vmatprep.subr.mxu0 0.0
      %1652 = vmatpush1.msra.mxu0 0.0
      %1653 = vmatprep.subr.mxu0 0.0
      %1654 = vmatpush1.msra.mxu0 0.0
      %1655 = vmatprep.subr.mxu0 0.0
      %1656 = vmatpush1.msra.mxu0 0.0
      %1657 = vmatprep.subr.mxu0 0.0
      %1658 = vmatpush1.msra.mxu0 0.0
      %1659 = vmatprep.subr.mxu0 0.0
      %1660 = vmatpush1.msra.mxu0 0.0
      %1661 = vmatprep.subr.mxu0 0.0
      %1662 = vmatpush1.msra.mxu0 0.0
      %1663 = vmatprep.subr.mxu0 0.0
      %1664 = vmatpush1.msra.mxu0 0.0
      %1665 = vmatprep.subr.mxu0 0.0
      %1666 = vmatpush1.msra.mxu0 0.0
      %1667 = vmatprep.subr.mxu0 0.0
      %1668 = vmatpush1.msra.mxu0 0.0
      %1669 = vmatprep.subr.mxu0 0.0
      %1670 = vmatpush1.msra.mxu0 0.0
      %1671 = vmatprep.mubr.f32.mxu0 0.0
      %1672 = vmatmul.mubr.f32.gmra.mrb[0].mxu0 %v714
      %v1673 = vpop.f32.mrb[0].mxu0
      %v1674 = vadd.f32 0.0, %v1673
      %v1675 = vpop.f32.mrb[0].mxu0
      %1676 = vmatprep.mubr.f32.mxu0 0.0
      %1677 = vmatmul.mubr.f32.gmra.mrb[0].mxu0 %v715
      %v1678 = vpop.f32.mrb[0].mxu0
      %v1679 = vadd.f32 0.0, %v1678
      %v1680 = vpop.f32.mrb[0].mxu0
      %1681 = vdwg.mxu0
      %v1682 = vlaneseq
      %v1683 = vshrl.u32 %v1682, 7
      %v1684 = vsub.s32 0, %v1683
      %v1685 = vrot.slane %v1566, %v1684
      %vm1686 = vcmp.eq.s32.totalorder %v142, %v1685
      %vm1687 = vcmp.eq.s32.totalorder %v143, %v1685
      %v1688 = vsel %vm1686, %v1674, 0.0
      %v1689 = vsel %vm1687, %v1679, 0.0
      %v1690 = vadd.f32 %v1549, %v1688
      %v1691 = vadd.f32 %v1550, %v1689
      %v1692 = vxor.u32 %v1551, %v859
      %v1693 = vcvt.s32.f32 %v1692
      %v1694 = vmul.f32 %v1693, 0.0009699321
      %v1695 = vfloor.f32 %v1694
      %v1696 = vcvt.f32.s32.to.zero.pseudo %v1695
      %v1697 = vmul.u32 %v1696, 1031
      %v1698 = vsub.s32 %v1692, %v1697
      %vm1699 = vcmp.lt.s32.totalorder %v1698, 0
      %v1700 = vadd.s32 %v1698, 1031
      %v1701 = vsel %vm1699, %v1700, %v1698
      %vm1702 = vcmp.ge.s32.totalorder %v1701, 1031
      %v1703 = vsub.s32 %v1701, 1031
      %v1704 = vsel %vm1702, %v1703, %v1701
      %v1705 = vand.u32 %v1704, 127
      %v1706 = vshra.s32 %v1704, 7
      %v1707 = vlaneseq
      %v1708 = vshrl.u32 %v1707, 7
      %v1709 = vsub.s32 0, %v1708
      %v1710 = vrot.slane %v1705, %v1709
      %vm1711 = vcmp.eq.s32.totalorder %v142, %v1710
      %vm1712 = vcmp.eq.s32.totalorder %v143, %v1710
      %vm1713 = vcmp.eq.s32.totalorder %v144, %v1710
      %vm1714 = vcmp.eq.s32.totalorder %v145, %v1710
      %vm1715 = vcmp.eq.s32.totalorder %v146, %v1710
      %vm1716 = vcmp.eq.s32.totalorder %v147, %v1710
      %vm1717 = vcmp.eq.s32.totalorder %v148, %v1710
      %vm1718 = vcmp.eq.s32.totalorder %v149, %v1710
      %vm1719 = vcmp.eq.s32.totalorder %v150, %v1710
      %vm1720 = vcmp.eq.s32.totalorder %v151, %v1710
      %vm1721 = vcmp.eq.s32.totalorder %v152, %v1710
      %vm1722 = vcmp.eq.s32.totalorder %v153, %v1710
      %vm1723 = vcmp.eq.s32.totalorder %v154, %v1710
      %vm1724 = vcmp.eq.s32.totalorder %v155, %v1710
      %vm1725 = vcmp.eq.s32.totalorder %v156, %v1710
      %vm1726 = vcmp.eq.s32.totalorder %v157, %v1710
      %v1727 = vsel %vm1711, %v1590, 0.0
      %v1728 = vsel %vm1712, %v1590, 0.0
      %v1729 = vsel %vm1713, %v1590, 0.0
      %v1730 = vsel %vm1714, %v1590, 0.0
      %v1731 = vsel %vm1715, %v1590, 0.0
      %v1732 = vsel %vm1716, %v1590, 0.0
      %v1733 = vsel %vm1717, %v1590, 0.0
      %v1734 = vsel %vm1718, %v1590, 0.0
      %v1735 = vsel %vm1719, %v1590, 0.0
      %v1736 = vsel %vm1720, %v1590, 0.0
      %v1737 = vsel %vm1721, %v1590, 0.0
      %v1738 = vsel %vm1722, %v1590, 0.0
      %v1739 = vsel %vm1723, %v1590, 0.0
      %v1740 = vsel %vm1724, %v1590, 0.0
      %v1741 = vsel %vm1725, %v1590, 0.0
      %v1742 = vsel %vm1726, %v1590, 0.0
      %1743 = vmatprep.subr.mxu0 0.0
      %1744 = vmatpush1.msra.mxu0 %v1727
      %1745 = vmatprep.subr.mxu0 0.0
      %1746 = vmatpush1.msra.mxu0 %v1728
      %1747 = vmatprep.subr.mxu0 0.0
      %1748 = vmatpush1.msra.mxu0 %v1729
      %1749 = vmatprep.subr.mxu0 0.0
      %1750 = vmatpush1.msra.mxu0 %v1730
      %1751 = vmatprep.subr.mxu0 0.0
      %1752 = vmatpush1.msra.mxu0 %v1731
      %1753 = vmatprep.subr.mxu0 0.0
      %1754 = vmatpush1.msra.mxu0 %v1732
      %1755 = vmatprep.subr.mxu0 0.0
      %1756 = vmatpush1.msra.mxu0 %v1733
      %1757 = vmatprep.subr.mxu0 0.0
      %1758 = vmatpush1.msra.mxu0 %v1734
      %1759 = vmatprep.subr.mxu0 0.0
      %1760 = vmatpush1.msra.mxu0 %v1735
      %1761 = vmatprep.subr.mxu0 0.0
      %1762 = vmatpush1.msra.mxu0 %v1736
      %1763 = vmatprep.subr.mxu0 0.0
      %1764 = vmatpush1.msra.mxu0 %v1737
      %1765 = vmatprep.subr.mxu0 0.0
      %1766 = vmatpush1.msra.mxu0 %v1738
      %1767 = vmatprep.subr.mxu0 0.0
      %1768 = vmatpush1.msra.mxu0 %v1739
      %1769 = vmatprep.subr.mxu0 0.0
      %1770 = vmatpush1.msra.mxu0 %v1740
      %1771 = vmatprep.subr.mxu0 0.0
      %1772 = vmatpush1.msra.mxu0 %v1741
      %1773 = vmatprep.subr.mxu0 0.0
      %1774 = vmatpush1.msra.mxu0 %v1742
      %1775 = vmatprep.subr.mxu0 0.0
      %1776 = vmatpush1.msra.mxu0 0.0
      %1777 = vmatprep.subr.mxu0 0.0
      %1778 = vmatpush1.msra.mxu0 0.0
      %1779 = vmatprep.subr.mxu0 0.0
      %1780 = vmatpush1.msra.mxu0 0.0
      %1781 = vmatprep.subr.mxu0 0.0
      %1782 = vmatpush1.msra.mxu0 0.0
      %1783 = vmatprep.subr.mxu0 0.0
      %1784 = vmatpush1.msra.mxu0 0.0
      %1785 = vmatprep.subr.mxu0 0.0
      %1786 = vmatpush1.msra.mxu0 0.0
      %1787 = vmatprep.subr.mxu0 0.0
      %1788 = vmatpush1.msra.mxu0 0.0
      %1789 = vmatprep.subr.mxu0 0.0
      %1790 = vmatpush1.msra.mxu0 0.0
      %1791 = vmatprep.subr.mxu0 0.0
      %1792 = vmatpush1.msra.mxu0 0.0
      %1793 = vmatprep.subr.mxu0 0.0
      %1794 = vmatpush1.msra.mxu0 0.0
      %1795 = vmatprep.subr.mxu0 0.0
      %1796 = vmatpush1.msra.mxu0 0.0
      %1797 = vmatprep.subr.mxu0 0.0
      %1798 = vmatpush1.msra.mxu0 0.0
      %1799 = vmatprep.subr.mxu0 0.0
      %1800 = vmatpush1.msra.mxu0 0.0
      %1801 = vmatprep.subr.mxu0 0.0
      %1802 = vmatpush1.msra.mxu0 0.0
      %1803 = vmatprep.subr.mxu0 0.0
      %1804 = vmatpush1.msra.mxu0 0.0
      %1805 = vmatprep.subr.mxu0 0.0
      %1806 = vmatpush1.msra.mxu0 0.0
      %1807 = vmatprep.mubr.f32.mxu0 0.0
      %1808 = vmatmul.mubr.f32.gmra.mrb[0].mxu0 %v714
      %v1809 = vpop.f32.mrb[0].mxu0
      %v1810 = vadd.f32 0.0, %v1809
      %v1811 = vpop.f32.mrb[0].mxu0
      %1812 = vmatprep.mubr.f32.mxu0 0.0
      %1813 = vmatmul.mubr.f32.gmra.mrb[0].mxu0 %v715
      %v1814 = vpop.f32.mrb[0].mxu0
      %v1815 = vadd.f32 0.0, %v1814
      %v1816 = vpop.f32.mrb[0].mxu0
      %1817 = vdwg.mxu0
      %v1818 = vlaneseq
      %v1819 = vshrl.u32 %v1818, 7
      %v1820 = vsub.s32 0, %v1819
      %v1821 = vrot.slane %v1706, %v1820
      %vm1822 = vcmp.eq.s32.totalorder %v142, %v1821
      %vm1823 = vcmp.eq.s32.totalorder %v143, %v1821
      %v1824 = vsel %vm1822, %v1810, 0.0
      %v1825 = vsel %vm1823, %v1815, 0.0
      %v1826 = vadd.f32 %v1690, %v1824
      %v1827 = vadd.f32 %v1691, %v1825
      %v1828 = vadd.f32 %v1826, %v1827
      %v1829 = vrot.slane %v1828, 4
      %v1830 = vadd.f32 %v1828, %v1829
      %v1831 = vrot.slane %v1830, 2
      %v1832 = vadd.f32 %v1830, %v1831
      %v1833 = vrot.slane %v1832, 1
      %v1834 = vadd.f32 %v1832, %v1833
      %1835 = vst [vmem:[%s138 + $0x4] sm:$0x1] %v1834
      %v1836 = vrcp.pop 0.071428575
      %v1837 = vmul.f32 %v139, %v1836
      %v1838 = vcvt.f32.s32.to.zero.pseudo %v1837
      %vm1839 = vcmp.gt.s32.totalorder %v1838, 0
      %v1840 = vsel %vm1839, %v1838, 0
      %vm1841 = vcmp.lt.s32.totalorder %v1840, 14
      %v1842 = vsel %vm1841, %v1840, 14
      %v1843 = vadd.f32 %v1837, 1.0
      %v1844 = vcvt.f32.s32.to.zero.pseudo %v1843
      %vm1845 = vcmp.gt.s32.totalorder %v1844, 0
      %v1846 = vsel %vm1845, %v1844, 0
      %vm1847 = vcmp.lt.s32.totalorder %v1846, 14
      %v1848 = vsel %vm1847, %v1846, 14
      %v1849 = vcvt.s32.f32 %v1842
      %v1850 = vsub.f32 %v1837, %v1849
      %v1851 = vsub.f32 1.0, %v1850
      %v1853 = vrot.slane %v1851, 1
      %v1855 = vmul.f32 %v1851, %v1853
      %v1857 = vrot.slane %v1850, 1
      %v1859 = vmul.f32 %v1851, %v1857
      %v1860 = vmul.f32 %v1850, %v1853
      %v1861 = vmul.f32 %v1850, %v1857
      %v1862 = vmul.u32 %v1842, 19349663
      %v1863 = vmul.u32 %v1848, 19349663
      %v1864 = vmul.u32 %v1842, 83492791
      %v1865 = vmul.u32 %v1848, 83492791
      %s1866 = scalar_lea.vmem %s1, 32
      %v1867 = vld [vmem:[%s1866] sm:$0xff]
      %v1868 = vld [vmem:[%s1866 + $0x8] sm:$0xff]
      %v1869 = vrot.slane %v1862, 1
      %v1870 = vxor.u32 %v1842, %v1869
      %v1871 = vrot.slane %v1864, 2
      %v1872 = vxor.u32 %v1870, %v1871
      %v1873 = vcvt.s32.f32 %v1872
      %v1874 = vmul.f32 %v1873, 0.0009699321
      %v1875 = vfloor.f32 %v1874
      %v1876 = vcvt.f32.s32.to.zero.pseudo %v1875
      %v1877 = vmul.u32 %v1876, 1031
      %v1878 = vsub.s32 %v1872, %v1877
      %vm1879 = vcmp.lt.s32.totalorder %v1878, 0
      %v1880 = vadd.s32 %v1878, 1031
      %v1881 = vsel %vm1879, %v1880, %v1878
      %vm1882 = vcmp.ge.s32.totalorder %v1881, 1031
      %v1883 = vsub.s32 %v1881, 1031
      %v1884 = vsel %vm1882, %v1883, %v1881
      %v1885 = vand.u32 %v1884, 127
      %v1886 = vshra.s32 %v1884, 7
      %v1887 = vlaneseq
      %v1888 = vshrl.u32 %v1887, 7
      %v1889 = vsub.s32 0, %v1888
      %v1890 = vrot.slane %v1885, %v1889
      %vm1891 = vcmp.eq.s32.totalorder %v142, %v1890
      %vm1892 = vcmp.eq.s32.totalorder %v143, %v1890
      %vm1893 = vcmp.eq.s32.totalorder %v144, %v1890
      %vm1894 = vcmp.eq.s32.totalorder %v145, %v1890
      %vm1895 = vcmp.eq.s32.totalorder %v146, %v1890
      %vm1896 = vcmp.eq.s32.totalorder %v147, %v1890
      %vm1897 = vcmp.eq.s32.totalorder %v148, %v1890
      %vm1898 = vcmp.eq.s32.totalorder %v149, %v1890
      %vm1899 = vcmp.eq.s32.totalorder %v150, %v1890
      %vm1900 = vcmp.eq.s32.totalorder %v151, %v1890
      %vm1901 = vcmp.eq.s32.totalorder %v152, %v1890
      %vm1902 = vcmp.eq.s32.totalorder %v153, %v1890
      %vm1903 = vcmp.eq.s32.totalorder %v154, %v1890
      %vm1904 = vcmp.eq.s32.totalorder %v155, %v1890
      %vm1905 = vcmp.eq.s32.totalorder %v156, %v1890
      %vm1906 = vcmp.eq.s32.totalorder %v157, %v1890
      %v1907 = vlaneseq
      %v1908 = vshrl.u32 %v1907, 7
      %v1909 = vsub.s32 0, %v1908
      %v1910 = vrot.slane %v1855, %v1909
      %v1911 = vsel %vm1891, %v1910, 0.0
      %v1912 = vsel %vm1892, %v1910, 0.0
      %v1913 = vsel %vm1893, %v1910, 0.0
      %v1914 = vsel %vm1894, %v1910, 0.0
      %v1915 = vsel %vm1895, %v1910, 0.0
      %v1916 = vsel %vm1896, %v1910, 0.0
      %v1917 = vsel %vm1897, %v1910, 0.0
      %v1918 = vsel %vm1898, %v1910, 0.0
      %v1919 = vsel %vm1899, %v1910, 0.0
      %v1920 = vsel %vm1900, %v1910, 0.0
      %v1921 = vsel %vm1901, %v1910, 0.0
      %v1922 = vsel %vm1902, %v1910, 0.0
      %v1923 = vsel %vm1903, %v1910, 0.0
      %v1924 = vsel %vm1904, %v1910, 0.0
      %v1925 = vsel %vm1905, %v1910, 0.0
      %v1926 = vsel %vm1906, %v1910, 0.0
      %1927 = vmatprep.subr.mxu0 0.0
      %1928 = vmatpush1.msra.mxu0 %v1911
      %1929 = vmatprep.subr.mxu0 0.0
      %1930 = vmatpush1.msra.mxu0 %v1912
      %1931 = vmatprep.subr.mxu0 0.0
      %1932 = vmatpush1.msra.mxu0 %v1913
      %1933 = vmatprep.subr.mxu0 0.0
      %1934 = vmatpush1.msra.mxu0 %v1914
      %1935 = vmatprep.subr.mxu0 0.0
      %1936 = vmatpush1.msra.mxu0 %v1915
      %1937 = vmatprep.subr.mxu0 0.0
      %1938 = vmatpush1.msra.mxu0 %v1916
      %1939 = vmatprep.subr.mxu0 0.0
      %1940 = vmatpush1.msra.mxu0 %v1917
      %1941 = vmatprep.subr.mxu0 0.0
      %1942 = vmatpush1.msra.mxu0 %v1918
      %1943 = vmatprep.subr.mxu0 0.0
      %1944 = vmatpush1.msra.mxu0 %v1919
      %1945 = vmatprep.subr.mxu0 0.0
      %1946 = vmatpush1.msra.mxu0 %v1920
      %1947 = vmatprep.subr.mxu0 0.0
      %1948 = vmatpush1.msra.mxu0 %v1921
      %1949 = vmatprep.subr.mxu0 0.0
      %1950 = vmatpush1.msra.mxu0 %v1922
      %1951 = vmatprep.subr.mxu0 0.0
      %1952 = vmatpush1.msra.mxu0 %v1923
      %1953 = vmatprep.subr.mxu0 0.0
      %1954 = vmatpush1.msra.mxu0 %v1924
      %1955 = vmatprep.subr.mxu0 0.0
      %1956 = vmatpush1.msra.mxu0 %v1925
      %1957 = vmatprep.subr.mxu0 0.0
      %1958 = vmatpush1.msra.mxu0 %v1926
      %1959 = vmatprep.subr.mxu0 0.0
      %1960 = vmatpush1.msra.mxu0 0.0
      %1961 = vmatprep.subr.mxu0 0.0
      %1962 = vmatpush1.msra.mxu0 0.0
      %1963 = vmatprep.subr.mxu0 0.0
      %1964 = vmatpush1.msra.mxu0 0.0
      %1965 = vmatprep.subr.mxu0 0.0
      %1966 = vmatpush1.msra.mxu0 0.0
      %1967 = vmatprep.subr.mxu0 0.0
      %1968 = vmatpush1.msra.mxu0 0.0
      %1969 = vmatprep.subr.mxu0 0.0
      %1970 = vmatpush1.msra.mxu0 0.0
      %1971 = vmatprep.subr.mxu0 0.0
      %1972 = vmatpush1.msra.mxu0 0.0
      %1973 = vmatprep.subr.mxu0 0.0
      %1974 = vmatpush1.msra.mxu0 0.0
      %1975 = vmatprep.subr.mxu0 0.0
      %1976 = vmatpush1.msra.mxu0 0.0
      %1977 = vmatprep.subr.mxu0 0.0
      %1978 = vmatpush1.msra.mxu0 0.0
      %1979 = vmatprep.subr.mxu0 0.0
      %1980 = vmatpush1.msra.mxu0 0.0
      %1981 = vmatprep.subr.mxu0 0.0
      %1982 = vmatpush1.msra.mxu0 0.0
      %1983 = vmatprep.subr.mxu0 0.0
      %1984 = vmatpush1.msra.mxu0 0.0
      %1985 = vmatprep.subr.mxu0 0.0
      %1986 = vmatpush1.msra.mxu0 0.0
      %1987 = vmatprep.subr.mxu0 0.0
      %1988 = vmatpush1.msra.mxu0 0.0
      %1989 = vmatprep.subr.mxu0 0.0
      %1990 = vmatpush1.msra.mxu0 0.0
      %1991 = vmatprep.mubr.f32.mxu0 0.0
      %1992 = vmatmul.mubr.f32.gmra.mrb[0].mxu0 %v1867
      %v1993 = vpop.f32.mrb[0].mxu0
      %v1994 = vadd.f32 0.0, %v1993
      %v1995 = vpop.f32.mrb[0].mxu0
      %1996 = vmatprep.mubr.f32.mxu0 0.0
      %1997 = vmatmul.mubr.f32.gmra.mrb[0].mxu0 %v1868
      %v1998 = vpop.f32.mrb[0].mxu0
      %v1999 = vadd.f32 0.0, %v1998
      %v2000 = vpop.f32.mrb[0].mxu0
      %2001 = vdwg.mxu0
      %v2002 = vlaneseq
      %v2003 = vshrl.u32 %v2002, 7
      %v2004 = vsub.s32 0, %v2003
      %v2005 = vrot.slane %v1886, %v2004
      %vm2006 = vcmp.eq.s32.totalorder %v142, %v2005
      %vm2007 = vcmp.eq.s32.totalorder %v143, %v2005
      %v2008 = vsel %vm2006, %v1994, 0.0
      %v2009 = vsel %vm2007, %v1999, 0.0
      %v2010 = vadd.f32 %v2008, 0.0
      %v2011 = vadd.f32 %v2009, 0.0
      %v2012 = vrot.slane %v1865, 2
      %v2013 = vxor.u32 %v1870, %v2012
      %v2014 = vcvt.s32.f32 %v2013
      %v2015 = vmul.f32 %v2014, 0.0009699321
      %v2016 = vfloor.f32 %v2015
      %v2017 = vcvt.f32.s32.to.zero.pseudo %v2016
      %v2018 = vmul.u32 %v2017, 1031
      %v2019 = vsub.s32 %v2013, %v2018
      %vm2020 = vcmp.lt.s32.totalorder %v2019, 0
      %v2021 = vadd.s32 %v2019, 1031
      %v2022 = vsel %vm2020, %v2021, %v2019
      %vm2023 = vcmp.ge.s32.totalorder %v2022, 1031
      %v2024 = vsub.s32 %v2022, 1031
      %v2025 = vsel %vm2023, %v2024, %v2022
      %v2026 = vand.u32 %v2025, 127
      %v2027 = vshra.s32 %v2025, 7
      %v2028 = vlaneseq
      %v2029 = vshrl.u32 %v2028, 7
      %v2030 = vsub.s32 0, %v2029
      %v2031 = vrot.slane %v2026, %v2030
      %vm2032 = vcmp.eq.s32.totalorder %v142, %v2031
      %vm2033 = vcmp.eq.s32.totalorder %v143, %v2031
      %vm2034 = vcmp.eq.s32.totalorder %v144, %v2031
      %vm2035 = vcmp.eq.s32.totalorder %v145, %v2031
      %vm2036 = vcmp.eq.s32.totalorder %v146, %v2031
      %vm2037 = vcmp.eq.s32.totalorder %v147, %v2031
      %vm2038 = vcmp.eq.s32.totalorder %v148, %v2031
      %vm2039 = vcmp.eq.s32.totalorder %v149, %v2031
      %vm2040 = vcmp.eq.s32.totalorder %v150, %v2031
      %vm2041 = vcmp.eq.s32.totalorder %v151, %v2031
      %vm2042 = vcmp.eq.s32.totalorder %v152, %v2031
      %vm2043 = vcmp.eq.s32.totalorder %v153, %v2031
      %vm2044 = vcmp.eq.s32.totalorder %v154, %v2031
      %vm2045 = vcmp.eq.s32.totalorder %v155, %v2031
      %vm2046 = vcmp.eq.s32.totalorder %v156, %v2031
      %vm2047 = vcmp.eq.s32.totalorder %v157, %v2031
      %v2048 = vsel %vm2032, %v1910, 0.0
      %v2049 = vsel %vm2033, %v1910, 0.0
      %v2050 = vsel %vm2034, %v1910, 0.0
      %v2051 = vsel %vm2035, %v1910, 0.0
      %v2052 = vsel %vm2036, %v1910, 0.0
      %v2053 = vsel %vm2037, %v1910, 0.0
      %v2054 = vsel %vm2038, %v1910, 0.0
      %v2055 = vsel %vm2039, %v1910, 0.0
      %v2056 = vsel %vm2040, %v1910, 0.0
      %v2057 = vsel %vm2041, %v1910, 0.0
      %v2058 = vsel %vm2042, %v1910, 0.0
      %v2059 = vsel %vm2043, %v1910, 0.0
      %v2060 = vsel %vm2044, %v1910, 0.0
      %v2061 = vsel %vm2045, %v1910, 0.0
      %v2062 = vsel %vm2046, %v1910, 0.0
      %v2063 = vsel %vm2047, %v1910, 0.0
      %2064 = vmatprep.subr.mxu0 0.0
      %2065 = vmatpush1.msra.mxu0 %v2048
      %2066 = vmatprep.subr.mxu0 0.0
      %2067 = vmatpush1.msra.mxu0 %v2049
      %2068 = vmatprep.subr.mxu0 0.0
      %2069 = vmatpush1.msra.mxu0 %v2050
      %2070 = vmatprep.subr.mxu0 0.0
      %2071 = vmatpush1.msra.mxu0 %v2051
      %2072 = vmatprep.subr.mxu0 0.0
      %2073 = vmatpush1.msra.mxu0 %v2052
      %2074 = vmatprep.subr.mxu0 0.0
      %2075 = vmatpush1.msra.mxu0 %v2053
      %2076 = vmatprep.subr.mxu0 0.0
      %2077 = vmatpush1.msra.mxu0 %v2054
      %2078 = vmatprep.subr.mxu0 0.0
      %2079 = vmatpush1.msra.mxu0 %v2055
      %2080 = vmatprep.subr.mxu0 0.0
      %2081 = vmatpush1.msra.mxu0 %v2056
      %2082 = vmatprep.subr.mxu0 0.0
      %2083 = vmatpush1.msra.mxu0 %v2057
      %2084 = vmatprep.subr.mxu0 0.0
      %2085 = vmatpush1.msra.mxu0 %v2058
      %2086 = vmatprep.subr.mxu0 0.0
      %2087 = vmatpush1.msra.mxu0 %v2059
      %2088 = vmatprep.subr.mxu0 0.0
      %2089 = vmatpush1.msra.mxu0 %v2060
      %2090 = vmatprep.subr.mxu0 0.0
      %2091 = vmatpush1.msra.mxu0 %v2061
      %2092 = vmatprep.subr.mxu0 0.0
      %2093 = vmatpush1.msra.mxu0 %v2062
      %2094 = vmatprep.subr.mxu0 0.0
      %2095 = vmatpush1.msra.mxu0 %v2063
      %2096 = vmatprep.subr.mxu0 0.0
      %2097 = vmatpush1.msra.mxu0 0.0
      %2098 = vmatprep.subr.mxu0 0.0
      %2099 = vmatpush1.msra.mxu0 0.0
      %2100 = vmatprep.subr.mxu0 0.0
      %2101 = vmatpush1.msra.mxu0 0.0
      %2102 = vmatprep.subr.mxu0 0.0
      %2103 = vmatpush1.msra.mxu0 0.0
      %2104 = vmatprep.subr.mxu0 0.0
      %2105 = vmatpush1.msra.mxu0 0.0
      %2106 = vmatprep.subr.mxu0 0.0
      %2107 = vmatpush1.msra.mxu0 0.0
      %2108 = vmatprep.subr.mxu0 0.0
      %2109 = vmatpush1.msra.mxu0 0.0
      %2110 = vmatprep.subr.mxu0 0.0
      %2111 = vmatpush1.msra.mxu0 0.0
      %2112 = vmatprep.subr.mxu0 0.0
      %2113 = vmatpush1.msra.mxu0 0.0
      %2114 = vmatprep.subr.mxu0 0.0
      %2115 = vmatpush1.msra.mxu0 0.0
      %2116 = vmatprep.subr.mxu0 0.0
      %2117 = vmatpush1.msra.mxu0 0.0
      %2118 = vmatprep.subr.mxu0 0.0
      %2119 = vmatpush1.msra.mxu0 0.0
      %2120 = vmatprep.subr.mxu0 0.0
      %2121 = vmatpush1.msra.mxu0 0.0
      %2122 = vmatprep.subr.mxu0 0.0
      %2123 = vmatpush1.msra.mxu0 0.0
      %2124 = vmatprep.subr.mxu0 0.0
      %2125 = vmatpush1.msra.mxu0 0.0
      %2126 = vmatprep.subr.mxu0 0.0
      %2127 = vmatpush1.msra.mxu0 0.0
      %2128 = vmatprep.mubr.f32.mxu0 0.0
      %2129 = vmatmul.mubr.f32.gmra.mrb[0].mxu0 %v1867
      %v2130 = vpop.f32.mrb[0].mxu0
      %v2131 = vadd.f32 0.0, %v2130
      %v2132 = vpop.f32.mrb[0].mxu0
      %2133 = vmatprep.mubr.f32.mxu0 0.0
      %2134 = vmatmul.mubr.f32.gmra.mrb[0].mxu0 %v1868
      %v2135 = vpop.f32.mrb[0].mxu0
      %v2136 = vadd.f32 0.0, %v2135
      %v2137 = vpop.f32.mrb[0].mxu0
      %2138 = vdwg.mxu0
      %v2139 = vlaneseq
      %v2140 = vshrl.u32 %v2139, 7
      %v2141 = vsub.s32 0, %v2140
      %v2142 = vrot.slane %v2027, %v2141
      %vm2143 = vcmp.eq.s32.totalorder %v142, %v2142
      %vm2144 = vcmp.eq.s32.totalorder %v143, %v2142
      %v2145 = vsel %vm2143, %v2131, 0.0
      %v2146 = vsel %vm2144, %v2136, 0.0
      %v2147 = vadd.f32 %v2010, %v2145
      %v2148 = vadd.f32 %v2011, %v2146
      %v2149 = vrot.slane %v1863, 1
      %v2150 = vxor.u32 %v1842, %v2149
      %v2151 = vxor.u32 %v2150, %v1871
      %v2152 = vcvt.s32.f32 %v2151
      %v2153 = vmul.f32 %v2152, 0.0009699321
      %v2154 = vfloor.f32 %v2153
      %v2155 = vcvt.f32.s32.to.zero.pseudo %v2154
      %v2156 = vmul.u32 %v2155, 1031
      %v2157 = vsub.s32 %v2151, %v2156
      %vm2158 = vcmp.lt.s32.totalorder %v2157, 0
      %v2159 = vadd.s32 %v2157, 1031
      %v2160 = vsel %vm2158, %v2159, %v2157
      %vm2161 = vcmp.ge.s32.totalorder %v2160, 1031
      %v2162 = vsub.s32 %v2160, 1031
      %v2163 = vsel %vm2161, %v2162, %v2160
      %v2164 = vand.u32 %v2163, 127
      %v2165 = vshra.s32 %v2163, 7
      %v2166 = vlaneseq
      %v2167 = vshrl.u32 %v2166, 7
      %v2168 = vsub.s32 0, %v2167
      %v2169 = vrot.slane %v2164, %v2168
      %vm2170 = vcmp.eq.s32.totalorder %v142, %v2169
      %vm2171 = vcmp.eq.s32.totalorder %v143, %v2169
      %vm2172 = vcmp.eq.s32.totalorder %v144, %v2169
      %vm2173 = vcmp.eq.s32.totalorder %v145, %v2169
      %vm2174 = vcmp.eq.s32.totalorder %v146, %v2169
      %vm2175 = vcmp.eq.s32.totalorder %v147, %v2169
      %vm2176 = vcmp.eq.s32.totalorder %v148, %v2169
      %vm2177 = vcmp.eq.s32.totalorder %v149, %v2169
      %vm2178 = vcmp.eq.s32.totalorder %v150, %v2169
      %vm2179 = vcmp.eq.s32.totalorder %v151, %v2169
      %vm2180 = vcmp.eq.s32.totalorder %v152, %v2169
      %vm2181 = vcmp.eq.s32.totalorder %v153, %v2169
      %vm2182 = vcmp.eq.s32.totalorder %v154, %v2169
      %vm2183 = vcmp.eq.s32.totalorder %v155, %v2169
      %vm2184 = vcmp.eq.s32.totalorder %v156, %v2169
      %vm2185 = vcmp.eq.s32.totalorder %v157, %v2169
      %v2186 = vlaneseq
      %v2187 = vshrl.u32 %v2186, 7
      %v2188 = vsub.s32 0, %v2187
      %v2189 = vrot.slane %v1859, %v2188
      %v2190 = vsel %vm2170, %v2189, 0.0
      %v2191 = vsel %vm2171, %v2189, 0.0
      %v2192 = vsel %vm2172, %v2189, 0.0
      %v2193 = vsel %vm2173, %v2189, 0.0
      %v2194 = vsel %vm2174, %v2189, 0.0
      %v2195 = vsel %vm2175, %v2189, 0.0
      %v2196 = vsel %vm2176, %v2189, 0.0
      %v2197 = vsel %vm2177, %v2189, 0.0
      %v2198 = vsel %vm2178, %v2189, 0.0
      %v2199 = vsel %vm2179, %v2189, 0.0
      %v2200 = vsel %vm2180, %v2189, 0.0
      %v2201 = vsel %vm2181, %v2189, 0.0
      %v2202 = vsel %vm2182, %v2189, 0.0
      %v2203 = vsel %vm2183, %v2189, 0.0
      %v2204 = vsel %vm2184, %v2189, 0.0
      %v2205 = vsel %vm2185, %v2189, 0.0
      %2206 = vmatprep.subr.mxu0 0.0
      %2207 = vmatpush1.msra.mxu0 %v2190
      %2208 = vmatprep.subr.mxu0 0.0
      %2209 = vmatpush1.msra.mxu0 %v2191
      %2210 = vmatprep.subr.mxu0 0.0
      %2211 = vmatpush1.msra.mxu0 %v2192
      %2212 = vmatprep.subr.mxu0 0.0
      %2213 = vmatpush1.msra.mxu0 %v2193
      %2214 = vmatprep.subr.mxu0 0.0
      %2215 = vmatpush1.msra.mxu0 %v2194
      %2216 = vmatprep.subr.mxu0 0.0
      %2217 = vmatpush1.msra.mxu0 %v2195
      %2218 = vmatprep.subr.mxu0 0.0
      %2219 = vmatpush1.msra.mxu0 %v2196
      %2220 = vmatprep.subr.mxu0 0.0
      %2221 = vmatpush1.msra.mxu0 %v2197
      %2222 = vmatprep.subr.mxu0 0.0
      %2223 = vmatpush1.msra.mxu0 %v2198
      %2224 = vmatprep.subr.mxu0 0.0
      %2225 = vmatpush1.msra.mxu0 %v2199
      %2226 = vmatprep.subr.mxu0 0.0
      %2227 = vmatpush1.msra.mxu0 %v2200
      %2228 = vmatprep.subr.mxu0 0.0
      %2229 = vmatpush1.msra.mxu0 %v2201
      %2230 = vmatprep.subr.mxu0 0.0
      %2231 = vmatpush1.msra.mxu0 %v2202
      %2232 = vmatprep.subr.mxu0 0.0
      %2233 = vmatpush1.msra.mxu0 %v2203
      %2234 = vmatprep.subr.mxu0 0.0
      %2235 = vmatpush1.msra.mxu0 %v2204
      %2236 = vmatprep.subr.mxu0 0.0
      %2237 = vmatpush1.msra.mxu0 %v2205
      %2238 = vmatprep.subr.mxu0 0.0
      %2239 = vmatpush1.msra.mxu0 0.0
      %2240 = vmatprep.subr.mxu0 0.0
      %2241 = vmatpush1.msra.mxu0 0.0
      %2242 = vmatprep.subr.mxu0 0.0
      %2243 = vmatpush1.msra.mxu0 0.0
      %2244 = vmatprep.subr.mxu0 0.0
      %2245 = vmatpush1.msra.mxu0 0.0
      %2246 = vmatprep.subr.mxu0 0.0
      %2247 = vmatpush1.msra.mxu0 0.0
      %2248 = vmatprep.subr.mxu0 0.0
      %2249 = vmatpush1.msra.mxu0 0.0
      %2250 = vmatprep.subr.mxu0 0.0
      %2251 = vmatpush1.msra.mxu0 0.0
      %2252 = vmatprep.subr.mxu0 0.0
      %2253 = vmatpush1.msra.mxu0 0.0
      %2254 = vmatprep.subr.mxu0 0.0
      %2255 = vmatpush1.msra.mxu0 0.0
      %2256 = vmatprep.subr.mxu0 0.0
      %2257 = vmatpush1.msra.mxu0 0.0
      %2258 = vmatprep.subr.mxu0 0.0
      %2259 = vmatpush1.msra.mxu0 0.0
      %2260 = vmatprep.subr.mxu0 0.0
      %2261 = vmatpush1.msra.mxu0 0.0
      %2262 = vmatprep.subr.mxu0 0.0
      %2263 = vmatpush1.msra.mxu0 0.0
      %2264 = vmatprep.subr.mxu0 0.0
      %2265 = vmatpush1.msra.mxu0 0.0
      %2266 = vmatprep.subr.mxu0 0.0
      %2267 = vmatpush1.msra.mxu0 0.0
      %2268 = vmatprep.subr.mxu0 0.0
      %2269 = vmatpush1.msra.mxu0 0.0
      %2270 = vmatprep.mubr.f32.mxu0 0.0
      %2271 = vmatmul.mubr.f32.gmra.mrb[0].mxu0 %v1867
      %v2272 = vpop.f32.mrb[0].mxu0
      %v2273 = vadd.f32 0.0, %v2272
      %v2274 = vpop.f32.mrb[0].mxu0
      %2275 = vmatprep.mubr.f32.mxu0 0.0
      %2276 = vmatmul.mubr.f32.gmra.mrb[0].mxu0 %v1868
      %v2277 = vpop.f32.mrb[0].mxu0
      %v2278 = vadd.f32 0.0, %v2277
      %v2279 = vpop.f32.mrb[0].mxu0
      %2280 = vdwg.mxu0
      %v2281 = vlaneseq
      %v2282 = vshrl.u32 %v2281, 7
      %v2283 = vsub.s32 0, %v2282
      %v2284 = vrot.slane %v2165, %v2283
      %vm2285 = vcmp.eq.s32.totalorder %v142, %v2284
      %vm2286 = vcmp.eq.s32.totalorder %v143, %v2284
      %v2287 = vsel %vm2285, %v2273, 0.0
      %v2288 = vsel %vm2286, %v2278, 0.0
      %v2289 = vadd.f32 %v2147, %v2287
      %v2290 = vadd.f32 %v2148, %v2288
      %v2291 = vxor.u32 %v2150, %v2012
      %v2292 = vcvt.s32.f32 %v2291
      %v2293 = vmul.f32 %v2292, 0.0009699321
      %v2294 = vfloor.f32 %v2293
      %v2295 = vcvt.f32.s32.to.zero.pseudo %v2294
      %v2296 = vmul.u32 %v2295, 1031
      %v2297 = vsub.s32 %v2291, %v2296
      %vm2298 = vcmp.lt.s32.totalorder %v2297, 0
      %v2299 = vadd.s32 %v2297, 1031
      %v2300 = vsel %vm2298, %v2299, %v2297
      %vm2301 = vcmp.ge.s32.totalorder %v2300, 1031
      %v2302 = vsub.s32 %v2300, 1031
      %v2303 = vsel %vm2301, %v2302, %v2300
      %v2304 = vand.u32 %v2303, 127
      %v2305 = vshra.s32 %v2303, 7
      %v2306 = vlaneseq
      %v2307 = vshrl.u32 %v2306, 7
      %v2308 = vsub.s32 0, %v2307
      %v2309 = vrot.slane %v2304, %v2308
      %vm2310 = vcmp.eq.s32.totalorder %v142, %v2309
      %vm2311 = vcmp.eq.s32.totalorder %v143, %v2309
      %vm2312 = vcmp.eq.s32.totalorder %v144, %v2309
      %vm2313 = vcmp.eq.s32.totalorder %v145, %v2309
      %vm2314 = vcmp.eq.s32.totalorder %v146, %v2309
      %vm2315 = vcmp.eq.s32.totalorder %v147, %v2309
      %vm2316 = vcmp.eq.s32.totalorder %v148, %v2309
      %vm2317 = vcmp.eq.s32.totalorder %v149, %v2309
      %vm2318 = vcmp.eq.s32.totalorder %v150, %v2309
      %vm2319 = vcmp.eq.s32.totalorder %v151, %v2309
      %vm2320 = vcmp.eq.s32.totalorder %v152, %v2309
      %vm2321 = vcmp.eq.s32.totalorder %v153, %v2309
      %vm2322 = vcmp.eq.s32.totalorder %v154, %v2309
      %vm2323 = vcmp.eq.s32.totalorder %v155, %v2309
      %vm2324 = vcmp.eq.s32.totalorder %v156, %v2309
      %vm2325 = vcmp.eq.s32.totalorder %v157, %v2309
      %v2326 = vsel %vm2310, %v2189, 0.0
      %v2327 = vsel %vm2311, %v2189, 0.0
      %v2328 = vsel %vm2312, %v2189, 0.0
      %v2329 = vsel %vm2313, %v2189, 0.0
      %v2330 = vsel %vm2314, %v2189, 0.0
      %v2331 = vsel %vm2315, %v2189, 0.0
      %v2332 = vsel %vm2316, %v2189, 0.0
      %v2333 = vsel %vm2317, %v2189, 0.0
      %v2334 = vsel %vm2318, %v2189, 0.0
      %v2335 = vsel %vm2319, %v2189, 0.0
      %v2336 = vsel %vm2320, %v2189, 0.0
      %v2337 = vsel %vm2321, %v2189, 0.0
      %v2338 = vsel %vm2322, %v2189, 0.0
      %v2339 = vsel %vm2323, %v2189, 0.0
      %v2340 = vsel %vm2324, %v2189, 0.0
      %v2341 = vsel %vm2325, %v2189, 0.0
      %2342 = vmatprep.subr.mxu0 0.0
      %2343 = vmatpush1.msra.mxu0 %v2326
      %2344 = vmatprep.subr.mxu0 0.0
      %2345 = vmatpush1.msra.mxu0 %v2327
      %2346 = vmatprep.subr.mxu0 0.0
      %2347 = vmatpush1.msra.mxu0 %v2328
      %2348 = vmatprep.subr.mxu0 0.0
      %2349 = vmatpush1.msra.mxu0 %v2329
      %2350 = vmatprep.subr.mxu0 0.0
      %2351 = vmatpush1.msra.mxu0 %v2330
      %2352 = vmatprep.subr.mxu0 0.0
      %2353 = vmatpush1.msra.mxu0 %v2331
      %2354 = vmatprep.subr.mxu0 0.0
      %2355 = vmatpush1.msra.mxu0 %v2332
      %2356 = vmatprep.subr.mxu0 0.0
      %2357 = vmatpush1.msra.mxu0 %v2333
      %2358 = vmatprep.subr.mxu0 0.0
      %2359 = vmatpush1.msra.mxu0 %v2334
      %2360 = vmatprep.subr.mxu0 0.0
      %2361 = vmatpush1.msra.mxu0 %v2335
      %2362 = vmatprep.subr.mxu0 0.0
      %2363 = vmatpush1.msra.mxu0 %v2336
      %2364 = vmatprep.subr.mxu0 0.0
      %2365 = vmatpush1.msra.mxu0 %v2337
      %2366 = vmatprep.subr.mxu0 0.0
      %2367 = vmatpush1.msra.mxu0 %v2338
      %2368 = vmatprep.subr.mxu0 0.0
      %2369 = vmatpush1.msra.mxu0 %v2339
      %2370 = vmatprep.subr.mxu0 0.0
      %2371 = vmatpush1.msra.mxu0 %v2340
      %2372 = vmatprep.subr.mxu0 0.0
      %2373 = vmatpush1.msra.mxu0 %v2341
      %2374 = vmatprep.subr.mxu0 0.0
      %2375 = vmatpush1.msra.mxu0 0.0
      %2376 = vmatprep.subr.mxu0 0.0
      %2377 = vmatpush1.msra.mxu0 0.0
      %2378 = vmatprep.subr.mxu0 0.0
      %2379 = vmatpush1.msra.mxu0 0.0
      %2380 = vmatprep.subr.mxu0 0.0
      %2381 = vmatpush1.msra.mxu0 0.0
      %2382 = vmatprep.subr.mxu0 0.0
      %2383 = vmatpush1.msra.mxu0 0.0
      %2384 = vmatprep.subr.mxu0 0.0
      %2385 = vmatpush1.msra.mxu0 0.0
      %2386 = vmatprep.subr.mxu0 0.0
      %2387 = vmatpush1.msra.mxu0 0.0
      %2388 = vmatprep.subr.mxu0 0.0
      %2389 = vmatpush1.msra.mxu0 0.0
      %2390 = vmatprep.subr.mxu0 0.0
      %2391 = vmatpush1.msra.mxu0 0.0
      %2392 = vmatprep.subr.mxu0 0.0
      %2393 = vmatpush1.msra.mxu0 0.0
      %2394 = vmatprep.subr.mxu0 0.0
      %2395 = vmatpush1.msra.mxu0 0.0
      %2396 = vmatprep.subr.mxu0 0.0
      %2397 = vmatpush1.msra.mxu0 0.0
      %2398 = vmatprep.subr.mxu0 0.0
      %2399 = vmatpush1.msra.mxu0 0.0
      %2400 = vmatprep.subr.mxu0 0.0
      %2401 = vmatpush1.msra.mxu0 0.0
      %2402 = vmatprep.subr.mxu0 0.0
      %2403 = vmatpush1.msra.mxu0 0.0
      %2404 = vmatprep.subr.mxu0 0.0
      %2405 = vmatpush1.msra.mxu0 0.0
      %2406 = vmatprep.mubr.f32.mxu0 0.0
      %2407 = vmatmul.mubr.f32.gmra.mrb[0].mxu0 %v1867
      %v2408 = vpop.f32.mrb[0].mxu0
      %v2409 = vadd.f32 0.0, %v2408
      %v2410 = vpop.f32.mrb[0].mxu0
      %2411 = vmatprep.mubr.f32.mxu0 0.0
      %2412 = vmatmul.mubr.f32.gmra.mrb[0].mxu0 %v1868
      %v2413 = vpop.f32.mrb[0].mxu0
      %v2414 = vadd.f32 0.0, %v2413
      %v2415 = vpop.f32.mrb[0].mxu0
      %2416 = vdwg.mxu0
      %v2417 = vlaneseq
      %v2418 = vshrl.u32 %v2417, 7
      %v2419 = vsub.s32 0, %v2418
      %v2420 = vrot.slane %v2305, %v2419
      %vm2421 = vcmp.eq.s32.totalorder %v142, %v2420
      %vm2422 = vcmp.eq.s32.totalorder %v143, %v2420
      %v2423 = vsel %vm2421, %v2409, 0.0
      %v2424 = vsel %vm2422, %v2414, 0.0
      %v2425 = vadd.f32 %v2289, %v2423
      %v2426 = vadd.f32 %v2290, %v2424
      %v2427 = vxor.u32 %v1848, %v1869
      %v2428 = vxor.u32 %v2427, %v1871
      %v2429 = vcvt.s32.f32 %v2428
      %v2430 = vmul.f32 %v2429, 0.0009699321
      %v2431 = vfloor.f32 %v2430
      %v2432 = vcvt.f32.s32.to.zero.pseudo %v2431
      %v2433 = vmul.u32 %v2432, 1031
      %v2434 = vsub.s32 %v2428, %v2433
      %vm2435 = vcmp.lt.s32.totalorder %v2434, 0
      %v2436 = vadd.s32 %v2434, 1031
      %v2437 = vsel %vm2435, %v2436, %v2434
      %vm2438 = vcmp.ge.s32.totalorder %v2437, 1031
      %v2439 = vsub.s32 %v2437, 1031
      %v2440 = vsel %vm2438, %v2439, %v2437
      %v2441 = vand.u32 %v2440, 127
      %v2442 = vshra.s32 %v2440, 7
      %v2443 = vlaneseq
      %v2444 = vshrl.u32 %v2443, 7
      %v2445 = vsub.s32 0, %v2444
      %v2446 = vrot.slane %v2441, %v2445
      %vm2447 = vcmp.eq.s32.totalorder %v142, %v2446
      %vm2448 = vcmp.eq.s32.totalorder %v143, %v2446
      %vm2449 = vcmp.eq.s32.totalorder %v144, %v2446
      %vm2450 = vcmp.eq.s32.totalorder %v145, %v2446
      %vm2451 = vcmp.eq.s32.totalorder %v146, %v2446
      %vm2452 = vcmp.eq.s32.totalorder %v147, %v2446
      %vm2453 = vcmp.eq.s32.totalorder %v148, %v2446
      %vm2454 = vcmp.eq.s32.totalorder %v149, %v2446
      %vm2455 = vcmp.eq.s32.totalorder %v150, %v2446
      %vm2456 = vcmp.eq.s32.totalorder %v151, %v2446
      %vm2457 = vcmp.eq.s32.totalorder %v152, %v2446
      %vm2458 = vcmp.eq.s32.totalorder %v153, %v2446
      %vm2459 = vcmp.eq.s32.totalorder %v154, %v2446
      %vm2460 = vcmp.eq.s32.totalorder %v155, %v2446
      %vm2461 = vcmp.eq.s32.totalorder %v156, %v2446
      %vm2462 = vcmp.eq.s32.totalorder %v157, %v2446
      %v2463 = vlaneseq
      %v2464 = vshrl.u32 %v2463, 7
      %v2465 = vsub.s32 0, %v2464
      %v2466 = vrot.slane %v1860, %v2465
      %v2467 = vsel %vm2447, %v2466, 0.0
      %v2468 = vsel %vm2448, %v2466, 0.0
      %v2469 = vsel %vm2449, %v2466, 0.0
      %v2470 = vsel %vm2450, %v2466, 0.0
      %v2471 = vsel %vm2451, %v2466, 0.0
      %v2472 = vsel %vm2452, %v2466, 0.0
      %v2473 = vsel %vm2453, %v2466, 0.0
      %v2474 = vsel %vm2454, %v2466, 0.0
      %v2475 = vsel %vm2455, %v2466, 0.0
      %v2476 = vsel %vm2456, %v2466, 0.0
      %v2477 = vsel %vm2457, %v2466, 0.0
      %v2478 = vsel %vm2458, %v2466, 0.0
      %v2479 = vsel %vm2459, %v2466, 0.0
      %v2480 = vsel %vm2460, %v2466, 0.0
      %v2481 = vsel %vm2461, %v2466, 0.0
      %v2482 = vsel %vm2462, %v2466, 0.0
      %2483 = vmatprep.subr.mxu0 0.0
      %2484 = vmatpush1.msra.mxu0 %v2467
      %2485 = vmatprep.subr.mxu0 0.0
      %2486 = vmatpush1.msra.mxu0 %v2468
      %2487 = vmatprep.subr.mxu0 0.0
      %2488 = vmatpush1.msra.mxu0 %v2469
      %2489 = vmatprep.subr.mxu0 0.0
      %2490 = vmatpush1.msra.mxu0 %v2470
      %2491 = vmatprep.subr.mxu0 0.0
      %2492 = vmatpush1.msra.mxu0 %v2471
      %2493 = vmatprep.subr.mxu0 0.0
      %2494 = vmatpush1.msra.mxu0 %v2472
      %2495 = vmatprep.subr.mxu0 0.0
      %2496 = vmatpush1.msra.mxu0 %v2473
      %2497 = vmatprep.subr.mxu0 0.0
      %2498 = vmatpush1.msra.mxu0 %v2474
      %2499 = vmatprep.subr.mxu0 0.0
      %2500 = vmatpush1.msra.mxu0 %v2475
      %2501 = vmatprep.subr.mxu0 0.0
      %2502 = vmatpush1.msra.mxu0 %v2476
      %2503 = vmatprep.subr.mxu0 0.0
      %2504 = vmatpush1.msra.mxu0 %v2477
      %2505 = vmatprep.subr.mxu0 0.0
      %2506 = vmatpush1.msra.mxu0 %v2478
      %2507 = vmatprep.subr.mxu0 0.0
      %2508 = vmatpush1.msra.mxu0 %v2479
      %2509 = vmatprep.subr.mxu0 0.0
      %2510 = vmatpush1.msra.mxu0 %v2480
      %2511 = vmatprep.subr.mxu0 0.0
      %2512 = vmatpush1.msra.mxu0 %v2481
      %2513 = vmatprep.subr.mxu0 0.0
      %2514 = vmatpush1.msra.mxu0 %v2482
      %2515 = vmatprep.subr.mxu0 0.0
      %2516 = vmatpush1.msra.mxu0 0.0
      %2517 = vmatprep.subr.mxu0 0.0
      %2518 = vmatpush1.msra.mxu0 0.0
      %2519 = vmatprep.subr.mxu0 0.0
      %2520 = vmatpush1.msra.mxu0 0.0
      %2521 = vmatprep.subr.mxu0 0.0
      %2522 = vmatpush1.msra.mxu0 0.0
      %2523 = vmatprep.subr.mxu0 0.0
      %2524 = vmatpush1.msra.mxu0 0.0
      %2525 = vmatprep.subr.mxu0 0.0
      %2526 = vmatpush1.msra.mxu0 0.0
      %2527 = vmatprep.subr.mxu0 0.0
      %2528 = vmatpush1.msra.mxu0 0.0
      %2529 = vmatprep.subr.mxu0 0.0
      %2530 = vmatpush1.msra.mxu0 0.0
      %2531 = vmatprep.subr.mxu0 0.0
      %2532 = vmatpush1.msra.mxu0 0.0
      %2533 = vmatprep.subr.mxu0 0.0
      %2534 = vmatpush1.msra.mxu0 0.0
      %2535 = vmatprep.subr.mxu0 0.0
      %2536 = vmatpush1.msra.mxu0 0.0
      %2537 = vmatprep.subr.mxu0 0.0
      %2538 = vmatpush1.msra.mxu0 0.0
      %2539 = vmatprep.subr.mxu0 0.0
      %2540 = vmatpush1.msra.mxu0 0.0
      %2541 = vmatprep.subr.mxu0 0.0
      %2542 = vmatpush1.msra.mxu0 0.0
      %2543 = vmatprep.subr.mxu0 0.0
      %2544 = vmatpush1.msra.mxu0 0.0
      %2545 = vmatprep.subr.mxu0 0.0
      %2546 = vmatpush1.msra.mxu0 0.0
      %2547 = vmatprep.mubr.f32.mxu0 0.0
      %2548 = vmatmul.mubr.f32.gmra.mrb[0].mxu0 %v1867
      %v2549 = vpop.f32.mrb[0].mxu0
      %v2550 = vadd.f32 0.0, %v2549
      %v2551 = vpop.f32.mrb[0].mxu0
      %2552 = vmatprep.mubr.f32.mxu0 0.0
      %2553 = vmatmul.mubr.f32.gmra.mrb[0].mxu0 %v1868
      %v2554 = vpop.f32.mrb[0].mxu0
      %v2555 = vadd.f32 0.0, %v2554
      %v2556 = vpop.f32.mrb[0].mxu0
      %2557 = vdwg.mxu0
      %v2558 = vlaneseq
      %v2559 = vshrl.u32 %v2558, 7
      %v2560 = vsub.s32 0, %v2559
      %v2561 = vrot.slane %v2442, %v2560
      %vm2562 = vcmp.eq.s32.totalorder %v142, %v2561
      %vm2563 = vcmp.eq.s32.totalorder %v143, %v2561
      %v2564 = vsel %vm2562, %v2550, 0.0
      %v2565 = vsel %vm2563, %v2555, 0.0
      %v2566 = vadd.f32 %v2425, %v2564
      %v2567 = vadd.f32 %v2426, %v2565
      %v2568 = vxor.u32 %v2427, %v2012
      %v2569 = vcvt.s32.f32 %v2568
      %v2570 = vmul.f32 %v2569, 0.0009699321
      %v2571 = vfloor.f32 %v2570
      %v2572 = vcvt.f32.s32.to.zero.pseudo %v2571
      %v2573 = vmul.u32 %v2572, 1031
      %v2574 = vsub.s32 %v2568, %v2573
      %vm2575 = vcmp.lt.s32.totalorder %v2574, 0
      %v2576 = vadd.s32 %v2574, 1031
      %v2577 = vsel %vm2575, %v2576, %v2574
      %vm2578 = vcmp.ge.s32.totalorder %v2577, 1031
      %v2579 = vsub.s32 %v2577, 1031
      %v2580 = vsel %vm2578, %v2579, %v2577
      %v2581 = vand.u32 %v2580, 127
      %v2582 = vshra.s32 %v2580, 7
      %v2583 = vlaneseq
      %v2584 = vshrl.u32 %v2583, 7
      %v2585 = vsub.s32 0, %v2584
      %v2586 = vrot.slane %v2581, %v2585
      %vm2587 = vcmp.eq.s32.totalorder %v142, %v2586
      %vm2588 = vcmp.eq.s32.totalorder %v143, %v2586
      %vm2589 = vcmp.eq.s32.totalorder %v144, %v2586
      %vm2590 = vcmp.eq.s32.totalorder %v145, %v2586
      %vm2591 = vcmp.eq.s32.totalorder %v146, %v2586
      %vm2592 = vcmp.eq.s32.totalorder %v147, %v2586
      %vm2593 = vcmp.eq.s32.totalorder %v148, %v2586
      %vm2594 = vcmp.eq.s32.totalorder %v149, %v2586
      %vm2595 = vcmp.eq.s32.totalorder %v150, %v2586
      %vm2596 = vcmp.eq.s32.totalorder %v151, %v2586
      %vm2597 = vcmp.eq.s32.totalorder %v152, %v2586
      %vm2598 = vcmp.eq.s32.totalorder %v153, %v2586
      %vm2599 = vcmp.eq.s32.totalorder %v154, %v2586
      %vm2600 = vcmp.eq.s32.totalorder %v155, %v2586
      %vm2601 = vcmp.eq.s32.totalorder %v156, %v2586
      %vm2602 = vcmp.eq.s32.totalorder %v157, %v2586
      %v2603 = vsel %vm2587, %v2466, 0.0
      %v2604 = vsel %vm2588, %v2466, 0.0
      %v2605 = vsel %vm2589, %v2466, 0.0
      %v2606 = vsel %vm2590, %v2466, 0.0
      %v2607 = vsel %vm2591, %v2466, 0.0
      %v2608 = vsel %vm2592, %v2466, 0.0
      %v2609 = vsel %vm2593, %v2466, 0.0
      %v2610 = vsel %vm2594, %v2466, 0.0
      %v2611 = vsel %vm2595, %v2466, 0.0
      %v2612 = vsel %vm2596, %v2466, 0.0
      %v2613 = vsel %vm2597, %v2466, 0.0
      %v2614 = vsel %vm2598, %v2466, 0.0
      %v2615 = vsel %vm2599, %v2466, 0.0
      %v2616 = vsel %vm2600, %v2466, 0.0
      %v2617 = vsel %vm2601, %v2466, 0.0
      %v2618 = vsel %vm2602, %v2466, 0.0
      %2619 = vmatprep.subr.mxu0 0.0
      %2620 = vmatpush1.msra.mxu0 %v2603
      %2621 = vmatprep.subr.mxu0 0.0
      %2622 = vmatpush1.msra.mxu0 %v2604
      %2623 = vmatprep.subr.mxu0 0.0
      %2624 = vmatpush1.msra.mxu0 %v2605
      %2625 = vmatprep.subr.mxu0 0.0
      %2626 = vmatpush1.msra.mxu0 %v2606
      %2627 = vmatprep.subr.mxu0 0.0
      %2628 = vmatpush1.msra.mxu0 %v2607
      %2629 = vmatprep.subr.mxu0 0.0
      %2630 = vmatpush1.msra.mxu0 %v2608
      %2631 = vmatprep.subr.mxu0 0.0
      %2632 = vmatpush1.msra.mxu0 %v2609
      %2633 = vmatprep.subr.mxu0 0.0
      %2634 = vmatpush1.msra.mxu0 %v2610
      %2635 = vmatprep.subr.mxu0 0.0
      %2636 = vmatpush1.msra.mxu0 %v2611
      %2637 = vmatprep.subr.mxu0 0.0
      %2638 = vmatpush1.msra.mxu0 %v2612
      %2639 = vmatprep.subr.mxu0 0.0
      %2640 = vmatpush1.msra.mxu0 %v2613
      %2641 = vmatprep.subr.mxu0 0.0
      %2642 = vmatpush1.msra.mxu0 %v2614
      %2643 = vmatprep.subr.mxu0 0.0
      %2644 = vmatpush1.msra.mxu0 %v2615
      %2645 = vmatprep.subr.mxu0 0.0
      %2646 = vmatpush1.msra.mxu0 %v2616
      %2647 = vmatprep.subr.mxu0 0.0
      %2648 = vmatpush1.msra.mxu0 %v2617
      %2649 = vmatprep.subr.mxu0 0.0
      %2650 = vmatpush1.msra.mxu0 %v2618
      %2651 = vmatprep.subr.mxu0 0.0
      %2652 = vmatpush1.msra.mxu0 0.0
      %2653 = vmatprep.subr.mxu0 0.0
      %2654 = vmatpush1.msra.mxu0 0.0
      %2655 = vmatprep.subr.mxu0 0.0
      %2656 = vmatpush1.msra.mxu0 0.0
      %2657 = vmatprep.subr.mxu0 0.0
      %2658 = vmatpush1.msra.mxu0 0.0
      %2659 = vmatprep.subr.mxu0 0.0
      %2660 = vmatpush1.msra.mxu0 0.0
      %2661 = vmatprep.subr.mxu0 0.0
      %2662 = vmatpush1.msra.mxu0 0.0
      %2663 = vmatprep.subr.mxu0 0.0
      %2664 = vmatpush1.msra.mxu0 0.0
      %2665 = vmatprep.subr.mxu0 0.0
      %2666 = vmatpush1.msra.mxu0 0.0
      %2667 = vmatprep.subr.mxu0 0.0
      %2668 = vmatpush1.msra.mxu0 0.0
      %2669 = vmatprep.subr.mxu0 0.0
      %2670 = vmatpush1.msra.mxu0 0.0
      %2671 = vmatprep.subr.mxu0 0.0
      %2672 = vmatpush1.msra.mxu0 0.0
      %2673 = vmatprep.subr.mxu0 0.0
      %2674 = vmatpush1.msra.mxu0 0.0
      %2675 = vmatprep.subr.mxu0 0.0
      %2676 = vmatpush1.msra.mxu0 0.0
      %2677 = vmatprep.subr.mxu0 0.0
      %2678 = vmatpush1.msra.mxu0 0.0
      %2679 = vmatprep.subr.mxu0 0.0
      %2680 = vmatpush1.msra.mxu0 0.0
      %2681 = vmatprep.subr.mxu0 0.0
      %2682 = vmatpush1.msra.mxu0 0.0
      %2683 = vmatprep.mubr.f32.mxu0 0.0
      %2684 = vmatmul.mubr.f32.gmra.mrb[0].mxu0 %v1867
      %v2685 = vpop.f32.mrb[0].mxu0
      %v2686 = vadd.f32 0.0, %v2685
      %v2687 = vpop.f32.mrb[0].mxu0
      %2688 = vmatprep.mubr.f32.mxu0 0.0
      %2689 = vmatmul.mubr.f32.gmra.mrb[0].mxu0 %v1868
      %v2690 = vpop.f32.mrb[0].mxu0
      %v2691 = vadd.f32 0.0, %v2690
      %v2692 = vpop.f32.mrb[0].mxu0
      %2693 = vdwg.mxu0
      %v2694 = vlaneseq
      %v2695 = vshrl.u32 %v2694, 7
      %v2696 = vsub.s32 0, %v2695
      %v2697 = vrot.slane %v2582, %v2696
      %vm2698 = vcmp.eq.s32.totalorder %v142, %v2697
      %vm2699 = vcmp.eq.s32.totalorder %v143, %v2697
      %v2700 = vsel %vm2698, %v2686, 0.0
      %v2701 = vsel %vm2699, %v2691, 0.0
      %v2702 = vadd.f32 %v2566, %v2700
      %v2703 = vadd.f32 %v2567, %v2701
      %v2704 = vxor.u32 %v1848, %v2149
      %v2705 = vxor.u32 %v2704, %v1871
      %v2706 = vcvt.s32.f32 %v2705
      %v2707 = vmul.f32 %v2706, 0.0009699321
      %v2708 = vfloor.f32 %v2707
      %v2709 = vcvt.f32.s32.to.zero.pseudo %v2708
      %v2710 = vmul.u32 %v2709, 1031
      %v2711 = vsub.s32 %v2705, %v2710
      %vm2712 = vcmp.lt.s32.totalorder %v2711, 0
      %v2713 = vadd.s32 %v2711, 1031
      %v2714 = vsel %vm2712, %v2713, %v2711
      %vm2715 = vcmp.ge.s32.totalorder %v2714, 1031
      %v2716 = vsub.s32 %v2714, 1031
      %v2717 = vsel %vm2715, %v2716, %v2714
      %v2718 = vand.u32 %v2717, 127
      %v2719 = vshra.s32 %v2717, 7
      %v2720 = vlaneseq
      %v2721 = vshrl.u32 %v2720, 7
      %v2722 = vsub.s32 0, %v2721
      %v2723 = vrot.slane %v2718, %v2722
      %vm2724 = vcmp.eq.s32.totalorder %v142, %v2723
      %vm2725 = vcmp.eq.s32.totalorder %v143, %v2723
      %vm2726 = vcmp.eq.s32.totalorder %v144, %v2723
      %vm2727 = vcmp.eq.s32.totalorder %v145, %v2723
      %vm2728 = vcmp.eq.s32.totalorder %v146, %v2723
      %vm2729 = vcmp.eq.s32.totalorder %v147, %v2723
      %vm2730 = vcmp.eq.s32.totalorder %v148, %v2723
      %vm2731 = vcmp.eq.s32.totalorder %v149, %v2723
      %vm2732 = vcmp.eq.s32.totalorder %v150, %v2723
      %vm2733 = vcmp.eq.s32.totalorder %v151, %v2723
      %vm2734 = vcmp.eq.s32.totalorder %v152, %v2723
      %vm2735 = vcmp.eq.s32.totalorder %v153, %v2723
      %vm2736 = vcmp.eq.s32.totalorder %v154, %v2723
      %vm2737 = vcmp.eq.s32.totalorder %v155, %v2723
      %vm2738 = vcmp.eq.s32.totalorder %v156, %v2723
      %vm2739 = vcmp.eq.s32.totalorder %v157, %v2723
      %v2740 = vlaneseq
      %v2741 = vshrl.u32 %v2740, 7
      %v2742 = vsub.s32 0, %v2741
      %v2743 = vrot.slane %v1861, %v2742
      %v2744 = vsel %vm2724, %v2743, 0.0
      %v2745 = vsel %vm2725, %v2743, 0.0
      %v2746 = vsel %vm2726, %v2743, 0.0
      %v2747 = vsel %vm2727, %v2743, 0.0
      %v2748 = vsel %vm2728, %v2743, 0.0
      %v2749 = vsel %vm2729, %v2743, 0.0
      %v2750 = vsel %vm2730, %v2743, 0.0
      %v2751 = vsel %vm2731, %v2743, 0.0
      %v2752 = vsel %vm2732, %v2743, 0.0
      %v2753 = vsel %vm2733, %v2743, 0.0
      %v2754 = vsel %vm2734, %v2743, 0.0
      %v2755 = vsel %vm2735, %v2743, 0.0
      %v2756 = vsel %vm2736, %v2743, 0.0
      %v2757 = vsel %vm2737, %v2743, 0.0
      %v2758 = vsel %vm2738, %v2743, 0.0
      %v2759 = vsel %vm2739, %v2743, 0.0
      %2760 = vmatprep.subr.mxu0 0.0
      %2761 = vmatpush1.msra.mxu0 %v2744
      %2762 = vmatprep.subr.mxu0 0.0
      %2763 = vmatpush1.msra.mxu0 %v2745
      %2764 = vmatprep.subr.mxu0 0.0
      %2765 = vmatpush1.msra.mxu0 %v2746
      %2766 = vmatprep.subr.mxu0 0.0
      %2767 = vmatpush1.msra.mxu0 %v2747
      %2768 = vmatprep.subr.mxu0 0.0
      %2769 = vmatpush1.msra.mxu0 %v2748
      %2770 = vmatprep.subr.mxu0 0.0
      %2771 = vmatpush1.msra.mxu0 %v2749
      %2772 = vmatprep.subr.mxu0 0.0
      %2773 = vmatpush1.msra.mxu0 %v2750
      %2774 = vmatprep.subr.mxu0 0.0
      %2775 = vmatpush1.msra.mxu0 %v2751
      %2776 = vmatprep.subr.mxu0 0.0
      %2777 = vmatpush1.msra.mxu0 %v2752
      %2778 = vmatprep.subr.mxu0 0.0
      %2779 = vmatpush1.msra.mxu0 %v2753
      %2780 = vmatprep.subr.mxu0 0.0
      %2781 = vmatpush1.msra.mxu0 %v2754
      %2782 = vmatprep.subr.mxu0 0.0
      %2783 = vmatpush1.msra.mxu0 %v2755
      %2784 = vmatprep.subr.mxu0 0.0
      %2785 = vmatpush1.msra.mxu0 %v2756
      %2786 = vmatprep.subr.mxu0 0.0
      %2787 = vmatpush1.msra.mxu0 %v2757
      %2788 = vmatprep.subr.mxu0 0.0
      %2789 = vmatpush1.msra.mxu0 %v2758
      %2790 = vmatprep.subr.mxu0 0.0
      %2791 = vmatpush1.msra.mxu0 %v2759
      %2792 = vmatprep.subr.mxu0 0.0
      %2793 = vmatpush1.msra.mxu0 0.0
      %2794 = vmatprep.subr.mxu0 0.0
      %2795 = vmatpush1.msra.mxu0 0.0
      %2796 = vmatprep.subr.mxu0 0.0
      %2797 = vmatpush1.msra.mxu0 0.0
      %2798 = vmatprep.subr.mxu0 0.0
      %2799 = vmatpush1.msra.mxu0 0.0
      %2800 = vmatprep.subr.mxu0 0.0
      %2801 = vmatpush1.msra.mxu0 0.0
      %2802 = vmatprep.subr.mxu0 0.0
      %2803 = vmatpush1.msra.mxu0 0.0
      %2804 = vmatprep.subr.mxu0 0.0
      %2805 = vmatpush1.msra.mxu0 0.0
      %2806 = vmatprep.subr.mxu0 0.0
      %2807 = vmatpush1.msra.mxu0 0.0
      %2808 = vmatprep.subr.mxu0 0.0
      %2809 = vmatpush1.msra.mxu0 0.0
      %2810 = vmatprep.subr.mxu0 0.0
      %2811 = vmatpush1.msra.mxu0 0.0
      %2812 = vmatprep.subr.mxu0 0.0
      %2813 = vmatpush1.msra.mxu0 0.0
      %2814 = vmatprep.subr.mxu0 0.0
      %2815 = vmatpush1.msra.mxu0 0.0
      %2816 = vmatprep.subr.mxu0 0.0
      %2817 = vmatpush1.msra.mxu0 0.0
      %2818 = vmatprep.subr.mxu0 0.0
      %2819 = vmatpush1.msra.mxu0 0.0
      %2820 = vmatprep.subr.mxu0 0.0
      %2821 = vmatpush1.msra.mxu0 0.0
      %2822 = vmatprep.subr.mxu0 0.0
      %2823 = vmatpush1.msra.mxu0 0.0
      %2824 = vmatprep.mubr.f32.mxu0 0.0
      %2825 = vmatmul.mubr.f32.gmra.mrb[0].mxu0 %v1867
      %v2826 = vpop.f32.mrb[0].mxu0
      %v2827 = vadd.f32 0.0, %v2826
      %v2828 = vpop.f32.mrb[0].mxu0
      %2829 = vmatprep.mubr.f32.mxu0 0.0
      %2830 = vmatmul.mubr.f32.gmra.mrb[0].mxu0 %v1868
      %v2831 = vpop.f32.mrb[0].mxu0
      %v2832 = vadd.f32 0.0, %v2831
      %v2833 = vpop.f32.mrb[0].mxu0
      %2834 = vdwg.mxu0
      %v2835 = vlaneseq
      %v2836 = vshrl.u32 %v2835, 7
      %v2837 = vsub.s32 0, %v2836
      %v2838 = vrot.slane %v2719, %v2837
      %vm2839 = vcmp.eq.s32.totalorder %v142, %v2838
      %vm2840 = vcmp.eq.s32.totalorder %v143, %v2838
      %v2841 = vsel %vm2839, %v2827, 0.0
      %v2842 = vsel %vm2840, %v2832, 0.0
      %v2843 = vadd.f32 %v2702, %v2841
      %v2844 = vadd.f32 %v2703, %v2842
      %v2845 = vxor.u32 %v2704, %v2012
      %v2846 = vcvt.s32.f32 %v2845
      %v2847 = vmul.f32 %v2846, 0.0009699321
      %v2848 = vfloor.f32 %v2847
      %v2849 = vcvt.f32.s32.to.zero.pseudo %v2848
      %v2850 = vmul.u32 %v2849, 1031
      %v2851 = vsub.s32 %v2845, %v2850
      %vm2852 = vcmp.lt.s32.totalorder %v2851, 0
      %v2853 = vadd.s32 %v2851, 1031
      %v2854 = vsel %vm2852, %v2853, %v2851
      %vm2855 = vcmp.ge.s32.totalorder %v2854, 1031
      %v2856 = vsub.s32 %v2854, 1031
      %v2857 = vsel %vm2855, %v2856, %v2854
      %v2858 = vand.u32 %v2857, 127
      %v2859 = vshra.s32 %v2857, 7
      %v2860 = vlaneseq
      %v2861 = vshrl.u32 %v2860, 7
      %v2862 = vsub.s32 0, %v2861
      %v2863 = vrot.slane %v2858, %v2862
      %vm2864 = vcmp.eq.s32.totalorder %v142, %v2863
      %vm2865 = vcmp.eq.s32.totalorder %v143, %v2863
      %vm2866 = vcmp.eq.s32.totalorder %v144, %v2863
      %vm2867 = vcmp.eq.s32.totalorder %v145, %v2863
      %vm2868 = vcmp.eq.s32.totalorder %v146, %v2863
      %vm2869 = vcmp.eq.s32.totalorder %v147, %v2863
      %vm2870 = vcmp.eq.s32.totalorder %v148, %v2863
      %vm2871 = vcmp.eq.s32.totalorder %v149, %v2863
      %vm2872 = vcmp.eq.s32.totalorder %v150, %v2863
      %vm2873 = vcmp.eq.s32.totalorder %v151, %v2863
      %vm2874 = vcmp.eq.s32.totalorder %v152, %v2863
      %vm2875 = vcmp.eq.s32.totalorder %v153, %v2863
      %vm2876 = vcmp.eq.s32.totalorder %v154, %v2863
      %vm2877 = vcmp.eq.s32.totalorder %v155, %v2863
      %vm2878 = vcmp.eq.s32.totalorder %v156, %v2863
      %vm2879 = vcmp.eq.s32.totalorder %v157, %v2863
      %v2880 = vsel %vm2864, %v2743, 0.0
      %v2881 = vsel %vm2865, %v2743, 0.0
      %v2882 = vsel %vm2866, %v2743, 0.0
      %v2883 = vsel %vm2867, %v2743, 0.0
      %v2884 = vsel %vm2868, %v2743, 0.0
      %v2885 = vsel %vm2869, %v2743, 0.0
      %v2886 = vsel %vm2870, %v2743, 0.0
      %v2887 = vsel %vm2871, %v2743, 0.0
      %v2888 = vsel %vm2872, %v2743, 0.0
      %v2889 = vsel %vm2873, %v2743, 0.0
      %v2890 = vsel %vm2874, %v2743, 0.0
      %v2891 = vsel %vm2875, %v2743, 0.0
      %v2892 = vsel %vm2876, %v2743, 0.0
      %v2893 = vsel %vm2877, %v2743, 0.0
      %v2894 = vsel %vm2878, %v2743, 0.0
      %v2895 = vsel %vm2879, %v2743, 0.0
      %2896 = vmatprep.subr.mxu0 0.0
      %2897 = vmatpush1.msra.mxu0 %v2880
      %2898 = vmatprep.subr.mxu0 0.0
      %2899 = vmatpush1.msra.mxu0 %v2881
      %2900 = vmatprep.subr.mxu0 0.0
      %2901 = vmatpush1.msra.mxu0 %v2882
      %2902 = vmatprep.subr.mxu0 0.0
      %2903 = vmatpush1.msra.mxu0 %v2883
      %2904 = vmatprep.subr.mxu0 0.0
      %2905 = vmatpush1.msra.mxu0 %v2884
      %2906 = vmatprep.subr.mxu0 0.0
      %2907 = vmatpush1.msra.mxu0 %v2885
      %2908 = vmatprep.subr.mxu0 0.0
      %2909 = vmatpush1.msra.mxu0 %v2886
      %2910 = vmatprep.subr.mxu0 0.0
      %2911 = vmatpush1.msra.mxu0 %v2887
      %2912 = vmatprep.subr.mxu0 0.0
      %2913 = vmatpush1.msra.mxu0 %v2888
      %2914 = vmatprep.subr.mxu0 0.0
      %2915 = vmatpush1.msra.mxu0 %v2889
      %2916 = vmatprep.subr.mxu0 0.0
      %2917 = vmatpush1.msra.mxu0 %v2890
      %2918 = vmatprep.subr.mxu0 0.0
      %2919 = vmatpush1.msra.mxu0 %v2891
      %2920 = vmatprep.subr.mxu0 0.0
      %2921 = vmatpush1.msra.mxu0 %v2892
      %2922 = vmatprep.subr.mxu0 0.0
      %2923 = vmatpush1.msra.mxu0 %v2893
      %2924 = vmatprep.subr.mxu0 0.0
      %2925 = vmatpush1.msra.mxu0 %v2894
      %2926 = vmatprep.subr.mxu0 0.0
      %2927 = vmatpush1.msra.mxu0 %v2895
      %2928 = vmatprep.subr.mxu0 0.0
      %2929 = vmatpush1.msra.mxu0 0.0
      %2930 = vmatprep.subr.mxu0 0.0
      %2931 = vmatpush1.msra.mxu0 0.0
      %2932 = vmatprep.subr.mxu0 0.0
      %2933 = vmatpush1.msra.mxu0 0.0
      %2934 = vmatprep.subr.mxu0 0.0
      %2935 = vmatpush1.msra.mxu0 0.0
      %2936 = vmatprep.subr.mxu0 0.0
      %2937 = vmatpush1.msra.mxu0 0.0
      %2938 = vmatprep.subr.mxu0 0.0
      %2939 = vmatpush1.msra.mxu0 0.0
      %2940 = vmatprep.subr.mxu0 0.0
      %2941 = vmatpush1.msra.mxu0 0.0
      %2942 = vmatprep.subr.mxu0 0.0
      %2943 = vmatpush1.msra.mxu0 0.0
      %2944 = vmatprep.subr.mxu0 0.0
      %2945 = vmatpush1.msra.mxu0 0.0
      %2946 = vmatprep.subr.mxu0 0.0
      %2947 = vmatpush1.msra.mxu0 0.0
      %2948 = vmatprep.subr.mxu0 0.0
      %2949 = vmatpush1.msra.mxu0 0.0
      %2950 = vmatprep.subr.mxu0 0.0
      %2951 = vmatpush1.msra.mxu0 0.0
      %2952 = vmatprep.subr.mxu0 0.0
      %2953 = vmatpush1.msra.mxu0 0.0
      %2954 = vmatprep.subr.mxu0 0.0
      %2955 = vmatpush1.msra.mxu0 0.0
      %2956 = vmatprep.subr.mxu0 0.0
      %2957 = vmatpush1.msra.mxu0 0.0
      %2958 = vmatprep.subr.mxu0 0.0
      %2959 = vmatpush1.msra.mxu0 0.0
      %2960 = vmatprep.mubr.f32.mxu0 0.0
      %2961 = vmatmul.mubr.f32.gmra.mrb[0].mxu0 %v1867
      %v2962 = vpop.f32.mrb[0].mxu0
      %v2963 = vadd.f32 0.0, %v2962
      %v2964 = vpop.f32.mrb[0].mxu0
      %2965 = vmatprep.mubr.f32.mxu0 0.0
      %2966 = vmatmul.mubr.f32.gmra.mrb[0].mxu0 %v1868
      %v2967 = vpop.f32.mrb[0].mxu0
      %v2968 = vadd.f32 0.0, %v2967
      %v2969 = vpop.f32.mrb[0].mxu0
      %2970 = vdwg.mxu0
      %v2971 = vlaneseq
      %v2972 = vshrl.u32 %v2971, 7
      %v2973 = vsub.s32 0, %v2972
      %v2974 = vrot.slane %v2859, %v2973
      %vm2975 = vcmp.eq.s32.totalorder %v142, %v2974
      %vm2976 = vcmp.eq.s32.totalorder %v143, %v2974
      %v2977 = vsel %vm2975, %v2963, 0.0
      %v2978 = vsel %vm2976, %v2968, 0.0
      %v2979 = vadd.f32 %v2843, %v2977
      %v2980 = vadd.f32 %v2844, %v2978
      %v2981 = vadd.f32 %v2979, %v2980
      %v2982 = vrot.slane %v2981, 4
      %v2983 = vadd.f32 %v2981, %v2982
      %v2984 = vrot.slane %v2983, 2
      %v2985 = vadd.f32 %v2983, %v2984
      %v2986 = vrot.slane %v2985, 1
      %v2987 = vadd.f32 %v2985, %v2986
      %2988 = vst [vmem:[%s138 + $0x5] sm:$0x1] %v2987
      %v2989 = vrcp.pop 0.05
      %v2990 = vmul.f32 %v139, %v2989
      %v2991 = vcvt.f32.s32.to.zero.pseudo %v2990
      %vm2992 = vcmp.gt.s32.totalorder %v2991, 0
      %v2993 = vsel %vm2992, %v2991, 0
      %vm2994 = vcmp.lt.s32.totalorder %v2993, 20
      %v2995 = vsel %vm2994, %v2993, 20
      %v2996 = vadd.f32 %v2990, 1.0
      %v2997 = vcvt.f32.s32.to.zero.pseudo %v2996
      %vm2998 = vcmp.gt.s32.totalorder %v2997, 0
      %v2999 = vsel %vm2998, %v2997, 0
      %vm3000 = vcmp.lt.s32.totalorder %v2999, 20
      %v3001 = vsel %vm3000, %v2999, 20
      %v3002 = vcvt.s32.f32 %v2995
      %v3003 = vsub.f32 %v2990, %v3002
      %v3004 = vsub.f32 1.0, %v3003
      %v3006 = vrot.slane %v3004, 1
      %v3008 = vmul.f32 %v3004, %v3006
      %v3010 = vrot.slane %v3003, 1
      %v3012 = vmul.f32 %v3004, %v3010
      %v3013 = vmul.f32 %v3003, %v3006
      %v3014 = vmul.f32 %v3003, %v3010
      %v3015 = vmul.u32 %v2995, 19349663
      %v3016 = vmul.u32 %v3001, 19349663
      %v3017 = vmul.u32 %v2995, 83492791
      %v3018 = vmul.u32 %v3001, 83492791
      %s3019 = scalar_lea.vmem %s1, 48
      %v3020 = vld [vmem:[%s3019] sm:$0xff]
      %v3021 = vld [vmem:[%s3019 + $0x8] sm:$0xff]
      %v3022 = vrot.slane %v3015, 1
      %v3023 = vxor.u32 %v2995, %v3022
      %v3024 = vrot.slane %v3017, 2
      %v3025 = vxor.u32 %v3023, %v3024
      %v3026 = vcvt.s32.f32 %v3025
      %v3027 = vmul.f32 %v3026, 0.0009699321
      %v3028 = vfloor.f32 %v3027
      %v3029 = vcvt.f32.s32.to.zero.pseudo %v3028
      %v3030 = vmul.u32 %v3029, 1031
      %v3031 = vsub.s32 %v3025, %v3030
      %vm3032 = vcmp.lt.s32.totalorder %v3031, 0
      %v3033 = vadd.s32 %v3031, 1031
      %v3034 = vsel %vm3032, %v3033, %v3031
      %vm3035 = vcmp.ge.s32.totalorder %v3034, 1031
      %v3036 = vsub.s32 %v3034, 1031
      %v3037 = vsel %vm3035, %v3036, %v3034
      %v3038 = vand.u32 %v3037, 127
      %v3039 = vshra.s32 %v3037, 7
      %v3040 = vlaneseq
      %v3041 = vshrl.u32 %v3040, 7
      %v3042 = vsub.s32 0, %v3041
      %v3043 = vrot.slane %v3038, %v3042
      %vm3044 = vcmp.eq.s32.totalorder %v142, %v3043
      %vm3045 = vcmp.eq.s32.totalorder %v143, %v3043
      %vm3046 = vcmp.eq.s32.totalorder %v144, %v3043
      %vm3047 = vcmp.eq.s32.totalorder %v145, %v3043
      %vm3048 = vcmp.eq.s32.totalorder %v146, %v3043
      %vm3049 = vcmp.eq.s32.totalorder %v147, %v3043
      %vm3050 = vcmp.eq.s32.totalorder %v148, %v3043
      %vm3051 = vcmp.eq.s32.totalorder %v149, %v3043
      %vm3052 = vcmp.eq.s32.totalorder %v150, %v3043
      %vm3053 = vcmp.eq.s32.totalorder %v151, %v3043
      %vm3054 = vcmp.eq.s32.totalorder %v152, %v3043
      %vm3055 = vcmp.eq.s32.totalorder %v153, %v3043
      %vm3056 = vcmp.eq.s32.totalorder %v154, %v3043
      %vm3057 = vcmp.eq.s32.totalorder %v155, %v3043
      %vm3058 = vcmp.eq.s32.totalorder %v156, %v3043
      %vm3059 = vcmp.eq.s32.totalorder %v157, %v3043
      %v3060 = vlaneseq
      %v3061 = vshrl.u32 %v3060, 7
      %v3062 = vsub.s32 0, %v3061
      %v3063 = vrot.slane %v3008, %v3062
      %v3064 = vsel %vm3044, %v3063, 0.0
      %v3065 = vsel %vm3045, %v3063, 0.0
      %v3066 = vsel %vm3046, %v3063, 0.0
      %v3067 = vsel %vm3047, %v3063, 0.0
      %v3068 = vsel %vm3048, %v3063, 0.0
      %v3069 = vsel %vm3049, %v3063, 0.0
      %v3070 = vsel %vm3050, %v3063, 0.0
      %v3071 = vsel %vm3051, %v3063, 0.0
      %v3072 = vsel %vm3052, %v3063, 0.0
      %v3073 = vsel %vm3053, %v3063, 0.0
      %v3074 = vsel %vm3054, %v3063, 0.0
      %v3075 = vsel %vm3055, %v3063, 0.0
      %v3076 = vsel %vm3056, %v3063, 0.0
      %v3077 = vsel %vm3057, %v3063, 0.0
      %v3078 = vsel %vm3058, %v3063, 0.0
      %v3079 = vsel %vm3059, %v3063, 0.0
      %3080 = vmatprep.subr.mxu0 0.0
      %3081 = vmatpush1.msra.mxu0 %v3064
      %3082 = vmatprep.subr.mxu0 0.0
      %3083 = vmatpush1.msra.mxu0 %v3065
      %3084 = vmatprep.subr.mxu0 0.0
      %3085 = vmatpush1.msra.mxu0 %v3066
      %3086 = vmatprep.subr.mxu0 0.0
      %3087 = vmatpush1.msra.mxu0 %v3067
      %3088 = vmatprep.subr.mxu0 0.0
      %3089 = vmatpush1.msra.mxu0 %v3068
      %3090 = vmatprep.subr.mxu0 0.0
      %3091 = vmatpush1.msra.mxu0 %v3069
      %3092 = vmatprep.subr.mxu0 0.0
      %3093 = vmatpush1.msra.mxu0 %v3070
      %3094 = vmatprep.subr.mxu0 0.0
      %3095 = vmatpush1.msra.mxu0 %v3071
      %3096 = vmatprep.subr.mxu0 0.0
      %3097 = vmatpush1.msra.mxu0 %v3072
      %3098 = vmatprep.subr.mxu0 0.0
      %3099 = vmatpush1.msra.mxu0 %v3073
      %3100 = vmatprep.subr.mxu0 0.0
      %3101 = vmatpush1.msra.mxu0 %v3074
      %3102 = vmatprep.subr.mxu0 0.0
      %3103 = vmatpush1.msra.mxu0 %v3075
      %3104 = vmatprep.subr.mxu0 0.0
      %3105 = vmatpush1.msra.mxu0 %v3076
      %3106 = vmatprep.subr.mxu0 0.0
      %3107 = vmatpush1.msra.mxu0 %v3077
      %3108 = vmatprep.subr.mxu0 0.0
      %3109 = vmatpush1.msra.mxu0 %v3078
      %3110 = vmatprep.subr.mxu0 0.0
      %3111 = vmatpush1.msra.mxu0 %v3079
      %3112 = vmatprep.subr.mxu0 0.0
      %3113 = vmatpush1.msra.mxu0 0.0
      %3114 = vmatprep.subr.mxu0 0.0
      %3115 = vmatpush1.msra.mxu0 0.0
      %3116 = vmatprep.subr.mxu0 0.0
      %3117 = vmatpush1.msra.mxu0 0.0
      %3118 = vmatprep.subr.mxu0 0.0
      %3119 = vmatpush1.msra.mxu0 0.0
      %3120 = vmatprep.subr.mxu0 0.0
      %3121 = vmatpush1.msra.mxu0 0.0
      %3122 = vmatprep.subr.mxu0 0.0
      %3123 = vmatpush1.msra.mxu0 0.0
      %3124 = vmatprep.subr.mxu0 0.0
      %3125 = vmatpush1.msra.mxu0 0.0
      %3126 = vmatprep.subr.mxu0 0.0
      %3127 = vmatpush1.msra.mxu0 0.0
      %3128 = vmatprep.subr.mxu0 0.0
      %3129 = vmatpush1.msra.mxu0 0.0
      %3130 = vmatprep.subr.mxu0 0.0
      %3131 = vmatpush1.msra.mxu0 0.0
      %3132 = vmatprep.subr.mxu0 0.0
      %3133 = vmatpush1.msra.mxu0 0.0
      %3134 = vmatprep.subr.mxu0 0.0
      %3135 = vmatpush1.msra.mxu0 0.0
      %3136 = vmatprep.subr.mxu0 0.0
      %3137 = vmatpush1.msra.mxu0 0.0
      %3138 = vmatprep.subr.mxu0 0.0
      %3139 = vmatpush1.msra.mxu0 0.0
      %3140 = vmatprep.subr.mxu0 0.0
      %3141 = vmatpush1.msra.mxu0 0.0
      %3142 = vmatprep.subr.mxu0 0.0
      %3143 = vmatpush1.msra.mxu0 0.0
      %3144 = vmatprep.mubr.f32.mxu0 0.0
      %3145 = vmatmul.mubr.f32.gmra.mrb[0].mxu0 %v3020
      %v3146 = vpop.f32.mrb[0].mxu0
      %v3147 = vadd.f32 0.0, %v3146
      %v3148 = vpop.f32.mrb[0].mxu0
      %3149 = vmatprep.mubr.f32.mxu0 0.0
      %3150 = vmatmul.mubr.f32.gmra.mrb[0].mxu0 %v3021
      %v3151 = vpop.f32.mrb[0].mxu0
      %v3152 = vadd.f32 0.0, %v3151
      %v3153 = vpop.f32.mrb[0].mxu0
      %3154 = vdwg.mxu0
      %v3155 = vlaneseq
      %v3156 = vshrl.u32 %v3155, 7
      %v3157 = vsub.s32 0, %v3156
      %v3158 = vrot.slane %v3039, %v3157
      %vm3159 = vcmp.eq.s32.totalorder %v142, %v3158
      %vm3160 = vcmp.eq.s32.totalorder %v143, %v3158
      %v3161 = vsel %vm3159, %v3147, 0.0
      %v3162 = vsel %vm3160, %v3152, 0.0
      %v3163 = vadd.f32 %v3161, 0.0
      %v3164 = vadd.f32 %v3162, 0.0
      %v3165 = vrot.slane %v3018, 2
      %v3166 = vxor.u32 %v3023, %v3165
      %v3167 = vcvt.s32.f32 %v3166
      %v3168 = vmul.f32 %v3167, 0.0009699321
      %v3169 = vfloor.f32 %v3168
      %v3170 = vcvt.f32.s32.to.zero.pseudo %v3169
      %v3171 = vmul.u32 %v3170, 1031
      %v3172 = vsub.s32 %v3166, %v3171
      %vm3173 = vcmp.lt.s32.totalorder %v3172, 0
      %v3174 = vadd.s32 %v3172, 1031
      %v3175 = vsel %vm3173, %v3174, %v3172
      %vm3176 = vcmp.ge.s32.totalorder %v3175, 1031
      %v3177 = vsub.s32 %v3175, 1031
      %v3178 = vsel %vm3176, %v3177, %v3175
      %v3179 = vand.u32 %v3178, 127
      %v3180 = vshra.s32 %v3178, 7
      %v3181 = vlaneseq
      %v3182 = vshrl.u32 %v3181, 7
      %v3183 = vsub.s32 0, %v3182
      %v3184 = vrot.slane %v3179, %v3183
      %vm3185 = vcmp.eq.s32.totalorder %v142, %v3184
      %vm3186 = vcmp.eq.s32.totalorder %v143, %v3184
      %vm3187 = vcmp.eq.s32.totalorder %v144, %v3184
      %vm3188 = vcmp.eq.s32.totalorder %v145, %v3184
      %vm3189 = vcmp.eq.s32.totalorder %v146, %v3184
      %vm3190 = vcmp.eq.s32.totalorder %v147, %v3184
      %vm3191 = vcmp.eq.s32.totalorder %v148, %v3184
      %vm3192 = vcmp.eq.s32.totalorder %v149, %v3184
      %vm3193 = vcmp.eq.s32.totalorder %v150, %v3184
      %vm3194 = vcmp.eq.s32.totalorder %v151, %v3184
      %vm3195 = vcmp.eq.s32.totalorder %v152, %v3184
      %vm3196 = vcmp.eq.s32.totalorder %v153, %v3184
      %vm3197 = vcmp.eq.s32.totalorder %v154, %v3184
      %vm3198 = vcmp.eq.s32.totalorder %v155, %v3184
      %vm3199 = vcmp.eq.s32.totalorder %v156, %v3184
      %vm3200 = vcmp.eq.s32.totalorder %v157, %v3184
      %v3201 = vsel %vm3185, %v3063, 0.0
      %v3202 = vsel %vm3186, %v3063, 0.0
      %v3203 = vsel %vm3187, %v3063, 0.0
      %v3204 = vsel %vm3188, %v3063, 0.0
      %v3205 = vsel %vm3189, %v3063, 0.0
      %v3206 = vsel %vm3190, %v3063, 0.0
      %v3207 = vsel %vm3191, %v3063, 0.0
      %v3208 = vsel %vm3192, %v3063, 0.0
      %v3209 = vsel %vm3193, %v3063, 0.0
      %v3210 = vsel %vm3194, %v3063, 0.0
      %v3211 = vsel %vm3195, %v3063, 0.0
      %v3212 = vsel %vm3196, %v3063, 0.0
      %v3213 = vsel %vm3197, %v3063, 0.0
      %v3214 = vsel %vm3198, %v3063, 0.0
      %v3215 = vsel %vm3199, %v3063, 0.0
      %v3216 = vsel %vm3200, %v3063, 0.0
      %3217 = vmatprep.subr.mxu0 0.0
      %3218 = vmatpush1.msra.mxu0 %v3201
      %3219 = vmatprep.subr.mxu0 0.0
      %3220 = vmatpush1.msra.mxu0 %v3202
      %3221 = vmatprep.subr.mxu0 0.0
      %3222 = vmatpush1.msra.mxu0 %v3203
      %3223 = vmatprep.subr.mxu0 0.0
      %3224 = vmatpush1.msra.mxu0 %v3204
      %3225 = vmatprep.subr.mxu0 0.0
      %3226 = vmatpush1.msra.mxu0 %v3205
      %3227 = vmatprep.subr.mxu0 0.0
      %3228 = vmatpush1.msra.mxu0 %v3206
      %3229 = vmatprep.subr.mxu0 0.0
      %3230 = vmatpush1.msra.mxu0 %v3207
      %3231 = vmatprep.subr.mxu0 0.0
      %3232 = vmatpush1.msra.mxu0 %v3208
      %3233 = vmatprep.subr.mxu0 0.0
      %3234 = vmatpush1.msra.mxu0 %v3209
      %3235 = vmatprep.subr.mxu0 0.0
      %3236 = vmatpush1.msra.mxu0 %v3210
      %3237 = vmatprep.subr.mxu0 0.0
      %3238 = vmatpush1.msra.mxu0 %v3211
      %3239 = vmatprep.subr.mxu0 0.0
      %3240 = vmatpush1.msra.mxu0 %v3212
      %3241 = vmatprep.subr.mxu0 0.0
      %3242 = vmatpush1.msra.mxu0 %v3213
      %3243 = vmatprep.subr.mxu0 0.0
      %3244 = vmatpush1.msra.mxu0 %v3214
      %3245 = vmatprep.subr.mxu0 0.0
      %3246 = vmatpush1.msra.mxu0 %v3215
      %3247 = vmatprep.subr.mxu0 0.0
      %3248 = vmatpush1.msra.mxu0 %v3216
      %3249 = vmatprep.subr.mxu0 0.0
      %3250 = vmatpush1.msra.mxu0 0.0
      %3251 = vmatprep.subr.mxu0 0.0
      %3252 = vmatpush1.msra.mxu0 0.0
      %3253 = vmatprep.subr.mxu0 0.0
      %3254 = vmatpush1.msra.mxu0 0.0
      %3255 = vmatprep.subr.mxu0 0.0
      %3256 = vmatpush1.msra.mxu0 0.0
      %3257 = vmatprep.subr.mxu0 0.0
      %3258 = vmatpush1.msra.mxu0 0.0
      %3259 = vmatprep.subr.mxu0 0.0
      %3260 = vmatpush1.msra.mxu0 0.0
      %3261 = vmatprep.subr.mxu0 0.0
      %3262 = vmatpush1.msra.mxu0 0.0
      %3263 = vmatprep.subr.mxu0 0.0
      %3264 = vmatpush1.msra.mxu0 0.0
      %3265 = vmatprep.subr.mxu0 0.0
      %3266 = vmatpush1.msra.mxu0 0.0
      %3267 = vmatprep.subr.mxu0 0.0
      %3268 = vmatpush1.msra.mxu0 0.0
      %3269 = vmatprep.subr.mxu0 0.0
      %3270 = vmatpush1.msra.mxu0 0.0
      %3271 = vmatprep.subr.mxu0 0.0
      %3272 = vmatpush1.msra.mxu0 0.0
      %3273 = vmatprep.subr.mxu0 0.0
      %3274 = vmatpush1.msra.mxu0 0.0
      %3275 = vmatprep.subr.mxu0 0.0
      %3276 = vmatpush1.msra.mxu0 0.0
      %3277 = vmatprep.subr.mxu0 0.0
      %3278 = vmatpush1.msra.mxu0 0.0
      %3279 = vmatprep.subr.mxu0 0.0
      %3280 = vmatpush1.msra.mxu0 0.0
      %3281 = vmatprep.mubr.f32.mxu0 0.0
      %3282 = vmatmul.mubr.f32.gmra.mrb[0].mxu0 %v3020
      %v3283 = vpop.f32.mrb[0].mxu0
      %v3284 = vadd.f32 0.0, %v3283
      %v3285 = vpop.f32.mrb[0].mxu0
      %3286 = vmatprep.mubr.f32.mxu0 0.0
      %3287 = vmatmul.mubr.f32.gmra.mrb[0].mxu0 %v3021
      %v3288 = vpop.f32.mrb[0].mxu0
      %v3289 = vadd.f32 0.0, %v3288
      %v3290 = vpop.f32.mrb[0].mxu0
      %3291 = vdwg.mxu0
      %v3292 = vlaneseq
      %v3293 = vshrl.u32 %v3292, 7
      %v3294 = vsub.s32 0, %v3293
      %v3295 = vrot.slane %v3180, %v3294
      %vm3296 = vcmp.eq.s32.totalorder %v142, %v3295
      %vm3297 = vcmp.eq.s32.totalorder %v143, %v3295
      %v3298 = vsel %vm3296, %v3284, 0.0
      %v3299 = vsel %vm3297, %v3289, 0.0
      %v3300 = vadd.f32 %v3163, %v3298
      %v3301 = vadd.f32 %v3164, %v3299
      %v3302 = vrot.slane %v3016, 1
      %v3303 = vxor.u32 %v2995, %v3302
      %v3304 = vxor.u32 %v3303, %v3024
      %v3305 = vcvt.s32.f32 %v3304
      %v3306 = vmul.f32 %v3305, 0.0009699321
      %v3307 = vfloor.f32 %v3306
      %v3308 = vcvt.f32.s32.to.zero.pseudo %v3307
      %v3309 = vmul.u32 %v3308, 1031
      %v3310 = vsub.s32 %v3304, %v3309
      %vm3311 = vcmp.lt.s32.totalorder %v3310, 0
      %v3312 = vadd.s32 %v3310, 1031
      %v3313 = vsel %vm3311, %v3312, %v3310
      %vm3314 = vcmp.ge.s32.totalorder %v3313, 1031
      %v3315 = vsub.s32 %v3313, 1031
      %v3316 = vsel %vm3314, %v3315, %v3313
      %v3317 = vand.u32 %v3316, 127
      %v3318 = vshra.s32 %v3316, 7
      %v3319 = vlaneseq
      %v3320 = vshrl.u32 %v3319, 7
      %v3321 = vsub.s32 0, %v3320
      %v3322 = vrot.slane %v3317, %v3321
      %vm3323 = vcmp.eq.s32.totalorder %v142, %v3322
      %vm3324 = vcmp.eq.s32.totalorder %v143, %v3322
      %vm3325 = vcmp.eq.s32.totalorder %v144, %v3322
      %vm3326 = vcmp.eq.s32.totalorder %v145, %v3322
      %vm3327 = vcmp.eq.s32.totalorder %v146, %v3322
      %vm3328 = vcmp.eq.s32.totalorder %v147, %v3322
      %vm3329 = vcmp.eq.s32.totalorder %v148, %v3322
      %vm3330 = vcmp.eq.s32.totalorder %v149, %v3322
      %vm3331 = vcmp.eq.s32.totalorder %v150, %v3322
      %vm3332 = vcmp.eq.s32.totalorder %v151, %v3322
      %vm3333 = vcmp.eq.s32.totalorder %v152, %v3322
      %vm3334 = vcmp.eq.s32.totalorder %v153, %v3322
      %vm3335 = vcmp.eq.s32.totalorder %v154, %v3322
      %vm3336 = vcmp.eq.s32.totalorder %v155, %v3322
      %vm3337 = vcmp.eq.s32.totalorder %v156, %v3322
      %vm3338 = vcmp.eq.s32.totalorder %v157, %v3322
      %v3339 = vlaneseq
      %v3340 = vshrl.u32 %v3339, 7
      %v3341 = vsub.s32 0, %v3340
      %v3342 = vrot.slane %v3012, %v3341
      %v3343 = vsel %vm3323, %v3342, 0.0
      %v3344 = vsel %vm3324, %v3342, 0.0
      %v3345 = vsel %vm3325, %v3342, 0.0
      %v3346 = vsel %vm3326, %v3342, 0.0
      %v3347 = vsel %vm3327, %v3342, 0.0
      %v3348 = vsel %vm3328, %v3342, 0.0
      %v3349 = vsel %vm3329, %v3342, 0.0
      %v3350 = vsel %vm3330, %v3342, 0.0
      %v3351 = vsel %vm3331, %v3342, 0.0
      %v3352 = vsel %vm3332, %v3342, 0.0
      %v3353 = vsel %vm3333, %v3342, 0.0
      %v3354 = vsel %vm3334, %v3342, 0.0
      %v3355 = vsel %vm3335, %v3342, 0.0
      %v3356 = vsel %vm3336, %v3342, 0.0
      %v3357 = vsel %vm3337, %v3342, 0.0
      %v3358 = vsel %vm3338, %v3342, 0.0
      %3359 = vmatprep.subr.mxu0 0.0
      %3360 = vmatpush1.msra.mxu0 %v3343
      %3361 = vmatprep.subr.mxu0 0.0
      %3362 = vmatpush1.msra.mxu0 %v3344
      %3363 = vmatprep.subr.mxu0 0.0
      %3364 = vmatpush1.msra.mxu0 %v3345
      %3365 = vmatprep.subr.mxu0 0.0
      %3366 = vmatpush1.msra.mxu0 %v3346
      %3367 = vmatprep.subr.mxu0 0.0
      %3368 = vmatpush1.msra.mxu0 %v3347
      %3369 = vmatprep.subr.mxu0 0.0
      %3370 = vmatpush1.msra.mxu0 %v3348
      %3371 = vmatprep.subr.mxu0 0.0
      %3372 = vmatpush1.msra.mxu0 %v3349
      %3373 = vmatprep.subr.mxu0 0.0
      %3374 = vmatpush1.msra.mxu0 %v3350
      %3375 = vmatprep.subr.mxu0 0.0
      %3376 = vmatpush1.msra.mxu0 %v3351
      %3377 = vmatprep.subr.mxu0 0.0
      %3378 = vmatpush1.msra.mxu0 %v3352
      %3379 = vmatprep.subr.mxu0 0.0
      %3380 = vmatpush1.msra.mxu0 %v3353
      %3381 = vmatprep.subr.mxu0 0.0
      %3382 = vmatpush1.msra.mxu0 %v3354
      %3383 = vmatprep.subr.mxu0 0.0
      %3384 = vmatpush1.msra.mxu0 %v3355
      %3385 = vmatprep.subr.mxu0 0.0
      %3386 = vmatpush1.msra.mxu0 %v3356
      %3387 = vmatprep.subr.mxu0 0.0
      %3388 = vmatpush1.msra.mxu0 %v3357
      %3389 = vmatprep.subr.mxu0 0.0
      %3390 = vmatpush1.msra.mxu0 %v3358
      %3391 = vmatprep.subr.mxu0 0.0
      %3392 = vmatpush1.msra.mxu0 0.0
      %3393 = vmatprep.subr.mxu0 0.0
      %3394 = vmatpush1.msra.mxu0 0.0
      %3395 = vmatprep.subr.mxu0 0.0
      %3396 = vmatpush1.msra.mxu0 0.0
      %3397 = vmatprep.subr.mxu0 0.0
      %3398 = vmatpush1.msra.mxu0 0.0
      %3399 = vmatprep.subr.mxu0 0.0
      %3400 = vmatpush1.msra.mxu0 0.0
      %3401 = vmatprep.subr.mxu0 0.0
      %3402 = vmatpush1.msra.mxu0 0.0
      %3403 = vmatprep.subr.mxu0 0.0
      %3404 = vmatpush1.msra.mxu0 0.0
      %3405 = vmatprep.subr.mxu0 0.0
      %3406 = vmatpush1.msra.mxu0 0.0
      %3407 = vmatprep.subr.mxu0 0.0
      %3408 = vmatpush1.msra.mxu0 0.0
      %3409 = vmatprep.subr.mxu0 0.0
      %3410 = vmatpush1.msra.mxu0 0.0
      %3411 = vmatprep.subr.mxu0 0.0
      %3412 = vmatpush1.msra.mxu0 0.0
      %3413 = vmatprep.subr.mxu0 0.0
      %3414 = vmatpush1.msra.mxu0 0.0
      %3415 = vmatprep.subr.mxu0 0.0
      %3416 = vmatpush1.msra.mxu0 0.0
      %3417 = vmatprep.subr.mxu0 0.0
      %3418 = vmatpush1.msra.mxu0 0.0
      %3419 = vmatprep.subr.mxu0 0.0
      %3420 = vmatpush1.msra.mxu0 0.0
      %3421 = vmatprep.subr.mxu0 0.0
      %3422 = vmatpush1.msra.mxu0 0.0
      %3423 = vmatprep.mubr.f32.mxu0 0.0
      %3424 = vmatmul.mubr.f32.gmra.mrb[0].mxu0 %v3020
      %v3425 = vpop.f32.mrb[0].mxu0
      %v3426 = vadd.f32 0.0, %v3425
      %v3427 = vpop.f32.mrb[0].mxu0
      %3428 = vmatprep.mubr.f32.mxu0 0.0
      %3429 = vmatmul.mubr.f32.gmra.mrb[0].mxu0 %v3021
      %v3430 = vpop.f32.mrb[0].mxu0
      %v3431 = vadd.f32 0.0, %v3430
      %v3432 = vpop.f32.mrb[0].mxu0
      %3433 = vdwg.mxu0
      %v3434 = vlaneseq
      %v3435 = vshrl.u32 %v3434, 7
      %v3436 = vsub.s32 0, %v3435
      %v3437 = vrot.slane %v3318, %v3436
      %vm3438 = vcmp.eq.s32.totalorder %v142, %v3437
      %vm3439 = vcmp.eq.s32.totalorder %v143, %v3437
      %v3440 = vsel %vm3438, %v3426, 0.0
      %v3441 = vsel %vm3439, %v3431, 0.0
      %v3442 = vadd.f32 %v3300, %v3440
      %v3443 = vadd.f32 %v3301, %v3441
      %v3444 = vxor.u32 %v3303, %v3165
      %v3445 = vcvt.s32.f32 %v3444
      %v3446 = vmul.f32 %v3445, 0.0009699321
      %v3447 = vfloor.f32 %v3446
      %v3448 = vcvt.f32.s32.to.zero.pseudo %v3447
      %v3449 = vmul.u32 %v3448, 1031
      %v3450 = vsub.s32 %v3444, %v3449
      %vm3451 = vcmp.lt.s32.totalorder %v3450, 0
      %v3452 = vadd.s32 %v3450, 1031
      %v3453 = vsel %vm3451, %v3452, %v3450
      %vm3454 = vcmp.ge.s32.totalorder %v3453, 1031
      %v3455 = vsub.s32 %v3453, 1031
      %v3456 = vsel %vm3454, %v3455, %v3453
      %v3457 = vand.u32 %v3456, 127
      %v3458 = vshra.s32 %v3456, 7
      %v3459 = vlaneseq
      %v3460 = vshrl.u32 %v3459, 7
      %v3461 = vsub.s32 0, %v3460
      %v3462 = vrot.slane %v3457, %v3461
      %vm3463 = vcmp.eq.s32.totalorder %v142, %v3462
      %vm3464 = vcmp.eq.s32.totalorder %v143, %v3462
      %vm3465 = vcmp.eq.s32.totalorder %v144, %v3462
      %vm3466 = vcmp.eq.s32.totalorder %v145, %v3462
      %vm3467 = vcmp.eq.s32.totalorder %v146, %v3462
      %vm3468 = vcmp.eq.s32.totalorder %v147, %v3462
      %vm3469 = vcmp.eq.s32.totalorder %v148, %v3462
      %vm3470 = vcmp.eq.s32.totalorder %v149, %v3462
      %vm3471 = vcmp.eq.s32.totalorder %v150, %v3462
      %vm3472 = vcmp.eq.s32.totalorder %v151, %v3462
      %vm3473 = vcmp.eq.s32.totalorder %v152, %v3462
      %vm3474 = vcmp.eq.s32.totalorder %v153, %v3462
      %vm3475 = vcmp.eq.s32.totalorder %v154, %v3462
      %vm3476 = vcmp.eq.s32.totalorder %v155, %v3462
      %vm3477 = vcmp.eq.s32.totalorder %v156, %v3462
      %vm3478 = vcmp.eq.s32.totalorder %v157, %v3462
      %v3479 = vsel %vm3463, %v3342, 0.0
      %v3480 = vsel %vm3464, %v3342, 0.0
      %v3481 = vsel %vm3465, %v3342, 0.0
      %v3482 = vsel %vm3466, %v3342, 0.0
      %v3483 = vsel %vm3467, %v3342, 0.0
      %v3484 = vsel %vm3468, %v3342, 0.0
      %v3485 = vsel %vm3469, %v3342, 0.0
      %v3486 = vsel %vm3470, %v3342, 0.0
      %v3487 = vsel %vm3471, %v3342, 0.0
      %v3488 = vsel %vm3472, %v3342, 0.0
      %v3489 = vsel %vm3473, %v3342, 0.0
      %v3490 = vsel %vm3474, %v3342, 0.0
      %v3491 = vsel %vm3475, %v3342, 0.0
      %v3492 = vsel %vm3476, %v3342, 0.0
      %v3493 = vsel %vm3477, %v3342, 0.0
      %v3494 = vsel %vm3478, %v3342, 0.0
      %3495 = vmatprep.subr.mxu0 0.0
      %3496 = vmatpush1.msra.mxu0 %v3479
      %3497 = vmatprep.subr.mxu0 0.0
      %3498 = vmatpush1.msra.mxu0 %v3480
      %3499 = vmatprep.subr.mxu0 0.0
      %3500 = vmatpush1.msra.mxu0 %v3481
      %3501 = vmatprep.subr.mxu0 0.0
      %3502 = vmatpush1.msra.mxu0 %v3482
      %3503 = vmatprep.subr.mxu0 0.0
      %3504 = vmatpush1.msra.mxu0 %v3483
      %3505 = vmatprep.subr.mxu0 0.0
      %3506 = vmatpush1.msra.mxu0 %v3484
      %3507 = vmatprep.subr.mxu0 0.0
      %3508 = vmatpush1.msra.mxu0 %v3485
      %3509 = vmatprep.subr.mxu0 0.0
      %3510 = vmatpush1.msra.mxu0 %v3486
      %3511 = vmatprep.subr.mxu0 0.0
      %3512 = vmatpush1.msra.mxu0 %v3487
      %3513 = vmatprep.subr.mxu0 0.0
      %3514 = vmatpush1.msra.mxu0 %v3488
      %3515 = vmatprep.subr.mxu0 0.0
      %3516 = vmatpush1.msra.mxu0 %v3489
      %3517 = vmatprep.subr.mxu0 0.0
      %3518 = vmatpush1.msra.mxu0 %v3490
      %3519 = vmatprep.subr.mxu0 0.0
      %3520 = vmatpush1.msra.mxu0 %v3491
      %3521 = vmatprep.subr.mxu0 0.0
      %3522 = vmatpush1.msra.mxu0 %v3492
      %3523 = vmatprep.subr.mxu0 0.0
      %3524 = vmatpush1.msra.mxu0 %v3493
      %3525 = vmatprep.subr.mxu0 0.0
      %3526 = vmatpush1.msra.mxu0 %v3494
      %3527 = vmatprep.subr.mxu0 0.0
      %3528 = vmatpush1.msra.mxu0 0.0
      %3529 = vmatprep.subr.mxu0 0.0
      %3530 = vmatpush1.msra.mxu0 0.0
      %3531 = vmatprep.subr.mxu0 0.0
      %3532 = vmatpush1.msra.mxu0 0.0
      %3533 = vmatprep.subr.mxu0 0.0
      %3534 = vmatpush1.msra.mxu0 0.0
      %3535 = vmatprep.subr.mxu0 0.0
      %3536 = vmatpush1.msra.mxu0 0.0
      %3537 = vmatprep.subr.mxu0 0.0
      %3538 = vmatpush1.msra.mxu0 0.0
      %3539 = vmatprep.subr.mxu0 0.0
      %3540 = vmatpush1.msra.mxu0 0.0
      %3541 = vmatprep.subr.mxu0 0.0
      %3542 = vmatpush1.msra.mxu0 0.0
      %3543 = vmatprep.subr.mxu0 0.0
      %3544 = vmatpush1.msra.mxu0 0.0
      %3545 = vmatprep.subr.mxu0 0.0
      %3546 = vmatpush1.msra.mxu0 0.0
      %3547 = vmatprep.subr.mxu0 0.0
      %3548 = vmatpush1.msra.mxu0 0.0
      %3549 = vmatprep.subr.mxu0 0.0
      %3550 = vmatpush1.msra.mxu0 0.0
      %3551 = vmatprep.subr.mxu0 0.0
      %3552 = vmatpush1.msra.mxu0 0.0
      %3553 = vmatprep.subr.mxu0 0.0
      %3554 = vmatpush1.msra.mxu0 0.0
      %3555 = vmatprep.subr.mxu0 0.0
      %3556 = vmatpush1.msra.mxu0 0.0
      %3557 = vmatprep.subr.mxu0 0.0
      %3558 = vmatpush1.msra.mxu0 0.0
      %3559 = vmatprep.mubr.f32.mxu0 0.0
      %3560 = vmatmul.mubr.f32.gmra.mrb[0].mxu0 %v3020
      %v3561 = vpop.f32.mrb[0].mxu0
      %v3562 = vadd.f32 0.0, %v3561
      %v3563 = vpop.f32.mrb[0].mxu0
      %3564 = vmatprep.mubr.f32.mxu0 0.0
      %3565 = vmatmul.mubr.f32.gmra.mrb[0].mxu0 %v3021
      %v3566 = vpop.f32.mrb[0].mxu0
      %v3567 = vadd.f32 0.0, %v3566
      %v3568 = vpop.f32.mrb[0].mxu0
      %3569 = vdwg.mxu0
      %v3570 = vlaneseq
      %v3571 = vshrl.u32 %v3570, 7
      %v3572 = vsub.s32 0, %v3571
      %v3573 = vrot.slane %v3458, %v3572
      %vm3574 = vcmp.eq.s32.totalorder %v142, %v3573
      %vm3575 = vcmp.eq.s32.totalorder %v143, %v3573
      %v3576 = vsel %vm3574, %v3562, 0.0
      %v3577 = vsel %vm3575, %v3567, 0.0
      %v3578 = vadd.f32 %v3442, %v3576
      %v3579 = vadd.f32 %v3443, %v3577
      %v3580 = vxor.u32 %v3001, %v3022
      %v3581 = vxor.u32 %v3580, %v3024
      %v3582 = vcvt.s32.f32 %v3581
      %v3583 = vmul.f32 %v3582, 0.0009699321
      %v3584 = vfloor.f32 %v3583
      %v3585 = vcvt.f32.s32.to.zero.pseudo %v3584
      %v3586 = vmul.u32 %v3585, 1031
      %v3587 = vsub.s32 %v3581, %v3586
      %vm3588 = vcmp.lt.s32.totalorder %v3587, 0
      %v3589 = vadd.s32 %v3587, 1031
      %v3590 = vsel %vm3588, %v3589, %v3587
      %vm3591 = vcmp.ge.s32.totalorder %v3590, 1031
      %v3592 = vsub.s32 %v3590, 1031
      %v3593 = vsel %vm3591, %v3592, %v3590
      %v3594 = vand.u32 %v3593, 127
      %v3595 = vshra.s32 %v3593, 7
      %v3596 = vlaneseq
      %v3597 = vshrl.u32 %v3596, 7
      %v3598 = vsub.s32 0, %v3597
      %v3599 = vrot.slane %v3594, %v3598
      %vm3600 = vcmp.eq.s32.totalorder %v142, %v3599
      %vm3601 = vcmp.eq.s32.totalorder %v143, %v3599
      %vm3602 = vcmp.eq.s32.totalorder %v144, %v3599
      %vm3603 = vcmp.eq.s32.totalorder %v145, %v3599
      %vm3604 = vcmp.eq.s32.totalorder %v146, %v3599
      %vm3605 = vcmp.eq.s32.totalorder %v147, %v3599
      %vm3606 = vcmp.eq.s32.totalorder %v148, %v3599
      %vm3607 = vcmp.eq.s32.totalorder %v149, %v3599
      %vm3608 = vcmp.eq.s32.totalorder %v150, %v3599
      %vm3609 = vcmp.eq.s32.totalorder %v151, %v3599
      %vm3610 = vcmp.eq.s32.totalorder %v152, %v3599
      %vm3611 = vcmp.eq.s32.totalorder %v153, %v3599
      %vm3612 = vcmp.eq.s32.totalorder %v154, %v3599
      %vm3613 = vcmp.eq.s32.totalorder %v155, %v3599
      %vm3614 = vcmp.eq.s32.totalorder %v156, %v3599
      %vm3615 = vcmp.eq.s32.totalorder %v157, %v3599
      %v3616 = vlaneseq
      %v3617 = vshrl.u32 %v3616, 7
      %v3618 = vsub.s32 0, %v3617
      %v3619 = vrot.slane %v3013, %v3618
      %v3620 = vsel %vm3600, %v3619, 0.0
      %v3621 = vsel %vm3601, %v3619, 0.0
      %v3622 = vsel %vm3602, %v3619, 0.0
      %v3623 = vsel %vm3603, %v3619, 0.0
      %v3624 = vsel %vm3604, %v3619, 0.0
      %v3625 = vsel %vm3605, %v3619, 0.0
      %v3626 = vsel %vm3606, %v3619, 0.0
      %v3627 = vsel %vm3607, %v3619, 0.0
      %v3628 = vsel %vm3608, %v3619, 0.0
      %v3629 = vsel %vm3609, %v3619, 0.0
      %v3630 = vsel %vm3610, %v3619, 0.0
      %v3631 = vsel %vm3611, %v3619, 0.0
      %v3632 = vsel %vm3612, %v3619, 0.0
      %v3633 = vsel %vm3613, %v3619, 0.0
      %v3634 = vsel %vm3614, %v3619, 0.0
      %v3635 = vsel %vm3615, %v3619, 0.0
      %3636 = vmatprep.subr.mxu0 0.0
      %3637 = vmatpush1.msra.mxu0 %v3620
      %3638 = vmatprep.subr.mxu0 0.0
      %3639 = vmatpush1.msra.mxu0 %v3621
      %3640 = vmatprep.subr.mxu0 0.0
      %3641 = vmatpush1.msra.mxu0 %v3622
      %3642 = vmatprep.subr.mxu0 0.0
      %3643 = vmatpush1.msra.mxu0 %v3623
      %3644 = vmatprep.subr.mxu0 0.0
      %3645 = vmatpush1.msra.mxu0 %v3624
      %3646 = vmatprep.subr.mxu0 0.0
      %3647 = vmatpush1.msra.mxu0 %v3625
      %3648 = vmatprep.subr.mxu0 0.0
      %3649 = vmatpush1.msra.mxu0 %v3626
      %3650 = vmatprep.subr.mxu0 0.0
      %3651 = vmatpush1.msra.mxu0 %v3627
      %3652 = vmatprep.subr.mxu0 0.0
      %3653 = vmatpush1.msra.mxu0 %v3628
      %3654 = vmatprep.subr.mxu0 0.0
      %3655 = vmatpush1.msra.mxu0 %v3629
      %3656 = vmatprep.subr.mxu0 0.0
      %3657 = vmatpush1.msra.mxu0 %v3630
      %3658 = vmatprep.subr.mxu0 0.0
      %3659 = vmatpush1.msra.mxu0 %v3631
      %3660 = vmatprep.subr.mxu0 0.0
      %3661 = vmatpush1.msra.mxu0 %v3632
      %3662 = vmatprep.subr.mxu0 0.0
      %3663 = vmatpush1.msra.mxu0 %v3633
      %3664 = vmatprep.subr.mxu0 0.0
      %3665 = vmatpush1.msra.mxu0 %v3634
      %3666 = vmatprep.subr.mxu0 0.0
      %3667 = vmatpush1.msra.mxu0 %v3635
      %3668 = vmatprep.subr.mxu0 0.0
      %3669 = vmatpush1.msra.mxu0 0.0
      %3670 = vmatprep.subr.mxu0 0.0
      %3671 = vmatpush1.msra.mxu0 0.0
      %3672 = vmatprep.subr.mxu0 0.0
      %3673 = vmatpush1.msra.mxu0 0.0
      %3674 = vmatprep.subr.mxu0 0.0
      %3675 = vmatpush1.msra.mxu0 0.0
      %3676 = vmatprep.subr.mxu0 0.0
      %3677 = vmatpush1.msra.mxu0 0.0
      %3678 = vmatprep.subr.mxu0 0.0
      %3679 = vmatpush1.msra.mxu0 0.0
      %3680 = vmatprep.subr.mxu0 0.0
      %3681 = vmatpush1.msra.mxu0 0.0
      %3682 = vmatprep.subr.mxu0 0.0
      %3683 = vmatpush1.msra.mxu0 0.0
      %3684 = vmatprep.subr.mxu0 0.0
      %3685 = vmatpush1.msra.mxu0 0.0
      %3686 = vmatprep.subr.mxu0 0.0
      %3687 = vmatpush1.msra.mxu0 0.0
      %3688 = vmatprep.subr.mxu0 0.0
      %3689 = vmatpush1.msra.mxu0 0.0
      %3690 = vmatprep.subr.mxu0 0.0
      %3691 = vmatpush1.msra.mxu0 0.0
      %3692 = vmatprep.subr.mxu0 0.0
      %3693 = vmatpush1.msra.mxu0 0.0
      %3694 = vmatprep.subr.mxu0 0.0
      %3695 = vmatpush1.msra.mxu0 0.0
      %3696 = vmatprep.subr.mxu0 0.0
      %3697 = vmatpush1.msra.mxu0 0.0
      %3698 = vmatprep.subr.mxu0 0.0
      %3699 = vmatpush1.msra.mxu0 0.0
      %3700 = vmatprep.mubr.f32.mxu0 0.0
      %3701 = vmatmul.mubr.f32.gmra.mrb[0].mxu0 %v3020
      %v3702 = vpop.f32.mrb[0].mxu0
      %v3703 = vadd.f32 0.0, %v3702
      %v3704 = vpop.f32.mrb[0].mxu0
      %3705 = vmatprep.mubr.f32.mxu0 0.0
      %3706 = vmatmul.mubr.f32.gmra.mrb[0].mxu0 %v3021
      %v3707 = vpop.f32.mrb[0].mxu0
      %v3708 = vadd.f32 0.0, %v3707
      %v3709 = vpop.f32.mrb[0].mxu0
      %3710 = vdwg.mxu0
      %v3711 = vlaneseq
      %v3712 = vshrl.u32 %v3711, 7
      %v3713 = vsub.s32 0, %v3712
      %v3714 = vrot.slane %v3595, %v3713
      %vm3715 = vcmp.eq.s32.totalorder %v142, %v3714
      %vm3716 = vcmp.eq.s32.totalorder %v143, %v3714
      %v3717 = vsel %vm3715, %v3703, 0.0
      %v3718 = vsel %vm3716, %v3708, 0.0
      %v3719 = vadd.f32 %v3578, %v3717
      %v3720 = vadd.f32 %v3579, %v3718
      %v3721 = vxor.u32 %v3580, %v3165
      %v3722 = vcvt.s32.f32 %v3721
      %v3723 = vmul.f32 %v3722, 0.0009699321
      %v3724 = vfloor.f32 %v3723
      %v3725 = vcvt.f32.s32.to.zero.pseudo %v3724
      %v3726 = vmul.u32 %v3725, 1031
      %v3727 = vsub.s32 %v3721, %v3726
      %vm3728 = vcmp.lt.s32.totalorder %v3727, 0
      %v3729 = vadd.s32 %v3727, 1031
      %v3730 = vsel %vm3728, %v3729, %v3727
      %vm3731 = vcmp.ge.s32.totalorder %v3730, 1031
      %v3732 = vsub.s32 %v3730, 1031
      %v3733 = vsel %vm3731, %v3732, %v3730
      %v3734 = vand.u32 %v3733, 127
      %v3735 = vshra.s32 %v3733, 7
      %v3736 = vlaneseq
      %v3737 = vshrl.u32 %v3736, 7
      %v3738 = vsub.s32 0, %v3737
      %v3739 = vrot.slane %v3734, %v3738
      %vm3740 = vcmp.eq.s32.totalorder %v142, %v3739
      %vm3741 = vcmp.eq.s32.totalorder %v143, %v3739
      %vm3742 = vcmp.eq.s32.totalorder %v144, %v3739
      %vm3743 = vcmp.eq.s32.totalorder %v145, %v3739
      %vm3744 = vcmp.eq.s32.totalorder %v146, %v3739
      %vm3745 = vcmp.eq.s32.totalorder %v147, %v3739
      %vm3746 = vcmp.eq.s32.totalorder %v148, %v3739
      %vm3747 = vcmp.eq.s32.totalorder %v149, %v3739
      %vm3748 = vcmp.eq.s32.totalorder %v150, %v3739
      %vm3749 = vcmp.eq.s32.totalorder %v151, %v3739
      %vm3750 = vcmp.eq.s32.totalorder %v152, %v3739
      %vm3751 = vcmp.eq.s32.totalorder %v153, %v3739
      %vm3752 = vcmp.eq.s32.totalorder %v154, %v3739
      %vm3753 = vcmp.eq.s32.totalorder %v155, %v3739
      %vm3754 = vcmp.eq.s32.totalorder %v156, %v3739
      %vm3755 = vcmp.eq.s32.totalorder %v157, %v3739
      %v3756 = vsel %vm3740, %v3619, 0.0
      %v3757 = vsel %vm3741, %v3619, 0.0
      %v3758 = vsel %vm3742, %v3619, 0.0
      %v3759 = vsel %vm3743, %v3619, 0.0
      %v3760 = vsel %vm3744, %v3619, 0.0
      %v3761 = vsel %vm3745, %v3619, 0.0
      %v3762 = vsel %vm3746, %v3619, 0.0
      %v3763 = vsel %vm3747, %v3619, 0.0
      %v3764 = vsel %vm3748, %v3619, 0.0
      %v3765 = vsel %vm3749, %v3619, 0.0
      %v3766 = vsel %vm3750, %v3619, 0.0
      %v3767 = vsel %vm3751, %v3619, 0.0
      %v3768 = vsel %vm3752, %v3619, 0.0
      %v3769 = vsel %vm3753, %v3619, 0.0
      %v3770 = vsel %vm3754, %v3619, 0.0
      %v3771 = vsel %vm3755, %v3619, 0.0
      %3772 = vmatprep.subr.mxu0 0.0
      %3773 = vmatpush1.msra.mxu0 %v3756
      %3774 = vmatprep.subr.mxu0 0.0
      %3775 = vmatpush1.msra.mxu0 %v3757
      %3776 = vmatprep.subr.mxu0 0.0
      %3777 = vmatpush1.msra.mxu0 %v3758
      %3778 = vmatprep.subr.mxu0 0.0
      %3779 = vmatpush1.msra.mxu0 %v3759
      %3780 = vmatprep.subr.mxu0 0.0
      %3781 = vmatpush1.msra.mxu0 %v3760
      %3782 = vmatprep.subr.mxu0 0.0
      %3783 = vmatpush1.msra.mxu0 %v3761
      %3784 = vmatprep.subr.mxu0 0.0
      %3785 = vmatpush1.msra.mxu0 %v3762
      %3786 = vmatprep.subr.mxu0 0.0
      %3787 = vmatpush1.msra.mxu0 %v3763
      %3788 = vmatprep.subr.mxu0 0.0
      %3789 = vmatpush1.msra.mxu0 %v3764
      %3790 = vmatprep.subr.mxu0 0.0
      %3791 = vmatpush1.msra.mxu0 %v3765
      %3792 = vmatprep.subr.mxu0 0.0
      %3793 = vmatpush1.msra.mxu0 %v3766
      %3794 = vmatprep.subr.mxu0 0.0
      %3795 = vmatpush1.msra.mxu0 %v3767
      %3796 = vmatprep.subr.mxu0 0.0
      %3797 = vmatpush1.msra.mxu0 %v3768
      %3798 = vmatprep.subr.mxu0 0.0
      %3799 = vmatpush1.msra.mxu0 %v3769
      %3800 = vmatprep.subr.mxu0 0.0
      %3801 = vmatpush1.msra.mxu0 %v3770
      %3802 = vmatprep.subr.mxu0 0.0
      %3803 = vmatpush1.msra.mxu0 %v3771
      %3804 = vmatprep.subr.mxu0 0.0
      %3805 = vmatpush1.msra.mxu0 0.0
      %3806 = vmatprep.subr.mxu0 0.0
      %3807 = vmatpush1.msra.mxu0 0.0
      %3808 = vmatprep.subr.mxu0 0.0
      %3809 = vmatpush1.msra.mxu0 0.0
      %3810 = vmatprep.subr.mxu0 0.0
      %3811 = vmatpush1.msra.mxu0 0.0
      %3812 = vmatprep.subr.mxu0 0.0
      %3813 = vmatpush1.msra.mxu0 0.0
      %3814 = vmatprep.subr.mxu0 0.0
      %3815 = vmatpush1.msra.mxu0 0.0
      %3816 = vmatprep.subr.mxu0 0.0
      %3817 = vmatpush1.msra.mxu0 0.0
      %3818 = vmatprep.subr.mxu0 0.0
      %3819 = vmatpush1.msra.mxu0 0.0
      %3820 = vmatprep.subr.mxu0 0.0
      %3821 = vmatpush1.msra.mxu0 0.0
      %3822 = vmatprep.subr.mxu0 0.0
      %3823 = vmatpush1.msra.mxu0 0.0
      %3824 = vmatprep.subr.mxu0 0.0
      %3825 = vmatpush1.msra.mxu0 0.0
      %3826 = vmatprep.subr.mxu0 0.0
      %3827 = vmatpush1.msra.mxu0 0.0
      %3828 = vmatprep.subr.mxu0 0.0
      %3829 = vmatpush1.msra.mxu0 0.0
      %3830 = vmatprep.subr.mxu0 0.0
      %3831 = vmatpush1.msra.mxu0 0.0
      %3832 = vmatprep.subr.mxu0 0.0
      %3833 = vmatpush1.msra.mxu0 0.0
      %3834 = vmatprep.subr.mxu0 0.0
      %3835 = vmatpush1.msra.mxu0 0.0
      %3836 = vmatprep.mubr.f32.mxu0 0.0
      %3837 = vmatmul.mubr.f32.gmra.mrb[0].mxu0 %v3020
      %v3838 = vpop.f32.mrb[0].mxu0
      %v3839 = vadd.f32 0.0, %v3838
      %v3840 = vpop.f32.mrb[0].mxu0
      %3841 = vmatprep.mubr.f32.mxu0 0.0
      %3842 = vmatmul.mubr.f32.gmra.mrb[0].mxu0 %v3021
      %v3843 = vpop.f32.mrb[0].mxu0
      %v3844 = vadd.f32 0.0, %v3843
      %v3845 = vpop.f32.mrb[0].mxu0
      %3846 = vdwg.mxu0
      %v3847 = vlaneseq
      %v3848 = vshrl.u32 %v3847, 7
      %v3849 = vsub.s32 0, %v3848
      %v3850 = vrot.slane %v3735, %v3849
      %vm3851 = vcmp.eq.s32.totalorder %v142, %v3850
      %vm3852 = vcmp.eq.s32.totalorder %v143, %v3850
      %v3853 = vsel %vm3851, %v3839, 0.0
      %v3854 = vsel %vm3852, %v3844, 0.0
      %v3855 = vadd.f32 %v3719, %v3853
      %v3856 = vadd.f32 %v3720, %v3854
      %v3857 = vxor.u32 %v3001, %v3302
      %v3858 = vxor.u32 %v3857, %v3024
      %v3859 = vcvt.s32.f32 %v3858
      %v3860 = vmul.f32 %v3859, 0.0009699321
      %v3861 = vfloor.f32 %v3860
      %v3862 = vcvt.f32.s32.to.zero.pseudo %v3861
      %v3863 = vmul.u32 %v3862, 1031
      %v3864 = vsub.s32 %v3858, %v3863
      %vm3865 = vcmp.lt.s32.totalorder %v3864, 0
      %v3866 = vadd.s32 %v3864, 1031
      %v3867 = vsel %vm3865, %v3866, %v3864
      %vm3868 = vcmp.ge.s32.totalorder %v3867, 1031
      %v3869 = vsub.s32 %v3867, 1031
      %v3870 = vsel %vm3868, %v3869, %v3867
      %v3871 = vand.u32 %v3870, 127
      %v3872 = vshra.s32 %v3870, 7
      %v3873 = vlaneseq
      %v3874 = vshrl.u32 %v3873, 7
      %v3875 = vsub.s32 0, %v3874
      %v3876 = vrot.slane %v3871, %v3875
      %vm3877 = vcmp.eq.s32.totalorder %v142, %v3876
      %vm3878 = vcmp.eq.s32.totalorder %v143, %v3876
      %vm3879 = vcmp.eq.s32.totalorder %v144, %v3876
      %vm3880 = vcmp.eq.s32.totalorder %v145, %v3876
      %vm3881 = vcmp.eq.s32.totalorder %v146, %v3876
      %vm3882 = vcmp.eq.s32.totalorder %v147, %v3876
      %vm3883 = vcmp.eq.s32.totalorder %v148, %v3876
      %vm3884 = vcmp.eq.s32.totalorder %v149, %v3876
      %vm3885 = vcmp.eq.s32.totalorder %v150, %v3876
      %vm3886 = vcmp.eq.s32.totalorder %v151, %v3876
      %vm3887 = vcmp.eq.s32.totalorder %v152, %v3876
      %vm3888 = vcmp.eq.s32.totalorder %v153, %v3876
      %vm3889 = vcmp.eq.s32.totalorder %v154, %v3876
      %vm3890 = vcmp.eq.s32.totalorder %v155, %v3876
      %vm3891 = vcmp.eq.s32.totalorder %v156, %v3876
      %vm3892 = vcmp.eq.s32.totalorder %v157, %v3876
      %v3893 = vlaneseq
      %v3894 = vshrl.u32 %v3893, 7
      %v3895 = vsub.s32 0, %v3894
      %v3896 = vrot.slane %v3014, %v3895
      %v3897 = vsel %vm3877, %v3896, 0.0
      %v3898 = vsel %vm3878, %v3896, 0.0
      %v3899 = vsel %vm3879, %v3896, 0.0
      %v3900 = vsel %vm3880, %v3896, 0.0
      %v3901 = vsel %vm3881, %v3896, 0.0
      %v3902 = vsel %vm3882, %v3896, 0.0
      %v3903 = vsel %vm3883, %v3896, 0.0
      %v3904 = vsel %vm3884, %v3896, 0.0
      %v3905 = vsel %vm3885, %v3896, 0.0
      %v3906 = vsel %vm3886, %v3896, 0.0
      %v3907 = vsel %vm3887, %v3896, 0.0
      %v3908 = vsel %vm3888, %v3896, 0.0
      %v3909 = vsel %vm3889, %v3896, 0.0
      %v3910 = vsel %vm3890, %v3896, 0.0
      %v3911 = vsel %vm3891, %v3896, 0.0
      %v3912 = vsel %vm3892, %v3896, 0.0
      %3913 = vmatprep.subr.mxu0 0.0
      %3914 = vmatpush1.msra.mxu0 %v3897
      %3915 = vmatprep.subr.mxu0 0.0
      %3916 = vmatpush1.msra.mxu0 %v3898
      %3917 = vmatprep.subr.mxu0 0.0
      %3918 = vmatpush1.msra.mxu0 %v3899
      %3919 = vmatprep.subr.mxu0 0.0
      %3920 = vmatpush1.msra.mxu0 %v3900
      %3921 = vmatprep.subr.mxu0 0.0
      %3922 = vmatpush1.msra.mxu0 %v3901
      %3923 = vmatprep.subr.mxu0 0.0
      %3924 = vmatpush1.msra.mxu0 %v3902
      %3925 = vmatprep.subr.mxu0 0.0
      %3926 = vmatpush1.msra.mxu0 %v3903
      %3927 = vmatprep.subr.mxu0 0.0
      %3928 = vmatpush1.msra.mxu0 %v3904
      %3929 = vmatprep.subr.mxu0 0.0
      %3930 = vmatpush1.msra.mxu0 %v3905
      %3931 = vmatprep.subr.mxu0 0.0
      %3932 = vmatpush1.msra.mxu0 %v3906
      %3933 = vmatprep.subr.mxu0 0.0
      %3934 = vmatpush1.msra.mxu0 %v3907
      %3935 = vmatprep.subr.mxu0 0.0
      %3936 = vmatpush1.msra.mxu0 %v3908
      %3937 = vmatprep.subr.mxu0 0.0
      %3938 = vmatpush1.msra.mxu0 %v3909
      %3939 = vmatprep.subr.mxu0 0.0
      %3940 = vmatpush1.msra.mxu0 %v3910
      %3941 = vmatprep.subr.mxu0 0.0
      %3942 = vmatpush1.msra.mxu0 %v3911
      %3943 = vmatprep.subr.mxu0 0.0
      %3944 = vmatpush1.msra.mxu0 %v3912
      %3945 = vmatprep.subr.mxu0 0.0
      %3946 = vmatpush1.msra.mxu0 0.0
      %3947 = vmatprep.subr.mxu0 0.0
      %3948 = vmatpush1.msra.mxu0 0.0
      %3949 = vmatprep.subr.mxu0 0.0
      %3950 = vmatpush1.msra.mxu0 0.0
      %3951 = vmatprep.subr.mxu0 0.0
      %3952 = vmatpush1.msra.mxu0 0.0
      %3953 = vmatprep.subr.mxu0 0.0
      %3954 = vmatpush1.msra.mxu0 0.0
      %3955 = vmatprep.subr.mxu0 0.0
      %3956 = vmatpush1.msra.mxu0 0.0
      %3957 = vmatprep.subr.mxu0 0.0
      %3958 = vmatpush1.msra.mxu0 0.0
      %3959 = vmatprep.subr.mxu0 0.0
      %3960 = vmatpush1.msra.mxu0 0.0
      %3961 = vmatprep.subr.mxu0 0.0
      %3962 = vmatpush1.msra.mxu0 0.0
      %3963 = vmatprep.subr.mxu0 0.0
      %3964 = vmatpush1.msra.mxu0 0.0
      %3965 = vmatprep.subr.mxu0 0.0
      %3966 = vmatpush1.msra.mxu0 0.0
      %3967 = vmatprep.subr.mxu0 0.0
      %3968 = vmatpush1.msra.mxu0 0.0
      %3969 = vmatprep.subr.mxu0 0.0
      %3970 = vmatpush1.msra.mxu0 0.0
      %3971 = vmatprep.subr.mxu0 0.0
      %3972 = vmatpush1.msra.mxu0 0.0
      %3973 = vmatprep.subr.mxu0 0.0
      %3974 = vmatpush1.msra.mxu0 0.0
      %3975 = vmatprep.subr.mxu0 0.0
      %3976 = vmatpush1.msra.mxu0 0.0
      %3977 = vmatprep.mubr.f32.mxu0 0.0
      %3978 = vmatmul.mubr.f32.gmra.mrb[0].mxu0 %v3020
      %v3979 = vpop.f32.mrb[0].mxu0
      %v3980 = vadd.f32 0.0, %v3979
      %v3981 = vpop.f32.mrb[0].mxu0
      %3982 = vmatprep.mubr.f32.mxu0 0.0
      %3983 = vmatmul.mubr.f32.gmra.mrb[0].mxu0 %v3021
      %v3984 = vpop.f32.mrb[0].mxu0
      %v3985 = vadd.f32 0.0, %v3984
      %v3986 = vpop.f32.mrb[0].mxu0
      %3987 = vdwg.mxu0
      %v3988 = vlaneseq
      %v3989 = vshrl.u32 %v3988, 7
      %v3990 = vsub.s32 0, %v3989
      %v3991 = vrot.slane %v3872, %v3990
      %vm3992 = vcmp.eq.s32.totalorder %v142, %v3991
      %vm3993 = vcmp.eq.s32.totalorder %v143, %v3991
      %v3994 = vsel %vm3992, %v3980, 0.0
      %v3995 = vsel %vm3993, %v3985, 0.0
      %v3996 = vadd.f32 %v3855, %v3994
      %v3997 = vadd.f32 %v3856, %v3995
      %v3998 = vxor.u32 %v3857, %v3165
      %v3999 = vcvt.s32.f32 %v3998
      %v4000 = vmul.f32 %v3999, 0.0009699321
      %v4001 = vfloor.f32 %v4000
      %v4002 = vcvt.f32.s32.to.zero.pseudo %v4001
      %v4003 = vmul.u32 %v4002, 1031
      %v4004 = vsub.s32 %v3998, %v4003
      %vm4005 = vcmp.lt.s32.totalorder %v4004, 0
      %v4006 = vadd.s32 %v4004, 1031
      %v4007 = vsel %vm4005, %v4006, %v4004
      %vm4008 = vcmp.ge.s32.totalorder %v4007, 1031
      %v4009 = vsub.s32 %v4007, 1031
      %v4010 = vsel %vm4008, %v4009, %v4007
      %v4011 = vand.u32 %v4010, 127
      %v4012 = vshra.s32 %v4010, 7
      %v4013 = vlaneseq
      %v4014 = vshrl.u32 %v4013, 7
      %v4015 = vsub.s32 0, %v4014
      %v4016 = vrot.slane %v4011, %v4015
      %vm4017 = vcmp.eq.s32.totalorder %v142, %v4016
      %vm4018 = vcmp.eq.s32.totalorder %v143, %v4016
      %vm4019 = vcmp.eq.s32.totalorder %v144, %v4016
      %vm4020 = vcmp.eq.s32.totalorder %v145, %v4016
      %vm4021 = vcmp.eq.s32.totalorder %v146, %v4016
      %vm4022 = vcmp.eq.s32.totalorder %v147, %v4016
      %vm4023 = vcmp.eq.s32.totalorder %v148, %v4016
      %vm4024 = vcmp.eq.s32.totalorder %v149, %v4016
      %vm4025 = vcmp.eq.s32.totalorder %v150, %v4016
      %vm4026 = vcmp.eq.s32.totalorder %v151, %v4016
      %vm4027 = vcmp.eq.s32.totalorder %v152, %v4016
      %vm4028 = vcmp.eq.s32.totalorder %v153, %v4016
      %vm4029 = vcmp.eq.s32.totalorder %v154, %v4016
      %vm4030 = vcmp.eq.s32.totalorder %v155, %v4016
      %vm4031 = vcmp.eq.s32.totalorder %v156, %v4016
      %vm4032 = vcmp.eq.s32.totalorder %v157, %v4016
      %v4033 = vsel %vm4017, %v3896, 0.0
      %v4034 = vsel %vm4018, %v3896, 0.0
      %v4035 = vsel %vm4019, %v3896, 0.0
      %v4036 = vsel %vm4020, %v3896, 0.0
      %v4037 = vsel %vm4021, %v3896, 0.0
      %v4038 = vsel %vm4022, %v3896, 0.0
      %v4039 = vsel %vm4023, %v3896, 0.0
      %v4040 = vsel %vm4024, %v3896, 0.0
      %v4041 = vsel %vm4025, %v3896, 0.0
      %v4042 = vsel %vm4026, %v3896, 0.0
      %v4043 = vsel %vm4027, %v3896, 0.0
      %v4044 = vsel %vm4028, %v3896, 0.0
      %v4045 = vsel %vm4029, %v3896, 0.0
      %v4046 = vsel %vm4030, %v3896, 0.0
      %v4047 = vsel %vm4031, %v3896, 0.0
      %v4048 = vsel %vm4032, %v3896, 0.0
      %4049 = vmatprep.subr.mxu0 0.0
      %4050 = vmatpush1.msra.mxu0 %v4033
      %4051 = vmatprep.subr.mxu0 0.0
      %4052 = vmatpush1.msra.mxu0 %v4034
      %4053 = vmatprep.subr.mxu0 0.0
      %4054 = vmatpush1.msra.mxu0 %v4035
      %4055 = vmatprep.subr.mxu0 0.0
      %4056 = vmatpush1.msra.mxu0 %v4036
      %4057 = vmatprep.subr.mxu0 0.0
      %4058 = vmatpush1.msra.mxu0 %v4037
      %4059 = vmatprep.subr.mxu0 0.0
      %4060 = vmatpush1.msra.mxu0 %v4038
      %4061 = vmatprep.subr.mxu0 0.0
      %4062 = vmatpush1.msra.mxu0 %v4039
      %4063 = vmatprep.subr.mxu0 0.0
      %4064 = vmatpush1.msra.mxu0 %v4040
      %4065 = vmatprep.subr.mxu0 0.0
      %4066 = vmatpush1.msra.mxu0 %v4041
      %4067 = vmatprep.subr.mxu0 0.0
      %4068 = vmatpush1.msra.mxu0 %v4042
      %4069 = vmatprep.subr.mxu0 0.0
      %4070 = vmatpush1.msra.mxu0 %v4043
      %4071 = vmatprep.subr.mxu0 0.0
      %4072 = vmatpush1.msra.mxu0 %v4044
      %4073 = vmatprep.subr.mxu0 0.0
      %4074 = vmatpush1.msra.mxu0 %v4045
      %4075 = vmatprep.subr.mxu0 0.0
      %4076 = vmatpush1.msra.mxu0 %v4046
      %4077 = vmatprep.subr.mxu0 0.0
      %4078 = vmatpush1.msra.mxu0 %v4047
      %4079 = vmatprep.subr.mxu0 0.0
      %4080 = vmatpush1.msra.mxu0 %v4048
      %4081 = vmatprep.subr.mxu0 0.0
      %4082 = vmatpush1.msra.mxu0 0.0
      %4083 = vmatprep.subr.mxu0 0.0
      %4084 = vmatpush1.msra.mxu0 0.0
      %4085 = vmatprep.subr.mxu0 0.0
      %4086 = vmatpush1.msra.mxu0 0.0
      %4087 = vmatprep.subr.mxu0 0.0
      %4088 = vmatpush1.msra.mxu0 0.0
      %4089 = vmatprep.subr.mxu0 0.0
      %4090 = vmatpush1.msra.mxu0 0.0
      %4091 = vmatprep.subr.mxu0 0.0
      %4092 = vmatpush1.msra.mxu0 0.0
      %4093 = vmatprep.subr.mxu0 0.0
      %4094 = vmatpush1.msra.mxu0 0.0
      %4095 = vmatprep.subr.mxu0 0.0
      %4096 = vmatpush1.msra.mxu0 0.0
      %4097 = vmatprep.subr.mxu0 0.0
      %4098 = vmatpush1.msra.mxu0 0.0
      %4099 = vmatprep.subr.mxu0 0.0
      %4100 = vmatpush1.msra.mxu0 0.0
      %4101 = vmatprep.subr.mxu0 0.0
      %4102 = vmatpush1.msra.mxu0 0.0
      %4103 = vmatprep.subr.mxu0 0.0
      %4104 = vmatpush1.msra.mxu0 0.0
      %4105 = vmatprep.subr.mxu0 0.0
      %4106 = vmatpush1.msra.mxu0 0.0
      %4107 = vmatprep.subr.mxu0 0.0
      %4108 = vmatpush1.msra.mxu0 0.0
      %4109 = vmatprep.subr.mxu0 0.0
      %4110 = vmatpush1.msra.mxu0 0.0
      %4111 = vmatprep.subr.mxu0 0.0
      %4112 = vmatpush1.msra.mxu0 0.0
      %4113 = vmatprep.mubr.f32.mxu0 0.0
      %4114 = vmatmul.mubr.f32.gmra.mrb[0].mxu0 %v3020
      %v4115 = vpop.f32.mrb[0].mxu0
      %v4116 = vadd.f32 0.0, %v4115
      %v4117 = vpop.f32.mrb[0].mxu0
      %4118 = vmatprep.mubr.f32.mxu0 0.0
      %4119 = vmatmul.mubr.f32.gmra.mrb[0].mxu0 %v3021
      %v4120 = vpop.f32.mrb[0].mxu0
      %v4121 = vadd.f32 0.0, %v4120
      %v4122 = vpop.f32.mrb[0].mxu0
      %4123 = vdwg.mxu0
      %v4124 = vlaneseq
      %v4125 = vshrl.u32 %v4124, 7
      %v4126 = vsub.s32 0, %v4125
      %v4127 = vrot.slane %v4012, %v4126
      %vm4128 = vcmp.eq.s32.totalorder %v142, %v4127
      %vm4129 = vcmp.eq.s32.totalorder %v143, %v4127
      %v4130 = vsel %vm4128, %v4116, 0.0
      %v4131 = vsel %vm4129, %v4121, 0.0
      %v4132 = vadd.f32 %v3996, %v4130
      %v4133 = vadd.f32 %v3997, %v4131
      %v4134 = vadd.f32 %v4132, %v4133
      %v4135 = vrot.slane %v4134, 4
      %v4136 = vadd.f32 %v4134, %v4135
      %v4137 = vrot.slane %v4136, 2
      %v4138 = vadd.f32 %v4136, %v4137
      %v4139 = vrot.slane %v4138, 1
      %v4140 = vadd.f32 %v4138, %v4139
      %4141 = vst [vmem:[%s138 + $0x6] sm:$0x1] %v4140
      %p4142 = scmp.lt.s32.totalorder %s13, 7
      %s4143 = scalar_select %p4142, %s13, 7
      %s4144 = smul.addr %s4143, 8
      %s4145 = scalar_lea.vmem %s2, %s4144
      // Predicated region
      $region29: #{fwd.1} parent=27 // pred_check
        %p4146 = pneg %p78
      $region30: #{fwd.1} parent=27 // pred_check_branch
        %4148 = sbr.rel (%p4146) target = $region32
      $region31: #{fwd.1} parent=27 // pred_region
        _
      $region32: #{fwd.1} parent=27 // pred_fallthru
        _
    $region28: #{fwd.1} parent=5 // pred_fallthru
      _
    %p4149 = scmp.le.s32.totalorder 2, %s8
    // Predicated region
    $region33: #{fwd.1} parent=5 // pred_check
      %p4150 = pneg %p4149
    $region34: #{fwd.1} parent=5 // pred_check_branch
      %4152 = sbr.rel (%p4150) target = $region36
    $region35: #{fwd.1} parent=5 // pred_region
      %s4153 = ssub.s32 %s8, 2
      // Predicated region
      $region37: #{fwd.1} parent=35 // pred_check
        %p4154 = pneg %p84
      $region38: #{fwd.1} parent=35 // pred_check_branch
        %4156 = sbr.rel (%p4154) target = $region40
      $region39: #{fwd.1} parent=35 // pred_region
        %p4157 = scmp.lt.s32.totalorder %s14, 7
        %s4158 = scalar_select %p4157, %s14, 7
        %s4159 = smul.addr %s4158, 8
        %s4160 = scalar_lea.vmem %s2, %s4159
      $region40: #{fwd.1} parent=35 // pred_fallthru
        _
    $region36: #{fwd.1} parent=5 // pred_fallthru
      _
  $region6: #{fwd.1} parent=0 // loop_footer
    %s12 = sadd.s32 1, %s8
  $region7: #{fwd.1} parent=0 // loop_footer_branch
    %7 = sbr.rel target = $region3
  $region8: #{fwd.1} parent=0 // loop_exit
    _

</llo_original>
